<compile_context>
chip_gen: v5e
topology: v5e:2x2
jax: 0.10.0
libtpu: 0.0.40
codegen_flags: <defaults>
</compile_context>

<pallas_src>
import math

import jax
import jax.numpy as jnp
from jax.experimental import pallas as pl
from jax.experimental.pallas import tpu as pltpu

NUM_CLASSES = 10
K = 5                 # conv kernel size
IMG = 32              # input spatial size
C1IN, C1OUT = 3, 4    # conv1 channels
C2OUT = 10            # conv2 channels
P2N = 5 * 5           # pooled 5x5 positions after pool2
FLAT = C2OUT * P2N    # 250 = fc1 in_features
FC1_OUT = 100

SP = 1152             # per-image flat-spatial stride (>= 1024 + max conv1 shift, mult of 128)
IN_PAD = 768          # extra zero columns appended to the kernel input
GCOLS = 640           # per-image window used by the flatten gather matmul
MAX_CHUNK = 8         # images per fused pallas_call (bounds VMEM on v5e/v6e/v7x)


# --------------------------------------------------------------------------- #
# Fused Pallas kernel: whole forward pass for one batch chunk
# --------------------------------------------------------------------------- #
def _fused_net_kernel(x_ref, w1_ref, b1_ref, w2_ref, b2_ref, g_ref,
                      fw1_ref, fb1_ref, fw2_ref, fb2_ref,
                      o_ref, pat1_ref, pat2_ref, flat_ref):
    B = o_ref.shape[0]
    wtot = B * SP
    w_c1 = wtot + 512          # conv1 output width
    w_p1 = wtot + 384          # pool1 output width
    w_c2 = wtot                # conv2 output width
    w_p2 = wtot - 128          # pool2 output width

    # ---- conv1: im2col (rows ordered (dy, dx, ci)) + one MXU matmul + bias + ReLU
    for kk in range(K * K):
        dy, dx = kk // K, kk % K
        s = dy * IMG + dx
        pat1_ref[C1IN * kk:C1IN * kk + C1IN, :] = x_ref[:, s:s + w_c1]
    h1 = jnp.dot(w1_ref[...], pat1_ref[...], preferred_element_type=jnp.float32)
    h1 = jnp.maximum(h1 + b1_ref[...], 0.0)                      # (4, w_c1)

    # ---- pool1: 2x2 max = max of 4 shifted slices {0, 1, 32, 33}
    m1 = jnp.maximum(jnp.maximum(h1[:, 0:w_p1], h1[:, 1:1 + w_p1]),
                     jnp.maximum(h1[:, IMG:IMG + w_p1],
                                 h1[:, IMG + 1:IMG + 1 + w_p1]))  # (4, w_p1)

    # ---- conv2 on the stride-2 grid: shifts are 64*dy + 2*dx
    for kk in range(K * K):
        dy, dx = kk // K, kk % K
        s = 2 * IMG * dy + 2 * dx
        pat2_ref[C1OUT * kk:C1OUT * kk + C1OUT, :] = m1[:, s:s + w_c2]
    h2 = jnp.dot(w2_ref[...], pat2_ref[...], preferred_element_type=jnp.float32)
    h2 = jnp.maximum(h2 + b2_ref[...], 0.0)                      # (10, w_c2)

    # ---- pool2: shifts {0, 2, 64, 66} on the stride-2 grid
    m2 = jnp.maximum(jnp.maximum(h2[:, 0:w_p2], h2[:, 2:2 + w_p2]),
                     jnp.maximum(h2[:, 2 * IMG:2 * IMG + w_p2],
                                 h2[:, 2 * IMG + 2:2 * IMG + 2 + w_p2]))  # (10, w_p2)

    # ---- flatten in torch NCHW order: gather the 25 valid pooled positions per image
    for b in range(B):
        blk = m2[:, b * SP:b * SP + GCOLS]                       # (10, 640)
        q = jnp.dot(blk, g_ref[...], preferred_element_type=jnp.float32)  # (10, 25)
        for c in range(C2OUT):
            flat_ref[b:b + 1, c * P2N:(c + 1) * P2N] = q[c:c + 1, :]

    # ---- fc1 + ReLU + fc2 + log_softmax, whole batch on the MXU
    f = flat_ref[...]                                            # (B, 250)
    z1 = jnp.dot(f, fw1_ref[...], preferred_element_type=jnp.float32) + fb1_ref[...]
    z1 = jnp.maximum(z1, 0.0)
    logits = jnp.dot(z1, fw2_ref[...], preferred_element_type=jnp.float32) + fb2_ref[...]
    mx = jnp.max(logits, axis=1, keepdims=True)
    z = logits - mx
    lse = jnp.log(jnp.sum(jnp.exp(z), axis=1, keepdims=True))
    o_ref[...] = z - lse


# --------------------------------------------------------------------------- #
# Wrapper: layout prep + pallas_call
# --------------------------------------------------------------------------- #
def _gather_matrix():
    """(640, 25) 0/1 matrix selecting pooled positions 128*y3 + 4*x3 -> y3*5+x3."""
    q = jnp.arange(P2N)
    cols = 4 * IMG * (q // 5) + 4 * (q % 5)
    return (jnp.arange(GCOLS)[:, None] == cols[None, :]).astype(jnp.float32)


def _prep_params(p):
    """Torch-layout params -> kernel-layout operands."""
    return dict(
        w1m=jnp.transpose(p["conv1_w"], (0, 2, 3, 1)).reshape(C1OUT, K * K * C1IN),
        b1=p["conv1_b"].reshape(C1OUT, 1),
        w2m=jnp.transpose(p["conv2_w"], (0, 2, 3, 1)).reshape(C2OUT, K * K * C1OUT),
        b2=p["conv2_b"].reshape(C2OUT, 1),
        fw1=p["fc1_w"].T,                    # (250, 100)
        fb1=p["fc1_b"].reshape(1, -1),
        fw2=p["fc2_w"].T,                    # (100, 10)
        fb2=p["fc2_b"].reshape(1, -1),
        g=_gather_matrix(),
    )


def _prep_input(x_nhwc):
    """NHWC (B,32,32,3) -> lane-dense (3, B*1152 + 768) flat layout (mirrors torch permute)."""
    bc = x_nhwc.shape[0]
    x = jnp.transpose(x_nhwc, (0, 3, 1, 2))          # NCHW (torch permute(0,3,1,2))
    x = jnp.transpose(x, (1, 0, 2, 3)).reshape(C1IN, bc, IMG * IMG)
    x = jnp.pad(x, ((0, 0), (0, 0), (0, SP - IMG * IMG)))
    x = x.reshape(C1IN, bc * SP)
    return jnp.pad(x, ((0, 0), (0, IN_PAD)))


def _fused_forward(kp, x_nhwc):
    bc = x_nhwc.shape[0]
    wtot = bc * SP
    x2d = _prep_input(x_nhwc)
    vmem = pl.BlockSpec(memory_space=pltpu.MemorySpace.VMEM)
    return pl.pallas_call(
        _fused_net_kernel,
        out_shape=jax.ShapeDtypeStruct((bc, NUM_CLASSES), jnp.float32),
        in_specs=[vmem] * 10,
        out_specs=vmem,
        scratch_shapes=[
            pltpu.VMEM((K * K * C1IN, wtot + 512), jnp.float32),   # conv1 im2col patches
            pltpu.VMEM((K * K * C1OUT, wtot), jnp.float32),        # conv2 im2col patches
            pltpu.VMEM((bc, FLAT), jnp.float32),                   # NCHW-flattened features
        ],
        compiler_params=pltpu.CompilerParams(vmem_limit_bytes=48 * 1024 * 1024),
    )(x2d, kp["w1m"], kp["b1"], kp["w2m"], kp["b2"], kp["g"],
      kp["fw1"], kp["fb1"], kp["fw2"], kp["fb2"])


# --------------------------------------------------------------------------- #
# Forward passes (mirror of the torch module)
# --------------------------------------------------------------------------- #
def training_pass(params, x_nhwc):
    kp = _prep_params(params)
    outs = []
    for s in range(0, x_nhwc.shape[0], MAX_CHUNK):
        outs.append(_fused_forward(kp, x_nhwc[s:s + MAX_CHUNK]))
    return outs[0] if len(outs) == 1 else jnp.concatenate(outs, axis=0)


def inference_pass(params, x, num, batch_size, key):
    """Randomized-smoothing vote frequencies (matches Net._inference_pass semantics)."""
    samples = math.ceil(num / batch_size)
    reps, remaining = [], num
    for _ in range(samples):
        this_bs = min(batch_size, remaining)
        remaining -= this_bs
        reps.append(jnp.tile(x, (this_bs, 1, 1, 1)))
    big = jnp.concatenate(reps, axis=0)                      # all noisy samples, one batch
    noise = jax.random.normal(key, big.shape, dtype=big.dtype) * 0.1
    logp = training_pass(params, big + noise)
    preds = jnp.argmax(logp, axis=1)
    counts = jnp.bincount(preds, length=NUM_CLASSES)
    return counts.astype(jnp.float32) / samples


def net_forward(params, x, *, training, key=None):
    if training:
        return training_pass(params, x)
    return inference_pass(params, x, num=3, batch_size=x.shape[0], key=key)


# --------------------------------------------------------------------------- #
# Pure-JAX reference (for correctness check) and synthetic parameters
# --------------------------------------------------------------------------- #
def _reference_forward(params, x_nhwc):
    hi = jax.lax.Precision.HIGHEST
    x = jnp.transpose(x_nhwc, (0, 3, 1, 2))
    h = jax.lax.conv_general_dilated(x, params["conv1_w"], (1, 1), "VALID",
                                     dimension_numbers=("NCHW", "OIHW", "NCHW"),
                                     precision=hi)
    h = jnp.maximum(h + params["conv1_b"][None, :, None, None], 0.0)
    h = jax.lax.reduce_window(h, -jnp.inf, jax.lax.max, (1, 1, 2, 2), (1, 1, 2, 2), "VALID")
    h = jax.lax.conv_general_dilated(h, params["conv2_w"], (1, 1), "VALID",
                                     dimension_numbers=("NCHW", "OIHW", "NCHW"),
                                     precision=hi)
    h = jnp.maximum(h + params["conv2_b"][None, :, None, None], 0.0)
    h = jax.lax.reduce_window(h, -jnp.inf, jax.lax.max, (1, 1, 2, 2), (1, 1, 2, 2), "VALID")
    f = h.reshape(h.shape[0], -1)
    z1 = jnp.maximum(jnp.dot(f, params["fc1_w"].T, precision=hi) + params["fc1_b"], 0.0)
    logits = jnp.dot(z1, params["fc2_w"].T, precision=hi) + params["fc2_b"]
    return jax.nn.log_softmax(logits, axis=1)


def init_params(key):
    ks = jax.random.split(key, 8)

    def u(k, shape, fan_in):
        bound = 1.0 / math.sqrt(fan_in)
        return jax.random.uniform(k, shape, jnp.float32, -bound, bound)

    return dict(
        conv1_w=u(ks[0], (C1OUT, C1IN, K, K), C1IN * K * K),
        conv1_b=u(ks[1], (C1OUT,), C1IN * K * K),
        conv2_w=u(ks[2], (C2OUT, C1OUT, K, K), C1OUT * K * K),
        conv2_b=u(ks[3], (C2OUT,), C1OUT * K * K),
        fc1_w=u(ks[4], (FC1_OUT, FLAT), FLAT),
        fc1_b=u(ks[5], (FC1_OUT,), FLAT),
        fc2_w=u(ks[6], (NUM_CLASSES, FC1_OUT), FC1_OUT),
        fc2_b=u(ks[7], (NUM_CLASSES,), FC1_OUT),
    )


# --------------------------------------------------------------------------- #
if __name__ == "__main__":
    root = jax.random.PRNGKey(0)
    k_x, k_p, k_n = jax.random.split(root, 3)

    params = init_params(k_p)
    # fc1 in_features=250 forces 32x32x3 (CIFAR) inputs; batch kept small.
    x = jax.random.normal(k_x, (2, IMG, IMG, C1IN), jnp.float32)   # NHWC

    # training-mode forward: per-sample log-softmax, shape (2, 10)
    logp = jax.block_until_ready(net_forward(params, x, training=True))
    assert logp.shape == (2, NUM_CLASSES)
    assert bool(jnp.all(jnp.abs(jnp.exp(logp).sum(axis=1) - 1.0) < 1e-3))

    # cross-check the fused Pallas forward against a pure-JAX reference
    ref = jax.block_until_ready(_reference_forward(params, x))
    assert float(jnp.max(jnp.abs(logp - ref))) < 5e-2

    # eval-mode forward: smoothed-inference class frequencies, shape (10,)
    freqs = jax.block_until_ready(net_forward(params, x, training=False, key=k_n))
    assert freqs.shape == (NUM_CLASSES,)
    assert abs(float(freqs.sum()) - 3.0) < 1e-5   # 6 votes / 2 sample rounds

    print("KERNEL_OK")
</pallas_src>

<mosaic_0001>
module attributes {stable_mosaic.version = 11 : i64} {
  func.func @_fused_net_kernel(%arg0: memref<3x3072xf32, #tpu.memory_space<vmem>>, %arg1: memref<4x75xf32, #tpu.memory_space<vmem>>, %arg2: memref<4x1xf32, #tpu.memory_space<vmem>>, %arg3: memref<10x100xf32, #tpu.memory_space<vmem>>, %arg4: memref<10x1xf32, #tpu.memory_space<vmem>>, %arg5: memref<640x25xf32, #tpu.memory_space<vmem>>, %arg6: memref<250x100xf32, #tpu.memory_space<vmem>>, %arg7: memref<1x100xf32, #tpu.memory_space<vmem>>, %arg8: memref<100x10xf32, #tpu.memory_space<vmem>>, %arg9: memref<1x10xf32, #tpu.memory_space<vmem>>, %arg10: memref<2x10xf32, #tpu.memory_space<vmem>>, %arg11: memref<75x2816xf32, #tpu.memory_space<vmem>>, %arg12: memref<100x2304xf32, #tpu.memory_space<vmem>>, %arg13: memref<2x250xf32, #tpu.memory_space<vmem>>) attributes {dimension_semantics = [], scalar_prefetch = 0 : i64, scratch_operands = 3 : i64, tpu.core_type = #tpu.core_type<tc>} {
    %c0 = arith.constant 0 : index
    %c0_0 = arith.constant 0 : index
    %0 = vector.load %arg0[%c0, %c0_0] : memref<3x3072xf32, #tpu.memory_space<vmem>>, vector<3x2816xf32>
    %c0_1 = arith.constant 0 : index
    %c0_2 = arith.constant 0 : index
    %1 = vector.load %arg11[%c0_1, %c0_2] : memref<75x2816xf32, #tpu.memory_space<vmem>>, vector<3x2816xf32>
    tpu.vector_store %arg11[%c0_1, %c0_2], %0 {strides = array<i32>} : memref<75x2816xf32, #tpu.memory_space<vmem>>, vector<3x2816xf32>,
    %c0_3 = arith.constant 0 : index
    %c1 = arith.constant 1 : index
    %2 = vector.load %arg0[%c0_3, %c1] : memref<3x3072xf32, #tpu.memory_space<vmem>>, vector<3x2816xf32>
    %c3 = arith.constant 3 : index
    %c0_4 = arith.constant 0 : index
    %3 = vector.load %arg11[%c3, %c0_4] : memref<75x2816xf32, #tpu.memory_space<vmem>>, vector<3x2816xf32>
    tpu.vector_store %arg11[%c3, %c0_4], %2 {strides = array<i32>} : memref<75x2816xf32, #tpu.memory_space<vmem>>, vector<3x2816xf32>,
    %c0_5 = arith.constant 0 : index
    %c2 = arith.constant 2 : index
    %4 = vector.load %arg0[%c0_5, %c2] : memref<3x3072xf32, #tpu.memory_space<vmem>>, vector<3x2816xf32>
    %c6 = arith.constant 6 : index
    %c0_6 = arith.constant 0 : index
    %5 = vector.load %arg11[%c6, %c0_6] : memref<75x2816xf32, #tpu.memory_space<vmem>>, vector<3x2816xf32>
    tpu.vector_store %arg11[%c6, %c0_6], %4 {strides = array<i32>} : memref<75x2816xf32, #tpu.memory_space<vmem>>, vector<3x2816xf32>,
    %c0_7 = arith.constant 0 : index
    %c3_8 = arith.constant 3 : index
    %6 = vector.load %arg0[%c0_7, %c3_8] : memref<3x3072xf32, #tpu.memory_space<vmem>>, vector<3x2816xf32>
    %c9 = arith.constant 9 : index
    %c0_9 = arith.constant 0 : index
    %7 = vector.load %arg11[%c9, %c0_9] : memref<75x2816xf32, #tpu.memory_space<vmem>>, vector<3x2816xf32>
    tpu.vector_store %arg11[%c9, %c0_9], %6 {strides = array<i32>} : memref<75x2816xf32, #tpu.memory_space<vmem>>, vector<3x2816xf32>,
    %c0_10 = arith.constant 0 : index
    %c4 = arith.constant 4 : index
    %8 = vector.load %arg0[%c0_10, %c4] : memref<3x3072xf32, #tpu.memory_space<vmem>>, vector<3x2816xf32>
    %c12 = arith.constant 12 : index
    %c0_11 = arith.constant 0 : index
    %9 = vector.load %arg11[%c12, %c0_11] : memref<75x2816xf32, #tpu.memory_space<vmem>>, vector<3x2816xf32>
    tpu.vector_store %arg11[%c12, %c0_11], %8 {strides = array<i32>} : memref<75x2816xf32, #tpu.memory_space<vmem>>, vector<3x2816xf32>,
    %c0_12 = arith.constant 0 : index
    %c32 = arith.constant 32 : index
    %10 = vector.load %arg0[%c0_12, %c32] : memref<3x3072xf32, #tpu.memory_space<vmem>>, vector<3x2816xf32>
    %c15 = arith.constant 15 : index
    %c0_13 = arith.constant 0 : index
    %11 = vector.load %arg11[%c15, %c0_13] : memref<75x2816xf32, #tpu.memory_space<vmem>>, vector<3x2816xf32>
    tpu.vector_store %arg11[%c15, %c0_13], %10 {strides = array<i32>} : memref<75x2816xf32, #tpu.memory_space<vmem>>, vector<3x2816xf32>,
    %c0_14 = arith.constant 0 : index
    %c33 = arith.constant 33 : index
    %12 = vector.load %arg0[%c0_14, %c33] : memref<3x3072xf32, #tpu.memory_space<vmem>>, vector<3x2816xf32>
    %c18 = arith.constant 18 : index
    %c0_15 = arith.constant 0 : index
    %13 = vector.load %arg11[%c18, %c0_15] : memref<75x2816xf32, #tpu.memory_space<vmem>>, vector<3x2816xf32>
    tpu.vector_store %arg11[%c18, %c0_15], %12 {strides = array<i32>} : memref<75x2816xf32, #tpu.memory_space<vmem>>, vector<3x2816xf32>,
    %c0_16 = arith.constant 0 : index
    %c34 = arith.constant 34 : index
    %14 = vector.load %arg0[%c0_16, %c34] : memref<3x3072xf32, #tpu.memory_space<vmem>>, vector<3x2816xf32>
    %c21 = arith.constant 21 : index
    %c0_17 = arith.constant 0 : index
    %15 = vector.load %arg11[%c21, %c0_17] : memref<75x2816xf32, #tpu.memory_space<vmem>>, vector<3x2816xf32>
    tpu.vector_store %arg11[%c21, %c0_17], %14 {strides = array<i32>} : memref<75x2816xf32, #tpu.memory_space<vmem>>, vector<3x2816xf32>,
    %c0_18 = arith.constant 0 : index
    %c35 = arith.constant 35 : index
    %16 = vector.load %arg0[%c0_18, %c35] : memref<3x3072xf32, #tpu.memory_space<vmem>>, vector<3x2816xf32>
    %c24 = arith.constant 24 : index
    %c0_19 = arith.constant 0 : index
    %17 = vector.load %arg11[%c24, %c0_19] : memref<75x2816xf32, #tpu.memory_space<vmem>>, vector<3x2816xf32>
    tpu.vector_store %arg11[%c24, %c0_19], %16 {strides = array<i32>} : memref<75x2816xf32, #tpu.memory_space<vmem>>, vector<3x2816xf32>,
    %c0_20 = arith.constant 0 : index
    %c36 = arith.constant 36 : index
    %18 = vector.load %arg0[%c0_20, %c36] : memref<3x3072xf32, #tpu.memory_space<vmem>>, vector<3x2816xf32>
    %c27 = arith.constant 27 : index
    %c0_21 = arith.constant 0 : index
    %19 = vector.load %arg11[%c27, %c0_21] : memref<75x2816xf32, #tpu.memory_space<vmem>>, vector<3x2816xf32>
    tpu.vector_store %arg11[%c27, %c0_21], %18 {strides = array<i32>} : memref<75x2816xf32, #tpu.memory_space<vmem>>, vector<3x2816xf32>,
    %c0_22 = arith.constant 0 : index
    %c64 = arith.constant 64 : index
    %20 = vector.load %arg0[%c0_22, %c64] : memref<3x3072xf32, #tpu.memory_space<vmem>>, vector<3x2816xf32>
    %c30 = arith.constant 30 : index
    %c0_23 = arith.constant 0 : index
    %21 = vector.load %arg11[%c30, %c0_23] : memref<75x2816xf32, #tpu.memory_space<vmem>>, vector<3x2816xf32>
    tpu.vector_store %arg11[%c30, %c0_23], %20 {strides = array<i32>} : memref<75x2816xf32, #tpu.memory_space<vmem>>, vector<3x2816xf32>,
    %c0_24 = arith.constant 0 : index
    %c65 = arith.constant 65 : index
    %22 = vector.load %arg0[%c0_24, %c65] : memref<3x3072xf32, #tpu.memory_space<vmem>>, vector<3x2816xf32>
    %c33_25 = arith.constant 33 : index
    %c0_26 = arith.constant 0 : index
    %23 = vector.load %arg11[%c33_25, %c0_26] : memref<75x2816xf32, #tpu.memory_space<vmem>>, vector<3x2816xf32>
    tpu.vector_store %arg11[%c33_25, %c0_26], %22 {strides = array<i32>} : memref<75x2816xf32, #tpu.memory_space<vmem>>, vector<3x2816xf32>,
    %c0_27 = arith.constant 0 : index
    %c66 = arith.constant 66 : index
    %24 = vector.load %arg0[%c0_27, %c66] : memref<3x3072xf32, #tpu.memory_space<vmem>>, vector<3x2816xf32>
    %c36_28 = arith.constant 36 : index
    %c0_29 = arith.constant 0 : index
    %25 = vector.load %arg11[%c36_28, %c0_29] : memref<75x2816xf32, #tpu.memory_space<vmem>>, vector<3x2816xf32>
    tpu.vector_store %arg11[%c36_28, %c0_29], %24 {strides = array<i32>} : memref<75x2816xf32, #tpu.memory_space<vmem>>, vector<3x2816xf32>,
    %c0_30 = arith.constant 0 : index
    %c67 = arith.constant 67 : index
    %26 = vector.load %arg0[%c0_30, %c67] : memref<3x3072xf32, #tpu.memory_space<vmem>>, vector<3x2816xf32>
    %c39 = arith.constant 39 : index
    %c0_31 = arith.constant 0 : index
    %27 = vector.load %arg11[%c39, %c0_31] : memref<75x2816xf32, #tpu.memory_space<vmem>>, vector<3x2816xf32>
    tpu.vector_store %arg11[%c39, %c0_31], %26 {strides = array<i32>} : memref<75x2816xf32, #tpu.memory_space<vmem>>, vector<3x2816xf32>,
    %c0_32 = arith.constant 0 : index
    %c68 = arith.constant 68 : index
    %28 = vector.load %arg0[%c0_32, %c68] : memref<3x3072xf32, #tpu.memory_space<vmem>>, vector<3x2816xf32>
    %c42 = arith.constant 42 : index
    %c0_33 = arith.constant 0 : index
    %29 = vector.load %arg11[%c42, %c0_33] : memref<75x2816xf32, #tpu.memory_space<vmem>>, vector<3x2816xf32>
    tpu.vector_store %arg11[%c42, %c0_33], %28 {strides = array<i32>} : memref<75x2816xf32, #tpu.memory_space<vmem>>, vector<3x2816xf32>,
    %c0_34 = arith.constant 0 : index
    %c96 = arith.constant 96 : index
    %30 = vector.load %arg0[%c0_34, %c96] : memref<3x3072xf32, #tpu.memory_space<vmem>>, vector<3x2816xf32>
    %c45 = arith.constant 45 : index
    %c0_35 = arith.constant 0 : index
    %31 = vector.load %arg11[%c45, %c0_35] : memref<75x2816xf32, #tpu.memory_space<vmem>>, vector<3x2816xf32>
    tpu.vector_store %arg11[%c45, %c0_35], %30 {strides = array<i32>} : memref<75x2816xf32, #tpu.memory_space<vmem>>, vector<3x2816xf32>,
    %c0_36 = arith.constant 0 : index
    %c97 = arith.constant 97 : index
    %32 = vector.load %arg0[%c0_36, %c97] : memref<3x3072xf32, #tpu.memory_space<vmem>>, vector<3x2816xf32>
    %c48 = arith.constant 48 : index
    %c0_37 = arith.constant 0 : index
    %33 = vector.load %arg11[%c48, %c0_37] : memref<75x2816xf32, #tpu.memory_space<vmem>>, vector<3x2816xf32>
    tpu.vector_store %arg11[%c48, %c0_37], %32 {strides = array<i32>} : memref<75x2816xf32, #tpu.memory_space<vmem>>, vector<3x2816xf32>,
    %c0_38 = arith.constant 0 : index
    %c98 = arith.constant 98 : index
    %34 = vector.load %arg0[%c0_38, %c98] : memref<3x3072xf32, #tpu.memory_space<vmem>>, vector<3x2816xf32>
    %c51 = arith.constant 51 : index
    %c0_39 = arith.constant 0 : index
    %35 = vector.load %arg11[%c51, %c0_39] : memref<75x2816xf32, #tpu.memory_space<vmem>>, vector<3x2816xf32>
    tpu.vector_store %arg11[%c51, %c0_39], %34 {strides = array<i32>} : memref<75x2816xf32, #tpu.memory_space<vmem>>, vector<3x2816xf32>,
    %c0_40 = arith.constant 0 : index
    %c99 = arith.constant 99 : index
    %36 = vector.load %arg0[%c0_40, %c99] : memref<3x3072xf32, #tpu.memory_space<vmem>>, vector<3x2816xf32>
    %c54 = arith.constant 54 : index
    %c0_41 = arith.constant 0 : index
    %37 = vector.load %arg11[%c54, %c0_41] : memref<75x2816xf32, #tpu.memory_space<vmem>>, vector<3x2816xf32>
    tpu.vector_store %arg11[%c54, %c0_41], %36 {strides = array<i32>} : memref<75x2816xf32, #tpu.memory_space<vmem>>, vector<3x2816xf32>,
    %c0_42 = arith.constant 0 : index
    %c100 = arith.constant 100 : index
    %38 = vector.load %arg0[%c0_42, %c100] : memref<3x3072xf32, #tpu.memory_space<vmem>>, vector<3x2816xf32>
    %c57 = arith.constant 57 : index
    %c0_43 = arith.constant 0 : index
    %39 = vector.load %arg11[%c57, %c0_43] : memref<75x2816xf32, #tpu.memory_space<vmem>>, vector<3x2816xf32>
    tpu.vector_store %arg11[%c57, %c0_43], %38 {strides = array<i32>} : memref<75x2816xf32, #tpu.memory_space<vmem>>, vector<3x2816xf32>,
    %c0_44 = arith.constant 0 : index
    %c128 = arith.constant 128 : index
    %40 = vector.load %arg0[%c0_44, %c128] : memref<3x3072xf32, #tpu.memory_space<vmem>>, vector<3x2816xf32>
    %c60 = arith.constant 60 : index
    %c0_45 = arith.constant 0 : index
    %41 = vector.load %arg11[%c60, %c0_45] : memref<75x2816xf32, #tpu.memory_space<vmem>>, vector<3x2816xf32>
    tpu.vector_store %arg11[%c60, %c0_45], %40 {strides = array<i32>} : memref<75x2816xf32, #tpu.memory_space<vmem>>, vector<3x2816xf32>,
    %c0_46 = arith.constant 0 : index
    %c129 = arith.constant 129 : index
    %42 = vector.load %arg0[%c0_46, %c129] : memref<3x3072xf32, #tpu.memory_space<vmem>>, vector<3x2816xf32>
    %c63 = arith.constant 63 : index
    %c0_47 = arith.constant 0 : index
    %43 = vector.load %arg11[%c63, %c0_47] : memref<75x2816xf32, #tpu.memory_space<vmem>>, vector<3x2816xf32>
    tpu.vector_store %arg11[%c63, %c0_47], %42 {strides = array<i32>} : memref<75x2816xf32, #tpu.memory_space<vmem>>, vector<3x2816xf32>,
    %c0_48 = arith.constant 0 : index
    %c130 = arith.constant 130 : index
    %44 = vector.load %arg0[%c0_48, %c130] : memref<3x3072xf32, #tpu.memory_space<vmem>>, vector<3x2816xf32>
    %c66_49 = arith.constant 66 : index
    %c0_50 = arith.constant 0 : index
    %45 = vector.load %arg11[%c66_49, %c0_50] : memref<75x2816xf32, #tpu.memory_space<vmem>>, vector<3x2816xf32>
    tpu.vector_store %arg11[%c66_49, %c0_50], %44 {strides = array<i32>} : memref<75x2816xf32, #tpu.memory_space<vmem>>, vector<3x2816xf32>,
    %c0_51 = arith.constant 0 : index
    %c131 = arith.constant 131 : index
    %46 = vector.load %arg0[%c0_51, %c131] : memref<3x3072xf32, #tpu.memory_space<vmem>>, vector<3x2816xf32>
    %c69 = arith.constant 69 : index
    %c0_52 = arith.constant 0 : index
    %47 = vector.load %arg11[%c69, %c0_52] : memref<75x2816xf32, #tpu.memory_space<vmem>>, vector<3x2816xf32>
    tpu.vector_store %arg11[%c69, %c0_52], %46 {strides = array<i32>} : memref<75x2816xf32, #tpu.memory_space<vmem>>, vector<3x2816xf32>,
    %c0_53 = arith.constant 0 : index
    %c132 = arith.constant 132 : index
    %48 = vector.load %arg0[%c0_53, %c132] : memref<3x3072xf32, #tpu.memory_space<vmem>>, vector<3x2816xf32>
    %c72 = arith.constant 72 : index
    %c0_54 = arith.constant 0 : index
    %49 = vector.load %arg11[%c72, %c0_54] : memref<75x2816xf32, #tpu.memory_space<vmem>>, vector<3x2816xf32>
    tpu.vector_store %arg11[%c72, %c0_54], %48 {strides = array<i32>} : memref<75x2816xf32, #tpu.memory_space<vmem>>, vector<3x2816xf32>,
    %c0_55 = arith.constant 0 : index
    %c0_56 = arith.constant 0 : index
    %50 = vector.load %arg1[%c0_55, %c0_56] : memref<4x75xf32, #tpu.memory_space<vmem>>, vector<4x75xf32>
    %c0_57 = arith.constant 0 : index
    %c0_58 = arith.constant 0 : index
    %51 = vector.load %arg11[%c0_57, %c0_58] : memref<75x2816xf32, #tpu.memory_space<vmem>>, vector<75x2816xf32>
    %cst = arith.constant dense<0.000000e+00> : vector<4x2816xf32>
    %52 = tpu.matmul %50, %51, %cst {dimension_numbers = #tpu.dot_dimension_numbers<[1], [0], [0], [1], [0, 0, 1, 1], [], []>} : vector<4x75xf32>, vector<75x2816xf32>, vector<4x2816xf32> -> vector<4x2816xf32>
    %c0_59 = arith.constant 0 : index
    %c0_60 = arith.constant 0 : index
    %53 = vector.load %arg2[%c0_59, %c0_60] : memref<4x1xf32, #tpu.memory_space<vmem>>, vector<4x1xf32>
    %54 = vector.broadcast %53 : vector<4x1xf32> to vector<4x2816xf32>
    %55 = arith.addf %52, %54 : vector<4x2816xf32>
    %cst_61 = arith.constant 0.000000e+00 : f32
    %56 = vector.broadcast %cst_61 : f32 to vector<4x2816xf32>
    %57 = arith.maximumf %55, %56 : vector<4x2816xf32>
    %58 = vector.extract_strided_slice %57 {offsets = [0, 0], sizes = [4, 2688], strides = [1, 1]} : vector<4x2816xf32> to vector<4x2688xf32>
    %59 = vector.extract_strided_slice %57 {offsets = [0, 1], sizes = [4, 2688], strides = [1, 1]} : vector<4x2816xf32> to vector<4x2688xf32>
    %60 = arith.maximumf %58, %59 : vector<4x2688xf32>
    %61 = vector.extract_strided_slice %57 {offsets = [0, 32], sizes = [4, 2688], strides = [1, 1]} : vector<4x2816xf32> to vector<4x2688xf32>
    %62 = vector.extract_strided_slice %57 {offsets = [0, 33], sizes = [4, 2688], strides = [1, 1]} : vector<4x2816xf32> to vector<4x2688xf32>
    %63 = arith.maximumf %61, %62 : vector<4x2688xf32>
    %64 = arith.maximumf %60, %63 : vector<4x2688xf32>
    %65 = vector.extract_strided_slice %64 {offsets = [0, 0], sizes = [4, 2304], strides = [1, 1]} : vector<4x2688xf32> to vector<4x2304xf32>
    %c0_62 = arith.constant 0 : index
    %c0_63 = arith.constant 0 : index
    %66 = vector.load %arg12[%c0_62, %c0_63] : memref<100x2304xf32, #tpu.memory_space<vmem>>, vector<4x2304xf32>
    tpu.vector_store %arg12[%c0_62, %c0_63], %65 {strides = array<i32>} : memref<100x2304xf32, #tpu.memory_space<vmem>>, vector<4x2304xf32>,
    %67 = vector.extract_strided_slice %64 {offsets = [0, 2], sizes = [4, 2304], strides = [1, 1]} : vector<4x2688xf32> to vector<4x2304xf32>
    %c4_64 = arith.constant 4 : index
    %c0_65 = arith.constant 0 : index
    %68 = vector.load %arg12[%c4_64, %c0_65] : memref<100x2304xf32, #tpu.memory_space<vmem>>, vector<4x2304xf32>
    tpu.vector_store %arg12[%c4_64, %c0_65], %67 {strides = array<i32>} : memref<100x2304xf32, #tpu.memory_space<vmem>>, vector<4x2304xf32>,
    %69 = vector.extract_strided_slice %64 {offsets = [0, 4], sizes = [4, 2304], strides = [1, 1]} : vector<4x2688xf32> to vector<4x2304xf32>
    %c8 = arith.constant 8 : index
    %c0_66 = arith.constant 0 : index
    %70 = vector.load %arg12[%c8, %c0_66] : memref<100x2304xf32, #tpu.memory_space<vmem>>, vector<4x2304xf32>
    tpu.vector_store %arg12[%c8, %c0_66], %69 {strides = array<i32>} : memref<100x2304xf32, #tpu.memory_space<vmem>>, vector<4x2304xf32>,
    %71 = vector.extract_strided_slice %64 {offsets = [0, 6], sizes = [4, 2304], strides = [1, 1]} : vector<4x2688xf32> to vector<4x2304xf32>
    %c12_67 = arith.constant 12 : index
    %c0_68 = arith.constant 0 : index
    %72 = vector.load %arg12[%c12_67, %c0_68] : memref<100x2304xf32, #tpu.memory_space<vmem>>, vector<4x2304xf32>
    tpu.vector_store %arg12[%c12_67, %c0_68], %71 {strides = array<i32>} : memref<100x2304xf32, #tpu.memory_space<vmem>>, vector<4x2304xf32>,
    %73 = vector.extract_strided_slice %64 {offsets = [0, 8], sizes = [4, 2304], strides = [1, 1]} : vector<4x2688xf32> to vector<4x2304xf32>
    %c16 = arith.constant 16 : index
    %c0_69 = arith.constant 0 : index
    %74 = vector.load %arg12[%c16, %c0_69] : memref<100x2304xf32, #tpu.memory_space<vmem>>, vector<4x2304xf32>
    tpu.vector_store %arg12[%c16, %c0_69], %73 {strides = array<i32>} : memref<100x2304xf32, #tpu.memory_space<vmem>>, vector<4x2304xf32>,
    %75 = vector.extract_strided_slice %64 {offsets = [0, 64], sizes = [4, 2304], strides = [1, 1]} : vector<4x2688xf32> to vector<4x2304xf32>
    %c20 = arith.constant 20 : index
    %c0_70 = arith.constant 0 : index
    %76 = vector.load %arg12[%c20, %c0_70] : memref<100x2304xf32, #tpu.memory_space<vmem>>, vector<4x2304xf32>
    tpu.vector_store %arg12[%c20, %c0_70], %75 {strides = array<i32>} : memref<100x2304xf32, #tpu.memory_space<vmem>>, vector<4x2304xf32>,
    %77 = vector.extract_strided_slice %64 {offsets = [0, 66], sizes = [4, 2304], strides = [1, 1]} : vector<4x2688xf32> to vector<4x2304xf32>
    %c24_71 = arith.constant 24 : index
    %c0_72 = arith.constant 0 : index
    %78 = vector.load %arg12[%c24_71, %c0_72] : memref<100x2304xf32, #tpu.memory_space<vmem>>, vector<4x2304xf32>
    tpu.vector_store %arg12[%c24_71, %c0_72], %77 {strides = array<i32>} : memref<100x2304xf32, #tpu.memory_space<vmem>>, vector<4x2304xf32>,
    %79 = vector.extract_strided_slice %64 {offsets = [0, 68], sizes = [4, 2304], strides = [1, 1]} : vector<4x2688xf32> to vector<4x2304xf32>
    %c28 = arith.constant 28 : index
    %c0_73 = arith.constant 0 : index
    %80 = vector.load %arg12[%c28, %c0_73] : memref<100x2304xf32, #tpu.memory_space<vmem>>, vector<4x2304xf32>
    tpu.vector_store %arg12[%c28, %c0_73], %79 {strides = array<i32>} : memref<100x2304xf32, #tpu.memory_space<vmem>>, vector<4x2304xf32>,
    %81 = vector.extract_strided_slice %64 {offsets = [0, 70], sizes = [4, 2304], strides = [1, 1]} : vector<4x2688xf32> to vector<4x2304xf32>
    %c32_74 = arith.constant 32 : index
    %c0_75 = arith.constant 0 : index
    %82 = vector.load %arg12[%c32_74, %c0_75] : memref<100x2304xf32, #tpu.memory_space<vmem>>, vector<4x2304xf32>
    tpu.vector_store %arg12[%c32_74, %c0_75], %81 {strides = array<i32>} : memref<100x2304xf32, #tpu.memory_space<vmem>>, vector<4x2304xf32>,
    %83 = vector.extract_strided_slice %64 {offsets = [0, 72], sizes = [4, 2304], strides = [1, 1]} : vector<4x2688xf32> to vector<4x2304xf32>
    %c36_76 = arith.constant 36 : index
    %c0_77 = arith.constant 0 : index
    %84 = vector.load %arg12[%c36_76, %c0_77] : memref<100x2304xf32, #tpu.memory_space<vmem>>, vector<4x2304xf32>
    tpu.vector_store %arg12[%c36_76, %c0_77], %83 {strides = array<i32>} : memref<100x2304xf32, #tpu.memory_space<vmem>>, vector<4x2304xf32>,
    %85 = vector.extract_strided_slice %64 {offsets = [0, 128], sizes = [4, 2304], strides = [1, 1]} : vector<4x2688xf32> to vector<4x2304xf32>
    %c40 = arith.constant 40 : index
    %c0_78 = arith.constant 0 : index
    %86 = vector.load %arg12[%c40, %c0_78] : memref<100x2304xf32, #tpu.memory_space<vmem>>, vector<4x2304xf32>
    tpu.vector_store %arg12[%c40, %c0_78], %85 {strides = array<i32>} : memref<100x2304xf32, #tpu.memory_space<vmem>>, vector<4x2304xf32>,
    %87 = vector.extract_strided_slice %64 {offsets = [0, 130], sizes = [4, 2304], strides = [1, 1]} : vector<4x2688xf32> to vector<4x2304xf32>
    %c44 = arith.constant 44 : index
    %c0_79 = arith.constant 0 : index
    %88 = vector.load %arg12[%c44, %c0_79] : memref<100x2304xf32, #tpu.memory_space<vmem>>, vector<4x2304xf32>
    tpu.vector_store %arg12[%c44, %c0_79], %87 {strides = array<i32>} : memref<100x2304xf32, #tpu.memory_space<vmem>>, vector<4x2304xf32>,
    %89 = vector.extract_strided_slice %64 {offsets = [0, 132], sizes = [4, 2304], strides = [1, 1]} : vector<4x2688xf32> to vector<4x2304xf32>
    %c48_80 = arith.constant 48 : index
    %c0_81 = arith.constant 0 : index
    %90 = vector.load %arg12[%c48_80, %c0_81] : memref<100x2304xf32, #tpu.memory_space<vmem>>, vector<4x2304xf32>
    tpu.vector_store %arg12[%c48_80, %c0_81], %89 {strides = array<i32>} : memref<100x2304xf32, #tpu.memory_space<vmem>>, vector<4x2304xf32>,
    %91 = vector.extract_strided_slice %64 {offsets = [0, 134], sizes = [4, 2304], strides = [1, 1]} : vector<4x2688xf32> to vector<4x2304xf32>
    %c52 = arith.constant 52 : index
    %c0_82 = arith.constant 0 : index
    %92 = vector.load %arg12[%c52, %c0_82] : memref<100x2304xf32, #tpu.memory_space<vmem>>, vector<4x2304xf32>
    tpu.vector_store %arg12[%c52, %c0_82], %91 {strides = array<i32>} : memref<100x2304xf32, #tpu.memory_space<vmem>>, vector<4x2304xf32>,
    %93 = vector.extract_strided_slice %64 {offsets = [0, 136], sizes = [4, 2304], strides = [1, 1]} : vector<4x2688xf32> to vector<4x2304xf32>
    %c56 = arith.constant 56 : index
    %c0_83 = arith.constant 0 : index
    %94 = vector.load %arg12[%c56, %c0_83] : memref<100x2304xf32, #tpu.memory_space<vmem>>, vector<4x2304xf32>
    tpu.vector_store %arg12[%c56, %c0_83], %93 {strides = array<i32>} : memref<100x2304xf32, #tpu.memory_space<vmem>>, vector<4x2304xf32>,
    %95 = vector.extract_strided_slice %64 {offsets = [0, 192], sizes = [4, 2304], strides = [1, 1]} : vector<4x2688xf32> to vector<4x2304xf32>
    %c60_84 = arith.constant 60 : index
    %c0_85 = arith.constant 0 : index
    %96 = vector.load %arg12[%c60_84, %c0_85] : memref<100x2304xf32, #tpu.memory_space<vmem>>, vector<4x2304xf32>
    tpu.vector_store %arg12[%c60_84, %c0_85], %95 {strides = array<i32>} : memref<100x2304xf32, #tpu.memory_space<vmem>>, vector<4x2304xf32>,
    %97 = vector.extract_strided_slice %64 {offsets = [0, 194], sizes = [4, 2304], strides = [1, 1]} : vector<4x2688xf32> to vector<4x2304xf32>
    %c64_86 = arith.constant 64 : index
    %c0_87 = arith.constant 0 : index
    %98 = vector.load %arg12[%c64_86, %c0_87] : memref<100x2304xf32, #tpu.memory_space<vmem>>, vector<4x2304xf32>
    tpu.vector_store %arg12[%c64_86, %c0_87], %97 {strides = array<i32>} : memref<100x2304xf32, #tpu.memory_space<vmem>>, vector<4x2304xf32>,
    %99 = vector.extract_strided_slice %64 {offsets = [0, 196], sizes = [4, 2304], strides = [1, 1]} : vector<4x2688xf32> to vector<4x2304xf32>
    %c68_88 = arith.constant 68 : index
    %c0_89 = arith.constant 0 : index
    %100 = vector.load %arg12[%c68_88, %c0_89] : memref<100x2304xf32, #tpu.memory_space<vmem>>, vector<4x2304xf32>
    tpu.vector_store %arg12[%c68_88, %c0_89], %99 {strides = array<i32>} : memref<100x2304xf32, #tpu.memory_space<vmem>>, vector<4x2304xf32>,
    %101 = vector.extract_strided_slice %64 {offsets = [0, 198], sizes = [4, 2304], strides = [1, 1]} : vector<4x2688xf32> to vector<4x2304xf32>
    %c72_90 = arith.constant 72 : index
    %c0_91 = arith.constant 0 : index
    %102 = vector.load %arg12[%c72_90, %c0_91] : memref<100x2304xf32, #tpu.memory_space<vmem>>, vector<4x2304xf32>
    tpu.vector_store %arg12[%c72_90, %c0_91], %101 {strides = array<i32>} : memref<100x2304xf32, #tpu.memory_space<vmem>>, vector<4x2304xf32>,
    %103 = vector.extract_strided_slice %64 {offsets = [0, 200], sizes = [4, 2304], strides = [1, 1]} : vector<4x2688xf32> to vector<4x2304xf32>
    %c76 = arith.constant 76 : index
    %c0_92 = arith.constant 0 : index
    %104 = vector.load %arg12[%c76, %c0_92] : memref<100x2304xf32, #tpu.memory_space<vmem>>, vector<4x2304xf32>
    tpu.vector_store %arg12[%c76, %c0_92], %103 {strides = array<i32>} : memref<100x2304xf32, #tpu.memory_space<vmem>>, vector<4x2304xf32>,
    %105 = vector.extract_strided_slice %64 {offsets = [0, 256], sizes = [4, 2304], strides = [1, 1]} : vector<4x2688xf32> to vector<4x2304xf32>
    %c80 = arith.constant 80 : index
    %c0_93 = arith.constant 0 : index
    %106 = vector.load %arg12[%c80, %c0_93] : memref<100x2304xf32, #tpu.memory_space<vmem>>, vector<4x2304xf32>
    tpu.vector_store %arg12[%c80, %c0_93], %105 {strides = array<i32>} : memref<100x2304xf32, #tpu.memory_space<vmem>>, vector<4x2304xf32>,
    %107 = vector.extract_strided_slice %64 {offsets = [0, 258], sizes = [4, 2304], strides = [1, 1]} : vector<4x2688xf32> to vector<4x2304xf32>
    %c84 = arith.constant 84 : index
    %c0_94 = arith.constant 0 : index
    %108 = vector.load %arg12[%c84, %c0_94] : memref<100x2304xf32, #tpu.memory_space<vmem>>, vector<4x2304xf32>
    tpu.vector_store %arg12[%c84, %c0_94], %107 {strides = array<i32>} : memref<100x2304xf32, #tpu.memory_space<vmem>>, vector<4x2304xf32>,
    %109 = vector.extract_strided_slice %64 {offsets = [0, 260], sizes = [4, 2304], strides = [1, 1]} : vector<4x2688xf32> to vector<4x2304xf32>
    %c88 = arith.constant 88 : index
    %c0_95 = arith.constant 0 : index
    %110 = vector.load %arg12[%c88, %c0_95] : memref<100x2304xf32, #tpu.memory_space<vmem>>, vector<4x2304xf32>
    tpu.vector_store %arg12[%c88, %c0_95], %109 {strides = array<i32>} : memref<100x2304xf32, #tpu.memory_space<vmem>>, vector<4x2304xf32>,
    %111 = vector.extract_strided_slice %64 {offsets = [0, 262], sizes = [4, 2304], strides = [1, 1]} : vector<4x2688xf32> to vector<4x2304xf32>
    %c92 = arith.constant 92 : index
    %c0_96 = arith.constant 0 : index
    %112 = vector.load %arg12[%c92, %c0_96] : memref<100x2304xf32, #tpu.memory_space<vmem>>, vector<4x2304xf32>
    tpu.vector_store %arg12[%c92, %c0_96], %111 {strides = array<i32>} : memref<100x2304xf32, #tpu.memory_space<vmem>>, vector<4x2304xf32>,
    %113 = vector.extract_strided_slice %64 {offsets = [0, 264], sizes = [4, 2304], strides = [1, 1]} : vector<4x2688xf32> to vector<4x2304xf32>
    %c96_97 = arith.constant 96 : index
    %c0_98 = arith.constant 0 : index
    %114 = vector.load %arg12[%c96_97, %c0_98] : memref<100x2304xf32, #tpu.memory_space<vmem>>, vector<4x2304xf32>
    tpu.vector_store %arg12[%c96_97, %c0_98], %113 {strides = array<i32>} : memref<100x2304xf32, #tpu.memory_space<vmem>>, vector<4x2304xf32>,
    %c0_99 = arith.constant 0 : index
    %c0_100 = arith.constant 0 : index
    %115 = vector.load %arg3[%c0_99, %c0_100] : memref<10x100xf32, #tpu.memory_space<vmem>>, vector<10x100xf32>
    %c0_101 = arith.constant 0 : index
    %c0_102 = arith.constant 0 : index
    %116 = vector.load %arg12[%c0_101, %c0_102] : memref<100x2304xf32, #tpu.memory_space<vmem>>, vector<100x2304xf32>
    %cst_103 = arith.constant dense<0.000000e+00> : vector<10x2304xf32>
    %117 = tpu.matmul %115, %116, %cst_103 {dimension_numbers = #tpu.dot_dimension_numbers<[1], [0], [0], [1], [0, 0, 1, 1], [], []>} : vector<10x100xf32>, vector<100x2304xf32>, vector<10x2304xf32> -> vector<10x2304xf32>
    %c0_104 = arith.constant 0 : index
    %c0_105 = arith.constant 0 : index
    %118 = vector.load %arg4[%c0_104, %c0_105] : memref<10x1xf32, #tpu.memory_space<vmem>>, vector<10x1xf32>
    %119 = vector.broadcast %118 : vector<10x1xf32> to vector<10x2304xf32>
    %120 = arith.addf %117, %119 : vector<10x2304xf32>
    %cst_106 = arith.constant 0.000000e+00 : f32
    %121 = vector.broadcast %cst_106 : f32 to vector<10x2304xf32>
    %122 = arith.maximumf %120, %121 : vector<10x2304xf32>
    %123 = vector.extract_strided_slice %122 {offsets = [0, 0], sizes = [10, 2176], strides = [1, 1]} : vector<10x2304xf32> to vector<10x2176xf32>
    %124 = vector.extract_strided_slice %122 {offsets = [0, 2], sizes = [10, 2176], strides = [1, 1]} : vector<10x2304xf32> to vector<10x2176xf32>
    %125 = arith.maximumf %123, %124 : vector<10x2176xf32>
    %126 = vector.extract_strided_slice %122 {offsets = [0, 64], sizes = [10, 2176], strides = [1, 1]} : vector<10x2304xf32> to vector<10x2176xf32>
    %127 = vector.extract_strided_slice %122 {offsets = [0, 66], sizes = [10, 2176], strides = [1, 1]} : vector<10x2304xf32> to vector<10x2176xf32>
    %128 = arith.maximumf %126, %127 : vector<10x2176xf32>
    %129 = arith.maximumf %125, %128 : vector<10x2176xf32>
    %130 = vector.extract_strided_slice %129 {offsets = [0, 0], sizes = [10, 640], strides = [1, 1]} : vector<10x2176xf32> to vector<10x640xf32>
    %c0_107 = arith.constant 0 : index
    %c0_108 = arith.constant 0 : index
    %131 = vector.load %arg5[%c0_107, %c0_108] : memref<640x25xf32, #tpu.memory_space<vmem>>, vector<640x25xf32>
    %cst_109 = arith.constant dense<0.000000e+00> : vector<10x25xf32>
    %132 = tpu.matmul %130, %131, %cst_109 {dimension_numbers = #tpu.dot_dimension_numbers<[1], [0], [0], [1], [0, 0, 1, 1], [], []>} : vector<10x640xf32>, vector<640x25xf32>, vector<10x25xf32> -> vector<10x25xf32>
    %133 = vector.extract_strided_slice %132 {offsets = [0, 0], sizes = [1, 25], strides = [1, 1]} : vector<10x25xf32> to vector<1x25xf32>
    %c0_110 = arith.constant 0 : index
    %c0_111 = arith.constant 0 : index
    %134 = vector.load %arg13[%c0_110, %c0_111] : memref<2x250xf32, #tpu.memory_space<vmem>>, vector<1x25xf32>
    tpu.vector_store %arg13[%c0_110, %c0_111], %133 {strides = array<i32>} : memref<2x250xf32, #tpu.memory_space<vmem>>, vector<1x25xf32>,
    %135 = vector.extract_strided_slice %132 {offsets = [1, 0], sizes = [1, 25], strides = [1, 1]} : vector<10x25xf32> to vector<1x25xf32>
    %c0_112 = arith.constant 0 : index
    %c25 = arith.constant 25 : index
    %136 = vector.load %arg13[%c0_112, %c25] : memref<2x250xf32, #tpu.memory_space<vmem>>, vector<1x25xf32>
    tpu.vector_store %arg13[%c0_112, %c25], %135 {strides = array<i32>} : memref<2x250xf32, #tpu.memory_space<vmem>>, vector<1x25xf32>,
    %137 = vector.extract_strided_slice %132 {offsets = [2, 0], sizes = [1, 25], strides = [1, 1]} : vector<10x25xf32> to vector<1x25xf32>
    %c0_113 = arith.constant 0 : index
    %c50 = arith.constant 50 : index
    %138 = vector.load %arg13[%c0_113, %c50] : memref<2x250xf32, #tpu.memory_space<vmem>>, vector<1x25xf32>
    tpu.vector_store %arg13[%c0_113, %c50], %137 {strides = array<i32>} : memref<2x250xf32, #tpu.memory_space<vmem>>, vector<1x25xf32>,
    %139 = vector.extract_strided_slice %132 {offsets = [3, 0], sizes = [1, 25], strides = [1, 1]} : vector<10x25xf32> to vector<1x25xf32>
    %c0_114 = arith.constant 0 : index
    %c75 = arith.constant 75 : index
    %140 = vector.load %arg13[%c0_114, %c75] : memref<2x250xf32, #tpu.memory_space<vmem>>, vector<1x25xf32>
    tpu.vector_store %arg13[%c0_114, %c75], %139 {strides = array<i32>} : memref<2x250xf32, #tpu.memory_space<vmem>>, vector<1x25xf32>,
    %141 = vector.extract_strided_slice %132 {offsets = [4, 0], sizes = [1, 25], strides = [1, 1]} : vector<10x25xf32> to vector<1x25xf32>
    %c0_115 = arith.constant 0 : index
    %c100_116 = arith.constant 100 : index
    %142 = vector.load %arg13[%c0_115, %c100_116] : memref<2x250xf32, #tpu.memory_space<vmem>>, vector<1x25xf32>
    tpu.vector_store %arg13[%c0_115, %c100_116], %141 {strides = array<i32>} : memref<2x250xf32, #tpu.memory_space<vmem>>, vector<1x25xf32>,
    %143 = vector.extract_strided_slice %132 {offsets = [5, 0], sizes = [1, 25], strides = [1, 1]} : vector<10x25xf32> to vector<1x25xf32>
    %c0_117 = arith.constant 0 : index
    %c125 = arith.constant 125 : index
    %144 = vector.load %arg13[%c0_117, %c125] : memref<2x250xf32, #tpu.memory_space<vmem>>, vector<1x25xf32>
    tpu.vector_store %arg13[%c0_117, %c125], %143 {strides = array<i32>} : memref<2x250xf32, #tpu.memory_space<vmem>>, vector<1x25xf32>,
    %145 = vector.extract_strided_slice %132 {offsets = [6, 0], sizes = [1, 25], strides = [1, 1]} : vector<10x25xf32> to vector<1x25xf32>
    %c0_118 = arith.constant 0 : index
    %c150 = arith.constant 150 : index
    %146 = vector.load %arg13[%c0_118, %c150] : memref<2x250xf32, #tpu.memory_space<vmem>>, vector<1x25xf32>
    tpu.vector_store %arg13[%c0_118, %c150], %145 {strides = array<i32>} : memref<2x250xf32, #tpu.memory_space<vmem>>, vector<1x25xf32>,
    %147 = vector.extract_strided_slice %132 {offsets = [7, 0], sizes = [1, 25], strides = [1, 1]} : vector<10x25xf32> to vector<1x25xf32>
    %c0_119 = arith.constant 0 : index
    %c175 = arith.constant 175 : index
    %148 = vector.load %arg13[%c0_119, %c175] : memref<2x250xf32, #tpu.memory_space<vmem>>, vector<1x25xf32>
    tpu.vector_store %arg13[%c0_119, %c175], %147 {strides = array<i32>} : memref<2x250xf32, #tpu.memory_space<vmem>>, vector<1x25xf32>,
    %149 = vector.extract_strided_slice %132 {offsets = [8, 0], sizes = [1, 25], strides = [1, 1]} : vector<10x25xf32> to vector<1x25xf32>
    %c0_120 = arith.constant 0 : index
    %c200 = arith.constant 200 : index
    %150 = vector.load %arg13[%c0_120, %c200] : memref<2x250xf32, #tpu.memory_space<vmem>>, vector<1x25xf32>
    tpu.vector_store %arg13[%c0_120, %c200], %149 {strides = array<i32>} : memref<2x250xf32, #tpu.memory_space<vmem>>, vector<1x25xf32>,
    %151 = vector.extract_strided_slice %132 {offsets = [9, 0], sizes = [1, 25], strides = [1, 1]} : vector<10x25xf32> to vector<1x25xf32>
    %c0_121 = arith.constant 0 : index
    %c225 = arith.constant 225 : index
    %152 = vector.load %arg13[%c0_121, %c225] : memref<2x250xf32, #tpu.memory_space<vmem>>, vector<1x25xf32>
    tpu.vector_store %arg13[%c0_121, %c225], %151 {strides = array<i32>} : memref<2x250xf32, #tpu.memory_space<vmem>>, vector<1x25xf32>,
    %153 = vector.extract_strided_slice %129 {offsets = [0, 1152], sizes = [10, 640], strides = [1, 1]} : vector<10x2176xf32> to vector<10x640xf32>
    %c0_122 = arith.constant 0 : index
    %c0_123 = arith.constant 0 : index
    %154 = vector.load %arg5[%c0_122, %c0_123] : memref<640x25xf32, #tpu.memory_space<vmem>>, vector<640x25xf32>
    %cst_124 = arith.constant dense<0.000000e+00> : vector<10x25xf32>
    %155 = tpu.matmul %153, %154, %cst_124 {dimension_numbers = #tpu.dot_dimension_numbers<[1], [0], [0], [1], [0, 0, 1, 1], [], []>} : vector<10x640xf32>, vector<640x25xf32>, vector<10x25xf32> -> vector<10x25xf32>
    %156 = vector.extract_strided_slice %155 {offsets = [0, 0], sizes = [1, 25], strides = [1, 1]} : vector<10x25xf32> to vector<1x25xf32>
    %c1_125 = arith.constant 1 : index
    %c0_126 = arith.constant 0 : index
    %157 = vector.load %arg13[%c1_125, %c0_126] : memref<2x250xf32, #tpu.memory_space<vmem>>, vector<1x25xf32>
    tpu.vector_store %arg13[%c1_125, %c0_126], %156 {strides = array<i32>} : memref<2x250xf32, #tpu.memory_space<vmem>>, vector<1x25xf32>,
    %158 = vector.extract_strided_slice %155 {offsets = [1, 0], sizes = [1, 25], strides = [1, 1]} : vector<10x25xf32> to vector<1x25xf32>
    %c1_127 = arith.constant 1 : index
    %c25_128 = arith.constant 25 : index
    %159 = vector.load %arg13[%c1_127, %c25_128] : memref<2x250xf32, #tpu.memory_space<vmem>>, vector<1x25xf32>
    tpu.vector_store %arg13[%c1_127, %c25_128], %158 {strides = array<i32>} : memref<2x250xf32, #tpu.memory_space<vmem>>, vector<1x25xf32>,
    %160 = vector.extract_strided_slice %155 {offsets = [2, 0], sizes = [1, 25], strides = [1, 1]} : vector<10x25xf32> to vector<1x25xf32>
    %c1_129 = arith.constant 1 : index
    %c50_130 = arith.constant 50 : index
    %161 = vector.load %arg13[%c1_129, %c50_130] : memref<2x250xf32, #tpu.memory_space<vmem>>, vector<1x25xf32>
    tpu.vector_store %arg13[%c1_129, %c50_130], %160 {strides = array<i32>} : memref<2x250xf32, #tpu.memory_space<vmem>>, vector<1x25xf32>,
    %162 = vector.extract_strided_slice %155 {offsets = [3, 0], sizes = [1, 25], strides = [1, 1]} : vector<10x25xf32> to vector<1x25xf32>
    %c1_131 = arith.constant 1 : index
    %c75_132 = arith.constant 75 : index
    %163 = vector.load %arg13[%c1_131, %c75_132] : memref<2x250xf32, #tpu.memory_space<vmem>>, vector<1x25xf32>
    tpu.vector_store %arg13[%c1_131, %c75_132], %162 {strides = array<i32>} : memref<2x250xf32, #tpu.memory_space<vmem>>, vector<1x25xf32>,
    %164 = vector.extract_strided_slice %155 {offsets = [4, 0], sizes = [1, 25], strides = [1, 1]} : vector<10x25xf32> to vector<1x25xf32>
    %c1_133 = arith.constant 1 : index
    %c100_134 = arith.constant 100 : index
    %165 = vector.load %arg13[%c1_133, %c100_134] : memref<2x250xf32, #tpu.memory_space<vmem>>, vector<1x25xf32>
    tpu.vector_store %arg13[%c1_133, %c100_134], %164 {strides = array<i32>} : memref<2x250xf32, #tpu.memory_space<vmem>>, vector<1x25xf32>,
    %166 = vector.extract_strided_slice %155 {offsets = [5, 0], sizes = [1, 25], strides = [1, 1]} : vector<10x25xf32> to vector<1x25xf32>
    %c1_135 = arith.constant 1 : index
    %c125_136 = arith.constant 125 : index
    %167 = vector.load %arg13[%c1_135, %c125_136] : memref<2x250xf32, #tpu.memory_space<vmem>>, vector<1x25xf32>
    tpu.vector_store %arg13[%c1_135, %c125_136], %166 {strides = array<i32>} : memref<2x250xf32, #tpu.memory_space<vmem>>, vector<1x25xf32>,
    %168 = vector.extract_strided_slice %155 {offsets = [6, 0], sizes = [1, 25], strides = [1, 1]} : vector<10x25xf32> to vector<1x25xf32>
    %c1_137 = arith.constant 1 : index
    %c150_138 = arith.constant 150 : index
    %169 = vector.load %arg13[%c1_137, %c150_138] : memref<2x250xf32, #tpu.memory_space<vmem>>, vector<1x25xf32>
    tpu.vector_store %arg13[%c1_137, %c150_138], %168 {strides = array<i32>} : memref<2x250xf32, #tpu.memory_space<vmem>>, vector<1x25xf32>,
    %170 = vector.extract_strided_slice %155 {offsets = [7, 0], sizes = [1, 25], strides = [1, 1]} : vector<10x25xf32> to vector<1x25xf32>
    %c1_139 = arith.constant 1 : index
    %c175_140 = arith.constant 175 : index
    %171 = vector.load %arg13[%c1_139, %c175_140] : memref<2x250xf32, #tpu.memory_space<vmem>>, vector<1x25xf32>
    tpu.vector_store %arg13[%c1_139, %c175_140], %170 {strides = array<i32>} : memref<2x250xf32, #tpu.memory_space<vmem>>, vector<1x25xf32>,
    %172 = vector.extract_strided_slice %155 {offsets = [8, 0], sizes = [1, 25], strides = [1, 1]} : vector<10x25xf32> to vector<1x25xf32>
    %c1_141 = arith.constant 1 : index
    %c200_142 = arith.constant 200 : index
    %173 = vector.load %arg13[%c1_141, %c200_142] : memref<2x250xf32, #tpu.memory_space<vmem>>, vector<1x25xf32>
    tpu.vector_store %arg13[%c1_141, %c200_142], %172 {strides = array<i32>} : memref<2x250xf32, #tpu.memory_space<vmem>>, vector<1x25xf32>,
    %174 = vector.extract_strided_slice %155 {offsets = [9, 0], sizes = [1, 25], strides = [1, 1]} : vector<10x25xf32> to vector<1x25xf32>
    %c1_143 = arith.constant 1 : index
    %c225_144 = arith.constant 225 : index
    %175 = vector.load %arg13[%c1_143, %c225_144] : memref<2x250xf32, #tpu.memory_space<vmem>>, vector<1x25xf32>
    tpu.vector_store %arg13[%c1_143, %c225_144], %174 {strides = array<i32>} : memref<2x250xf32, #tpu.memory_space<vmem>>, vector<1x25xf32>,
    %c0_145 = arith.constant 0 : index
    %c0_146 = arith.constant 0 : index
    %176 = vector.load %arg13[%c0_145, %c0_146] : memref<2x250xf32, #tpu.memory_space<vmem>>, vector<2x250xf32>
    %c0_147 = arith.constant 0 : index
    %c0_148 = arith.constant 0 : index
    %177 = vector.load %arg6[%c0_147, %c0_148] : memref<250x100xf32, #tpu.memory_space<vmem>>, vector<250x100xf32>
    %cst_149 = arith.constant dense<0.000000e+00> : vector<2x100xf32>
    %178 = tpu.matmul %176, %177, %cst_149 {dimension_numbers = #tpu.dot_dimension_numbers<[1], [0], [0], [1], [0, 0, 1, 1], [], []>} : vector<2x250xf32>, vector<250x100xf32>, vector<2x100xf32> -> vector<2x100xf32>
    %c0_150 = arith.constant 0 : index
    %c0_151 = arith.constant 0 : index
    %179 = vector.load %arg7[%c0_150, %c0_151] : memref<1x100xf32, #tpu.memory_space<vmem>>, vector<1x100xf32>
    %180 = vector.broadcast %179 : vector<1x100xf32> to vector<2x100xf32>
    %181 = arith.addf %178, %180 : vector<2x100xf32>
    %cst_152 = arith.constant 0.000000e+00 : f32
    %182 = vector.broadcast %cst_152 : f32 to vector<2x100xf32>
    %183 = arith.maximumf %181, %182 : vector<2x100xf32>
    %c0_153 = arith.constant 0 : index
    %c0_154 = arith.constant 0 : index
    %184 = vector.load %arg8[%c0_153, %c0_154] : memref<100x10xf32, #tpu.memory_space<vmem>>, vector<100x10xf32>
    %cst_155 = arith.constant dense<0.000000e+00> : vector<2x10xf32>
    %185 = tpu.matmul %183, %184, %cst_155 {dimension_numbers = #tpu.dot_dimension_numbers<[1], [0], [0], [1], [0, 0, 1, 1], [], []>} : vector<2x100xf32>, vector<100x10xf32>, vector<2x10xf32> -> vector<2x10xf32>
    %c0_156 = arith.constant 0 : index
    %c0_157 = arith.constant 0 : index
    %186 = vector.load %arg9[%c0_156, %c0_157] : memref<1x10xf32, #tpu.memory_space<vmem>>, vector<1x10xf32>
    %187 = vector.broadcast %186 : vector<1x10xf32> to vector<2x10xf32>
    %188 = arith.addf %185, %187 : vector<2x10xf32>
    %cst_158 = arith.constant dense<0xFF800000> : vector<2xf32>
    %189 = vector.multi_reduction <maximumf>, %188, %cst_158 [1] : vector<2x10xf32> to vector<2xf32>
    %190 = vector.shape_cast %189 : vector<2xf32> to vector<2x1xf32>
    %191 = vector.broadcast %190 : vector<2x1xf32> to vector<2x10xf32>
    %192 = arith.subf %188, %191 : vector<2x10xf32>
    %193 = math.exp %192 : vector<2x10xf32>
    %cst_159 = arith.constant dense<0.000000e+00> : vector<2xf32>
    %194 = vector.multi_reduction <add>, %193, %cst_159 [1] : vector<2x10xf32> to vector<2xf32>
    %195 = vector.shape_cast %194 : vector<2xf32> to vector<2x1xf32>
    %196 = math.log %195 : vector<2x1xf32>
    %197 = vector.broadcast %196 : vector<2x1xf32> to vector<2x10xf32>
    %198 = arith.subf %192, %197 : vector<2x10xf32>
    %c0_160 = arith.constant 0 : index
    %c0_161 = arith.constant 0 : index
    %199 = vector.load %arg10[%c0_160, %c0_161] : memref<2x10xf32, #tpu.memory_space<vmem>>, vector<2x10xf32>
    tpu.vector_store %arg10[%c0_160, %c0_161], %198 {strides = array<i32>} : memref<2x10xf32, #tpu.memory_space<vmem>>, vector<2x10xf32>,
    return
  }
}

</mosaic_0001>

<llo_original>
// kernel: tpu_custom_call.1
$region0: #{tpu_custom_call.1}
  #allocation0 [shape = 'u32[]', space=smem, size = 0x4, offset = 0x4, fixed_abs, tag = 'smem constant byte address 0x4 - core index']
  #allocation1 [shape = 'u32[72,128]{1,0:T(1,128)}', space=vmem, size = 0x9000, scoped, tag = 'internal scratch']
  #allocation2 [shape = 'f32[75,2816]{1,0:T(8,128)}', space=vmem, size = 0xdc000, scoped, tag = 'scratch operand']
  #allocation3 [shape = 'f32[100,2304]{1,0:T(8,128)}', space=vmem, size = 0xea000, scoped, tag = 'scratch operand']
  #allocation4 [shape = 'f32[2,250]{1,0:T(2,128)}', space=vmem, size = 0x800, scoped, tag = 'scratch operand']
  %s0 = inlined_call_operand.vmem [shape: f32[3,3072], index: 0, kind: input, shape index: {}]
  %s1 = inlined_call_operand.vmem [shape: f32[4,75], index: 1, kind: input, shape index: {}]
  %s2 = inlined_call_operand.vmem [shape: f32[4,1], index: 2, kind: input, shape index: {}]
  %s3 = inlined_call_operand.vmem [shape: f32[10,100], index: 3, kind: input, shape index: {}]
  %s4 = inlined_call_operand.vmem [shape: f32[10,1], index: 4, kind: input, shape index: {}]
  %s5 = inlined_call_operand.vmem [shape: f32[640,25], index: 5, kind: input, shape index: {}]
  %s6 = inlined_call_operand.vmem [shape: f32[250,100], index: 6, kind: input, shape index: {}]
  %s7 = inlined_call_operand.vmem [shape: f32[1,100], index: 7, kind: input, shape index: {}]
  %s8 = inlined_call_operand.vmem [shape: f32[100,10], index: 8, kind: input, shape index: {}]
  %s9 = inlined_call_operand.vmem [shape: f32[1,10], index: 9, kind: input, shape index: {}]
  %s10 = inlined_call_operand.hbm [shape: f32[2,10], index: 10, kind: output, shape index: {}]
  %s11 = sld [smem:[#allocation0]]
  $region50: #{tpu_custom_call.1} parent=0
    _
  %s13 = ssub.s32 1, %s11
  %s14 = scalar_select 0, %s13, %s11
  $region1: #{tpu_custom_call.1} parent=0
    #allocation5 [shape = 'u8[1024]{0}', space=vmem, size = 0x400, scoped, tag = 'output window, operand 0, single buffered']
    #allocation6 [shape = 's32[1]{0}', space=sflag, size = 0x4, scoped, tag = 'scoped memory for tpu_custom_call.1']
    %15 = vsyncpa [#allocation6], 0
    // Predicated region
    $region2: #{tpu_custom_call.1} parent=1 // pred_check
      _
    $region3: #{tpu_custom_call.1} parent=1 // pred_check_branch
      %17 = sbr.rel (0) target = $region5
    $region4: #{tpu_custom_call.1} parent=1 // pred_region
      _
    $region5: #{tpu_custom_call.1} parent=1 // pred_fallthru
      _
    // Predicated region
    $region6: #{tpu_custom_call.1} parent=1 // pred_check
      _
    $region7: #{tpu_custom_call.1} parent=1 // pred_check_branch
      %19 = sbr.rel (0) target = $region9
    $region8: #{tpu_custom_call.1} parent=1 // pred_region
      _
    $region9: #{tpu_custom_call.1} parent=1 // pred_fallthru
      _
    // Predicated region
    $region10: #{tpu_custom_call.1} parent=1 // pred_check
      _
    $region11: #{tpu_custom_call.1} parent=1 // pred_check_branch
      %21 = sbr.rel (0) target = $region13
    $region12: #{tpu_custom_call.1} parent=1 // pred_region
      _
    $region13: #{tpu_custom_call.1} parent=1 // pred_fallthru
      _
    // Predicated region
    $region14: #{tpu_custom_call.1} parent=1 // pred_check
      _
    $region15: #{tpu_custom_call.1} parent=1 // pred_check_branch
      %23 = sbr.rel (0) target = $region17
    $region16: #{tpu_custom_call.1} parent=1 // pred_region
      _
    $region17: #{tpu_custom_call.1} parent=1 // pred_fallthru
      _
    // Predicated region
    $region18: #{tpu_custom_call.1} parent=1 // pred_check
      _
    $region19: #{tpu_custom_call.1} parent=1 // pred_check_branch
      %25 = sbr.rel (0) target = $region21
    $region20: #{tpu_custom_call.1} parent=1 // pred_region
      _
    $region21: #{tpu_custom_call.1} parent=1 // pred_fallthru
      _
    // Predicated region
    $region22: #{tpu_custom_call.1} parent=1 // pred_check
      _
    $region23: #{tpu_custom_call.1} parent=1 // pred_check_branch
      %27 = sbr.rel (0) target = $region25
    $region24: #{tpu_custom_call.1} parent=1 // pred_region
      _
    $region25: #{tpu_custom_call.1} parent=1 // pred_fallthru
      _
    // Predicated region
    $region26: #{tpu_custom_call.1} parent=1 // pred_check
      _
    $region27: #{tpu_custom_call.1} parent=1 // pred_check_branch
      %29 = sbr.rel (0) target = $region29
    $region28: #{tpu_custom_call.1} parent=1 // pred_region
      _
    $region29: #{tpu_custom_call.1} parent=1 // pred_fallthru
      _
    // Predicated region
    $region30: #{tpu_custom_call.1} parent=1 // pred_check
      _
    $region31: #{tpu_custom_call.1} parent=1 // pred_check_branch
      %31 = sbr.rel (0) target = $region33
    $region32: #{tpu_custom_call.1} parent=1 // pred_region
      _
    $region33: #{tpu_custom_call.1} parent=1 // pred_fallthru
      _
    // Predicated region
    $region34: #{tpu_custom_call.1} parent=1 // pred_check
      _
    $region35: #{tpu_custom_call.1} parent=1 // pred_check_branch
      %33 = sbr.rel (0) target = $region37
    $region36: #{tpu_custom_call.1} parent=1 // pred_region
      _
    $region37: #{tpu_custom_call.1} parent=1 // pred_fallthru
      _
    // Predicated region
    $region38: #{tpu_custom_call.1} parent=1 // pred_check
      _
    $region39: #{tpu_custom_call.1} parent=1 // pred_check_branch
      %35 = sbr.rel (0) target = $region41
    $region40: #{tpu_custom_call.1} parent=1 // pred_region
      _
    $region41: #{tpu_custom_call.1} parent=1 // pred_fallthru
      _
    %v36 = vld [vmem:[%s0] sm:$0x77]
    %v37 = vld [vmem:[%s0 + $0x8] sm:$0x77]
    %v38 = vld [vmem:[%s0 + $0x10] sm:$0x77]
    %v39 = vld [vmem:[%s0 + $0x18] sm:$0x77]
    %v40 = vld [vmem:[%s0 + $0x20] sm:$0x77]
    %v41 = vld [vmem:[%s0 + $0x28] sm:$0x77]
    %v42 = vld [vmem:[%s0 + $0x30] sm:$0x77]
    %v43 = vld [vmem:[%s0 + $0x38] sm:$0x77]
    %v44 = vld [vmem:[%s0 + $0x40] sm:$0x77]
    %v45 = vld [vmem:[%s0 + $0x48] sm:$0x77]
    %v46 = vld [vmem:[%s0 + $0x50] sm:$0x77]
    %58 = vst [vmem:[#allocation1] ss:$2 sm:$0xff] %v36
    %s59 = scalar_lea.vmem [#allocation1], 16
    %60 = vst [vmem:[%s59] ss:$2 sm:$0xff] %v37
    %s61 = scalar_lea.vmem [#allocation1], 32
    %62 = vst [vmem:[%s61] ss:$2 sm:$0xff] %v38
    %s63 = scalar_lea.vmem [#allocation1], 48
    %64 = vst [vmem:[%s63] ss:$2 sm:$0xff] %v39
    %v65 = vld.sshfl [vmem:[#allocation1] sm:$0xff pattern:$0x75316420]
    %v66 = vld.sshfl [vmem:[#allocation1 + $0x8] sm:$0xff pattern:$0x75316420]
    %v67 = vld.sshfl [vmem:[#allocation1 + $0x10] sm:$0xff pattern:$0x75316420]
    %v68 = vld.sshfl [vmem:[#allocation1 + $0x18] sm:$0xff pattern:$0x75316420]
    %v69 = vld.sshfl [vmem:[#allocation1 + $0x20] sm:$0xff pattern:$0x75316420]
    %v70 = vld.sshfl [vmem:[#allocation1 + $0x28] sm:$0xff pattern:$0x75316420]
    %v71 = vld.sshfl [vmem:[#allocation1 + $0x30] sm:$0xff pattern:$0x75316420]
    %v72 = vld.sshfl [vmem:[#allocation1 + $0x38] sm:$0xff pattern:$0x75316420]
    %73 = vst [vmem:[#allocation1] ss:$2 sm:$0xff] %v40
    %74 = vst [vmem:[%s59] ss:$2 sm:$0xff] %v41
    %75 = vst [vmem:[%s61] ss:$2 sm:$0xff] %v42
    %76 = vst [vmem:[%s63] ss:$2 sm:$0xff] %v43
    %v77 = vld.sshfl [vmem:[#allocation1] sm:$0xff pattern:$0x75316420]
    %v78 = vld.sshfl [vmem:[#allocation1 + $0x8] sm:$0xff pattern:$0x75316420]
    %v79 = vld.sshfl [vmem:[#allocation1 + $0x10] sm:$0xff pattern:$0x75316420]
    %v80 = vld.sshfl [vmem:[#allocation1 + $0x18] sm:$0xff pattern:$0x75316420]
    %v81 = vld.sshfl [vmem:[#allocation1 + $0x20] sm:$0xff pattern:$0x75316420]
    %v82 = vld.sshfl [vmem:[#allocation1 + $0x28] sm:$0xff pattern:$0x75316420]
    %v83 = vld.sshfl [vmem:[#allocation1 + $0x30] sm:$0xff pattern:$0x75316420]
    %v84 = vld.sshfl [vmem:[#allocation1 + $0x38] sm:$0xff pattern:$0x75316420]
    %85 = vst [vmem:[#allocation1] ss:$2 sm:$0xff] %v44
    %86 = vst [vmem:[%s59] ss:$2 sm:$0xff] %v45
    %87 = vst [vmem:[%s61] ss:$2 sm:$0xff] %v46
    %v88 = vld.sshfl [vmem:[#allocation1] sm:$0xff pattern:$0x75316420]
    %v89 = vld.sshfl [vmem:[#allocation1 + $0x8] sm:$0xff pattern:$0x75316420]
    %v90 = vld.sshfl [vmem:[#allocation1 + $0x10] sm:$0xff pattern:$0x75316420]
    %v91 = vld.sshfl [vmem:[#allocation1 + $0x18] sm:$0xff pattern:$0x75316420]
    %v92 = vld.sshfl [vmem:[#allocation1 + $0x20] sm:$0xff pattern:$0x75316420]
    %v93 = vld.sshfl [vmem:[#allocation1 + $0x28] sm:$0xff pattern:$0x75316420]
    %116 = vst [vmem:[#allocation2] sm:$0x7] %v65
    %117 = vst [vmem:[#allocation2 + $0x8] sm:$0x7] %v66
    %118 = vst [vmem:[#allocation2 + $0x10] sm:$0x7] %v67
    %119 = vst [vmem:[#allocation2 + $0x18] sm:$0x7] %v68
    %120 = vst [vmem:[#allocation2 + $0x20] sm:$0x7] %v69
    %121 = vst [vmem:[#allocation2 + $0x28] sm:$0x7] %v70
    %122 = vst [vmem:[#allocation2 + $0x30] sm:$0x7] %v71
    %123 = vst [vmem:[#allocation2 + $0x38] sm:$0x7] %v72
    %124 = vst [vmem:[#allocation2 + $0x40] sm:$0x7] %v77
    %125 = vst [vmem:[#allocation2 + $0x48] sm:$0x7] %v78
    %126 = vst [vmem:[#allocation2 + $0x50] sm:$0x7] %v79
    %127 = vst [vmem:[#allocation2 + $0x58] sm:$0x7] %v80
    %128 = vst [vmem:[#allocation2 + $0x60] sm:$0x7] %v81
    %129 = vst [vmem:[#allocation2 + $0x68] sm:$0x7] %v82
    %130 = vst [vmem:[#allocation2 + $0x70] sm:$0x7] %v83
    %131 = vst [vmem:[#allocation2 + $0x78] sm:$0x7] %v84
    %132 = vst [vmem:[#allocation2 + $0x80] sm:$0x7] %v88
    %133 = vst [vmem:[#allocation2 + $0x88] sm:$0x7] %v89
    %134 = vst [vmem:[#allocation2 + $0x90] sm:$0x7] %v90
    %135 = vst [vmem:[#allocation2 + $0x98] sm:$0x7] %v91
    %136 = vst [vmem:[#allocation2 + $0xa0] sm:$0x7] %v92
    %137 = vst [vmem:[#allocation2 + $0xa8] sm:$0x7] %v93
    %v138 = vld [vmem:[%s0] sm:$0x77]
    %v139 = vld [vmem:[%s0 + $0x8] sm:$0x77]
    %v140 = vld [vmem:[%s0 + $0x10] sm:$0x77]
    %v141 = vld [vmem:[%s0 + $0x18] sm:$0x77]
    %v142 = vld [vmem:[%s0 + $0x20] sm:$0x77]
    %v143 = vld [vmem:[%s0 + $0x28] sm:$0x77]
    %v144 = vld [vmem:[%s0 + $0x30] sm:$0x77]
    %v145 = vld [vmem:[%s0 + $0x38] sm:$0x77]
    %v146 = vld [vmem:[%s0 + $0x40] sm:$0x77]
    %v147 = vld [vmem:[%s0 + $0x48] sm:$0x77]
    %v148 = vld [vmem:[%s0 + $0x50] sm:$0x77]
    %v149 = vld [vmem:[%s0 + $0x58] sm:$0x7]
    %162 = vst [vmem:[#allocation1] ss:$2 sm:$0xff] %v138
    %s163 = scalar_lea.vmem [#allocation1], 16
    %164 = vst [vmem:[%s163] ss:$2 sm:$0xff] %v139
    %s165 = scalar_lea.vmem [#allocation1], 32
    %166 = vst [vmem:[%s165] ss:$2 sm:$0xff] %v140
    %s167 = scalar_lea.vmem [#allocation1], 48
    %168 = vst [vmem:[%s167] ss:$2 sm:$0xff] %v141
    %v169 = vld.sshfl [vmem:[#allocation1] sm:$0xff pattern:$0x75316420]
    %v170 = vld.sshfl [vmem:[#allocation1 + $0x8] sm:$0xff pattern:$0x75316420]
    %v171 = vld.sshfl [vmem:[#allocation1 + $0x10] sm:$0xff pattern:$0x75316420]
    %v172 = vld.sshfl [vmem:[#allocation1 + $0x18] sm:$0xff pattern:$0x75316420]
    %v173 = vld.sshfl [vmem:[#allocation1 + $0x20] sm:$0xff pattern:$0x75316420]
    %v174 = vld.sshfl [vmem:[#allocation1 + $0x28] sm:$0xff pattern:$0x75316420]
    %v175 = vld.sshfl [vmem:[#allocation1 + $0x30] sm:$0xff pattern:$0x75316420]
    %v176 = vld.sshfl [vmem:[#allocation1 + $0x38] sm:$0xff pattern:$0x75316420]
    %177 = vst [vmem:[#allocation1] ss:$2 sm:$0xff] %v142
    %178 = vst [vmem:[%s163] ss:$2 sm:$0xff] %v143
    %179 = vst [vmem:[%s165] ss:$2 sm:$0xff] %v144
    %180 = vst [vmem:[%s167] ss:$2 sm:$0xff] %v145
    %v181 = vld.sshfl [vmem:[#allocation1] sm:$0xff pattern:$0x75316420]
    %v182 = vld.sshfl [vmem:[#allocation1 + $0x8] sm:$0xff pattern:$0x75316420]
    %v183 = vld.sshfl [vmem:[#allocation1 + $0x10] sm:$0xff pattern:$0x75316420]
    %v184 = vld.sshfl [vmem:[#allocation1 + $0x18] sm:$0xff pattern:$0x75316420]
    %v185 = vld.sshfl [vmem:[#allocation1 + $0x20] sm:$0xff pattern:$0x75316420]
    %v186 = vld.sshfl [vmem:[#allocation1 + $0x28] sm:$0xff pattern:$0x75316420]
    %v187 = vld.sshfl [vmem:[#allocation1 + $0x30] sm:$0xff pattern:$0x75316420]
    %v188 = vld.sshfl [vmem:[#allocation1 + $0x38] sm:$0xff pattern:$0x75316420]
    %189 = vst [vmem:[#allocation1] ss:$2 sm:$0xff] %v146
    %190 = vst [vmem:[%s163] ss:$2 sm:$0xff] %v147
    %191 = vst [vmem:[%s165] ss:$2 sm:$0xff] %v148
    %192 = vst [vmem:[%s167] ss:$2 sm:$0xff] %v149
    %v193 = vld.sshfl [vmem:[#allocation1] sm:$0xff pattern:$0x75316420]
    %v194 = vld.sshfl [vmem:[#allocation1 + $0x8] sm:$0xff pattern:$0x75316420]
    %v195 = vld.sshfl [vmem:[#allocation1 + $0x10] sm:$0xff pattern:$0x75316420]
    %v196 = vld.sshfl [vmem:[#allocation1 + $0x18] sm:$0xff pattern:$0x75316420]
    %v197 = vld.sshfl [vmem:[#allocation1 + $0x20] sm:$0xff pattern:$0x75316420]
    %v198 = vld.sshfl [vmem:[#allocation1 + $0x28] sm:$0xff pattern:$0x75316420]
    %v199 = vld.sshfl [vmem:[#allocation1 + $0x30] sm:$0xff pattern:$0x75316420]
    %v200 = vrot.slane %v169, 5
    %v201 = vrot.slane %v170, 5
    %v202 = vrot.slane %v171, 5
    %v203 = vrot.slane %v172, 5
    %v204 = vrot.slane %v173, 5
    %v205 = vrot.slane %v174, 5
    %v206 = vrot.slane %v175, 5
    %v207 = vrot.slane %v176, 5
    %v208 = vrot.slane %v181, 5
    %v209 = vrot.slane %v182, 5
    %v210 = vrot.slane %v183, 5
    %v211 = vrot.slane %v184, 5
    %v212 = vrot.slane %v185, 5
    %v213 = vrot.slane %v186, 5
    %v214 = vrot.slane %v187, 5
    %v215 = vrot.slane %v188, 5
    %v216 = vrot.slane %v193, 5
    %v217 = vrot.slane %v194, 5
    %v218 = vrot.slane %v195, 5
    %v219 = vrot.slane %v196, 5
    %v220 = vrot.slane %v197, 5
    %v221 = vrot.slane %v198, 5
    %v222 = vrot.slane %v199, 5
    %223 = vrot.lane.b32.xlu0 %v200, 127
    %v224 = vpop.permute.xlu0 %223
    %225 = vrot.lane.b32.xlu0 %v201, 127
    %v226 = vpop.permute.xlu0 %225
    %227 = vrot.lane.b32.xlu0 %v202, 127
    %v228 = vpop.permute.xlu0 %227
    %229 = vrot.lane.b32.xlu0 %v203, 127
    %v230 = vpop.permute.xlu0 %229
    %231 = vrot.lane.b32.xlu0 %v204, 127
    %v232 = vpop.permute.xlu0 %231
    %233 = vrot.lane.b32.xlu0 %v205, 127
    %v234 = vpop.permute.xlu0 %233
    %235 = vrot.lane.b32.xlu0 %v206, 127
    %v236 = vpop.permute.xlu0 %235
    %237 = vrot.lane.b32.xlu0 %v207, 127
    %v238 = vpop.permute.xlu0 %237
    %239 = vrot.lane.b32.xlu0 %v208, 127
    %v240 = vpop.permute.xlu0 %239
    %241 = vrot.lane.b32.xlu0 %v209, 127
    %v242 = vpop.permute.xlu0 %241
    %243 = vrot.lane.b32.xlu0 %v210, 127
    %v244 = vpop.permute.xlu0 %243
    %245 = vrot.lane.b32.xlu0 %v211, 127
    %v246 = vpop.permute.xlu0 %245
    %247 = vrot.lane.b32.xlu0 %v212, 127
    %v248 = vpop.permute.xlu0 %247
    %249 = vrot.lane.b32.xlu0 %v213, 127
    %v250 = vpop.permute.xlu0 %249
    %251 = vrot.lane.b32.xlu0 %v214, 127
    %v252 = vpop.permute.xlu0 %251
    %253 = vrot.lane.b32.xlu0 %v215, 127
    %v254 = vpop.permute.xlu0 %253
    %255 = vrot.lane.b32.xlu0 %v216, 127
    %v256 = vpop.permute.xlu0 %255
    %257 = vrot.lane.b32.xlu0 %v217, 127
    %v258 = vpop.permute.xlu0 %257
    %259 = vrot.lane.b32.xlu0 %v218, 127
    %v260 = vpop.permute.xlu0 %259
    %261 = vrot.lane.b32.xlu0 %v219, 127
    %v262 = vpop.permute.xlu0 %261
    %263 = vrot.lane.b32.xlu0 %v220, 127
    %v264 = vpop.permute.xlu0 %263
    %265 = vrot.lane.b32.xlu0 %v221, 127
    %v266 = vpop.permute.xlu0 %265
    %267 = vrot.lane.b32.xlu0 %v222, 127
    %v268 = vpop.permute.xlu0 %267
    %vm269 = vcmask 1039360
    %v270 = vsel %vm269, %v224, %v226
    %v271 = vsel %vm269, %v226, %v228
    %v272 = vsel %vm269, %v228, %v230
    %v273 = vsel %vm269, %v230, %v232
    %v274 = vsel %vm269, %v232, %v234
    %v275 = vsel %vm269, %v234, %v236
    %v276 = vsel %vm269, %v236, %v238
    %v277 = vsel %vm269, %v238, %v240
    %v278 = vsel %vm269, %v240, %v242
    %v279 = vsel %vm269, %v242, %v244
    %v280 = vsel %vm269, %v244, %v246
    %v281 = vsel %vm269, %v246, %v248
    %v282 = vsel %vm269, %v248, %v250
    %v283 = vsel %vm269, %v250, %v252
    %v284 = vsel %vm269, %v252, %v254
    %v285 = vsel %vm269, %v254, %v256
    %v286 = vsel %vm269, %v256, %v258
    %v287 = vsel %vm269, %v258, %v260
    %v288 = vsel %vm269, %v260, %v262
    %v289 = vsel %vm269, %v262, %v264
    %v290 = vsel %vm269, %v264, %v266
    %v291 = vsel %vm269, %v266, %v268
    %314 = vst [vmem:[#allocation2] sm:$0x38] %v270
    %315 = vst [vmem:[#allocation2 + $0x8] sm:$0x38] %v271
    %316 = vst [vmem:[#allocation2 + $0x10] sm:$0x38] %v272
    %317 = vst [vmem:[#allocation2 + $0x18] sm:$0x38] %v273
    %318 = vst [vmem:[#allocation2 + $0x20] sm:$0x38] %v274
    %319 = vst [vmem:[#allocation2 + $0x28] sm:$0x38] %v275
    %320 = vst [vmem:[#allocation2 + $0x30] sm:$0x38] %v276
    %321 = vst [vmem:[#allocation2 + $0x38] sm:$0x38] %v277
    %322 = vst [vmem:[#allocation2 + $0x40] sm:$0x38] %v278
    %323 = vst [vmem:[#allocation2 + $0x48] sm:$0x38] %v279
    %324 = vst [vmem:[#allocation2 + $0x50] sm:$0x38] %v280
    %325 = vst [vmem:[#allocation2 + $0x58] sm:$0x38] %v281
    %326 = vst [vmem:[#allocation2 + $0x60] sm:$0x38] %v282
    %327 = vst [vmem:[#allocation2 + $0x68] sm:$0x38] %v283
    %328 = vst [vmem:[#allocation2 + $0x70] sm:$0x38] %v284
    %329 = vst [vmem:[#allocation2 + $0x78] sm:$0x38] %v285
    %330 = vst [vmem:[#allocation2 + $0x80] sm:$0x38] %v286
    %331 = vst [vmem:[#allocation2 + $0x88] sm:$0x38] %v287
    %332 = vst [vmem:[#allocation2 + $0x90] sm:$0x38] %v288
    %333 = vst [vmem:[#allocation2 + $0x98] sm:$0x38] %v289
    %334 = vst [vmem:[#allocation2 + $0xa0] sm:$0x38] %v290
    %335 = vst [vmem:[#allocation2 + $0xa8] sm:$0x38] %v291
    %v336 = vld [vmem:[%s0] sm:$0x77]
    %v337 = vld [vmem:[%s0 + $0x8] sm:$0x77]
    %v338 = vld [vmem:[%s0 + $0x10] sm:$0x77]
    %v339 = vld [vmem:[%s0 + $0x18] sm:$0x77]
    %v340 = vld [vmem:[%s0 + $0x20] sm:$0x77]
    %v341 = vld [vmem:[%s0 + $0x28] sm:$0x77]
    %v342 = vld [vmem:[%s0 + $0x30] sm:$0x77]
    %v343 = vld [vmem:[%s0 + $0x38] sm:$0x77]
    %v344 = vld [vmem:[%s0 + $0x40] sm:$0x77]
    %v345 = vld [vmem:[%s0 + $0x48] sm:$0x77]
    %v346 = vld [vmem:[%s0 + $0x50] sm:$0x77]
    %v347 = vld [vmem:[%s0 + $0x58] sm:$0x7]
    %360 = vst [vmem:[#allocation1] ss:$2 sm:$0xff] %v336
    %s361 = scalar_lea.vmem [#allocation1], 16
    %362 = vst [vmem:[%s361] ss:$2 sm:$0xff] %v337
    %s363 = scalar_lea.vmem [#allocation1], 32
    %364 = vst [vmem:[%s363] ss:$2 sm:$0xff] %v338
    %s365 = scalar_lea.vmem [#allocation1], 48
    %366 = vst [vmem:[%s365] ss:$2 sm:$0xff] %v339
    %v367 = vld.sshfl [vmem:[#allocation1] sm:$0xff pattern:$0x75316420]
    %v368 = vld.sshfl [vmem:[#allocation1 + $0x8] sm:$0xff pattern:$0x75316420]
    %v369 = vld.sshfl [vmem:[#allocation1 + $0x10] sm:$0xff pattern:$0x75316420]
    %v370 = vld.sshfl [vmem:[#allocation1 + $0x18] sm:$0xff pattern:$0x75316420]
    %v371 = vld.sshfl [vmem:[#allocation1 + $0x20] sm:$0xff pattern:$0x75316420]
    %v372 = vld.sshfl [vmem:[#allocation1 + $0x28] sm:$0xff pattern:$0x75316420]
    %v373 = vld.sshfl [vmem:[#allocation1 + $0x30] sm:$0xff pattern:$0x75316420]
    %v374 = vld.sshfl [vmem:[#allocation1 + $0x38] sm:$0xff pattern:$0x75316420]
    %375 = vst [vmem:[#allocation1] ss:$2 sm:$0xff] %v340
    %376 = vst [vmem:[%s361] ss:$2 sm:$0xff] %v341
    %377 = vst [vmem:[%s363] ss:$2 sm:$0xff] %v342
    %378 = vst [vmem:[%s365] ss:$2 sm:$0xff] %v343
    %v379 = vld.sshfl [vmem:[#allocation1] sm:$0xff pattern:$0x75316420]
    %v380 = vld.sshfl [vmem:[#allocation1 + $0x8] sm:$0xff pattern:$0x75316420]
    %v381 = vld.sshfl [vmem:[#allocation1 + $0x10] sm:$0xff pattern:$0x75316420]
    %v382 = vld.sshfl [vmem:[#allocation1 + $0x18] sm:$0xff pattern:$0x75316420]
    %v383 = vld.sshfl [vmem:[#allocation1 + $0x20] sm:$0xff pattern:$0x75316420]
    %v384 = vld.sshfl [vmem:[#allocation1 + $0x28] sm:$0xff pattern:$0x75316420]
    %v385 = vld.sshfl [vmem:[#allocation1 + $0x30] sm:$0xff pattern:$0x75316420]
    %v386 = vld.sshfl [vmem:[#allocation1 + $0x38] sm:$0xff pattern:$0x75316420]
    %387 = vst [vmem:[#allocation1] ss:$2 sm:$0xff] %v344
    %388 = vst [vmem:[%s361] ss:$2 sm:$0xff] %v345
    %389 = vst [vmem:[%s363] ss:$2 sm:$0xff] %v346
    %390 = vst [vmem:[%s365] ss:$2 sm:$0xff] %v347
    %v391 = vld.sshfl [vmem:[#allocation1] sm:$0xff pattern:$0x75316420]
    %v392 = vld.sshfl [vmem:[#allocation1 + $0x8] sm:$0xff pattern:$0x75316420]
    %v393 = vld.sshfl [vmem:[#allocation1 + $0x10] sm:$0xff pattern:$0x75316420]
    %v394 = vld.sshfl [vmem:[#allocation1 + $0x18] sm:$0xff pattern:$0x75316420]
    %v395 = vld.sshfl [vmem:[#allocation1 + $0x20] sm:$0xff pattern:$0x75316420]
    %v396 = vld.sshfl [vmem:[#allocation1 + $0x28] sm:$0xff pattern:$0x75316420]
    %v397 = vld.sshfl [vmem:[#allocation1 + $0x30] sm:$0xff pattern:$0x75316420]
    %v398 = vrot.slane %v367, 2
    %v399 = vrot.slane %v368, 2
    %v400 = vrot.slane %v369, 2
    %v401 = vrot.slane %v370, 2
    %v402 = vrot.slane %v371, 2
    %v403 = vrot.slane %v372, 2
    %v404 = vrot.slane %v373, 2
    %v405 = vrot.slane %v374, 2
    %v406 = vrot.slane %v379, 2
    %v407 = vrot.slane %v380, 2
    %v408 = vrot.slane %v381, 2
    %v409 = vrot.slane %v382, 2
    %v410 = vrot.slane %v383, 2
    %v411 = vrot.slane %v384, 2
    %v412 = vrot.slane %v385, 2
    %v413 = vrot.slane %v386, 2
    %v414 = vrot.slane %v391, 2
    %v415 = vrot.slane %v392, 2
    %v416 = vrot.slane %v393, 2
    %v417 = vrot.slane %v394, 2
    %v418 = vrot.slane %v395, 2
    %v419 = vrot.slane %v396, 2
    %v420 = vrot.slane %v397, 2
    %421 = vrot.lane.b32.xlu0 %v398, 126
    %v422 = vpop.permute.xlu0 %421
    %423 = vrot.lane.b32.xlu0 %v399, 126
    %v424 = vpop.permute.xlu0 %423
    %425 = vrot.lane.b32.xlu0 %v400, 126
    %v426 = vpop.permute.xlu0 %425
    %427 = vrot.lane.b32.xlu0 %v401, 126
    %v428 = vpop.permute.xlu0 %427
    %429 = vrot.lane.b32.xlu0 %v402, 126
    %v430 = vpop.permute.xlu0 %429
    %431 = vrot.lane.b32.xlu0 %v403, 126
    %v432 = vpop.permute.xlu0 %431
    %433 = vrot.lane.b32.xlu0 %v404, 126
    %v434 = vpop.permute.xlu0 %433
    %435 = vrot.lane.b32.xlu0 %v405, 126
    %v436 = vpop.permute.xlu0 %435
    %437 = vrot.lane.b32.xlu0 %v406, 126
    %v438 = vpop.permute.xlu0 %437
    %439 = vrot.lane.b32.xlu0 %v407, 126
    %v440 = vpop.permute.xlu0 %439
    %441 = vrot.lane.b32.xlu0 %v408, 126
    %v442 = vpop.permute.xlu0 %441
    %443 = vrot.lane.b32.xlu0 %v409, 126
    %v444 = vpop.permute.xlu0 %443
    %445 = vrot.lane.b32.xlu0 %v410, 126
    %v446 = vpop.permute.xlu0 %445
    %447 = vrot.lane.b32.xlu0 %v411, 126
    %v448 = vpop.permute.xlu0 %447
    %449 = vrot.lane.b32.xlu0 %v412, 126
    %v450 = vpop.permute.xlu0 %449
    %451 = vrot.lane.b32.xlu0 %v413, 126
    %v452 = vpop.permute.xlu0 %451
    %453 = vrot.lane.b32.xlu0 %v414, 126
    %v454 = vpop.permute.xlu0 %453
    %455 = vrot.lane.b32.xlu0 %v415, 126
    %v456 = vpop.permute.xlu0 %455
    %457 = vrot.lane.b32.xlu0 %v416, 126
    %v458 = vpop.permute.xlu0 %457
    %459 = vrot.lane.b32.xlu0 %v417, 126
    %v460 = vpop.permute.xlu0 %459
    %461 = vrot.lane.b32.xlu0 %v418, 126
    %v462 = vpop.permute.xlu0 %461
    %463 = vrot.lane.b32.xlu0 %v419, 126
    %v464 = vpop.permute.xlu0 %463
    %465 = vrot.lane.b32.xlu0 %v420, 126
    %v466 = vpop.permute.xlu0 %465
    %vm467 = vcmask 1031168
    %v468 = vsel %vm467, %v422, %v424
    %v469 = vsel %vm467, %v424, %v426
    %v470 = vsel %vm467, %v426, %v428
    %v471 = vsel %vm467, %v428, %v430
    %v472 = vsel %vm467, %v430, %v432
    %v473 = vsel %vm467, %v432, %v434
    %v474 = vsel %vm467, %v434, %v436
    %v475 = vsel %vm467, %v436, %v438
    %v476 = vsel %vm467, %v438, %v440
    %v477 = vsel %vm467, %v440, %v442
    %v478 = vsel %vm467, %v442, %v444
    %v479 = vsel %vm467, %v444, %v446
    %v480 = vsel %vm467, %v446, %v448
    %v481 = vsel %vm467, %v448, %v450
    %v482 = vsel %vm467, %v450, %v452
    %v483 = vsel %vm467, %v452, %v454
    %v484 = vsel %vm467, %v454, %v456
    %v485 = vsel %vm467, %v456, %v458
    %v486 = vsel %vm467, %v458, %v460
    %v487 = vsel %vm467, %v460, %v462
    %v488 = vsel %vm467, %v462, %v464
    %v489 = vsel %vm467, %v464, %v466
    %512 = vst [vmem:[#allocation2] sm:$0xc0] %v468
    %513 = vst [vmem:[#allocation2 + $0x8] sm:$0xc0] %v469
    %514 = vst [vmem:[#allocation2 + $0x10] sm:$0xc0] %v470
    %515 = vst [vmem:[#allocation2 + $0x18] sm:$0xc0] %v471
    %516 = vst [vmem:[#allocation2 + $0x20] sm:$0xc0] %v472
    %517 = vst [vmem:[#allocation2 + $0x28] sm:$0xc0] %v473
    %518 = vst [vmem:[#allocation2 + $0x30] sm:$0xc0] %v474
    %519 = vst [vmem:[#allocation2 + $0x38] sm:$0xc0] %v475
    %520 = vst [vmem:[#allocation2 + $0x40] sm:$0xc0] %v476
    %521 = vst [vmem:[#allocation2 + $0x48] sm:$0xc0] %v477
    %522 = vst [vmem:[#allocation2 + $0x50] sm:$0xc0] %v478
    %523 = vst [vmem:[#allocation2 + $0x58] sm:$0xc0] %v479
    %524 = vst [vmem:[#allocation2 + $0x60] sm:$0xc0] %v480
    %525 = vst [vmem:[#allocation2 + $0x68] sm:$0xc0] %v481
    %526 = vst [vmem:[#allocation2 + $0x70] sm:$0xc0] %v482
    %527 = vst [vmem:[#allocation2 + $0x78] sm:$0xc0] %v483
    %528 = vst [vmem:[#allocation2 + $0x80] sm:$0xc0] %v484
    %529 = vst [vmem:[#allocation2 + $0x88] sm:$0xc0] %v485
    %530 = vst [vmem:[#allocation2 + $0x90] sm:$0xc0] %v486
    %531 = vst [vmem:[#allocation2 + $0x98] sm:$0xc0] %v487
    %532 = vst [vmem:[#allocation2 + $0xa0] sm:$0xc0] %v488
    %533 = vst [vmem:[#allocation2 + $0xa8] sm:$0xc0] %v489
    %534 = vst [vmem:[#allocation2 + $0xb0] sm:$0x1] %v468
    %535 = vst [vmem:[#allocation2 + $0xb8] sm:$0x1] %v469
    %536 = vst [vmem:[#allocation2 + $0xc0] sm:$0x1] %v470
    %537 = vst [vmem:[#allocation2 + $0xc8] sm:$0x1] %v471
    %538 = vst [vmem:[#allocation2 + $0xd0] sm:$0x1] %v472
    %539 = vst [vmem:[#allocation2 + $0xd8] sm:$0x1] %v473
    %540 = vst [vmem:[#allocation2 + $0xe0] sm:$0x1] %v474
    %541 = vst [vmem:[#allocation2 + $0xe8] sm:$0x1] %v475
    %542 = vst [vmem:[#allocation2 + $0xf0] sm:$0x1] %v476
    %543 = vst [vmem:[#allocation2 + $0xf8] sm:$0x1] %v477
    %544 = vst [vmem:[#allocation2 + $0x100] sm:$0x1] %v478
    %545 = vst [vmem:[#allocation2 + $0x108] sm:$0x1] %v479
    %546 = vst [vmem:[#allocation2 + $0x110] sm:$0x1] %v480
    %547 = vst [vmem:[#allocation2 + $0x118] sm:$0x1] %v481
    %548 = vst [vmem:[#allocation2 + $0x120] sm:$0x1] %v482
    %549 = vst [vmem:[#allocation2 + $0x128] sm:$0x1] %v483
    %550 = vst [vmem:[#allocation2 + $0x130] sm:$0x1] %v484
    %551 = vst [vmem:[#allocation2 + $0x138] sm:$0x1] %v485
    %552 = vst [vmem:[#allocation2 + $0x140] sm:$0x1] %v486
    %553 = vst [vmem:[#allocation2 + $0x148] sm:$0x1] %v487
    %554 = vst [vmem:[#allocation2 + $0x150] sm:$0x1] %v488
    %555 = vst [vmem:[#allocation2 + $0x158] sm:$0x1] %v489
    %v556 = vld [vmem:[%s0] sm:$0x77]
    %v557 = vld [vmem:[%s0 + $0x8] sm:$0x77]
    %v558 = vld [vmem:[%s0 + $0x10] sm:$0x77]
    %v559 = vld [vmem:[%s0 + $0x18] sm:$0x77]
    %v560 = vld [vmem:[%s0 + $0x20] sm:$0x77]
    %v561 = vld [vmem:[%s0 + $0x28] sm:$0x77]
    %v562 = vld [vmem:[%s0 + $0x30] sm:$0x77]
    %v563 = vld [vmem:[%s0 + $0x38] sm:$0x77]
    %v564 = vld [vmem:[%s0 + $0x40] sm:$0x77]
    %v565 = vld [vmem:[%s0 + $0x48] sm:$0x77]
    %v566 = vld [vmem:[%s0 + $0x50] sm:$0x77]
    %v567 = vld [vmem:[%s0 + $0x58] sm:$0x7]
    %580 = vst [vmem:[#allocation1] ss:$2 sm:$0xff] %v556
    %s581 = scalar_lea.vmem [#allocation1], 16
    %582 = vst [vmem:[%s581] ss:$2 sm:$0xff] %v557
    %s583 = scalar_lea.vmem [#allocation1], 32
    %584 = vst [vmem:[%s583] ss:$2 sm:$0xff] %v558
    %s585 = scalar_lea.vmem [#allocation1], 48
    %586 = vst [vmem:[%s585] ss:$2 sm:$0xff] %v559
    %v587 = vld.sshfl [vmem:[#allocation1] sm:$0xff pattern:$0x75316420]
    %v588 = vld.sshfl [vmem:[#allocation1 + $0x8] sm:$0xff pattern:$0x75316420]
    %v589 = vld.sshfl [vmem:[#allocation1 + $0x10] sm:$0xff pattern:$0x75316420]
    %v590 = vld.sshfl [vmem:[#allocation1 + $0x18] sm:$0xff pattern:$0x75316420]
    %v591 = vld.sshfl [vmem:[#allocation1 + $0x20] sm:$0xff pattern:$0x75316420]
    %v592 = vld.sshfl [vmem:[#allocation1 + $0x28] sm:$0xff pattern:$0x75316420]
    %v593 = vld.sshfl [vmem:[#allocation1 + $0x30] sm:$0xff pattern:$0x75316420]
    %v594 = vld.sshfl [vmem:[#allocation1 + $0x38] sm:$0xff pattern:$0x75316420]
    %595 = vst [vmem:[#allocation1] ss:$2 sm:$0xff] %v560
    %596 = vst [vmem:[%s581] ss:$2 sm:$0xff] %v561
    %597 = vst [vmem:[%s583] ss:$2 sm:$0xff] %v562
    %598 = vst [vmem:[%s585] ss:$2 sm:$0xff] %v563
    %v599 = vld.sshfl [vmem:[#allocation1] sm:$0xff pattern:$0x75316420]
    %v600 = vld.sshfl [vmem:[#allocation1 + $0x8] sm:$0xff pattern:$0x75316420]
    %v601 = vld.sshfl [vmem:[#allocation1 + $0x10] sm:$0xff pattern:$0x75316420]
    %v602 = vld.sshfl [vmem:[#allocation1 + $0x18] sm:$0xff pattern:$0x75316420]
    %v603 = vld.sshfl [vmem:[#allocation1 + $0x20] sm:$0xff pattern:$0x75316420]
    %v604 = vld.sshfl [vmem:[#allocation1 + $0x28] sm:$0xff pattern:$0x75316420]
    %v605 = vld.sshfl [vmem:[#allocation1 + $0x30] sm:$0xff pattern:$0x75316420]
    %v606 = vld.sshfl [vmem:[#allocation1 + $0x38] sm:$0xff pattern:$0x75316420]
    %607 = vst [vmem:[#allocation1] ss:$2 sm:$0xff] %v564
    %608 = vst [vmem:[%s581] ss:$2 sm:$0xff] %v565
    %609 = vst [vmem:[%s583] ss:$2 sm:$0xff] %v566
    %610 = vst [vmem:[%s585] ss:$2 sm:$0xff] %v567
    %v611 = vld.sshfl [vmem:[#allocation1] sm:$0xff pattern:$0x75316420]
    %v612 = vld.sshfl [vmem:[#allocation1 + $0x8] sm:$0xff pattern:$0x75316420]
    %v613 = vld.sshfl [vmem:[#allocation1 + $0x10] sm:$0xff pattern:$0x75316420]
    %v614 = vld.sshfl [vmem:[#allocation1 + $0x18] sm:$0xff pattern:$0x75316420]
    %v615 = vld.sshfl [vmem:[#allocation1 + $0x20] sm:$0xff pattern:$0x75316420]
    %v616 = vld.sshfl [vmem:[#allocation1 + $0x28] sm:$0xff pattern:$0x75316420]
    %v617 = vld.sshfl [vmem:[#allocation1 + $0x30] sm:$0xff pattern:$0x75316420]
    %v618 = vrot.slane %v587, 7
    %v619 = vrot.slane %v588, 7
    %v620 = vrot.slane %v589, 7
    %v621 = vrot.slane %v590, 7
    %v622 = vrot.slane %v591, 7
    %v623 = vrot.slane %v592, 7
    %v624 = vrot.slane %v593, 7
    %v625 = vrot.slane %v594, 7
    %v626 = vrot.slane %v599, 7
    %v627 = vrot.slane %v600, 7
    %v628 = vrot.slane %v601, 7
    %v629 = vrot.slane %v602, 7
    %v630 = vrot.slane %v603, 7
    %v631 = vrot.slane %v604, 7
    %v632 = vrot.slane %v605, 7
    %v633 = vrot.slane %v606, 7
    %v634 = vrot.slane %v611, 7
    %v635 = vrot.slane %v612, 7
    %v636 = vrot.slane %v613, 7
    %v637 = vrot.slane %v614, 7
    %v638 = vrot.slane %v615, 7
    %v639 = vrot.slane %v616, 7
    %v640 = vrot.slane %v617, 7
    %641 = vrot.lane.b32.xlu0 %v618, 125
    %v642 = vpop.permute.xlu0 %641
    %643 = vrot.lane.b32.xlu0 %v619, 125
    %v644 = vpop.permute.xlu0 %643
    %645 = vrot.lane.b32.xlu0 %v620, 125
    %v646 = vpop.permute.xlu0 %645
    %647 = vrot.lane.b32.xlu0 %v621, 125
    %v648 = vpop.permute.xlu0 %647
    %649 = vrot.lane.b32.xlu0 %v622, 125
    %v650 = vpop.permute.xlu0 %649
    %651 = vrot.lane.b32.xlu0 %v623, 125
    %v652 = vpop.permute.xlu0 %651
    %653 = vrot.lane.b32.xlu0 %v624, 125
    %v654 = vpop.permute.xlu0 %653
    %655 = vrot.lane.b32.xlu0 %v625, 125
    %v656 = vpop.permute.xlu0 %655
    %657 = vrot.lane.b32.xlu0 %v626, 125
    %v658 = vpop.permute.xlu0 %657
    %659 = vrot.lane.b32.xlu0 %v627, 125
    %v660 = vpop.permute.xlu0 %659
    %661 = vrot.lane.b32.xlu0 %v628, 125
    %v662 = vpop.permute.xlu0 %661
    %663 = vrot.lane.b32.xlu0 %v629, 125
    %v664 = vpop.permute.xlu0 %663
    %665 = vrot.lane.b32.xlu0 %v630, 125
    %v666 = vpop.permute.xlu0 %665
    %667 = vrot.lane.b32.xlu0 %v631, 125
    %v668 = vpop.permute.xlu0 %667
    %669 = vrot.lane.b32.xlu0 %v632, 125
    %v670 = vpop.permute.xlu0 %669
    %671 = vrot.lane.b32.xlu0 %v633, 125
    %v672 = vpop.permute.xlu0 %671
    %673 = vrot.lane.b32.xlu0 %v634, 125
    %v674 = vpop.permute.xlu0 %673
    %675 = vrot.lane.b32.xlu0 %v635, 125
    %v676 = vpop.permute.xlu0 %675
    %677 = vrot.lane.b32.xlu0 %v636, 125
    %v678 = vpop.permute.xlu0 %677
    %679 = vrot.lane.b32.xlu0 %v637, 125
    %v680 = vpop.permute.xlu0 %679
    %681 = vrot.lane.b32.xlu0 %v638, 125
    %v682 = vpop.permute.xlu0 %681
    %683 = vrot.lane.b32.xlu0 %v639, 125
    %v684 = vpop.permute.xlu0 %683
    %685 = vrot.lane.b32.xlu0 %v640, 125
    %v686 = vpop.permute.xlu0 %685
    %vm687 = vcmask 1022976
    %v688 = vsel %vm687, %v642, %v644
    %v689 = vsel %vm687, %v644, %v646
    %v690 = vsel %vm687, %v646, %v648
    %v691 = vsel %vm687, %v648, %v650
    %v692 = vsel %vm687, %v650, %v652
    %v693 = vsel %vm687, %v652, %v654
    %v694 = vsel %vm687, %v654, %v656
    %v695 = vsel %vm687, %v656, %v658
    %v696 = vsel %vm687, %v658, %v660
    %v697 = vsel %vm687, %v660, %v662
    %v698 = vsel %vm687, %v662, %v664
    %v699 = vsel %vm687, %v664, %v666
    %v700 = vsel %vm687, %v666, %v668
    %v701 = vsel %vm687, %v668, %v670
    %v702 = vsel %vm687, %v670, %v672
    %v703 = vsel %vm687, %v672, %v674
    %v704 = vsel %vm687, %v674, %v676
    %v705 = vsel %vm687, %v676, %v678
    %v706 = vsel %vm687, %v678, %v680
    %v707 = vsel %vm687, %v680, %v682
    %v708 = vsel %vm687, %v682, %v684
    %v709 = vsel %vm687, %v684, %v686
    %732 = vst [vmem:[#allocation2 + $0xb0] sm:$0xe] %v688
    %733 = vst [vmem:[#allocation2 + $0xb8] sm:$0xe] %v689
    %734 = vst [vmem:[#allocation2 + $0xc0] sm:$0xe] %v690
    %735 = vst [vmem:[#allocation2 + $0xc8] sm:$0xe] %v691
    %736 = vst [vmem:[#allocation2 + $0xd0] sm:$0xe] %v692
    %737 = vst [vmem:[#allocation2 + $0xd8] sm:$0xe] %v693
    %738 = vst [vmem:[#allocation2 + $0xe0] sm:$0xe] %v694
    %739 = vst [vmem:[#allocation2 + $0xe8] sm:$0xe] %v695
    %740 = vst [vmem:[#allocation2 + $0xf0] sm:$0xe] %v696
    %741 = vst [vmem:[#allocation2 + $0xf8] sm:$0xe] %v697
    %742 = vst [vmem:[#allocation2 + $0x100] sm:$0xe] %v698
    %743 = vst [vmem:[#allocation2 + $0x108] sm:$0xe] %v699
    %744 = vst [vmem:[#allocation2 + $0x110] sm:$0xe] %v700
    %745 = vst [vmem:[#allocation2 + $0x118] sm:$0xe] %v701
    %746 = vst [vmem:[#allocation2 + $0x120] sm:$0xe] %v702
    %747 = vst [vmem:[#allocation2 + $0x128] sm:$0xe] %v703
    %748 = vst [vmem:[#allocation2 + $0x130] sm:$0xe] %v704
    %749 = vst [vmem:[#allocation2 + $0x138] sm:$0xe] %v705
    %750 = vst [vmem:[#allocation2 + $0x140] sm:$0xe] %v706
    %751 = vst [vmem:[#allocation2 + $0x148] sm:$0xe] %v707
    %752 = vst [vmem:[#allocation2 + $0x150] sm:$0xe] %v708
    %753 = vst [vmem:[#allocation2 + $0x158] sm:$0xe] %v709
    %v754 = vld [vmem:[%s0] sm:$0x77]
    %v755 = vld [vmem:[%s0 + $0x8] sm:$0x77]
    %v756 = vld [vmem:[%s0 + $0x10] sm:$0x77]
    %v757 = vld [vmem:[%s0 + $0x18] sm:$0x77]
    %v758 = vld [vmem:[%s0 + $0x20] sm:$0x77]
    %v759 = vld [vmem:[%s0 + $0x28] sm:$0x77]
    %v760 = vld [vmem:[%s0 + $0x30] sm:$0x77]
    %v761 = vld [vmem:[%s0 + $0x38] sm:$0x77]
    %v762 = vld [vmem:[%s0 + $0x40] sm:$0x77]
    %v763 = vld [vmem:[%s0 + $0x48] sm:$0x77]
    %v764 = vld [vmem:[%s0 + $0x50] sm:$0x77]
    %v765 = vld [vmem:[%s0 + $0x58] sm:$0x7]
    %s778 = scalar_lea.vmem [#allocation1], 1
    %779 = vst [vmem:[%s778] ss:$2 sm:$0xff] %v754
    %s780 = scalar_lea.vmem [#allocation1], 17
    %781 = vst [vmem:[%s780] ss:$2 sm:$0xff] %v755
    %s782 = scalar_lea.vmem [#allocation1], 33
    %783 = vst [vmem:[%s782] ss:$2 sm:$0xff] %v756
    %s784 = scalar_lea.vmem [#allocation1], 49
    %785 = vst [vmem:[%s784] ss:$2 sm:$0xff] %v757
    %v786 = vld.sshfl [vmem:[#allocation1] sm:$0xff pattern:$0x75316420]
    %v787 = vld.sshfl [vmem:[#allocation1 + $0x8] sm:$0xff pattern:$0x75316420]
    %v788 = vld.sshfl [vmem:[#allocation1 + $0x10] sm:$0xff pattern:$0x75316420]
    %v789 = vld.sshfl [vmem:[#allocation1 + $0x18] sm:$0xff pattern:$0x75316420]
    %v790 = vld.sshfl [vmem:[#allocation1 + $0x20] sm:$0xff pattern:$0x75316420]
    %v791 = vld.sshfl [vmem:[#allocation1 + $0x28] sm:$0xff pattern:$0x75316420]
    %v792 = vld.sshfl [vmem:[#allocation1 + $0x30] sm:$0xff pattern:$0x75316420]
    %v793 = vld.sshfl [vmem:[#allocation1 + $0x38] sm:$0xff pattern:$0x75316420]
    %794 = vst [vmem:[%s778] ss:$2 sm:$0xff] %v758
    %795 = vst [vmem:[%s780] ss:$2 sm:$0xff] %v759
    %796 = vst [vmem:[%s782] ss:$2 sm:$0xff] %v760
    %797 = vst [vmem:[%s784] ss:$2 sm:$0xff] %v761
    %v798 = vld.sshfl [vmem:[#allocation1] sm:$0xff pattern:$0x75316420]
    %v799 = vld.sshfl [vmem:[#allocation1 + $0x8] sm:$0xff pattern:$0x75316420]
    %v800 = vld.sshfl [vmem:[#allocation1 + $0x10] sm:$0xff pattern:$0x75316420]
    %v801 = vld.sshfl [vmem:[#allocation1 + $0x18] sm:$0xff pattern:$0x75316420]
    %v802 = vld.sshfl [vmem:[#allocation1 + $0x20] sm:$0xff pattern:$0x75316420]
    %v803 = vld.sshfl [vmem:[#allocation1 + $0x28] sm:$0xff pattern:$0x75316420]
    %v804 = vld.sshfl [vmem:[#allocation1 + $0x30] sm:$0xff pattern:$0x75316420]
    %v805 = vld.sshfl [vmem:[#allocation1 + $0x38] sm:$0xff pattern:$0x75316420]
    %806 = vst [vmem:[%s778] ss:$2 sm:$0xff] %v762
    %807 = vst [vmem:[%s780] ss:$2 sm:$0xff] %v763
    %808 = vst [vmem:[%s782] ss:$2 sm:$0xff] %v764
    %809 = vst [vmem:[%s784] ss:$2 sm:$0xff] %v765
    %v810 = vld.sshfl [vmem:[#allocation1] sm:$0xff pattern:$0x75316420]
    %v811 = vld.sshfl [vmem:[#allocation1 + $0x8] sm:$0xff pattern:$0x75316420]
    %v812 = vld.sshfl [vmem:[#allocation1 + $0x10] sm:$0xff pattern:$0x75316420]
    %v813 = vld.sshfl [vmem:[#allocation1 + $0x18] sm:$0xff pattern:$0x75316420]
    %v814 = vld.sshfl [vmem:[#allocation1 + $0x20] sm:$0xff pattern:$0x75316420]
    %v815 = vld.sshfl [vmem:[#allocation1 + $0x28] sm:$0xff pattern:$0x75316420]
    %v816 = vld.sshfl [vmem:[#allocation1 + $0x30] sm:$0xff pattern:$0x75316420]
    %817 = vrot.lane.b32.xlu0 %v786, 124
    %v818 = vpop.permute.xlu0 %817
    %819 = vrot.lane.b32.xlu0 %v787, 124
    %v820 = vpop.permute.xlu0 %819
    %821 = vrot.lane.b32.xlu0 %v788, 124
    %v822 = vpop.permute.xlu0 %821
    %823 = vrot.lane.b32.xlu0 %v789, 124
    %v824 = vpop.permute.xlu0 %823
    %825 = vrot.lane.b32.xlu0 %v790, 124
    %v826 = vpop.permute.xlu0 %825
    %827 = vrot.lane.b32.xlu0 %v791, 124
    %v828 = vpop.permute.xlu0 %827
    %829 = vrot.lane.b32.xlu0 %v792, 124
    %v830 = vpop.permute.xlu0 %829
    %831 = vrot.lane.b32.xlu0 %v793, 124
    %v832 = vpop.permute.xlu0 %831
    %833 = vrot.lane.b32.xlu0 %v798, 124
    %v834 = vpop.permute.xlu0 %833
    %835 = vrot.lane.b32.xlu0 %v799, 124
    %v836 = vpop.permute.xlu0 %835
    %837 = vrot.lane.b32.xlu0 %v800, 124
    %v838 = vpop.permute.xlu0 %837
    %839 = vrot.lane.b32.xlu0 %v801, 124
    %v840 = vpop.permute.xlu0 %839
    %841 = vrot.lane.b32.xlu0 %v802, 124
    %v842 = vpop.permute.xlu0 %841
    %843 = vrot.lane.b32.xlu0 %v803, 124
    %v844 = vpop.permute.xlu0 %843
    %845 = vrot.lane.b32.xlu0 %v804, 124
    %v846 = vpop.permute.xlu0 %845
    %847 = vrot.lane.b32.xlu0 %v805, 124
    %v848 = vpop.permute.xlu0 %847
    %849 = vrot.lane.b32.xlu0 %v810, 124
    %v850 = vpop.permute.xlu0 %849
    %851 = vrot.lane.b32.xlu0 %v811, 124
    %v852 = vpop.permute.xlu0 %851
    %853 = vrot.lane.b32.xlu0 %v812, 124
    %v854 = vpop.permute.xlu0 %853
    %855 = vrot.lane.b32.xlu0 %v813, 124
    %v856 = vpop.permute.xlu0 %855
    %857 = vrot.lane.b32.xlu0 %v814, 124
    %v858 = vpop.permute.xlu0 %857
    %859 = vrot.lane.b32.xlu0 %v815, 124
    %v860 = vpop.permute.xlu0 %859
    %861 = vrot.lane.b32.xlu0 %v816, 124
    %v862 = vpop.permute.xlu0 %861
    %vm863 = vcmask 1014784
    %v864 = vsel %vm863, %v818, %v820
    %v865 = vsel %vm863, %v820, %v822
    %v866 = vsel %vm863, %v822, %v824
    %v867 = vsel %vm863, %v824, %v826
    %v868 = vsel %vm863, %v826, %v828
    %v869 = vsel %vm863, %v828, %v830
    %v870 = vsel %vm863, %v830, %v832
    %v871 = vsel %vm863, %v832, %v834
    %v872 = vsel %vm863, %v834, %v836
    %v873 = vsel %vm863, %v836, %v838
    %v874 = vsel %vm863, %v838, %v840
    %v875 = vsel %vm863, %v840, %v842
    %v876 = vsel %vm863, %v842, %v844
    %v877 = vsel %vm863, %v844, %v846
    %v878 = vsel %vm863, %v846, %v848
    %v879 = vsel %vm863, %v848, %v850
    %v880 = vsel %vm863, %v850, %v852
    %v881 = vsel %vm863, %v852, %v854
    %v882 = vsel %vm863, %v854, %v856
    %v883 = vsel %vm863, %v856, %v858
    %v884 = vsel %vm863, %v858, %v860
    %v885 = vsel %vm863, %v860, %v862
    %908 = vst [vmem:[#allocation2 + $0xb0] sm:$0x70] %v864
    %909 = vst [vmem:[#allocation2 + $0xb8] sm:$0x70] %v865
    %910 = vst [vmem:[#allocation2 + $0xc0] sm:$0x70] %v866
    %911 = vst [vmem:[#allocation2 + $0xc8] sm:$0x70] %v867
    %912 = vst [vmem:[#allocation2 + $0xd0] sm:$0x70] %v868
    %913 = vst [vmem:[#allocation2 + $0xd8] sm:$0x70] %v869
    %914 = vst [vmem:[#allocation2 + $0xe0] sm:$0x70] %v870
    %915 = vst [vmem:[#allocation2 + $0xe8] sm:$0x70] %v871
    %916 = vst [vmem:[#allocation2 + $0xf0] sm:$0x70] %v872
    %917 = vst [vmem:[#allocation2 + $0xf8] sm:$0x70] %v873
    %918 = vst [vmem:[#allocation2 + $0x100] sm:$0x70] %v874
    %919 = vst [vmem:[#allocation2 + $0x108] sm:$0x70] %v875
    %920 = vst [vmem:[#allocation2 + $0x110] sm:$0x70] %v876
    %921 = vst [vmem:[#allocation2 + $0x118] sm:$0x70] %v877
    %922 = vst [vmem:[#allocation2 + $0x120] sm:$0x70] %v878
    %923 = vst [vmem:[#allocation2 + $0x128] sm:$0x70] %v879
    %924 = vst [vmem:[#allocation2 + $0x130] sm:$0x70] %v880
    %925 = vst [vmem:[#allocation2 + $0x138] sm:$0x70] %v881
    %926 = vst [vmem:[#allocation2 + $0x140] sm:$0x70] %v882
    %927 = vst [vmem:[#allocation2 + $0x148] sm:$0x70] %v883
    %928 = vst [vmem:[#allocation2 + $0x150] sm:$0x70] %v884
    %929 = vst [vmem:[#allocation2 + $0x158] sm:$0x70] %v885
    %v930 = vld [vmem:[%s0] sm:$0x77]
    %v931 = vld [vmem:[%s0 + $0x8] sm:$0x77]
    %v932 = vld [vmem:[%s0 + $0x10] sm:$0x77]
    %v933 = vld [vmem:[%s0 + $0x18] sm:$0x77]
    %v934 = vld [vmem:[%s0 + $0x20] sm:$0x77]
    %v935 = vld [vmem:[%s0 + $0x28] sm:$0x77]
    %v936 = vld [vmem:[%s0 + $0x30] sm:$0x77]
    %v937 = vld [vmem:[%s0 + $0x38] sm:$0x77]
    %v938 = vld [vmem:[%s0 + $0x40] sm:$0x77]
    %v939 = vld [vmem:[%s0 + $0x48] sm:$0x77]
    %v940 = vld [vmem:[%s0 + $0x50] sm:$0x77]
    %v941 = vld [vmem:[%s0 + $0x58] sm:$0x7]
    %954 = vst [vmem:[#allocation1] ss:$2 sm:$0xff] %v930
    %s955 = scalar_lea.vmem [#allocation1], 16
    %956 = vst [vmem:[%s955] ss:$2 sm:$0xff] %v931
    %s957 = scalar_lea.vmem [#allocation1], 32
    %958 = vst [vmem:[%s957] ss:$2 sm:$0xff] %v932
    %s959 = scalar_lea.vmem [#allocation1], 48
    %960 = vst [vmem:[%s959] ss:$2 sm:$0xff] %v933
    %v961 = vld.sshfl [vmem:[#allocation1] sm:$0xff pattern:$0x75316420]
    %v962 = vld.sshfl [vmem:[#allocation1 + $0x8] sm:$0xff pattern:$0x75316420]
    %v963 = vld.sshfl [vmem:[#allocation1 + $0x10] sm:$0xff pattern:$0x75316420]
    %v964 = vld.sshfl [vmem:[#allocation1 + $0x18] sm:$0xff pattern:$0x75316420]
    %v965 = vld.sshfl [vmem:[#allocation1 + $0x20] sm:$0xff pattern:$0x75316420]
    %v966 = vld.sshfl [vmem:[#allocation1 + $0x28] sm:$0xff pattern:$0x75316420]
    %v967 = vld.sshfl [vmem:[#allocation1 + $0x30] sm:$0xff pattern:$0x75316420]
    %v968 = vld.sshfl [vmem:[#allocation1 + $0x38] sm:$0xff pattern:$0x75316420]
    %969 = vst [vmem:[#allocation1] ss:$2 sm:$0xff] %v934
    %970 = vst [vmem:[%s955] ss:$2 sm:$0xff] %v935
    %971 = vst [vmem:[%s957] ss:$2 sm:$0xff] %v936
    %972 = vst [vmem:[%s959] ss:$2 sm:$0xff] %v937
    %v973 = vld.sshfl [vmem:[#allocation1] sm:$0xff pattern:$0x75316420]
    %v974 = vld.sshfl [vmem:[#allocation1 + $0x8] sm:$0xff pattern:$0x75316420]
    %v975 = vld.sshfl [vmem:[#allocation1 + $0x10] sm:$0xff pattern:$0x75316420]
    %v976 = vld.sshfl [vmem:[#allocation1 + $0x18] sm:$0xff pattern:$0x75316420]
    %v977 = vld.sshfl [vmem:[#allocation1 + $0x20] sm:$0xff pattern:$0x75316420]
    %v978 = vld.sshfl [vmem:[#allocation1 + $0x28] sm:$0xff pattern:$0x75316420]
    %v979 = vld.sshfl [vmem:[#allocation1 + $0x30] sm:$0xff pattern:$0x75316420]
    %v980 = vld.sshfl [vmem:[#allocation1 + $0x38] sm:$0xff pattern:$0x75316420]
    %981 = vst [vmem:[#allocation1] ss:$2 sm:$0xff] %v938
    %982 = vst [vmem:[%s955] ss:$2 sm:$0xff] %v939
    %983 = vst [vmem:[%s957] ss:$2 sm:$0xff] %v940
    %984 = vst [vmem:[%s959] ss:$2 sm:$0xff] %v941
    %v985 = vld.sshfl [vmem:[#allocation1] sm:$0xff pattern:$0x75316420]
    %v986 = vld.sshfl [vmem:[#allocation1 + $0x8] sm:$0xff pattern:$0x75316420]
    %v987 = vld.sshfl [vmem:[#allocation1 + $0x10] sm:$0xff pattern:$0x75316420]
    %v988 = vld.sshfl [vmem:[#allocation1 + $0x18] sm:$0xff pattern:$0x75316420]
    %v989 = vld.sshfl [vmem:[#allocation1 + $0x20] sm:$0xff pattern:$0x75316420]
    %v990 = vld.sshfl [vmem:[#allocation1 + $0x28] sm:$0xff pattern:$0x75316420]
    %v991 = vld.sshfl [vmem:[#allocation1 + $0x30] sm:$0xff pattern:$0x75316420]
    %v992 = vrot.slane %v961, 1
    %v993 = vrot.slane %v962, 1
    %v994 = vrot.slane %v963, 1
    %v995 = vrot.slane %v964, 1
    %v996 = vrot.slane %v965, 1
    %v997 = vrot.slane %v966, 1
    %v998 = vrot.slane %v967, 1
    %v999 = vrot.slane %v968, 1
    %v1000 = vrot.slane %v973, 1
    %v1001 = vrot.slane %v974, 1
    %v1002 = vrot.slane %v975, 1
    %v1003 = vrot.slane %v976, 1
    %v1004 = vrot.slane %v977, 1
    %v1005 = vrot.slane %v978, 1
    %v1006 = vrot.slane %v979, 1
    %v1007 = vrot.slane %v980, 1
    %v1008 = vrot.slane %v985, 1
    %v1009 = vrot.slane %v986, 1
    %v1010 = vrot.slane %v987, 1
    %v1011 = vrot.slane %v988, 1
    %v1012 = vrot.slane %v989, 1
    %v1013 = vrot.slane %v990, 1
    %v1014 = vrot.slane %v991, 1
    %1015 = vrot.lane.b32.xlu0 %v992, 96
    %v1016 = vpop.permute.xlu0 %1015
    %1017 = vrot.lane.b32.xlu0 %v993, 96
    %v1018 = vpop.permute.xlu0 %1017
    %1019 = vrot.lane.b32.xlu0 %v994, 96
    %v1020 = vpop.permute.xlu0 %1019
    %1021 = vrot.lane.b32.xlu0 %v995, 96
    %v1022 = vpop.permute.xlu0 %1021
    %1023 = vrot.lane.b32.xlu0 %v996, 96
    %v1024 = vpop.permute.xlu0 %1023
    %1025 = vrot.lane.b32.xlu0 %v997, 96
    %v1026 = vpop.permute.xlu0 %1025
    %1027 = vrot.lane.b32.xlu0 %v998, 96
    %v1028 = vpop.permute.xlu0 %1027
    %1029 = vrot.lane.b32.xlu0 %v999, 96
    %v1030 = vpop.permute.xlu0 %1029
    %1031 = vrot.lane.b32.xlu0 %v1000, 96
    %v1032 = vpop.permute.xlu0 %1031
    %1033 = vrot.lane.b32.xlu0 %v1001, 96
    %v1034 = vpop.permute.xlu0 %1033
    %1035 = vrot.lane.b32.xlu0 %v1002, 96
    %v1036 = vpop.permute.xlu0 %1035
    %1037 = vrot.lane.b32.xlu0 %v1003, 96
    %v1038 = vpop.permute.xlu0 %1037
    %1039 = vrot.lane.b32.xlu0 %v1004, 96
    %v1040 = vpop.permute.xlu0 %1039
    %1041 = vrot.lane.b32.xlu0 %v1005, 96
    %v1042 = vpop.permute.xlu0 %1041
    %1043 = vrot.lane.b32.xlu0 %v1006, 96
    %v1044 = vpop.permute.xlu0 %1043
    %1045 = vrot.lane.b32.xlu0 %v1007, 96
    %v1046 = vpop.permute.xlu0 %1045
    %1047 = vrot.lane.b32.xlu0 %v1008, 96
    %v1048 = vpop.permute.xlu0 %1047
    %1049 = vrot.lane.b32.xlu0 %v1009, 96
    %v1050 = vpop.permute.xlu0 %1049
    %1051 = vrot.lane.b32.xlu0 %v1010, 96
    %v1052 = vpop.permute.xlu0 %1051
    %1053 = vrot.lane.b32.xlu0 %v1011, 96
    %v1054 = vpop.permute.xlu0 %1053
    %1055 = vrot.lane.b32.xlu0 %v1012, 96
    %v1056 = vpop.permute.xlu0 %1055
    %1057 = vrot.lane.b32.xlu0 %v1013, 96
    %v1058 = vpop.permute.xlu0 %1057
    %1059 = vrot.lane.b32.xlu0 %v1014, 96
    %v1060 = vpop.permute.xlu0 %1059
    %vm1061 = vcmask 785408
    %v1062 = vsel %vm1061, %v1016, %v1018
    %v1063 = vsel %vm1061, %v1018, %v1020
    %v1064 = vsel %vm1061, %v1020, %v1022
    %v1065 = vsel %vm1061, %v1022, %v1024
    %v1066 = vsel %vm1061, %v1024, %v1026
    %v1067 = vsel %vm1061, %v1026, %v1028
    %v1068 = vsel %vm1061, %v1028, %v1030
    %v1069 = vsel %vm1061, %v1030, %v1032
    %v1070 = vsel %vm1061, %v1032, %v1034
    %v1071 = vsel %vm1061, %v1034, %v1036
    %v1072 = vsel %vm1061, %v1036, %v1038
    %v1073 = vsel %vm1061, %v1038, %v1040
    %v1074 = vsel %vm1061, %v1040, %v1042
    %v1075 = vsel %vm1061, %v1042, %v1044
    %v1076 = vsel %vm1061, %v1044, %v1046
    %v1077 = vsel %vm1061, %v1046, %v1048
    %v1078 = vsel %vm1061, %v1048, %v1050
    %v1079 = vsel %vm1061, %v1050, %v1052
    %v1080 = vsel %vm1061, %v1052, %v1054
    %v1081 = vsel %vm1061, %v1054, %v1056
    %v1082 = vsel %vm1061, %v1056, %v1058
    %v1083 = vsel %vm1061, %v1058, %v1060
    %1106 = vst [vmem:[#allocation2 + $0xb0] sm:$0x80] %v1062
    %1107 = vst [vmem:[#allocation2 + $0xb8] sm:$0x80] %v1063
    %1108 = vst [vmem:[#allocation2 + $0xc0] sm:$0x80] %v1064
    %1109 = vst [vmem:[#allocation2 + $0xc8] sm:$0x80] %v1065
    %1110 = vst [vmem:[#allocation2 + $0xd0] sm:$0x80] %v1066
    %1111 = vst [vmem:[#allocation2 + $0xd8] sm:$0x80] %v1067
    %1112 = vst [vmem:[#allocation2 + $0xe0] sm:$0x80] %v1068
    %1113 = vst [vmem:[#allocation2 + $0xe8] sm:$0x80] %v1069
    %1114 = vst [vmem:[#allocation2 + $0xf0] sm:$0x80] %v1070
    %1115 = vst [vmem:[#allocation2 + $0xf8] sm:$0x80] %v1071
    %1116 = vst [vmem:[#allocation2 + $0x100] sm:$0x80] %v1072
    %1117 = vst [vmem:[#allocation2 + $0x108] sm:$0x80] %v1073
    %1118 = vst [vmem:[#allocation2 + $0x110] sm:$0x80] %v1074
    %1119 = vst [vmem:[#allocation2 + $0x118] sm:$0x80] %v1075
    %1120 = vst [vmem:[#allocation2 + $0x120] sm:$0x80] %v1076
    %1121 = vst [vmem:[#allocation2 + $0x128] sm:$0x80] %v1077
    %1122 = vst [vmem:[#allocation2 + $0x130] sm:$0x80] %v1078
    %1123 = vst [vmem:[#allocation2 + $0x138] sm:$0x80] %v1079
    %1124 = vst [vmem:[#allocation2 + $0x140] sm:$0x80] %v1080
    %1125 = vst [vmem:[#allocation2 + $0x148] sm:$0x80] %v1081
    %1126 = vst [vmem:[#allocation2 + $0x150] sm:$0x80] %v1082
    %1127 = vst [vmem:[#allocation2 + $0x158] sm:$0x80] %v1083
    %1128 = vst [vmem:[#allocation2 + $0x160] sm:$0x3] %v1062
    %1129 = vst [vmem:[#allocation2 + $0x168] sm:$0x3] %v1063
    %1130 = vst [vmem:[#allocation2 + $0x170] sm:$0x3] %v1064
    %1131 = vst [vmem:[#allocation2 + $0x178] sm:$0x3] %v1065
    %1132 = vst [vmem:[#allocation2 + $0x180] sm:$0x3] %v1066
    %1133 = vst [vmem:[#allocation2 + $0x188] sm:$0x3] %v1067
    %1134 = vst [vmem:[#allocation2 + $0x190] sm:$0x3] %v1068
    %1135 = vst [vmem:[#allocation2 + $0x198] sm:$0x3] %v1069
    %1136 = vst [vmem:[#allocation2 + $0x1a0] sm:$0x3] %v1070
    %1137 = vst [vmem:[#allocation2 + $0x1a8] sm:$0x3] %v1071
    %1138 = vst [vmem:[#allocation2 + $0x1b0] sm:$0x3] %v1072
    %1139 = vst [vmem:[#allocation2 + $0x1b8] sm:$0x3] %v1073
    %1140 = vst [vmem:[#allocation2 + $0x1c0] sm:$0x3] %v1074
    %1141 = vst [vmem:[#allocation2 + $0x1c8] sm:$0x3] %v1075
    %1142 = vst [vmem:[#allocation2 + $0x1d0] sm:$0x3] %v1076
    %1143 = vst [vmem:[#allocation2 + $0x1d8] sm:$0x3] %v1077
    %1144 = vst [vmem:[#allocation2 + $0x1e0] sm:$0x3] %v1078
    %1145 = vst [vmem:[#allocation2 + $0x1e8] sm:$0x3] %v1079
    %1146 = vst [vmem:[#allocation2 + $0x1f0] sm:$0x3] %v1080
    %1147 = vst [vmem:[#allocation2 + $0x1f8] sm:$0x3] %v1081
    %1148 = vst [vmem:[#allocation2 + $0x200] sm:$0x3] %v1082
    %1149 = vst [vmem:[#allocation2 + $0x208] sm:$0x3] %v1083
    %v1150 = vld [vmem:[%s0] sm:$0x77]
    %v1151 = vld [vmem:[%s0 + $0x8] sm:$0x77]
    %v1152 = vld [vmem:[%s0 + $0x10] sm:$0x77]
    %v1153 = vld [vmem:[%s0 + $0x18] sm:$0x77]
    %v1154 = vld [vmem:[%s0 + $0x20] sm:$0x77]
    %v1155 = vld [vmem:[%s0 + $0x28] sm:$0x77]
    %v1156 = vld [vmem:[%s0 + $0x30] sm:$0x77]
    %v1157 = vld [vmem:[%s0 + $0x38] sm:$0x77]
    %v1158 = vld [vmem:[%s0 + $0x40] sm:$0x77]
    %v1159 = vld [vmem:[%s0 + $0x48] sm:$0x77]
    %v1160 = vld [vmem:[%s0 + $0x50] sm:$0x77]
    %v1161 = vld [vmem:[%s0 + $0x58] sm:$0x7]
    %1174 = vst [vmem:[#allocation1] ss:$2 sm:$0xff] %v1150
    %s1175 = scalar_lea.vmem [#allocation1], 16
    %1176 = vst [vmem:[%s1175] ss:$2 sm:$0xff] %v1151
    %s1177 = scalar_lea.vmem [#allocation1], 32
    %1178 = vst [vmem:[%s1177] ss:$2 sm:$0xff] %v1152
    %s1179 = scalar_lea.vmem [#allocation1], 48
    %1180 = vst [vmem:[%s1179] ss:$2 sm:$0xff] %v1153
    %v1181 = vld.sshfl [vmem:[#allocation1] sm:$0xff pattern:$0x75316420]
    %v1182 = vld.sshfl [vmem:[#allocation1 + $0x8] sm:$0xff pattern:$0x75316420]
    %v1183 = vld.sshfl [vmem:[#allocation1 + $0x10] sm:$0xff pattern:$0x75316420]
    %v1184 = vld.sshfl [vmem:[#allocation1 + $0x18] sm:$0xff pattern:$0x75316420]
    %v1185 = vld.sshfl [vmem:[#allocation1 + $0x20] sm:$0xff pattern:$0x75316420]
    %v1186 = vld.sshfl [vmem:[#allocation1 + $0x28] sm:$0xff pattern:$0x75316420]
    %v1187 = vld.sshfl [vmem:[#allocation1 + $0x30] sm:$0xff pattern:$0x75316420]
    %v1188 = vld.sshfl [vmem:[#allocation1 + $0x38] sm:$0xff pattern:$0x75316420]
    %1189 = vst [vmem:[#allocation1] ss:$2 sm:$0xff] %v1154
    %1190 = vst [vmem:[%s1175] ss:$2 sm:$0xff] %v1155
    %1191 = vst [vmem:[%s1177] ss:$2 sm:$0xff] %v1156
    %1192 = vst [vmem:[%s1179] ss:$2 sm:$0xff] %v1157
    %v1193 = vld.sshfl [vmem:[#allocation1] sm:$0xff pattern:$0x75316420]
    %v1194 = vld.sshfl [vmem:[#allocation1 + $0x8] sm:$0xff pattern:$0x75316420]
    %v1195 = vld.sshfl [vmem:[#allocation1 + $0x10] sm:$0xff pattern:$0x75316420]
    %v1196 = vld.sshfl [vmem:[#allocation1 + $0x18] sm:$0xff pattern:$0x75316420]
    %v1197 = vld.sshfl [vmem:[#allocation1 + $0x20] sm:$0xff pattern:$0x75316420]
    %v1198 = vld.sshfl [vmem:[#allocation1 + $0x28] sm:$0xff pattern:$0x75316420]
    %v1199 = vld.sshfl [vmem:[#allocation1 + $0x30] sm:$0xff pattern:$0x75316420]
    %v1200 = vld.sshfl [vmem:[#allocation1 + $0x38] sm:$0xff pattern:$0x75316420]
    %1201 = vst [vmem:[#allocation1] ss:$2 sm:$0xff] %v1158
    %1202 = vst [vmem:[%s1175] ss:$2 sm:$0xff] %v1159
    %1203 = vst [vmem:[%s1177] ss:$2 sm:$0xff] %v1160
    %1204 = vst [vmem:[%s1179] ss:$2 sm:$0xff] %v1161
    %v1205 = vld.sshfl [vmem:[#allocation1] sm:$0xff pattern:$0x75316420]
    %v1206 = vld.sshfl [vmem:[#allocation1 + $0x8] sm:$0xff pattern:$0x75316420]
    %v1207 = vld.sshfl [vmem:[#allocation1 + $0x10] sm:$0xff pattern:$0x75316420]
    %v1208 = vld.sshfl [vmem:[#allocation1 + $0x18] sm:$0xff pattern:$0x75316420]
    %v1209 = vld.sshfl [vmem:[#allocation1 + $0x20] sm:$0xff pattern:$0x75316420]
    %v1210 = vld.sshfl [vmem:[#allocation1 + $0x28] sm:$0xff pattern:$0x75316420]
    %v1211 = vld.sshfl [vmem:[#allocation1 + $0x30] sm:$0xff pattern:$0x75316420]
    %v1212 = vrot.slane %v1181, 6
    %v1213 = vrot.slane %v1182, 6
    %v1214 = vrot.slane %v1183, 6
    %v1215 = vrot.slane %v1184, 6
    %v1216 = vrot.slane %v1185, 6
    %v1217 = vrot.slane %v1186, 6
    %v1218 = vrot.slane %v1187, 6
    %v1219 = vrot.slane %v1188, 6
    %v1220 = vrot.slane %v1193, 6
    %v1221 = vrot.slane %v1194, 6
    %v1222 = vrot.slane %v1195, 6
    %v1223 = vrot.slane %v1196, 6
    %v1224 = vrot.slane %v1197, 6
    %v1225 = vrot.slane %v1198, 6
    %v1226 = vrot.slane %v1199, 6
    %v1227 = vrot.slane %v1200, 6
    %v1228 = vrot.slane %v1205, 6
    %v1229 = vrot.slane %v1206, 6
    %v1230 = vrot.slane %v1207, 6
    %v1231 = vrot.slane %v1208, 6
    %v1232 = vrot.slane %v1209, 6
    %v1233 = vrot.slane %v1210, 6
    %v1234 = vrot.slane %v1211, 6
    %1235 = vrot.lane.b32.xlu0 %v1212, 95
    %v1236 = vpop.permute.xlu0 %1235
    %1237 = vrot.lane.b32.xlu0 %v1213, 95
    %v1238 = vpop.permute.xlu0 %1237
    %1239 = vrot.lane.b32.xlu0 %v1214, 95
    %v1240 = vpop.permute.xlu0 %1239
    %1241 = vrot.lane.b32.xlu0 %v1215, 95
    %v1242 = vpop.permute.xlu0 %1241
    %1243 = vrot.lane.b32.xlu0 %v1216, 95
    %v1244 = vpop.permute.xlu0 %1243
    %1245 = vrot.lane.b32.xlu0 %v1217, 95
    %v1246 = vpop.permute.xlu0 %1245
    %1247 = vrot.lane.b32.xlu0 %v1218, 95
    %v1248 = vpop.permute.xlu0 %1247
    %1249 = vrot.lane.b32.xlu0 %v1219, 95
    %v1250 = vpop.permute.xlu0 %1249
    %1251 = vrot.lane.b32.xlu0 %v1220, 95
    %v1252 = vpop.permute.xlu0 %1251
    %1253 = vrot.lane.b32.xlu0 %v1221, 95
    %v1254 = vpop.permute.xlu0 %1253
    %1255 = vrot.lane.b32.xlu0 %v1222, 95
    %v1256 = vpop.permute.xlu0 %1255
    %1257 = vrot.lane.b32.xlu0 %v1223, 95
    %v1258 = vpop.permute.xlu0 %1257
    %1259 = vrot.lane.b32.xlu0 %v1224, 95
    %v1260 = vpop.permute.xlu0 %1259
    %1261 = vrot.lane.b32.xlu0 %v1225, 95
    %v1262 = vpop.permute.xlu0 %1261
    %1263 = vrot.lane.b32.xlu0 %v1226, 95
    %v1264 = vpop.permute.xlu0 %1263
    %1265 = vrot.lane.b32.xlu0 %v1227, 95
    %v1266 = vpop.permute.xlu0 %1265
    %1267 = vrot.lane.b32.xlu0 %v1228, 95
    %v1268 = vpop.permute.xlu0 %1267
    %1269 = vrot.lane.b32.xlu0 %v1229, 95
    %v1270 = vpop.permute.xlu0 %1269
    %1271 = vrot.lane.b32.xlu0 %v1230, 95
    %v1272 = vpop.permute.xlu0 %1271
    %1273 = vrot.lane.b32.xlu0 %v1231, 95
    %v1274 = vpop.permute.xlu0 %1273
    %1275 = vrot.lane.b32.xlu0 %v1232, 95
    %v1276 = vpop.permute.xlu0 %1275
    %1277 = vrot.lane.b32.xlu0 %v1233, 95
    %v1278 = vpop.permute.xlu0 %1277
    %1279 = vrot.lane.b32.xlu0 %v1234, 95
    %v1280 = vpop.permute.xlu0 %1279
    %vm1281 = vcmask 777216
    %v1282 = vsel %vm1281, %v1236, %v1238
    %v1283 = vsel %vm1281, %v1238, %v1240
    %v1284 = vsel %vm1281, %v1240, %v1242
    %v1285 = vsel %vm1281, %v1242, %v1244
    %v1286 = vsel %vm1281, %v1244, %v1246
    %v1287 = vsel %vm1281, %v1246, %v1248
    %v1288 = vsel %vm1281, %v1248, %v1250
    %v1289 = vsel %vm1281, %v1250, %v1252
    %v1290 = vsel %vm1281, %v1252, %v1254
    %v1291 = vsel %vm1281, %v1254, %v1256
    %v1292 = vsel %vm1281, %v1256, %v1258
    %v1293 = vsel %vm1281, %v1258, %v1260
    %v1294 = vsel %vm1281, %v1260, %v1262
    %v1295 = vsel %vm1281, %v1262, %v1264
    %v1296 = vsel %vm1281, %v1264, %v1266
    %v1297 = vsel %vm1281, %v1266, %v1268
    %v1298 = vsel %vm1281, %v1268, %v1270
    %v1299 = vsel %vm1281, %v1270, %v1272
    %v1300 = vsel %vm1281, %v1272, %v1274
    %v1301 = vsel %vm1281, %v1274, %v1276
    %v1302 = vsel %vm1281, %v1276, %v1278
    %v1303 = vsel %vm1281, %v1278, %v1280
    %1326 = vst [vmem:[#allocation2 + $0x160] sm:$0x1c] %v1282
    %1327 = vst [vmem:[#allocation2 + $0x168] sm:$0x1c] %v1283
    %1328 = vst [vmem:[#allocation2 + $0x170] sm:$0x1c] %v1284
    %1329 = vst [vmem:[#allocation2 + $0x178] sm:$0x1c] %v1285
    %1330 = vst [vmem:[#allocation2 + $0x180] sm:$0x1c] %v1286
    %1331 = vst [vmem:[#allocation2 + $0x188] sm:$0x1c] %v1287
    %1332 = vst [vmem:[#allocation2 + $0x190] sm:$0x1c] %v1288
    %1333 = vst [vmem:[#allocation2 + $0x198] sm:$0x1c] %v1289
    %1334 = vst [vmem:[#allocation2 + $0x1a0] sm:$0x1c] %v1290
    %1335 = vst [vmem:[#allocation2 + $0x1a8] sm:$0x1c] %v1291
    %1336 = vst [vmem:[#allocation2 + $0x1b0] sm:$0x1c] %v1292
    %1337 = vst [vmem:[#allocation2 + $0x1b8] sm:$0x1c] %v1293
    %1338 = vst [vmem:[#allocation2 + $0x1c0] sm:$0x1c] %v1294
    %1339 = vst [vmem:[#allocation2 + $0x1c8] sm:$0x1c] %v1295
    %1340 = vst [vmem:[#allocation2 + $0x1d0] sm:$0x1c] %v1296
    %1341 = vst [vmem:[#allocation2 + $0x1d8] sm:$0x1c] %v1297
    %1342 = vst [vmem:[#allocation2 + $0x1e0] sm:$0x1c] %v1298
    %1343 = vst [vmem:[#allocation2 + $0x1e8] sm:$0x1c] %v1299
    %1344 = vst [vmem:[#allocation2 + $0x1f0] sm:$0x1c] %v1300
    %1345 = vst [vmem:[#allocation2 + $0x1f8] sm:$0x1c] %v1301
    %1346 = vst [vmem:[#allocation2 + $0x200] sm:$0x1c] %v1302
    %1347 = vst [vmem:[#allocation2 + $0x208] sm:$0x1c] %v1303
    %v1348 = vld [vmem:[%s0] sm:$0x77]
    %v1349 = vld [vmem:[%s0 + $0x8] sm:$0x77]
    %v1350 = vld [vmem:[%s0 + $0x10] sm:$0x77]
    %v1351 = vld [vmem:[%s0 + $0x18] sm:$0x77]
    %v1352 = vld [vmem:[%s0 + $0x20] sm:$0x77]
    %v1353 = vld [vmem:[%s0 + $0x28] sm:$0x77]
    %v1354 = vld [vmem:[%s0 + $0x30] sm:$0x77]
    %v1355 = vld [vmem:[%s0 + $0x38] sm:$0x77]
    %v1356 = vld [vmem:[%s0 + $0x40] sm:$0x77]
    %v1357 = vld [vmem:[%s0 + $0x48] sm:$0x77]
    %v1358 = vld [vmem:[%s0 + $0x50] sm:$0x77]
    %v1359 = vld [vmem:[%s0 + $0x58] sm:$0x7]
    %1372 = vst [vmem:[#allocation1] ss:$2 sm:$0xff] %v1348
    %s1373 = scalar_lea.vmem [#allocation1], 16
    %1374 = vst [vmem:[%s1373] ss:$2 sm:$0xff] %v1349
    %s1375 = scalar_lea.vmem [#allocation1], 32
    %1376 = vst [vmem:[%s1375] ss:$2 sm:$0xff] %v1350
    %s1377 = scalar_lea.vmem [#allocation1], 48
    %1378 = vst [vmem:[%s1377] ss:$2 sm:$0xff] %v1351
    %v1379 = vld.sshfl [vmem:[#allocation1] sm:$0xff pattern:$0x75316420]
    %v1380 = vld.sshfl [vmem:[#allocation1 + $0x8] sm:$0xff pattern:$0x75316420]
    %v1381 = vld.sshfl [vmem:[#allocation1 + $0x10] sm:$0xff pattern:$0x75316420]
    %v1382 = vld.sshfl [vmem:[#allocation1 + $0x18] sm:$0xff pattern:$0x75316420]
    %v1383 = vld.sshfl [vmem:[#allocation1 + $0x20] sm:$0xff pattern:$0x75316420]
    %v1384 = vld.sshfl [vmem:[#allocation1 + $0x28] sm:$0xff pattern:$0x75316420]
    %v1385 = vld.sshfl [vmem:[#allocation1 + $0x30] sm:$0xff pattern:$0x75316420]
    %v1386 = vld.sshfl [vmem:[#allocation1 + $0x38] sm:$0xff pattern:$0x75316420]
    %1387 = vst [vmem:[#allocation1] ss:$2 sm:$0xff] %v1352
    %1388 = vst [vmem:[%s1373] ss:$2 sm:$0xff] %v1353
    %1389 = vst [vmem:[%s1375] ss:$2 sm:$0xff] %v1354
    %1390 = vst [vmem:[%s1377] ss:$2 sm:$0xff] %v1355
    %v1391 = vld.sshfl [vmem:[#allocation1] sm:$0xff pattern:$0x75316420]
    %v1392 = vld.sshfl [vmem:[#allocation1 + $0x8] sm:$0xff pattern:$0x75316420]
    %v1393 = vld.sshfl [vmem:[#allocation1 + $0x10] sm:$0xff pattern:$0x75316420]
    %v1394 = vld.sshfl [vmem:[#allocation1 + $0x18] sm:$0xff pattern:$0x75316420]
    %v1395 = vld.sshfl [vmem:[#allocation1 + $0x20] sm:$0xff pattern:$0x75316420]
    %v1396 = vld.sshfl [vmem:[#allocation1 + $0x28] sm:$0xff pattern:$0x75316420]
    %v1397 = vld.sshfl [vmem:[#allocation1 + $0x30] sm:$0xff pattern:$0x75316420]
    %v1398 = vld.sshfl [vmem:[#allocation1 + $0x38] sm:$0xff pattern:$0x75316420]
    %1399 = vst [vmem:[#allocation1] ss:$2 sm:$0xff] %v1356
    %1400 = vst [vmem:[%s1373] ss:$2 sm:$0xff] %v1357
    %1401 = vst [vmem:[%s1375] ss:$2 sm:$0xff] %v1358
    %1402 = vst [vmem:[%s1377] ss:$2 sm:$0xff] %v1359
    %v1403 = vld.sshfl [vmem:[#allocation1] sm:$0xff pattern:$0x75316420]
    %v1404 = vld.sshfl [vmem:[#allocation1 + $0x8] sm:$0xff pattern:$0x75316420]
    %v1405 = vld.sshfl [vmem:[#allocation1 + $0x10] sm:$0xff pattern:$0x75316420]
    %v1406 = vld.sshfl [vmem:[#allocation1 + $0x18] sm:$0xff pattern:$0x75316420]
    %v1407 = vld.sshfl [vmem:[#allocation1 + $0x20] sm:$0xff pattern:$0x75316420]
    %v1408 = vld.sshfl [vmem:[#allocation1 + $0x28] sm:$0xff pattern:$0x75316420]
    %v1409 = vld.sshfl [vmem:[#allocation1 + $0x30] sm:$0xff pattern:$0x75316420]
    %v1410 = vrot.slane %v1379, 3
    %v1411 = vrot.slane %v1380, 3
    %v1412 = vrot.slane %v1381, 3
    %v1413 = vrot.slane %v1382, 3
    %v1414 = vrot.slane %v1383, 3
    %v1415 = vrot.slane %v1384, 3
    %v1416 = vrot.slane %v1385, 3
    %v1417 = vrot.slane %v1386, 3
    %v1418 = vrot.slane %v1391, 3
    %v1419 = vrot.slane %v1392, 3
    %v1420 = vrot.slane %v1393, 3
    %v1421 = vrot.slane %v1394, 3
    %v1422 = vrot.slane %v1395, 3
    %v1423 = vrot.slane %v1396, 3
    %v1424 = vrot.slane %v1397, 3
    %v1425 = vrot.slane %v1398, 3
    %v1426 = vrot.slane %v1403, 3
    %v1427 = vrot.slane %v1404, 3
    %v1428 = vrot.slane %v1405, 3
    %v1429 = vrot.slane %v1406, 3
    %v1430 = vrot.slane %v1407, 3
    %v1431 = vrot.slane %v1408, 3
    %v1432 = vrot.slane %v1409, 3
    %1433 = vrot.lane.b32.xlu0 %v1410, 94
    %v1434 = vpop.permute.xlu0 %1433
    %1435 = vrot.lane.b32.xlu0 %v1411, 94
    %v1436 = vpop.permute.xlu0 %1435
    %1437 = vrot.lane.b32.xlu0 %v1412, 94
    %v1438 = vpop.permute.xlu0 %1437
    %1439 = vrot.lane.b32.xlu0 %v1413, 94
    %v1440 = vpop.permute.xlu0 %1439
    %1441 = vrot.lane.b32.xlu0 %v1414, 94
    %v1442 = vpop.permute.xlu0 %1441
    %1443 = vrot.lane.b32.xlu0 %v1415, 94
    %v1444 = vpop.permute.xlu0 %1443
    %1445 = vrot.lane.b32.xlu0 %v1416, 94
    %v1446 = vpop.permute.xlu0 %1445
    %1447 = vrot.lane.b32.xlu0 %v1417, 94
    %v1448 = vpop.permute.xlu0 %1447
    %1449 = vrot.lane.b32.xlu0 %v1418, 94
    %v1450 = vpop.permute.xlu0 %1449
    %1451 = vrot.lane.b32.xlu0 %v1419, 94
    %v1452 = vpop.permute.xlu0 %1451
    %1453 = vrot.lane.b32.xlu0 %v1420, 94
    %v1454 = vpop.permute.xlu0 %1453
    %1455 = vrot.lane.b32.xlu0 %v1421, 94
    %v1456 = vpop.permute.xlu0 %1455
    %1457 = vrot.lane.b32.xlu0 %v1422, 94
    %v1458 = vpop.permute.xlu0 %1457
    %1459 = vrot.lane.b32.xlu0 %v1423, 94
    %v1460 = vpop.permute.xlu0 %1459
    %1461 = vrot.lane.b32.xlu0 %v1424, 94
    %v1462 = vpop.permute.xlu0 %1461
    %1463 = vrot.lane.b32.xlu0 %v1425, 94
    %v1464 = vpop.permute.xlu0 %1463
    %1465 = vrot.lane.b32.xlu0 %v1426, 94
    %v1466 = vpop.permute.xlu0 %1465
    %1467 = vrot.lane.b32.xlu0 %v1427, 94
    %v1468 = vpop.permute.xlu0 %1467
    %1469 = vrot.lane.b32.xlu0 %v1428, 94
    %v1470 = vpop.permute.xlu0 %1469
    %1471 = vrot.lane.b32.xlu0 %v1429, 94
    %v1472 = vpop.permute.xlu0 %1471
    %1473 = vrot.lane.b32.xlu0 %v1430, 94
    %v1474 = vpop.permute.xlu0 %1473
    %1475 = vrot.lane.b32.xlu0 %v1431, 94
    %v1476 = vpop.permute.xlu0 %1475
    %1477 = vrot.lane.b32.xlu0 %v1432, 94
    %v1478 = vpop.permute.xlu0 %1477
    %vm1479 = vcmask 769024
    %v1480 = vsel %vm1479, %v1434, %v1436
    %v1481 = vsel %vm1479, %v1436, %v1438
    %v1482 = vsel %vm1479, %v1438, %v1440
    %v1483 = vsel %vm1479, %v1440, %v1442
    %v1484 = vsel %vm1479, %v1442, %v1444
    %v1485 = vsel %vm1479, %v1444, %v1446
    %v1486 = vsel %vm1479, %v1446, %v1448
    %v1487 = vsel %vm1479, %v1448, %v1450
    %v1488 = vsel %vm1479, %v1450, %v1452
    %v1489 = vsel %vm1479, %v1452, %v1454
    %v1490 = vsel %vm1479, %v1454, %v1456
    %v1491 = vsel %vm1479, %v1456, %v1458
    %v1492 = vsel %vm1479, %v1458, %v1460
    %v1493 = vsel %vm1479, %v1460, %v1462
    %v1494 = vsel %vm1479, %v1462, %v1464
    %v1495 = vsel %vm1479, %v1464, %v1466
    %v1496 = vsel %vm1479, %v1466, %v1468
    %v1497 = vsel %vm1479, %v1468, %v1470
    %v1498 = vsel %vm1479, %v1470, %v1472
    %v1499 = vsel %vm1479, %v1472, %v1474
    %v1500 = vsel %vm1479, %v1474, %v1476
    %v1501 = vsel %vm1479, %v1476, %v1478
    %1524 = vst [vmem:[#allocation2 + $0x160] sm:$0xe0] %v1480
    %1525 = vst [vmem:[#allocation2 + $0x168] sm:$0xe0] %v1481
    %1526 = vst [vmem:[#allocation2 + $0x170] sm:$0xe0] %v1482
    %1527 = vst [vmem:[#allocation2 + $0x178] sm:$0xe0] %v1483
    %1528 = vst [vmem:[#allocation2 + $0x180] sm:$0xe0] %v1484
    %1529 = vst [vmem:[#allocation2 + $0x188] sm:$0xe0] %v1485
    %1530 = vst [vmem:[#allocation2 + $0x190] sm:$0xe0] %v1486
    %1531 = vst [vmem:[#allocation2 + $0x198] sm:$0xe0] %v1487
    %1532 = vst [vmem:[#allocation2 + $0x1a0] sm:$0xe0] %v1488
    %1533 = vst [vmem:[#allocation2 + $0x1a8] sm:$0xe0] %v1489
    %1534 = vst [vmem:[#allocation2 + $0x1b0] sm:$0xe0] %v1490
    %1535 = vst [vmem:[#allocation2 + $0x1b8] sm:$0xe0] %v1491
    %1536 = vst [vmem:[#allocation2 + $0x1c0] sm:$0xe0] %v1492
    %1537 = vst [vmem:[#allocation2 + $0x1c8] sm:$0xe0] %v1493
    %1538 = vst [vmem:[#allocation2 + $0x1d0] sm:$0xe0] %v1494
    %1539 = vst [vmem:[#allocation2 + $0x1d8] sm:$0xe0] %v1495
    %1540 = vst [vmem:[#allocation2 + $0x1e0] sm:$0xe0] %v1496
    %1541 = vst [vmem:[#allocation2 + $0x1e8] sm:$0xe0] %v1497
    %1542 = vst [vmem:[#allocation2 + $0x1f0] sm:$0xe0] %v1498
    %1543 = vst [vmem:[#allocation2 + $0x1f8] sm:$0xe0] %v1499
    %1544 = vst [vmem:[#allocation2 + $0x200] sm:$0xe0] %v1500
    %1545 = vst [vmem:[#allocation2 + $0x208] sm:$0xe0] %v1501
    %v1546 = vld [vmem:[%s0] sm:$0x77]
    %v1547 = vld [vmem:[%s0 + $0x8] sm:$0x77]
    %v1548 = vld [vmem:[%s0 + $0x10] sm:$0x77]
    %v1549 = vld [vmem:[%s0 + $0x18] sm:$0x77]
    %v1550 = vld [vmem:[%s0 + $0x20] sm:$0x77]
    %v1551 = vld [vmem:[%s0 + $0x28] sm:$0x77]
    %v1552 = vld [vmem:[%s0 + $0x30] sm:$0x77]
    %v1553 = vld [vmem:[%s0 + $0x38] sm:$0x77]
    %v1554 = vld [vmem:[%s0 + $0x40] sm:$0x77]
    %v1555 = vld [vmem:[%s0 + $0x48] sm:$0x77]
    %v1556 = vld [vmem:[%s0 + $0x50] sm:$0x77]
    %v1557 = vld [vmem:[%s0 + $0x58] sm:$0x7]
    %1570 = vst [vmem:[#allocation1] ss:$2 sm:$0xff] %v1546
    %s1571 = scalar_lea.vmem [#allocation1], 16
    %1572 = vst [vmem:[%s1571] ss:$2 sm:$0xff] %v1547
    %s1573 = scalar_lea.vmem [#allocation1], 32
    %1574 = vst [vmem:[%s1573] ss:$2 sm:$0xff] %v1548
    %s1575 = scalar_lea.vmem [#allocation1], 48
    %1576 = vst [vmem:[%s1575] ss:$2 sm:$0xff] %v1549
    %v1577 = vld.sshfl [vmem:[#allocation1] sm:$0xff pattern:$0x75316420]
    %v1578 = vld.sshfl [vmem:[#allocation1 + $0x8] sm:$0xff pattern:$0x75316420]
    %v1579 = vld.sshfl [vmem:[#allocation1 + $0x10] sm:$0xff pattern:$0x75316420]
    %v1580 = vld.sshfl [vmem:[#allocation1 + $0x18] sm:$0xff pattern:$0x75316420]
    %v1581 = vld.sshfl [vmem:[#allocation1 + $0x20] sm:$0xff pattern:$0x75316420]
    %v1582 = vld.sshfl [vmem:[#allocation1 + $0x28] sm:$0xff pattern:$0x75316420]
    %v1583 = vld.sshfl [vmem:[#allocation1 + $0x30] sm:$0xff pattern:$0x75316420]
    %v1584 = vld.sshfl [vmem:[#allocation1 + $0x38] sm:$0xff pattern:$0x75316420]
    %1585 = vst [vmem:[#allocation1] ss:$2 sm:$0xff] %v1550
    %1586 = vst [vmem:[%s1571] ss:$2 sm:$0xff] %v1551
    %1587 = vst [vmem:[%s1573] ss:$2 sm:$0xff] %v1552
    %1588 = vst [vmem:[%s1575] ss:$2 sm:$0xff] %v1553
    %v1589 = vld.sshfl [vmem:[#allocation1] sm:$0xff pattern:$0x75316420]
    %v1590 = vld.sshfl [vmem:[#allocation1 + $0x8] sm:$0xff pattern:$0x75316420]
    %v1591 = vld.sshfl [vmem:[#allocation1 + $0x10] sm:$0xff pattern:$0x75316420]
    %v1592 = vld.sshfl [vmem:[#allocation1 + $0x18] sm:$0xff pattern:$0x75316420]
    %v1593 = vld.sshfl [vmem:[#allocation1 + $0x20] sm:$0xff pattern:$0x75316420]
    %v1594 = vld.sshfl [vmem:[#allocation1 + $0x28] sm:$0xff pattern:$0x75316420]
    %v1595 = vld.sshfl [vmem:[#allocation1 + $0x30] sm:$0xff pattern:$0x75316420]
    %v1596 = vld.sshfl [vmem:[#allocation1 + $0x38] sm:$0xff pattern:$0x75316420]
    %1597 = vst [vmem:[#allocation1] ss:$2 sm:$0xff] %v1554
    %1598 = vst [vmem:[%s1571] ss:$2 sm:$0xff] %v1555
    %1599 = vst [vmem:[%s1573] ss:$2 sm:$0xff] %v1556
    %1600 = vst [vmem:[%s1575] ss:$2 sm:$0xff] %v1557
    %v1601 = vld.sshfl [vmem:[#allocation1] sm:$0xff pattern:$0x75316420]
    %v1602 = vld.sshfl [vmem:[#allocation1 + $0x8] sm:$0xff pattern:$0x75316420]
    %v1603 = vld.sshfl [vmem:[#allocation1 + $0x10] sm:$0xff pattern:$0x75316420]
    %v1604 = vld.sshfl [vmem:[#allocation1 + $0x18] sm:$0xff pattern:$0x75316420]
    %v1605 = vld.sshfl [vmem:[#allocation1 + $0x20] sm:$0xff pattern:$0x75316420]
    %v1606 = vld.sshfl [vmem:[#allocation1 + $0x28] sm:$0xff pattern:$0x75316420]
    %v1607 = vld.sshfl [vmem:[#allocation1 + $0x30] sm:$0xff pattern:$0x75316420]
    %1608 = vrot.lane.b32.xlu0 %v1577, 93
    %v1609 = vpop.permute.xlu0 %1608
    %1610 = vrot.lane.b32.xlu0 %v1578, 93
    %v1611 = vpop.permute.xlu0 %1610
    %1612 = vrot.lane.b32.xlu0 %v1579, 93
    %v1613 = vpop.permute.xlu0 %1612
    %1614 = vrot.lane.b32.xlu0 %v1580, 93
    %v1615 = vpop.permute.xlu0 %1614
    %1616 = vrot.lane.b32.xlu0 %v1581, 93
    %v1617 = vpop.permute.xlu0 %1616
    %1618 = vrot.lane.b32.xlu0 %v1582, 93
    %v1619 = vpop.permute.xlu0 %1618
    %1620 = vrot.lane.b32.xlu0 %v1583, 93
    %v1621 = vpop.permute.xlu0 %1620
    %1622 = vrot.lane.b32.xlu0 %v1584, 93
    %v1623 = vpop.permute.xlu0 %1622
    %1624 = vrot.lane.b32.xlu0 %v1589, 93
    %v1625 = vpop.permute.xlu0 %1624
    %1626 = vrot.lane.b32.xlu0 %v1590, 93
    %v1627 = vpop.permute.xlu0 %1626
    %1628 = vrot.lane.b32.xlu0 %v1591, 93
    %v1629 = vpop.permute.xlu0 %1628
    %1630 = vrot.lane.b32.xlu0 %v1592, 93
    %v1631 = vpop.permute.xlu0 %1630
    %1632 = vrot.lane.b32.xlu0 %v1593, 93
    %v1633 = vpop.permute.xlu0 %1632
    %1634 = vrot.lane.b32.xlu0 %v1594, 93
    %v1635 = vpop.permute.xlu0 %1634
    %1636 = vrot.lane.b32.xlu0 %v1595, 93
    %v1637 = vpop.permute.xlu0 %1636
    %1638 = vrot.lane.b32.xlu0 %v1596, 93
    %v1639 = vpop.permute.xlu0 %1638
    %1640 = vrot.lane.b32.xlu0 %v1601, 93
    %v1641 = vpop.permute.xlu0 %1640
    %1642 = vrot.lane.b32.xlu0 %v1602, 93
    %v1643 = vpop.permute.xlu0 %1642
    %1644 = vrot.lane.b32.xlu0 %v1603, 93
    %v1645 = vpop.permute.xlu0 %1644
    %1646 = vrot.lane.b32.xlu0 %v1604, 93
    %v1647 = vpop.permute.xlu0 %1646
    %1648 = vrot.lane.b32.xlu0 %v1605, 93
    %v1649 = vpop.permute.xlu0 %1648
    %1650 = vrot.lane.b32.xlu0 %v1606, 93
    %v1651 = vpop.permute.xlu0 %1650
    %1652 = vrot.lane.b32.xlu0 %v1607, 93
    %v1653 = vpop.permute.xlu0 %1652
    %vm1654 = vcmask 760832
    %v1655 = vsel %vm1654, %v1609, %v1611
    %v1656 = vsel %vm1654, %v1611, %v1613
    %v1657 = vsel %vm1654, %v1613, %v1615
    %v1658 = vsel %vm1654, %v1615, %v1617
    %v1659 = vsel %vm1654, %v1617, %v1619
    %v1660 = vsel %vm1654, %v1619, %v1621
    %v1661 = vsel %vm1654, %v1621, %v1623
    %v1662 = vsel %vm1654, %v1623, %v1625
    %v1663 = vsel %vm1654, %v1625, %v1627
    %v1664 = vsel %vm1654, %v1627, %v1629
    %v1665 = vsel %vm1654, %v1629, %v1631
    %v1666 = vsel %vm1654, %v1631, %v1633
    %v1667 = vsel %vm1654, %v1633, %v1635
    %v1668 = vsel %vm1654, %v1635, %v1637
    %v1669 = vsel %vm1654, %v1637, %v1639
    %v1670 = vsel %vm1654, %v1639, %v1641
    %v1671 = vsel %vm1654, %v1641, %v1643
    %v1672 = vsel %vm1654, %v1643, %v1645
    %v1673 = vsel %vm1654, %v1645, %v1647
    %v1674 = vsel %vm1654, %v1647, %v1649
    %v1675 = vsel %vm1654, %v1649, %v1651
    %v1676 = vsel %vm1654, %v1651, %v1653
    %1699 = vst [vmem:[#allocation2 + $0x210] sm:$0x7] %v1655
    %1700 = vst [vmem:[#allocation2 + $0x218] sm:$0x7] %v1656
    %1701 = vst [vmem:[#allocation2 + $0x220] sm:$0x7] %v1657
    %1702 = vst [vmem:[#allocation2 + $0x228] sm:$0x7] %v1658
    %1703 = vst [vmem:[#allocation2 + $0x230] sm:$0x7] %v1659
    %1704 = vst [vmem:[#allocation2 + $0x238] sm:$0x7] %v1660
    %1705 = vst [vmem:[#allocation2 + $0x240] sm:$0x7] %v1661
    %1706 = vst [vmem:[#allocation2 + $0x248] sm:$0x7] %v1662
    %1707 = vst [vmem:[#allocation2 + $0x250] sm:$0x7] %v1663
    %1708 = vst [vmem:[#allocation2 + $0x258] sm:$0x7] %v1664
    %1709 = vst [vmem:[#allocation2 + $0x260] sm:$0x7] %v1665
    %1710 = vst [vmem:[#allocation2 + $0x268] sm:$0x7] %v1666
    %1711 = vst [vmem:[#allocation2 + $0x270] sm:$0x7] %v1667
    %1712 = vst [vmem:[#allocation2 + $0x278] sm:$0x7] %v1668
    %1713 = vst [vmem:[#allocation2 + $0x280] sm:$0x7] %v1669
    %1714 = vst [vmem:[#allocation2 + $0x288] sm:$0x7] %v1670
    %1715 = vst [vmem:[#allocation2 + $0x290] sm:$0x7] %v1671
    %1716 = vst [vmem:[#allocation2 + $0x298] sm:$0x7] %v1672
    %1717 = vst [vmem:[#allocation2 + $0x2a0] sm:$0x7] %v1673
    %1718 = vst [vmem:[#allocation2 + $0x2a8] sm:$0x7] %v1674
    %1719 = vst [vmem:[#allocation2 + $0x2b0] sm:$0x7] %v1675
    %1720 = vst [vmem:[#allocation2 + $0x2b8] sm:$0x7] %v1676
    %v1721 = vld [vmem:[%s0] sm:$0x77]
    %v1722 = vld [vmem:[%s0 + $0x8] sm:$0x77]
    %v1723 = vld [vmem:[%s0 + $0x10] sm:$0x77]
    %v1724 = vld [vmem:[%s0 + $0x18] sm:$0x77]
    %v1725 = vld [vmem:[%s0 + $0x20] sm:$0x77]
    %v1726 = vld [vmem:[%s0 + $0x28] sm:$0x77]
    %v1727 = vld [vmem:[%s0 + $0x30] sm:$0x77]
    %v1728 = vld [vmem:[%s0 + $0x38] sm:$0x77]
    %v1729 = vld [vmem:[%s0 + $0x40] sm:$0x77]
    %v1730 = vld [vmem:[%s0 + $0x48] sm:$0x77]
    %v1731 = vld [vmem:[%s0 + $0x50] sm:$0x77]
    %v1732 = vld [vmem:[%s0 + $0x58] sm:$0x7]
    %1745 = vst [vmem:[#allocation1] ss:$2 sm:$0xff] %v1721
    %s1746 = scalar_lea.vmem [#allocation1], 16
    %1747 = vst [vmem:[%s1746] ss:$2 sm:$0xff] %v1722
    %s1748 = scalar_lea.vmem [#allocation1], 32
    %1749 = vst [vmem:[%s1748] ss:$2 sm:$0xff] %v1723
    %s1750 = scalar_lea.vmem [#allocation1], 48
    %1751 = vst [vmem:[%s1750] ss:$2 sm:$0xff] %v1724
    %v1752 = vld.sshfl [vmem:[#allocation1] sm:$0xff pattern:$0x75316420]
    %v1753 = vld.sshfl [vmem:[#allocation1 + $0x8] sm:$0xff pattern:$0x75316420]
    %v1754 = vld.sshfl [vmem:[#allocation1 + $0x10] sm:$0xff pattern:$0x75316420]
    %v1755 = vld.sshfl [vmem:[#allocation1 + $0x18] sm:$0xff pattern:$0x75316420]
    %v1756 = vld.sshfl [vmem:[#allocation1 + $0x20] sm:$0xff pattern:$0x75316420]
    %v1757 = vld.sshfl [vmem:[#allocation1 + $0x28] sm:$0xff pattern:$0x75316420]
    %v1758 = vld.sshfl [vmem:[#allocation1 + $0x30] sm:$0xff pattern:$0x75316420]
    %v1759 = vld.sshfl [vmem:[#allocation1 + $0x38] sm:$0xff pattern:$0x75316420]
    %1760 = vst [vmem:[#allocation1] ss:$2 sm:$0xff] %v1725
    %1761 = vst [vmem:[%s1746] ss:$2 sm:$0xff] %v1726
    %1762 = vst [vmem:[%s1748] ss:$2 sm:$0xff] %v1727
    %1763 = vst [vmem:[%s1750] ss:$2 sm:$0xff] %v1728
    %v1764 = vld.sshfl [vmem:[#allocation1] sm:$0xff pattern:$0x75316420]
    %v1765 = vld.sshfl [vmem:[#allocation1 + $0x8] sm:$0xff pattern:$0x75316420]
    %v1766 = vld.sshfl [vmem:[#allocation1 + $0x10] sm:$0xff pattern:$0x75316420]
    %v1767 = vld.sshfl [vmem:[#allocation1 + $0x18] sm:$0xff pattern:$0x75316420]
    %v1768 = vld.sshfl [vmem:[#allocation1 + $0x20] sm:$0xff pattern:$0x75316420]
    %v1769 = vld.sshfl [vmem:[#allocation1 + $0x28] sm:$0xff pattern:$0x75316420]
    %v1770 = vld.sshfl [vmem:[#allocation1 + $0x30] sm:$0xff pattern:$0x75316420]
    %v1771 = vld.sshfl [vmem:[#allocation1 + $0x38] sm:$0xff pattern:$0x75316420]
    %1772 = vst [vmem:[#allocation1] ss:$2 sm:$0xff] %v1729
    %1773 = vst [vmem:[%s1746] ss:$2 sm:$0xff] %v1730
    %1774 = vst [vmem:[%s1748] ss:$2 sm:$0xff] %v1731
    %1775 = vst [vmem:[%s1750] ss:$2 sm:$0xff] %v1732
    %v1776 = vld.sshfl [vmem:[#allocation1] sm:$0xff pattern:$0x75316420]
    %v1777 = vld.sshfl [vmem:[#allocation1 + $0x8] sm:$0xff pattern:$0x75316420]
    %v1778 = vld.sshfl [vmem:[#allocation1 + $0x10] sm:$0xff pattern:$0x75316420]
    %v1779 = vld.sshfl [vmem:[#allocation1 + $0x18] sm:$0xff pattern:$0x75316420]
    %v1780 = vld.sshfl [vmem:[#allocation1 + $0x20] sm:$0xff pattern:$0x75316420]
    %v1781 = vld.sshfl [vmem:[#allocation1 + $0x28] sm:$0xff pattern:$0x75316420]
    %v1782 = vld.sshfl [vmem:[#allocation1 + $0x30] sm:$0xff pattern:$0x75316420]
    %v1783 = vrot.slane %v1752, 5
    %v1784 = vrot.slane %v1753, 5
    %v1785 = vrot.slane %v1754, 5
    %v1786 = vrot.slane %v1755, 5
    %v1787 = vrot.slane %v1756, 5
    %v1788 = vrot.slane %v1757, 5
    %v1789 = vrot.slane %v1758, 5
    %v1790 = vrot.slane %v1759, 5
    %v1791 = vrot.slane %v1764, 5
    %v1792 = vrot.slane %v1765, 5
    %v1793 = vrot.slane %v1766, 5
    %v1794 = vrot.slane %v1767, 5
    %v1795 = vrot.slane %v1768, 5
    %v1796 = vrot.slane %v1769, 5
    %v1797 = vrot.slane %v1770, 5
    %v1798 = vrot.slane %v1771, 5
    %v1799 = vrot.slane %v1776, 5
    %v1800 = vrot.slane %v1777, 5
    %v1801 = vrot.slane %v1778, 5
    %v1802 = vrot.slane %v1779, 5
    %v1803 = vrot.slane %v1780, 5
    %v1804 = vrot.slane %v1781, 5
    %v1805 = vrot.slane %v1782, 5
    %1806 = vrot.lane.b32.xlu0 %v1783, 92
    %v1807 = vpop.permute.xlu0 %1806
    %1808 = vrot.lane.b32.xlu0 %v1784, 92
    %v1809 = vpop.permute.xlu0 %1808
    %1810 = vrot.lane.b32.xlu0 %v1785, 92
    %v1811 = vpop.permute.xlu0 %1810
    %1812 = vrot.lane.b32.xlu0 %v1786, 92
    %v1813 = vpop.permute.xlu0 %1812
    %1814 = vrot.lane.b32.xlu0 %v1787, 92
    %v1815 = vpop.permute.xlu0 %1814
    %1816 = vrot.lane.b32.xlu0 %v1788, 92
    %v1817 = vpop.permute.xlu0 %1816
    %1818 = vrot.lane.b32.xlu0 %v1789, 92
    %v1819 = vpop.permute.xlu0 %1818
    %1820 = vrot.lane.b32.xlu0 %v1790, 92
    %v1821 = vpop.permute.xlu0 %1820
    %1822 = vrot.lane.b32.xlu0 %v1791, 92
    %v1823 = vpop.permute.xlu0 %1822
    %1824 = vrot.lane.b32.xlu0 %v1792, 92
    %v1825 = vpop.permute.xlu0 %1824
    %1826 = vrot.lane.b32.xlu0 %v1793, 92
    %v1827 = vpop.permute.xlu0 %1826
    %1828 = vrot.lane.b32.xlu0 %v1794, 92
    %v1829 = vpop.permute.xlu0 %1828
    %1830 = vrot.lane.b32.xlu0 %v1795, 92
    %v1831 = vpop.permute.xlu0 %1830
    %1832 = vrot.lane.b32.xlu0 %v1796, 92
    %v1833 = vpop.permute.xlu0 %1832
    %1834 = vrot.lane.b32.xlu0 %v1797, 92
    %v1835 = vpop.permute.xlu0 %1834
    %1836 = vrot.lane.b32.xlu0 %v1798, 92
    %v1837 = vpop.permute.xlu0 %1836
    %1838 = vrot.lane.b32.xlu0 %v1799, 92
    %v1839 = vpop.permute.xlu0 %1838
    %1840 = vrot.lane.b32.xlu0 %v1800, 92
    %v1841 = vpop.permute.xlu0 %1840
    %1842 = vrot.lane.b32.xlu0 %v1801, 92
    %v1843 = vpop.permute.xlu0 %1842
    %1844 = vrot.lane.b32.xlu0 %v1802, 92
    %v1845 = vpop.permute.xlu0 %1844
    %1846 = vrot.lane.b32.xlu0 %v1803, 92
    %v1847 = vpop.permute.xlu0 %1846
    %1848 = vrot.lane.b32.xlu0 %v1804, 92
    %v1849 = vpop.permute.xlu0 %1848
    %1850 = vrot.lane.b32.xlu0 %v1805, 92
    %v1851 = vpop.permute.xlu0 %1850
    %vm1852 = vcmask 752640
    %v1853 = vsel %vm1852, %v1807, %v1809
    %v1854 = vsel %vm1852, %v1809, %v1811
    %v1855 = vsel %vm1852, %v1811, %v1813
    %v1856 = vsel %vm1852, %v1813, %v1815
    %v1857 = vsel %vm1852, %v1815, %v1817
    %v1858 = vsel %vm1852, %v1817, %v1819
    %v1859 = vsel %vm1852, %v1819, %v1821
    %v1860 = vsel %vm1852, %v1821, %v1823
    %v1861 = vsel %vm1852, %v1823, %v1825
    %v1862 = vsel %vm1852, %v1825, %v1827
    %v1863 = vsel %vm1852, %v1827, %v1829
    %v1864 = vsel %vm1852, %v1829, %v1831
    %v1865 = vsel %vm1852, %v1831, %v1833
    %v1866 = vsel %vm1852, %v1833, %v1835
    %v1867 = vsel %vm1852, %v1835, %v1837
    %v1868 = vsel %vm1852, %v1837, %v1839
    %v1869 = vsel %vm1852, %v1839, %v1841
    %v1870 = vsel %vm1852, %v1841, %v1843
    %v1871 = vsel %vm1852, %v1843, %v1845
    %v1872 = vsel %vm1852, %v1845, %v1847
    %v1873 = vsel %vm1852, %v1847, %v1849
    %v1874 = vsel %vm1852, %v1849, %v1851
    %1897 = vst [vmem:[#allocation2 + $0x210] sm:$0x38] %v1853
    %1898 = vst [vmem:[#allocation2 + $0x218] sm:$0x38] %v1854
    %1899 = vst [vmem:[#allocation2 + $0x220] sm:$0x38] %v1855
    %1900 = vst [vmem:[#allocation2 + $0x228] sm:$0x38] %v1856
    %1901 = vst [vmem:[#allocation2 + $0x230] sm:$0x38] %v1857
    %1902 = vst [vmem:[#allocation2 + $0x238] sm:$0x38] %v1858
    %1903 = vst [vmem:[#allocation2 + $0x240] sm:$0x38] %v1859
    %1904 = vst [vmem:[#allocation2 + $0x248] sm:$0x38] %v1860
    %1905 = vst [vmem:[#allocation2 + $0x250] sm:$0x38] %v1861
    %1906 = vst [vmem:[#allocation2 + $0x258] sm:$0x38] %v1862
    %1907 = vst [vmem:[#allocation2 + $0x260] sm:$0x38] %v1863
    %1908 = vst [vmem:[#allocation2 + $0x268] sm:$0x38] %v1864
    %1909 = vst [vmem:[#allocation2 + $0x270] sm:$0x38] %v1865
    %1910 = vst [vmem:[#allocation2 + $0x278] sm:$0x38] %v1866
    %1911 = vst [vmem:[#allocation2 + $0x280] sm:$0x38] %v1867
    %1912 = vst [vmem:[#allocation2 + $0x288] sm:$0x38] %v1868
    %1913 = vst [vmem:[#allocation2 + $0x290] sm:$0x38] %v1869
    %1914 = vst [vmem:[#allocation2 + $0x298] sm:$0x38] %v1870
    %1915 = vst [vmem:[#allocation2 + $0x2a0] sm:$0x38] %v1871
    %1916 = vst [vmem:[#allocation2 + $0x2a8] sm:$0x38] %v1872
    %1917 = vst [vmem:[#allocation2 + $0x2b0] sm:$0x38] %v1873
    %1918 = vst [vmem:[#allocation2 + $0x2b8] sm:$0x38] %v1874
    %v1919 = vld [vmem:[%s0] sm:$0x77]
    %v1920 = vld [vmem:[%s0 + $0x8] sm:$0x77]
    %v1921 = vld [vmem:[%s0 + $0x10] sm:$0x77]
    %v1922 = vld [vmem:[%s0 + $0x18] sm:$0x77]
    %v1923 = vld [vmem:[%s0 + $0x20] sm:$0x77]
    %v1924 = vld [vmem:[%s0 + $0x28] sm:$0x77]
    %v1925 = vld [vmem:[%s0 + $0x30] sm:$0x77]
    %v1926 = vld [vmem:[%s0 + $0x38] sm:$0x77]
    %v1927 = vld [vmem:[%s0 + $0x40] sm:$0x77]
    %v1928 = vld [vmem:[%s0 + $0x48] sm:$0x77]
    %v1929 = vld [vmem:[%s0 + $0x50] sm:$0x77]
    %v1930 = vld [vmem:[%s0 + $0x58] sm:$0x7]
    %1943 = vst [vmem:[#allocation1] ss:$2 sm:$0xff] %v1919
    %s1944 = scalar_lea.vmem [#allocation1], 16
    %1945 = vst [vmem:[%s1944] ss:$2 sm:$0xff] %v1920
    %s1946 = scalar_lea.vmem [#allocation1], 32
    %1947 = vst [vmem:[%s1946] ss:$2 sm:$0xff] %v1921
    %s1948 = scalar_lea.vmem [#allocation1], 48
    %1949 = vst [vmem:[%s1948] ss:$2 sm:$0xff] %v1922
    %v1950 = vld.sshfl [vmem:[#allocation1] sm:$0xff pattern:$0x75316420]
    %v1951 = vld.sshfl [vmem:[#allocation1 + $0x8] sm:$0xff pattern:$0x75316420]
    %v1952 = vld.sshfl [vmem:[#allocation1 + $0x10] sm:$0xff pattern:$0x75316420]
    %v1953 = vld.sshfl [vmem:[#allocation1 + $0x18] sm:$0xff pattern:$0x75316420]
    %v1954 = vld.sshfl [vmem:[#allocation1 + $0x20] sm:$0xff pattern:$0x75316420]
    %v1955 = vld.sshfl [vmem:[#allocation1 + $0x28] sm:$0xff pattern:$0x75316420]
    %v1956 = vld.sshfl [vmem:[#allocation1 + $0x30] sm:$0xff pattern:$0x75316420]
    %v1957 = vld.sshfl [vmem:[#allocation1 + $0x38] sm:$0xff pattern:$0x75316420]
    %1958 = vst [vmem:[#allocation1] ss:$2 sm:$0xff] %v1923
    %1959 = vst [vmem:[%s1944] ss:$2 sm:$0xff] %v1924
    %1960 = vst [vmem:[%s1946] ss:$2 sm:$0xff] %v1925
    %1961 = vst [vmem:[%s1948] ss:$2 sm:$0xff] %v1926
    %v1962 = vld.sshfl [vmem:[#allocation1] sm:$0xff pattern:$0x75316420]
    %v1963 = vld.sshfl [vmem:[#allocation1 + $0x8] sm:$0xff pattern:$0x75316420]
    %v1964 = vld.sshfl [vmem:[#allocation1 + $0x10] sm:$0xff pattern:$0x75316420]
    %v1965 = vld.sshfl [vmem:[#allocation1 + $0x18] sm:$0xff pattern:$0x75316420]
    %v1966 = vld.sshfl [vmem:[#allocation1 + $0x20] sm:$0xff pattern:$0x75316420]
    %v1967 = vld.sshfl [vmem:[#allocation1 + $0x28] sm:$0xff pattern:$0x75316420]
    %v1968 = vld.sshfl [vmem:[#allocation1 + $0x30] sm:$0xff pattern:$0x75316420]
    %v1969 = vld.sshfl [vmem:[#allocation1 + $0x38] sm:$0xff pattern:$0x75316420]
    %1970 = vst [vmem:[#allocation1] ss:$2 sm:$0xff] %v1927
    %1971 = vst [vmem:[%s1944] ss:$2 sm:$0xff] %v1928
    %1972 = vst [vmem:[%s1946] ss:$2 sm:$0xff] %v1929
    %1973 = vst [vmem:[%s1948] ss:$2 sm:$0xff] %v1930
    %v1974 = vld.sshfl [vmem:[#allocation1] sm:$0xff pattern:$0x75316420]
    %v1975 = vld.sshfl [vmem:[#allocation1 + $0x8] sm:$0xff pattern:$0x75316420]
    %v1976 = vld.sshfl [vmem:[#allocation1 + $0x10] sm:$0xff pattern:$0x75316420]
    %v1977 = vld.sshfl [vmem:[#allocation1 + $0x18] sm:$0xff pattern:$0x75316420]
    %v1978 = vld.sshfl [vmem:[#allocation1 + $0x20] sm:$0xff pattern:$0x75316420]
    %v1979 = vld.sshfl [vmem:[#allocation1 + $0x28] sm:$0xff pattern:$0x75316420]
    %v1980 = vld.sshfl [vmem:[#allocation1 + $0x30] sm:$0xff pattern:$0x75316420]
    %v1981 = vrot.slane %v1950, 2
    %v1982 = vrot.slane %v1951, 2
    %v1983 = vrot.slane %v1952, 2
    %v1984 = vrot.slane %v1953, 2
    %v1985 = vrot.slane %v1954, 2
    %v1986 = vrot.slane %v1955, 2
    %v1987 = vrot.slane %v1956, 2
    %v1988 = vrot.slane %v1957, 2
    %v1989 = vrot.slane %v1962, 2
    %v1990 = vrot.slane %v1963, 2
    %v1991 = vrot.slane %v1964, 2
    %v1992 = vrot.slane %v1965, 2
    %v1993 = vrot.slane %v1966, 2
    %v1994 = vrot.slane %v1967, 2
    %v1995 = vrot.slane %v1968, 2
    %v1996 = vrot.slane %v1969, 2
    %v1997 = vrot.slane %v1974, 2
    %v1998 = vrot.slane %v1975, 2
    %v1999 = vrot.slane %v1976, 2
    %v2000 = vrot.slane %v1977, 2
    %v2001 = vrot.slane %v1978, 2
    %v2002 = vrot.slane %v1979, 2
    %v2003 = vrot.slane %v1980, 2
    %2004 = vrot.lane.b32.xlu0 %v1981, 64
    %v2005 = vpop.permute.xlu0 %2004
    %2006 = vrot.lane.b32.xlu0 %v1982, 64
    %v2007 = vpop.permute.xlu0 %2006
    %2008 = vrot.lane.b32.xlu0 %v1983, 64
    %v2009 = vpop.permute.xlu0 %2008
    %2010 = vrot.lane.b32.xlu0 %v1984, 64
    %v2011 = vpop.permute.xlu0 %2010
    %2012 = vrot.lane.b32.xlu0 %v1985, 64
    %v2013 = vpop.permute.xlu0 %2012
    %2014 = vrot.lane.b32.xlu0 %v1986, 64
    %v2015 = vpop.permute.xlu0 %2014
    %2016 = vrot.lane.b32.xlu0 %v1987, 64
    %v2017 = vpop.permute.xlu0 %2016
    %2018 = vrot.lane.b32.xlu0 %v1988, 64
    %v2019 = vpop.permute.xlu0 %2018
    %2020 = vrot.lane.b32.xlu0 %v1989, 64
    %v2021 = vpop.permute.xlu0 %2020
    %2022 = vrot.lane.b32.xlu0 %v1990, 64
    %v2023 = vpop.permute.xlu0 %2022
    %2024 = vrot.lane.b32.xlu0 %v1991, 64
    %v2025 = vpop.permute.xlu0 %2024
    %2026 = vrot.lane.b32.xlu0 %v1992, 64
    %v2027 = vpop.permute.xlu0 %2026
    %2028 = vrot.lane.b32.xlu0 %v1993, 64
    %v2029 = vpop.permute.xlu0 %2028
    %2030 = vrot.lane.b32.xlu0 %v1994, 64
    %v2031 = vpop.permute.xlu0 %2030
    %2032 = vrot.lane.b32.xlu0 %v1995, 64
    %v2033 = vpop.permute.xlu0 %2032
    %2034 = vrot.lane.b32.xlu0 %v1996, 64
    %v2035 = vpop.permute.xlu0 %2034
    %2036 = vrot.lane.b32.xlu0 %v1997, 64
    %v2037 = vpop.permute.xlu0 %2036
    %2038 = vrot.lane.b32.xlu0 %v1998, 64
    %v2039 = vpop.permute.xlu0 %2038
    %2040 = vrot.lane.b32.xlu0 %v1999, 64
    %v2041 = vpop.permute.xlu0 %2040
    %2042 = vrot.lane.b32.xlu0 %v2000, 64
    %v2043 = vpop.permute.xlu0 %2042
    %2044 = vrot.lane.b32.xlu0 %v2001, 64
    %v2045 = vpop.permute.xlu0 %2044
    %2046 = vrot.lane.b32.xlu0 %v2002, 64
    %v2047 = vpop.permute.xlu0 %2046
    %2048 = vrot.lane.b32.xlu0 %v2003, 64
    %v2049 = vpop.permute.xlu0 %2048
    %vm2050 = vcmask 523264
    %v2051 = vsel %vm2050, %v2005, %v2007
    %v2052 = vsel %vm2050, %v2007, %v2009
    %v2053 = vsel %vm2050, %v2009, %v2011
    %v2054 = vsel %vm2050, %v2011, %v2013
    %v2055 = vsel %vm2050, %v2013, %v2015
    %v2056 = vsel %vm2050, %v2015, %v2017
    %v2057 = vsel %vm2050, %v2017, %v2019
    %v2058 = vsel %vm2050, %v2019, %v2021
    %v2059 = vsel %vm2050, %v2021, %v2023
    %v2060 = vsel %vm2050, %v2023, %v2025
    %v2061 = vsel %vm2050, %v2025, %v2027
    %v2062 = vsel %vm2050, %v2027, %v2029
    %v2063 = vsel %vm2050, %v2029, %v2031
    %v2064 = vsel %vm2050, %v2031, %v2033
    %v2065 = vsel %vm2050, %v2033, %v2035
    %v2066 = vsel %vm2050, %v2035, %v2037
    %v2067 = vsel %vm2050, %v2037, %v2039
    %v2068 = vsel %vm2050, %v2039, %v2041
    %v2069 = vsel %vm2050, %v2041, %v2043
    %v2070 = vsel %vm2050, %v2043, %v2045
    %v2071 = vsel %vm2050, %v2045, %v2047
    %v2072 = vsel %vm2050, %v2047, %v2049
    %2095 = vst [vmem:[#allocation2 + $0x210] sm:$0xc0] %v2051
    %2096 = vst [vmem:[#allocation2 + $0x218] sm:$0xc0] %v2052
    %2097 = vst [vmem:[#allocation2 + $0x220] sm:$0xc0] %v2053
    %2098 = vst [vmem:[#allocation2 + $0x228] sm:$0xc0] %v2054
    %2099 = vst [vmem:[#allocation2 + $0x230] sm:$0xc0] %v2055
    %2100 = vst [vmem:[#allocation2 + $0x238] sm:$0xc0] %v2056
    %2101 = vst [vmem:[#allocation2 + $0x240] sm:$0xc0] %v2057
    %2102 = vst [vmem:[#allocation2 + $0x248] sm:$0xc0] %v2058
    %2103 = vst [vmem:[#allocation2 + $0x250] sm:$0xc0] %v2059
    %2104 = vst [vmem:[#allocation2 + $0x258] sm:$0xc0] %v2060
    %2105 = vst [vmem:[#allocation2 + $0x260] sm:$0xc0] %v2061
    %2106 = vst [vmem:[#allocation2 + $0x268] sm:$0xc0] %v2062
    %2107 = vst [vmem:[#allocation2 + $0x270] sm:$0xc0] %v2063
    %2108 = vst [vmem:[#allocation2 + $0x278] sm:$0xc0] %v2064
    %2109 = vst [vmem:[#allocation2 + $0x280] sm:$0xc0] %v2065
    %2110 = vst [vmem:[#allocation2 + $0x288] sm:$0xc0] %v2066
    %2111 = vst [vmem:[#allocation2 + $0x290] sm:$0xc0] %v2067
    %2112 = vst [vmem:[#allocation2 + $0x298] sm:$0xc0] %v2068
    %2113 = vst [vmem:[#allocation2 + $0x2a0] sm:$0xc0] %v2069
    %2114 = vst [vmem:[#allocation2 + $0x2a8] sm:$0xc0] %v2070
    %2115 = vst [vmem:[#allocation2 + $0x2b0] sm:$0xc0] %v2071
    %2116 = vst [vmem:[#allocation2 + $0x2b8] sm:$0xc0] %v2072
    %2117 = vst [vmem:[#allocation2 + $0x2c0] sm:$0x1] %v2051
    %2118 = vst [vmem:[#allocation2 + $0x2c8] sm:$0x1] %v2052
    %2119 = vst [vmem:[#allocation2 + $0x2d0] sm:$0x1] %v2053
    %2120 = vst [vmem:[#allocation2 + $0x2d8] sm:$0x1] %v2054
    %2121 = vst [vmem:[#allocation2 + $0x2e0] sm:$0x1] %v2055
    %2122 = vst [vmem:[#allocation2 + $0x2e8] sm:$0x1] %v2056
    %2123 = vst [vmem:[#allocation2 + $0x2f0] sm:$0x1] %v2057
    %2124 = vst [vmem:[#allocation2 + $0x2f8] sm:$0x1] %v2058
    %2125 = vst [vmem:[#allocation2 + $0x300] sm:$0x1] %v2059
    %2126 = vst [vmem:[#allocation2 + $0x308] sm:$0x1] %v2060
    %2127 = vst [vmem:[#allocation2 + $0x310] sm:$0x1] %v2061
    %2128 = vst [vmem:[#allocation2 + $0x318] sm:$0x1] %v2062
    %2129 = vst [vmem:[#allocation2 + $0x320] sm:$0x1] %v2063
    %2130 = vst [vmem:[#allocation2 + $0x328] sm:$0x1] %v2064
    %2131 = vst [vmem:[#allocation2 + $0x330] sm:$0x1] %v2065
    %2132 = vst [vmem:[#allocation2 + $0x338] sm:$0x1] %v2066
    %2133 = vst [vmem:[#allocation2 + $0x340] sm:$0x1] %v2067
    %2134 = vst [vmem:[#allocation2 + $0x348] sm:$0x1] %v2068
    %2135 = vst [vmem:[#allocation2 + $0x350] sm:$0x1] %v2069
    %2136 = vst [vmem:[#allocation2 + $0x358] sm:$0x1] %v2070
    %2137 = vst [vmem:[#allocation2 + $0x360] sm:$0x1] %v2071
    %2138 = vst [vmem:[#allocation2 + $0x368] sm:$0x1] %v2072
    %v2139 = vld [vmem:[%s0] sm:$0x77]
    %v2140 = vld [vmem:[%s0 + $0x8] sm:$0x77]
    %v2141 = vld [vmem:[%s0 + $0x10] sm:$0x77]
    %v2142 = vld [vmem:[%s0 + $0x18] sm:$0x77]
    %v2143 = vld [vmem:[%s0 + $0x20] sm:$0x77]
    %v2144 = vld [vmem:[%s0 + $0x28] sm:$0x77]
    %v2145 = vld [vmem:[%s0 + $0x30] sm:$0x77]
    %v2146 = vld [vmem:[%s0 + $0x38] sm:$0x77]
    %v2147 = vld [vmem:[%s0 + $0x40] sm:$0x77]
    %v2148 = vld [vmem:[%s0 + $0x48] sm:$0x77]
    %v2149 = vld [vmem:[%s0 + $0x50] sm:$0x77]
    %v2150 = vld [vmem:[%s0 + $0x58] sm:$0x7]
    %2163 = vst [vmem:[#allocation1] ss:$2 sm:$0xff] %v2139
    %s2164 = scalar_lea.vmem [#allocation1], 16
    %2165 = vst [vmem:[%s2164] ss:$2 sm:$0xff] %v2140
    %s2166 = scalar_lea.vmem [#allocation1], 32
    %2167 = vst [vmem:[%s2166] ss:$2 sm:$0xff] %v2141
    %s2168 = scalar_lea.vmem [#allocation1], 48
    %2169 = vst [vmem:[%s2168] ss:$2 sm:$0xff] %v2142
    %v2170 = vld.sshfl [vmem:[#allocation1] sm:$0xff pattern:$0x75316420]
    %v2171 = vld.sshfl [vmem:[#allocation1 + $0x8] sm:$0xff pattern:$0x75316420]
    %v2172 = vld.sshfl [vmem:[#allocation1 + $0x10] sm:$0xff pattern:$0x75316420]
    %v2173 = vld.sshfl [vmem:[#allocation1 + $0x18] sm:$0xff pattern:$0x75316420]
    %v2174 = vld.sshfl [vmem:[#allocation1 + $0x20] sm:$0xff pattern:$0x75316420]
    %v2175 = vld.sshfl [vmem:[#allocation1 + $0x28] sm:$0xff pattern:$0x75316420]
    %v2176 = vld.sshfl [vmem:[#allocation1 + $0x30] sm:$0xff pattern:$0x75316420]
    %v2177 = vld.sshfl [vmem:[#allocation1 + $0x38] sm:$0xff pattern:$0x75316420]
    %2178 = vst [vmem:[#allocation1] ss:$2 sm:$0xff] %v2143
    %2179 = vst [vmem:[%s2164] ss:$2 sm:$0xff] %v2144
    %2180 = vst [vmem:[%s2166] ss:$2 sm:$0xff] %v2145
    %2181 = vst [vmem:[%s2168] ss:$2 sm:$0xff] %v2146
    %v2182 = vld.sshfl [vmem:[#allocation1] sm:$0xff pattern:$0x75316420]
    %v2183 = vld.sshfl [vmem:[#allocation1 + $0x8] sm:$0xff pattern:$0x75316420]
    %v2184 = vld.sshfl [vmem:[#allocation1 + $0x10] sm:$0xff pattern:$0x75316420]
    %v2185 = vld.sshfl [vmem:[#allocation1 + $0x18] sm:$0xff pattern:$0x75316420]
    %v2186 = vld.sshfl [vmem:[#allocation1 + $0x20] sm:$0xff pattern:$0x75316420]
    %v2187 = vld.sshfl [vmem:[#allocation1 + $0x28] sm:$0xff pattern:$0x75316420]
    %v2188 = vld.sshfl [vmem:[#allocation1 + $0x30] sm:$0xff pattern:$0x75316420]
    %v2189 = vld.sshfl [vmem:[#allocation1 + $0x38] sm:$0xff pattern:$0x75316420]
    %2190 = vst [vmem:[#allocation1] ss:$2 sm:$0xff] %v2147
    %2191 = vst [vmem:[%s2164] ss:$2 sm:$0xff] %v2148
    %2192 = vst [vmem:[%s2166] ss:$2 sm:$0xff] %v2149
    %2193 = vst [vmem:[%s2168] ss:$2 sm:$0xff] %v2150
    %v2194 = vld.sshfl [vmem:[#allocation1] sm:$0xff pattern:$0x75316420]
    %v2195 = vld.sshfl [vmem:[#allocation1 + $0x8] sm:$0xff pattern:$0x75316420]
    %v2196 = vld.sshfl [vmem:[#allocation1 + $0x10] sm:$0xff pattern:$0x75316420]
    %v2197 = vld.sshfl [vmem:[#allocation1 + $0x18] sm:$0xff pattern:$0x75316420]
    %v2198 = vld.sshfl [vmem:[#allocation1 + $0x20] sm:$0xff pattern:$0x75316420]
    %v2199 = vld.sshfl [vmem:[#allocation1 + $0x28] sm:$0xff pattern:$0x75316420]
    %v2200 = vld.sshfl [vmem:[#allocation1 + $0x30] sm:$0xff pattern:$0x75316420]
    %v2201 = vrot.slane %v2170, 7
    %v2202 = vrot.slane %v2171, 7
    %v2203 = vrot.slane %v2172, 7
    %v2204 = vrot.slane %v2173, 7
    %v2205 = vrot.slane %v2174, 7
    %v2206 = vrot.slane %v2175, 7
    %v2207 = vrot.slane %v2176, 7
    %v2208 = vrot.slane %v2177, 7
    %v2209 = vrot.slane %v2182, 7
    %v2210 = vrot.slane %v2183, 7
    %v2211 = vrot.slane %v2184, 7
    %v2212 = vrot.slane %v2185, 7
    %v2213 = vrot.slane %v2186, 7
    %v2214 = vrot.slane %v2187, 7
    %v2215 = vrot.slane %v2188, 7
    %v2216 = vrot.slane %v2189, 7
    %v2217 = vrot.slane %v2194, 7
    %v2218 = vrot.slane %v2195, 7
    %v2219 = vrot.slane %v2196, 7
    %v2220 = vrot.slane %v2197, 7
    %v2221 = vrot.slane %v2198, 7
    %v2222 = vrot.slane %v2199, 7
    %v2223 = vrot.slane %v2200, 7
    %2224 = vrot.lane.b32.xlu0 %v2201, 63
    %v2225 = vpop.permute.xlu0 %2224
    %2226 = vrot.lane.b32.xlu0 %v2202, 63
    %v2227 = vpop.permute.xlu0 %2226
    %2228 = vrot.lane.b32.xlu0 %v2203, 63
    %v2229 = vpop.permute.xlu0 %2228
    %2230 = vrot.lane.b32.xlu0 %v2204, 63
    %v2231 = vpop.permute.xlu0 %2230
    %2232 = vrot.lane.b32.xlu0 %v2205, 63
    %v2233 = vpop.permute.xlu0 %2232
    %2234 = vrot.lane.b32.xlu0 %v2206, 63
    %v2235 = vpop.permute.xlu0 %2234
    %2236 = vrot.lane.b32.xlu0 %v2207, 63
    %v2237 = vpop.permute.xlu0 %2236
    %2238 = vrot.lane.b32.xlu0 %v2208, 63
    %v2239 = vpop.permute.xlu0 %2238
    %2240 = vrot.lane.b32.xlu0 %v2209, 63
    %v2241 = vpop.permute.xlu0 %2240
    %2242 = vrot.lane.b32.xlu0 %v2210, 63
    %v2243 = vpop.permute.xlu0 %2242
    %2244 = vrot.lane.b32.xlu0 %v2211, 63
    %v2245 = vpop.permute.xlu0 %2244
    %2246 = vrot.lane.b32.xlu0 %v2212, 63
    %v2247 = vpop.permute.xlu0 %2246
    %2248 = vrot.lane.b32.xlu0 %v2213, 63
    %v2249 = vpop.permute.xlu0 %2248
    %2250 = vrot.lane.b32.xlu0 %v2214, 63
    %v2251 = vpop.permute.xlu0 %2250
    %2252 = vrot.lane.b32.xlu0 %v2215, 63
    %v2253 = vpop.permute.xlu0 %2252
    %2254 = vrot.lane.b32.xlu0 %v2216, 63
    %v2255 = vpop.permute.xlu0 %2254
    %2256 = vrot.lane.b32.xlu0 %v2217, 63
    %v2257 = vpop.permute.xlu0 %2256
    %2258 = vrot.lane.b32.xlu0 %v2218, 63
    %v2259 = vpop.permute.xlu0 %2258
    %2260 = vrot.lane.b32.xlu0 %v2219, 63
    %v2261 = vpop.permute.xlu0 %2260
    %2262 = vrot.lane.b32.xlu0 %v2220, 63
    %v2263 = vpop.permute.xlu0 %2262
    %2264 = vrot.lane.b32.xlu0 %v2221, 63
    %v2265 = vpop.permute.xlu0 %2264
    %2266 = vrot.lane.b32.xlu0 %v2222, 63
    %v2267 = vpop.permute.xlu0 %2266
    %2268 = vrot.lane.b32.xlu0 %v2223, 63
    %v2269 = vpop.permute.xlu0 %2268
    %vm2270 = vcmask 515072
    %v2271 = vsel %vm2270, %v2225, %v2227
    %v2272 = vsel %vm2270, %v2227, %v2229
    %v2273 = vsel %vm2270, %v2229, %v2231
    %v2274 = vsel %vm2270, %v2231, %v2233
    %v2275 = vsel %vm2270, %v2233, %v2235
    %v2276 = vsel %vm2270, %v2235, %v2237
    %v2277 = vsel %vm2270, %v2237, %v2239
    %v2278 = vsel %vm2270, %v2239, %v2241
    %v2279 = vsel %vm2270, %v2241, %v2243
    %v2280 = vsel %vm2270, %v2243, %v2245
    %v2281 = vsel %vm2270, %v2245, %v2247
    %v2282 = vsel %vm2270, %v2247, %v2249
    %v2283 = vsel %vm2270, %v2249, %v2251
    %v2284 = vsel %vm2270, %v2251, %v2253
    %v2285 = vsel %vm2270, %v2253, %v2255
    %v2286 = vsel %vm2270, %v2255, %v2257
    %v2287 = vsel %vm2270, %v2257, %v2259
    %v2288 = vsel %vm2270, %v2259, %v2261
    %v2289 = vsel %vm2270, %v2261, %v2263
    %v2290 = vsel %vm2270, %v2263, %v2265
    %v2291 = vsel %vm2270, %v2265, %v2267
    %v2292 = vsel %vm2270, %v2267, %v2269
    %2315 = vst [vmem:[#allocation2 + $0x2c0] sm:$0xe] %v2271
    %2316 = vst [vmem:[#allocation2 + $0x2c8] sm:$0xe] %v2272
    %2317 = vst [vmem:[#allocation2 + $0x2d0] sm:$0xe] %v2273
    %2318 = vst [vmem:[#allocation2 + $0x2d8] sm:$0xe] %v2274
    %2319 = vst [vmem:[#allocation2 + $0x2e0] sm:$0xe] %v2275
    %2320 = vst [vmem:[#allocation2 + $0x2e8] sm:$0xe] %v2276
    %2321 = vst [vmem:[#allocation2 + $0x2f0] sm:$0xe] %v2277
    %2322 = vst [vmem:[#allocation2 + $0x2f8] sm:$0xe] %v2278
    %2323 = vst [vmem:[#allocation2 + $0x300] sm:$0xe] %v2279
    %2324 = vst [vmem:[#allocation2 + $0x308] sm:$0xe] %v2280
    %2325 = vst [vmem:[#allocation2 + $0x310] sm:$0xe] %v2281
    %2326 = vst [vmem:[#allocation2 + $0x318] sm:$0xe] %v2282
    %2327 = vst [vmem:[#allocation2 + $0x320] sm:$0xe] %v2283
    %2328 = vst [vmem:[#allocation2 + $0x328] sm:$0xe] %v2284
    %2329 = vst [vmem:[#allocation2 + $0x330] sm:$0xe] %v2285
    %2330 = vst [vmem:[#allocation2 + $0x338] sm:$0xe] %v2286
    %2331 = vst [vmem:[#allocation2 + $0x340] sm:$0xe] %v2287
    %2332 = vst [vmem:[#allocation2 + $0x348] sm:$0xe] %v2288
    %2333 = vst [vmem:[#allocation2 + $0x350] sm:$0xe] %v2289
    %2334 = vst [vmem:[#allocation2 + $0x358] sm:$0xe] %v2290
    %2335 = vst [vmem:[#allocation2 + $0x360] sm:$0xe] %v2291
    %2336 = vst [vmem:[#allocation2 + $0x368] sm:$0xe] %v2292
    %v2337 = vld [vmem:[%s0] sm:$0x77]
    %v2338 = vld [vmem:[%s0 + $0x8] sm:$0x77]
    %v2339 = vld [vmem:[%s0 + $0x10] sm:$0x77]
    %v2340 = vld [vmem:[%s0 + $0x18] sm:$0x77]
    %v2341 = vld [vmem:[%s0 + $0x20] sm:$0x77]
    %v2342 = vld [vmem:[%s0 + $0x28] sm:$0x77]
    %v2343 = vld [vmem:[%s0 + $0x30] sm:$0x77]
    %v2344 = vld [vmem:[%s0 + $0x38] sm:$0x77]
    %v2345 = vld [vmem:[%s0 + $0x40] sm:$0x77]
    %v2346 = vld [vmem:[%s0 + $0x48] sm:$0x77]
    %v2347 = vld [vmem:[%s0 + $0x50] sm:$0x77]
    %v2348 = vld [vmem:[%s0 + $0x58] sm:$0x7]
    %s2361 = scalar_lea.vmem [#allocation1], 1
    %2362 = vst [vmem:[%s2361] ss:$2 sm:$0xff] %v2337
    %s2363 = scalar_lea.vmem [#allocation1], 17
    %2364 = vst [vmem:[%s2363] ss:$2 sm:$0xff] %v2338
    %s2365 = scalar_lea.vmem [#allocation1], 33
    %2366 = vst [vmem:[%s2365] ss:$2 sm:$0xff] %v2339
    %s2367 = scalar_lea.vmem [#allocation1], 49
    %2368 = vst [vmem:[%s2367] ss:$2 sm:$0xff] %v2340
    %v2369 = vld.sshfl [vmem:[#allocation1] sm:$0xff pattern:$0x75316420]
    %v2370 = vld.sshfl [vmem:[#allocation1 + $0x8] sm:$0xff pattern:$0x75316420]
    %v2371 = vld.sshfl [vmem:[#allocation1 + $0x10] sm:$0xff pattern:$0x75316420]
    %v2372 = vld.sshfl [vmem:[#allocation1 + $0x18] sm:$0xff pattern:$0x75316420]
    %v2373 = vld.sshfl [vmem:[#allocation1 + $0x20] sm:$0xff pattern:$0x75316420]
    %v2374 = vld.sshfl [vmem:[#allocation1 + $0x28] sm:$0xff pattern:$0x75316420]
    %v2375 = vld.sshfl [vmem:[#allocation1 + $0x30] sm:$0xff pattern:$0x75316420]
    %v2376 = vld.sshfl [vmem:[#allocation1 + $0x38] sm:$0xff pattern:$0x75316420]
    %2377 = vst [vmem:[%s2361] ss:$2 sm:$0xff] %v2341
    %2378 = vst [vmem:[%s2363] ss:$2 sm:$0xff] %v2342
    %2379 = vst [vmem:[%s2365] ss:$2 sm:$0xff] %v2343
    %2380 = vst [vmem:[%s2367] ss:$2 sm:$0xff] %v2344
    %v2381 = vld.sshfl [vmem:[#allocation1] sm:$0xff pattern:$0x75316420]
    %v2382 = vld.sshfl [vmem:[#allocation1 + $0x8] sm:$0xff pattern:$0x75316420]
    %v2383 = vld.sshfl [vmem:[#allocation1 + $0x10] sm:$0xff pattern:$0x75316420]
    %v2384 = vld.sshfl [vmem:[#allocation1 + $0x18] sm:$0xff pattern:$0x75316420]
    %v2385 = vld.sshfl [vmem:[#allocation1 + $0x20] sm:$0xff pattern:$0x75316420]
    %v2386 = vld.sshfl [vmem:[#allocation1 + $0x28] sm:$0xff pattern:$0x75316420]
    %v2387 = vld.sshfl [vmem:[#allocation1 + $0x30] sm:$0xff pattern:$0x75316420]
    %v2388 = vld.sshfl [vmem:[#allocation1 + $0x38] sm:$0xff pattern:$0x75316420]
    %2389 = vst [vmem:[%s2361] ss:$2 sm:$0xff] %v2345
    %2390 = vst [vmem:[%s2363] ss:$2 sm:$0xff] %v2346
    %2391 = vst [vmem:[%s2365] ss:$2 sm:$0xff] %v2347
    %2392 = vst [vmem:[%s2367] ss:$2 sm:$0xff] %v2348
    %v2393 = vld.sshfl [vmem:[#allocation1] sm:$0xff pattern:$0x75316420]
    %v2394 = vld.sshfl [vmem:[#allocation1 + $0x8] sm:$0xff pattern:$0x75316420]
    %v2395 = vld.sshfl [vmem:[#allocation1 + $0x10] sm:$0xff pattern:$0x75316420]
    %v2396 = vld.sshfl [vmem:[#allocation1 + $0x18] sm:$0xff pattern:$0x75316420]
    %v2397 = vld.sshfl [vmem:[#allocation1 + $0x20] sm:$0xff pattern:$0x75316420]
    %v2398 = vld.sshfl [vmem:[#allocation1 + $0x28] sm:$0xff pattern:$0x75316420]
    %v2399 = vld.sshfl [vmem:[#allocation1 + $0x30] sm:$0xff pattern:$0x75316420]
    %2400 = vrot.lane.b32.xlu0 %v2369, 62
    %v2401 = vpop.permute.xlu0 %2400
    %2402 = vrot.lane.b32.xlu0 %v2370, 62
    %v2403 = vpop.permute.xlu0 %2402
    %2404 = vrot.lane.b32.xlu0 %v2371, 62
    %v2405 = vpop.permute.xlu0 %2404
    %2406 = vrot.lane.b32.xlu0 %v2372, 62
    %v2407 = vpop.permute.xlu0 %2406
    %2408 = vrot.lane.b32.xlu0 %v2373, 62
    %v2409 = vpop.permute.xlu0 %2408
    %2410 = vrot.lane.b32.xlu0 %v2374, 62
    %v2411 = vpop.permute.xlu0 %2410
    %2412 = vrot.lane.b32.xlu0 %v2375, 62
    %v2413 = vpop.permute.xlu0 %2412
    %2414 = vrot.lane.b32.xlu0 %v2376, 62
    %v2415 = vpop.permute.xlu0 %2414
    %2416 = vrot.lane.b32.xlu0 %v2381, 62
    %v2417 = vpop.permute.xlu0 %2416
    %2418 = vrot.lane.b32.xlu0 %v2382, 62
    %v2419 = vpop.permute.xlu0 %2418
    %2420 = vrot.lane.b32.xlu0 %v2383, 62
    %v2421 = vpop.permute.xlu0 %2420
    %2422 = vrot.lane.b32.xlu0 %v2384, 62
    %v2423 = vpop.permute.xlu0 %2422
    %2424 = vrot.lane.b32.xlu0 %v2385, 62
    %v2425 = vpop.permute.xlu0 %2424
    %2426 = vrot.lane.b32.xlu0 %v2386, 62
    %v2427 = vpop.permute.xlu0 %2426
    %2428 = vrot.lane.b32.xlu0 %v2387, 62
    %v2429 = vpop.permute.xlu0 %2428
    %2430 = vrot.lane.b32.xlu0 %v2388, 62
    %v2431 = vpop.permute.xlu0 %2430
    %2432 = vrot.lane.b32.xlu0 %v2393, 62
    %v2433 = vpop.permute.xlu0 %2432
    %2434 = vrot.lane.b32.xlu0 %v2394, 62
    %v2435 = vpop.permute.xlu0 %2434
    %2436 = vrot.lane.b32.xlu0 %v2395, 62
    %v2437 = vpop.permute.xlu0 %2436
    %2438 = vrot.lane.b32.xlu0 %v2396, 62
    %v2439 = vpop.permute.xlu0 %2438
    %2440 = vrot.lane.b32.xlu0 %v2397, 62
    %v2441 = vpop.permute.xlu0 %2440
    %2442 = vrot.lane.b32.xlu0 %v2398, 62
    %v2443 = vpop.permute.xlu0 %2442
    %2444 = vrot.lane.b32.xlu0 %v2399, 62
    %v2445 = vpop.permute.xlu0 %2444
    %vm2446 = vcmask 506880
    %v2447 = vsel %vm2446, %v2401, %v2403
    %v2448 = vsel %vm2446, %v2403, %v2405
    %v2449 = vsel %vm2446, %v2405, %v2407
    %v2450 = vsel %vm2446, %v2407, %v2409
    %v2451 = vsel %vm2446, %v2409, %v2411
    %v2452 = vsel %vm2446, %v2411, %v2413
    %v2453 = vsel %vm2446, %v2413, %v2415
    %v2454 = vsel %vm2446, %v2415, %v2417
    %v2455 = vsel %vm2446, %v2417, %v2419
    %v2456 = vsel %vm2446, %v2419, %v2421
    %v2457 = vsel %vm2446, %v2421, %v2423
    %v2458 = vsel %vm2446, %v2423, %v2425
    %v2459 = vsel %vm2446, %v2425, %v2427
    %v2460 = vsel %vm2446, %v2427, %v2429
    %v2461 = vsel %vm2446, %v2429, %v2431
    %v2462 = vsel %vm2446, %v2431, %v2433
    %v2463 = vsel %vm2446, %v2433, %v2435
    %v2464 = vsel %vm2446, %v2435, %v2437
    %v2465 = vsel %vm2446, %v2437, %v2439
    %v2466 = vsel %vm2446, %v2439, %v2441
    %v2467 = vsel %vm2446, %v2441, %v2443
    %v2468 = vsel %vm2446, %v2443, %v2445
    %2491 = vst [vmem:[#allocation2 + $0x2c0] sm:$0x70] %v2447
    %2492 = vst [vmem:[#allocation2 + $0x2c8] sm:$0x70] %v2448
    %2493 = vst [vmem:[#allocation2 + $0x2d0] sm:$0x70] %v2449
    %2494 = vst [vmem:[#allocation2 + $0x2d8] sm:$0x70] %v2450
    %2495 = vst [vmem:[#allocation2 + $0x2e0] sm:$0x70] %v2451
    %2496 = vst [vmem:[#allocation2 + $0x2e8] sm:$0x70] %v2452
    %2497 = vst [vmem:[#allocation2 + $0x2f0] sm:$0x70] %v2453
    %2498 = vst [vmem:[#allocation2 + $0x2f8] sm:$0x70] %v2454
    %2499 = vst [vmem:[#allocation2 + $0x300] sm:$0x70] %v2455
    %2500 = vst [vmem:[#allocation2 + $0x308] sm:$0x70] %v2456
    %2501 = vst [vmem:[#allocation2 + $0x310] sm:$0x70] %v2457
    %2502 = vst [vmem:[#allocation2 + $0x318] sm:$0x70] %v2458
    %2503 = vst [vmem:[#allocation2 + $0x320] sm:$0x70] %v2459
    %2504 = vst [vmem:[#allocation2 + $0x328] sm:$0x70] %v2460
    %2505 = vst [vmem:[#allocation2 + $0x330] sm:$0x70] %v2461
    %2506 = vst [vmem:[#allocation2 + $0x338] sm:$0x70] %v2462
    %2507 = vst [vmem:[#allocation2 + $0x340] sm:$0x70] %v2463
    %2508 = vst [vmem:[#allocation2 + $0x348] sm:$0x70] %v2464
    %2509 = vst [vmem:[#allocation2 + $0x350] sm:$0x70] %v2465
    %2510 = vst [vmem:[#allocation2 + $0x358] sm:$0x70] %v2466
    %2511 = vst [vmem:[#allocation2 + $0x360] sm:$0x70] %v2467
    %2512 = vst [vmem:[#allocation2 + $0x368] sm:$0x70] %v2468
    %v2513 = vld [vmem:[%s0] sm:$0x77]
    %v2514 = vld [vmem:[%s0 + $0x8] sm:$0x77]
    %v2515 = vld [vmem:[%s0 + $0x10] sm:$0x77]
    %v2516 = vld [vmem:[%s0 + $0x18] sm:$0x77]
    %v2517 = vld [vmem:[%s0 + $0x20] sm:$0x77]
    %v2518 = vld [vmem:[%s0 + $0x28] sm:$0x77]
    %v2519 = vld [vmem:[%s0 + $0x30] sm:$0x77]
    %v2520 = vld [vmem:[%s0 + $0x38] sm:$0x77]
    %v2521 = vld [vmem:[%s0 + $0x40] sm:$0x77]
    %v2522 = vld [vmem:[%s0 + $0x48] sm:$0x77]
    %v2523 = vld [vmem:[%s0 + $0x50] sm:$0x77]
    %v2524 = vld [vmem:[%s0 + $0x58] sm:$0x7]
    %2537 = vst [vmem:[#allocation1] ss:$2 sm:$0xff] %v2513
    %s2538 = scalar_lea.vmem [#allocation1], 16
    %2539 = vst [vmem:[%s2538] ss:$2 sm:$0xff] %v2514
    %s2540 = scalar_lea.vmem [#allocation1], 32
    %2541 = vst [vmem:[%s2540] ss:$2 sm:$0xff] %v2515
    %s2542 = scalar_lea.vmem [#allocation1], 48
    %2543 = vst [vmem:[%s2542] ss:$2 sm:$0xff] %v2516
    %v2544 = vld.sshfl [vmem:[#allocation1] sm:$0xff pattern:$0x75316420]
    %v2545 = vld.sshfl [vmem:[#allocation1 + $0x8] sm:$0xff pattern:$0x75316420]
    %v2546 = vld.sshfl [vmem:[#allocation1 + $0x10] sm:$0xff pattern:$0x75316420]
    %v2547 = vld.sshfl [vmem:[#allocation1 + $0x18] sm:$0xff pattern:$0x75316420]
    %v2548 = vld.sshfl [vmem:[#allocation1 + $0x20] sm:$0xff pattern:$0x75316420]
    %v2549 = vld.sshfl [vmem:[#allocation1 + $0x28] sm:$0xff pattern:$0x75316420]
    %v2550 = vld.sshfl [vmem:[#allocation1 + $0x30] sm:$0xff pattern:$0x75316420]
    %v2551 = vld.sshfl [vmem:[#allocation1 + $0x38] sm:$0xff pattern:$0x75316420]
    %2552 = vst [vmem:[#allocation1] ss:$2 sm:$0xff] %v2517
    %2553 = vst [vmem:[%s2538] ss:$2 sm:$0xff] %v2518
    %2554 = vst [vmem:[%s2540] ss:$2 sm:$0xff] %v2519
    %2555 = vst [vmem:[%s2542] ss:$2 sm:$0xff] %v2520
    %v2556 = vld.sshfl [vmem:[#allocation1] sm:$0xff pattern:$0x75316420]
    %v2557 = vld.sshfl [vmem:[#allocation1 + $0x8] sm:$0xff pattern:$0x75316420]
    %v2558 = vld.sshfl [vmem:[#allocation1 + $0x10] sm:$0xff pattern:$0x75316420]
    %v2559 = vld.sshfl [vmem:[#allocation1 + $0x18] sm:$0xff pattern:$0x75316420]
    %v2560 = vld.sshfl [vmem:[#allocation1 + $0x20] sm:$0xff pattern:$0x75316420]
    %v2561 = vld.sshfl [vmem:[#allocation1 + $0x28] sm:$0xff pattern:$0x75316420]
    %v2562 = vld.sshfl [vmem:[#allocation1 + $0x30] sm:$0xff pattern:$0x75316420]
    %v2563 = vld.sshfl [vmem:[#allocation1 + $0x38] sm:$0xff pattern:$0x75316420]
    %2564 = vst [vmem:[#allocation1] ss:$2 sm:$0xff] %v2521
    %2565 = vst [vmem:[%s2538] ss:$2 sm:$0xff] %v2522
    %2566 = vst [vmem:[%s2540] ss:$2 sm:$0xff] %v2523
    %2567 = vst [vmem:[%s2542] ss:$2 sm:$0xff] %v2524
    %v2568 = vld.sshfl [vmem:[#allocation1] sm:$0xff pattern:$0x75316420]
    %v2569 = vld.sshfl [vmem:[#allocation1 + $0x8] sm:$0xff pattern:$0x75316420]
    %v2570 = vld.sshfl [vmem:[#allocation1 + $0x10] sm:$0xff pattern:$0x75316420]
    %v2571 = vld.sshfl [vmem:[#allocation1 + $0x18] sm:$0xff pattern:$0x75316420]
    %v2572 = vld.sshfl [vmem:[#allocation1 + $0x20] sm:$0xff pattern:$0x75316420]
    %v2573 = vld.sshfl [vmem:[#allocation1 + $0x28] sm:$0xff pattern:$0x75316420]
    %v2574 = vld.sshfl [vmem:[#allocation1 + $0x30] sm:$0xff pattern:$0x75316420]
    %v2575 = vrot.slane %v2544, 1
    %v2576 = vrot.slane %v2545, 1
    %v2577 = vrot.slane %v2546, 1
    %v2578 = vrot.slane %v2547, 1
    %v2579 = vrot.slane %v2548, 1
    %v2580 = vrot.slane %v2549, 1
    %v2581 = vrot.slane %v2550, 1
    %v2582 = vrot.slane %v2551, 1
    %v2583 = vrot.slane %v2556, 1
    %v2584 = vrot.slane %v2557, 1
    %v2585 = vrot.slane %v2558, 1
    %v2586 = vrot.slane %v2559, 1
    %v2587 = vrot.slane %v2560, 1
    %v2588 = vrot.slane %v2561, 1
    %v2589 = vrot.slane %v2562, 1
    %v2590 = vrot.slane %v2563, 1
    %v2591 = vrot.slane %v2568, 1
    %v2592 = vrot.slane %v2569, 1
    %v2593 = vrot.slane %v2570, 1
    %v2594 = vrot.slane %v2571, 1
    %v2595 = vrot.slane %v2572, 1
    %v2596 = vrot.slane %v2573, 1
    %v2597 = vrot.slane %v2574, 1
    %2598 = vrot.lane.b32.xlu0 %v2575, 61
    %v2599 = vpop.permute.xlu0 %2598
    %2600 = vrot.lane.b32.xlu0 %v2576, 61
    %v2601 = vpop.permute.xlu0 %2600
    %2602 = vrot.lane.b32.xlu0 %v2577, 61
    %v2603 = vpop.permute.xlu0 %2602
    %2604 = vrot.lane.b32.xlu0 %v2578, 61
    %v2605 = vpop.permute.xlu0 %2604
    %2606 = vrot.lane.b32.xlu0 %v2579, 61
    %v2607 = vpop.permute.xlu0 %2606
    %2608 = vrot.lane.b32.xlu0 %v2580, 61
    %v2609 = vpop.permute.xlu0 %2608
    %2610 = vrot.lane.b32.xlu0 %v2581, 61
    %v2611 = vpop.permute.xlu0 %2610
    %2612 = vrot.lane.b32.xlu0 %v2582, 61
    %v2613 = vpop.permute.xlu0 %2612
    %2614 = vrot.lane.b32.xlu0 %v2583, 61
    %v2615 = vpop.permute.xlu0 %2614
    %2616 = vrot.lane.b32.xlu0 %v2584, 61
    %v2617 = vpop.permute.xlu0 %2616
    %2618 = vrot.lane.b32.xlu0 %v2585, 61
    %v2619 = vpop.permute.xlu0 %2618
    %2620 = vrot.lane.b32.xlu0 %v2586, 61
    %v2621 = vpop.permute.xlu0 %2620
    %2622 = vrot.lane.b32.xlu0 %v2587, 61
    %v2623 = vpop.permute.xlu0 %2622
    %2624 = vrot.lane.b32.xlu0 %v2588, 61
    %v2625 = vpop.permute.xlu0 %2624
    %2626 = vrot.lane.b32.xlu0 %v2589, 61
    %v2627 = vpop.permute.xlu0 %2626
    %2628 = vrot.lane.b32.xlu0 %v2590, 61
    %v2629 = vpop.permute.xlu0 %2628
    %2630 = vrot.lane.b32.xlu0 %v2591, 61
    %v2631 = vpop.permute.xlu0 %2630
    %2632 = vrot.lane.b32.xlu0 %v2592, 61
    %v2633 = vpop.permute.xlu0 %2632
    %2634 = vrot.lane.b32.xlu0 %v2593, 61
    %v2635 = vpop.permute.xlu0 %2634
    %2636 = vrot.lane.b32.xlu0 %v2594, 61
    %v2637 = vpop.permute.xlu0 %2636
    %2638 = vrot.lane.b32.xlu0 %v2595, 61
    %v2639 = vpop.permute.xlu0 %2638
    %2640 = vrot.lane.b32.xlu0 %v2596, 61
    %v2641 = vpop.permute.xlu0 %2640
    %2642 = vrot.lane.b32.xlu0 %v2597, 61
    %v2643 = vpop.permute.xlu0 %2642
    %vm2644 = vcmask 498688
    %v2645 = vsel %vm2644, %v2599, %v2601
    %v2646 = vsel %vm2644, %v2601, %v2603
    %v2647 = vsel %vm2644, %v2603, %v2605
    %v2648 = vsel %vm2644, %v2605, %v2607
    %v2649 = vsel %vm2644, %v2607, %v2609
    %v2650 = vsel %vm2644, %v2609, %v2611
    %v2651 = vsel %vm2644, %v2611, %v2613
    %v2652 = vsel %vm2644, %v2613, %v2615
    %v2653 = vsel %vm2644, %v2615, %v2617
    %v2654 = vsel %vm2644, %v2617, %v2619
    %v2655 = vsel %vm2644, %v2619, %v2621
    %v2656 = vsel %vm2644, %v2621, %v2623
    %v2657 = vsel %vm2644, %v2623, %v2625
    %v2658 = vsel %vm2644, %v2625, %v2627
    %v2659 = vsel %vm2644, %v2627, %v2629
    %v2660 = vsel %vm2644, %v2629, %v2631
    %v2661 = vsel %vm2644, %v2631, %v2633
    %v2662 = vsel %vm2644, %v2633, %v2635
    %v2663 = vsel %vm2644, %v2635, %v2637
    %v2664 = vsel %vm2644, %v2637, %v2639
    %v2665 = vsel %vm2644, %v2639, %v2641
    %v2666 = vsel %vm2644, %v2641, %v2643
    %2689 = vst [vmem:[#allocation2 + $0x2c0] sm:$0x80] %v2645
    %2690 = vst [vmem:[#allocation2 + $0x2c8] sm:$0x80] %v2646
    %2691 = vst [vmem:[#allocation2 + $0x2d0] sm:$0x80] %v2647
    %2692 = vst [vmem:[#allocation2 + $0x2d8] sm:$0x80] %v2648
    %2693 = vst [vmem:[#allocation2 + $0x2e0] sm:$0x80] %v2649
    %2694 = vst [vmem:[#allocation2 + $0x2e8] sm:$0x80] %v2650
    %2695 = vst [vmem:[#allocation2 + $0x2f0] sm:$0x80] %v2651
    %2696 = vst [vmem:[#allocation2 + $0x2f8] sm:$0x80] %v2652
    %2697 = vst [vmem:[#allocation2 + $0x300] sm:$0x80] %v2653
    %2698 = vst [vmem:[#allocation2 + $0x308] sm:$0x80] %v2654
    %2699 = vst [vmem:[#allocation2 + $0x310] sm:$0x80] %v2655
    %2700 = vst [vmem:[#allocation2 + $0x318] sm:$0x80] %v2656
    %2701 = vst [vmem:[#allocation2 + $0x320] sm:$0x80] %v2657
    %2702 = vst [vmem:[#allocation2 + $0x328] sm:$0x80] %v2658
    %2703 = vst [vmem:[#allocation2 + $0x330] sm:$0x80] %v2659
    %2704 = vst [vmem:[#allocation2 + $0x338] sm:$0x80] %v2660
    %2705 = vst [vmem:[#allocation2 + $0x340] sm:$0x80] %v2661
    %2706 = vst [vmem:[#allocation2 + $0x348] sm:$0x80] %v2662
    %2707 = vst [vmem:[#allocation2 + $0x350] sm:$0x80] %v2663
    %2708 = vst [vmem:[#allocation2 + $0x358] sm:$0x80] %v2664
    %2709 = vst [vmem:[#allocation2 + $0x360] sm:$0x80] %v2665
    %2710 = vst [vmem:[#allocation2 + $0x368] sm:$0x80] %v2666
    %2711 = vst [vmem:[#allocation2 + $0x370] sm:$0x3] %v2645
    %2712 = vst [vmem:[#allocation2 + $0x378] sm:$0x3] %v2646
    %2713 = vst [vmem:[#allocation2 + $0x380] sm:$0x3] %v2647
    %2714 = vst [vmem:[#allocation2 + $0x388] sm:$0x3] %v2648
    %2715 = vst [vmem:[#allocation2 + $0x390] sm:$0x3] %v2649
    %2716 = vst [vmem:[#allocation2 + $0x398] sm:$0x3] %v2650
    %2717 = vst [vmem:[#allocation2 + $0x3a0] sm:$0x3] %v2651
    %2718 = vst [vmem:[#allocation2 + $0x3a8] sm:$0x3] %v2652
    %2719 = vst [vmem:[#allocation2 + $0x3b0] sm:$0x3] %v2653
    %2720 = vst [vmem:[#allocation2 + $0x3b8] sm:$0x3] %v2654
    %2721 = vst [vmem:[#allocation2 + $0x3c0] sm:$0x3] %v2655
    %2722 = vst [vmem:[#allocation2 + $0x3c8] sm:$0x3] %v2656
    %2723 = vst [vmem:[#allocation2 + $0x3d0] sm:$0x3] %v2657
    %2724 = vst [vmem:[#allocation2 + $0x3d8] sm:$0x3] %v2658
    %2725 = vst [vmem:[#allocation2 + $0x3e0] sm:$0x3] %v2659
    %2726 = vst [vmem:[#allocation2 + $0x3e8] sm:$0x3] %v2660
    %2727 = vst [vmem:[#allocation2 + $0x3f0] sm:$0x3] %v2661
    %2728 = vst [vmem:[#allocation2 + $0x3f8] sm:$0x3] %v2662
    %2729 = vst [vmem:[#allocation2 + $0x400] sm:$0x3] %v2663
    %2730 = vst [vmem:[#allocation2 + $0x408] sm:$0x3] %v2664
    %2731 = vst [vmem:[#allocation2 + $0x410] sm:$0x3] %v2665
    %2732 = vst [vmem:[#allocation2 + $0x418] sm:$0x3] %v2666
    %v2733 = vld [vmem:[%s0] sm:$0x77]
    %v2734 = vld [vmem:[%s0 + $0x8] sm:$0x77]
    %v2735 = vld [vmem:[%s0 + $0x10] sm:$0x77]
    %v2736 = vld [vmem:[%s0 + $0x18] sm:$0x77]
    %v2737 = vld [vmem:[%s0 + $0x20] sm:$0x77]
    %v2738 = vld [vmem:[%s0 + $0x28] sm:$0x77]
    %v2739 = vld [vmem:[%s0 + $0x30] sm:$0x77]
    %v2740 = vld [vmem:[%s0 + $0x38] sm:$0x77]
    %v2741 = vld [vmem:[%s0 + $0x40] sm:$0x77]
    %v2742 = vld [vmem:[%s0 + $0x48] sm:$0x77]
    %v2743 = vld [vmem:[%s0 + $0x50] sm:$0x77]
    %v2744 = vld [vmem:[%s0 + $0x58] sm:$0x7]
    %2757 = vst [vmem:[#allocation1] ss:$2 sm:$0xff] %v2733
    %s2758 = scalar_lea.vmem [#allocation1], 16
    %2759 = vst [vmem:[%s2758] ss:$2 sm:$0xff] %v2734
    %s2760 = scalar_lea.vmem [#allocation1], 32
    %2761 = vst [vmem:[%s2760] ss:$2 sm:$0xff] %v2735
    %s2762 = scalar_lea.vmem [#allocation1], 48
    %2763 = vst [vmem:[%s2762] ss:$2 sm:$0xff] %v2736
    %v2764 = vld.sshfl [vmem:[#allocation1] sm:$0xff pattern:$0x75316420]
    %v2765 = vld.sshfl [vmem:[#allocation1 + $0x8] sm:$0xff pattern:$0x75316420]
    %v2766 = vld.sshfl [vmem:[#allocation1 + $0x10] sm:$0xff pattern:$0x75316420]
    %v2767 = vld.sshfl [vmem:[#allocation1 + $0x18] sm:$0xff pattern:$0x75316420]
    %v2768 = vld.sshfl [vmem:[#allocation1 + $0x20] sm:$0xff pattern:$0x75316420]
    %v2769 = vld.sshfl [vmem:[#allocation1 + $0x28] sm:$0xff pattern:$0x75316420]
    %v2770 = vld.sshfl [vmem:[#allocation1 + $0x30] sm:$0xff pattern:$0x75316420]
    %v2771 = vld.sshfl [vmem:[#allocation1 + $0x38] sm:$0xff pattern:$0x75316420]
    %2772 = vst [vmem:[#allocation1] ss:$2 sm:$0xff] %v2737
    %2773 = vst [vmem:[%s2758] ss:$2 sm:$0xff] %v2738
    %2774 = vst [vmem:[%s2760] ss:$2 sm:$0xff] %v2739
    %2775 = vst [vmem:[%s2762] ss:$2 sm:$0xff] %v2740
    %v2776 = vld.sshfl [vmem:[#allocation1] sm:$0xff pattern:$0x75316420]
    %v2777 = vld.sshfl [vmem:[#allocation1 + $0x8] sm:$0xff pattern:$0x75316420]
    %v2778 = vld.sshfl [vmem:[#allocation1 + $0x10] sm:$0xff pattern:$0x75316420]
    %v2779 = vld.sshfl [vmem:[#allocation1 + $0x18] sm:$0xff pattern:$0x75316420]
    %v2780 = vld.sshfl [vmem:[#allocation1 + $0x20] sm:$0xff pattern:$0x75316420]
    %v2781 = vld.sshfl [vmem:[#allocation1 + $0x28] sm:$0xff pattern:$0x75316420]
    %v2782 = vld.sshfl [vmem:[#allocation1 + $0x30] sm:$0xff pattern:$0x75316420]
    %v2783 = vld.sshfl [vmem:[#allocation1 + $0x38] sm:$0xff pattern:$0x75316420]
    %2784 = vst [vmem:[#allocation1] ss:$2 sm:$0xff] %v2741
    %2785 = vst [vmem:[%s2758] ss:$2 sm:$0xff] %v2742
    %2786 = vst [vmem:[%s2760] ss:$2 sm:$0xff] %v2743
    %2787 = vst [vmem:[%s2762] ss:$2 sm:$0xff] %v2744
    %v2788 = vld.sshfl [vmem:[#allocation1] sm:$0xff pattern:$0x75316420]
    %v2789 = vld.sshfl [vmem:[#allocation1 + $0x8] sm:$0xff pattern:$0x75316420]
    %v2790 = vld.sshfl [vmem:[#allocation1 + $0x10] sm:$0xff pattern:$0x75316420]
    %v2791 = vld.sshfl [vmem:[#allocation1 + $0x18] sm:$0xff pattern:$0x75316420]
    %v2792 = vld.sshfl [vmem:[#allocation1 + $0x20] sm:$0xff pattern:$0x75316420]
    %v2793 = vld.sshfl [vmem:[#allocation1 + $0x28] sm:$0xff pattern:$0x75316420]
    %v2794 = vld.sshfl [vmem:[#allocation1 + $0x30] sm:$0xff pattern:$0x75316420]
    %v2795 = vrot.slane %v2764, 6
    %v2796 = vrot.slane %v2765, 6
    %v2797 = vrot.slane %v2766, 6
    %v2798 = vrot.slane %v2767, 6
    %v2799 = vrot.slane %v2768, 6
    %v2800 = vrot.slane %v2769, 6
    %v2801 = vrot.slane %v2770, 6
    %v2802 = vrot.slane %v2771, 6
    %v2803 = vrot.slane %v2776, 6
    %v2804 = vrot.slane %v2777, 6
    %v2805 = vrot.slane %v2778, 6
    %v2806 = vrot.slane %v2779, 6
    %v2807 = vrot.slane %v2780, 6
    %v2808 = vrot.slane %v2781, 6
    %v2809 = vrot.slane %v2782, 6
    %v2810 = vrot.slane %v2783, 6
    %v2811 = vrot.slane %v2788, 6
    %v2812 = vrot.slane %v2789, 6
    %v2813 = vrot.slane %v2790, 6
    %v2814 = vrot.slane %v2791, 6
    %v2815 = vrot.slane %v2792, 6
    %v2816 = vrot.slane %v2793, 6
    %v2817 = vrot.slane %v2794, 6
    %2818 = vrot.lane.b32.xlu0 %v2795, 60
    %v2819 = vpop.permute.xlu0 %2818
    %2820 = vrot.lane.b32.xlu0 %v2796, 60
    %v2821 = vpop.permute.xlu0 %2820
    %2822 = vrot.lane.b32.xlu0 %v2797, 60
    %v2823 = vpop.permute.xlu0 %2822
    %2824 = vrot.lane.b32.xlu0 %v2798, 60
    %v2825 = vpop.permute.xlu0 %2824
    %2826 = vrot.lane.b32.xlu0 %v2799, 60
    %v2827 = vpop.permute.xlu0 %2826
    %2828 = vrot.lane.b32.xlu0 %v2800, 60
    %v2829 = vpop.permute.xlu0 %2828
    %2830 = vrot.lane.b32.xlu0 %v2801, 60
    %v2831 = vpop.permute.xlu0 %2830
    %2832 = vrot.lane.b32.xlu0 %v2802, 60
    %v2833 = vpop.permute.xlu0 %2832
    %2834 = vrot.lane.b32.xlu0 %v2803, 60
    %v2835 = vpop.permute.xlu0 %2834
    %2836 = vrot.lane.b32.xlu0 %v2804, 60
    %v2837 = vpop.permute.xlu0 %2836
    %2838 = vrot.lane.b32.xlu0 %v2805, 60
    %v2839 = vpop.permute.xlu0 %2838
    %2840 = vrot.lane.b32.xlu0 %v2806, 60
    %v2841 = vpop.permute.xlu0 %2840
    %2842 = vrot.lane.b32.xlu0 %v2807, 60
    %v2843 = vpop.permute.xlu0 %2842
    %2844 = vrot.lane.b32.xlu0 %v2808, 60
    %v2845 = vpop.permute.xlu0 %2844
    %2846 = vrot.lane.b32.xlu0 %v2809, 60
    %v2847 = vpop.permute.xlu0 %2846
    %2848 = vrot.lane.b32.xlu0 %v2810, 60
    %v2849 = vpop.permute.xlu0 %2848
    %2850 = vrot.lane.b32.xlu0 %v2811, 60
    %v2851 = vpop.permute.xlu0 %2850
    %2852 = vrot.lane.b32.xlu0 %v2812, 60
    %v2853 = vpop.permute.xlu0 %2852
    %2854 = vrot.lane.b32.xlu0 %v2813, 60
    %v2855 = vpop.permute.xlu0 %2854
    %2856 = vrot.lane.b32.xlu0 %v2814, 60
    %v2857 = vpop.permute.xlu0 %2856
    %2858 = vrot.lane.b32.xlu0 %v2815, 60
    %v2859 = vpop.permute.xlu0 %2858
    %2860 = vrot.lane.b32.xlu0 %v2816, 60
    %v2861 = vpop.permute.xlu0 %2860
    %2862 = vrot.lane.b32.xlu0 %v2817, 60
    %v2863 = vpop.permute.xlu0 %2862
    %vm2864 = vcmask 490496
    %v2865 = vsel %vm2864, %v2819, %v2821
    %v2866 = vsel %vm2864, %v2821, %v2823
    %v2867 = vsel %vm2864, %v2823, %v2825
    %v2868 = vsel %vm2864, %v2825, %v2827
    %v2869 = vsel %vm2864, %v2827, %v2829
    %v2870 = vsel %vm2864, %v2829, %v2831
    %v2871 = vsel %vm2864, %v2831, %v2833
    %v2872 = vsel %vm2864, %v2833, %v2835
    %v2873 = vsel %vm2864, %v2835, %v2837
    %v2874 = vsel %vm2864, %v2837, %v2839
    %v2875 = vsel %vm2864, %v2839, %v2841
    %v2876 = vsel %vm2864, %v2841, %v2843
    %v2877 = vsel %vm2864, %v2843, %v2845
    %v2878 = vsel %vm2864, %v2845, %v2847
    %v2879 = vsel %vm2864, %v2847, %v2849
    %v2880 = vsel %vm2864, %v2849, %v2851
    %v2881 = vsel %vm2864, %v2851, %v2853
    %v2882 = vsel %vm2864, %v2853, %v2855
    %v2883 = vsel %vm2864, %v2855, %v2857
    %v2884 = vsel %vm2864, %v2857, %v2859
    %v2885 = vsel %vm2864, %v2859, %v2861
    %v2886 = vsel %vm2864, %v2861, %v2863
    %2909 = vst [vmem:[#allocation2 + $0x370] sm:$0x1c] %v2865
    %2910 = vst [vmem:[#allocation2 + $0x378] sm:$0x1c] %v2866
    %2911 = vst [vmem:[#allocation2 + $0x380] sm:$0x1c] %v2867
    %2912 = vst [vmem:[#allocation2 + $0x388] sm:$0x1c] %v2868
    %2913 = vst [vmem:[#allocation2 + $0x390] sm:$0x1c] %v2869
    %2914 = vst [vmem:[#allocation2 + $0x398] sm:$0x1c] %v2870
    %2915 = vst [vmem:[#allocation2 + $0x3a0] sm:$0x1c] %v2871
    %2916 = vst [vmem:[#allocation2 + $0x3a8] sm:$0x1c] %v2872
    %2917 = vst [vmem:[#allocation2 + $0x3b0] sm:$0x1c] %v2873
    %2918 = vst [vmem:[#allocation2 + $0x3b8] sm:$0x1c] %v2874
    %2919 = vst [vmem:[#allocation2 + $0x3c0] sm:$0x1c] %v2875
    %2920 = vst [vmem:[#allocation2 + $0x3c8] sm:$0x1c] %v2876
    %2921 = vst [vmem:[#allocation2 + $0x3d0] sm:$0x1c] %v2877
    %2922 = vst [vmem:[#allocation2 + $0x3d8] sm:$0x1c] %v2878
    %2923 = vst [vmem:[#allocation2 + $0x3e0] sm:$0x1c] %v2879
    %2924 = vst [vmem:[#allocation2 + $0x3e8] sm:$0x1c] %v2880
    %2925 = vst [vmem:[#allocation2 + $0x3f0] sm:$0x1c] %v2881
    %2926 = vst [vmem:[#allocation2 + $0x3f8] sm:$0x1c] %v2882
    %2927 = vst [vmem:[#allocation2 + $0x400] sm:$0x1c] %v2883
    %2928 = vst [vmem:[#allocation2 + $0x408] sm:$0x1c] %v2884
    %2929 = vst [vmem:[#allocation2 + $0x410] sm:$0x1c] %v2885
    %2930 = vst [vmem:[#allocation2 + $0x418] sm:$0x1c] %v2886
    %v2931 = vld [vmem:[%s0] sm:$0x77]
    %v2932 = vld [vmem:[%s0 + $0x8] sm:$0x77]
    %v2933 = vld [vmem:[%s0 + $0x10] sm:$0x77]
    %v2934 = vld [vmem:[%s0 + $0x18] sm:$0x77]
    %v2935 = vld [vmem:[%s0 + $0x20] sm:$0x77]
    %v2936 = vld [vmem:[%s0 + $0x28] sm:$0x77]
    %v2937 = vld [vmem:[%s0 + $0x30] sm:$0x77]
    %v2938 = vld [vmem:[%s0 + $0x38] sm:$0x77]
    %v2939 = vld [vmem:[%s0 + $0x40] sm:$0x77]
    %v2940 = vld [vmem:[%s0 + $0x48] sm:$0x77]
    %v2941 = vld [vmem:[%s0 + $0x50] sm:$0x77]
    %v2942 = vld [vmem:[%s0 + $0x58] sm:$0x7]
    %2955 = vst [vmem:[#allocation1] ss:$2 sm:$0xff] %v2931
    %s2956 = scalar_lea.vmem [#allocation1], 16
    %2957 = vst [vmem:[%s2956] ss:$2 sm:$0xff] %v2932
    %s2958 = scalar_lea.vmem [#allocation1], 32
    %2959 = vst [vmem:[%s2958] ss:$2 sm:$0xff] %v2933
    %s2960 = scalar_lea.vmem [#allocation1], 48
    %2961 = vst [vmem:[%s2960] ss:$2 sm:$0xff] %v2934
    %v2962 = vld.sshfl [vmem:[#allocation1] sm:$0xff pattern:$0x75316420]
    %v2963 = vld.sshfl [vmem:[#allocation1 + $0x8] sm:$0xff pattern:$0x75316420]
    %v2964 = vld.sshfl [vmem:[#allocation1 + $0x10] sm:$0xff pattern:$0x75316420]
    %v2965 = vld.sshfl [vmem:[#allocation1 + $0x18] sm:$0xff pattern:$0x75316420]
    %v2966 = vld.sshfl [vmem:[#allocation1 + $0x20] sm:$0xff pattern:$0x75316420]
    %v2967 = vld.sshfl [vmem:[#allocation1 + $0x28] sm:$0xff pattern:$0x75316420]
    %v2968 = vld.sshfl [vmem:[#allocation1 + $0x30] sm:$0xff pattern:$0x75316420]
    %v2969 = vld.sshfl [vmem:[#allocation1 + $0x38] sm:$0xff pattern:$0x75316420]
    %2970 = vst [vmem:[#allocation1] ss:$2 sm:$0xff] %v2935
    %2971 = vst [vmem:[%s2956] ss:$2 sm:$0xff] %v2936
    %2972 = vst [vmem:[%s2958] ss:$2 sm:$0xff] %v2937
    %2973 = vst [vmem:[%s2960] ss:$2 sm:$0xff] %v2938
    %v2974 = vld.sshfl [vmem:[#allocation1] sm:$0xff pattern:$0x75316420]
    %v2975 = vld.sshfl [vmem:[#allocation1 + $0x8] sm:$0xff pattern:$0x75316420]
    %v2976 = vld.sshfl [vmem:[#allocation1 + $0x10] sm:$0xff pattern:$0x75316420]
    %v2977 = vld.sshfl [vmem:[#allocation1 + $0x18] sm:$0xff pattern:$0x75316420]
    %v2978 = vld.sshfl [vmem:[#allocation1 + $0x20] sm:$0xff pattern:$0x75316420]
    %v2979 = vld.sshfl [vmem:[#allocation1 + $0x28] sm:$0xff pattern:$0x75316420]
    %v2980 = vld.sshfl [vmem:[#allocation1 + $0x30] sm:$0xff pattern:$0x75316420]
    %v2981 = vld.sshfl [vmem:[#allocation1 + $0x38] sm:$0xff pattern:$0x75316420]
    %2982 = vst [vmem:[#allocation1] ss:$2 sm:$0xff] %v2939
    %2983 = vst [vmem:[%s2956] ss:$2 sm:$0xff] %v2940
    %2984 = vst [vmem:[%s2958] ss:$2 sm:$0xff] %v2941
    %2985 = vst [vmem:[%s2960] ss:$2 sm:$0xff] %v2942
    %v2986 = vld.sshfl [vmem:[#allocation1] sm:$0xff pattern:$0x75316420]
    %v2987 = vld.sshfl [vmem:[#allocation1 + $0x8] sm:$0xff pattern:$0x75316420]
    %v2988 = vld.sshfl [vmem:[#allocation1 + $0x10] sm:$0xff pattern:$0x75316420]
    %v2989 = vld.sshfl [vmem:[#allocation1 + $0x18] sm:$0xff pattern:$0x75316420]
    %v2990 = vld.sshfl [vmem:[#allocation1 + $0x20] sm:$0xff pattern:$0x75316420]
    %v2991 = vld.sshfl [vmem:[#allocation1 + $0x28] sm:$0xff pattern:$0x75316420]
    %v2992 = vld.sshfl [vmem:[#allocation1 + $0x30] sm:$0xff pattern:$0x75316420]
    %v2993 = vrot.slane %v2962, 3
    %v2994 = vrot.slane %v2963, 3
    %v2995 = vrot.slane %v2964, 3
    %v2996 = vrot.slane %v2965, 3
    %v2997 = vrot.slane %v2966, 3
    %v2998 = vrot.slane %v2967, 3
    %v2999 = vrot.slane %v2968, 3
    %v3000 = vrot.slane %v2969, 3
    %v3001 = vrot.slane %v2974, 3
    %v3002 = vrot.slane %v2975, 3
    %v3003 = vrot.slane %v2976, 3
    %v3004 = vrot.slane %v2977, 3
    %v3005 = vrot.slane %v2978, 3
    %v3006 = vrot.slane %v2979, 3
    %v3007 = vrot.slane %v2980, 3
    %v3008 = vrot.slane %v2981, 3
    %v3009 = vrot.slane %v2986, 3
    %v3010 = vrot.slane %v2987, 3
    %v3011 = vrot.slane %v2988, 3
    %v3012 = vrot.slane %v2989, 3
    %v3013 = vrot.slane %v2990, 3
    %v3014 = vrot.slane %v2991, 3
    %v3015 = vrot.slane %v2992, 3
    %3016 = vrot.lane.b32.xlu0 %v2993, 32
    %v3017 = vpop.permute.xlu0 %3016
    %3018 = vrot.lane.b32.xlu0 %v2994, 32
    %v3019 = vpop.permute.xlu0 %3018
    %3020 = vrot.lane.b32.xlu0 %v2995, 32
    %v3021 = vpop.permute.xlu0 %3020
    %3022 = vrot.lane.b32.xlu0 %v2996, 32
    %v3023 = vpop.permute.xlu0 %3022
    %3024 = vrot.lane.b32.xlu0 %v2997, 32
    %v3025 = vpop.permute.xlu0 %3024
    %3026 = vrot.lane.b32.xlu0 %v2998, 32
    %v3027 = vpop.permute.xlu0 %3026
    %3028 = vrot.lane.b32.xlu0 %v2999, 32
    %v3029 = vpop.permute.xlu0 %3028
    %3030 = vrot.lane.b32.xlu0 %v3000, 32
    %v3031 = vpop.permute.xlu0 %3030
    %3032 = vrot.lane.b32.xlu0 %v3001, 32
    %v3033 = vpop.permute.xlu0 %3032
    %3034 = vrot.lane.b32.xlu0 %v3002, 32
    %v3035 = vpop.permute.xlu0 %3034
    %3036 = vrot.lane.b32.xlu0 %v3003, 32
    %v3037 = vpop.permute.xlu0 %3036
    %3038 = vrot.lane.b32.xlu0 %v3004, 32
    %v3039 = vpop.permute.xlu0 %3038
    %3040 = vrot.lane.b32.xlu0 %v3005, 32
    %v3041 = vpop.permute.xlu0 %3040
    %3042 = vrot.lane.b32.xlu0 %v3006, 32
    %v3043 = vpop.permute.xlu0 %3042
    %3044 = vrot.lane.b32.xlu0 %v3007, 32
    %v3045 = vpop.permute.xlu0 %3044
    %3046 = vrot.lane.b32.xlu0 %v3008, 32
    %v3047 = vpop.permute.xlu0 %3046
    %3048 = vrot.lane.b32.xlu0 %v3009, 32
    %v3049 = vpop.permute.xlu0 %3048
    %3050 = vrot.lane.b32.xlu0 %v3010, 32
    %v3051 = vpop.permute.xlu0 %3050
    %3052 = vrot.lane.b32.xlu0 %v3011, 32
    %v3053 = vpop.permute.xlu0 %3052
    %3054 = vrot.lane.b32.xlu0 %v3012, 32
    %v3055 = vpop.permute.xlu0 %3054
    %3056 = vrot.lane.b32.xlu0 %v3013, 32
    %v3057 = vpop.permute.xlu0 %3056
    %3058 = vrot.lane.b32.xlu0 %v3014, 32
    %v3059 = vpop.permute.xlu0 %3058
    %3060 = vrot.lane.b32.xlu0 %v3015, 32
    %v3061 = vpop.permute.xlu0 %3060
    %vm3062 = vcmask 261120
    %v3063 = vsel %vm3062, %v3017, %v3019
    %v3064 = vsel %vm3062, %v3019, %v3021
    %v3065 = vsel %vm3062, %v3021, %v3023
    %v3066 = vsel %vm3062, %v3023, %v3025
    %v3067 = vsel %vm3062, %v3025, %v3027
    %v3068 = vsel %vm3062, %v3027, %v3029
    %v3069 = vsel %vm3062, %v3029, %v3031
    %v3070 = vsel %vm3062, %v3031, %v3033
    %v3071 = vsel %vm3062, %v3033, %v3035
    %v3072 = vsel %vm3062, %v3035, %v3037
    %v3073 = vsel %vm3062, %v3037, %v3039
    %v3074 = vsel %vm3062, %v3039, %v3041
    %v3075 = vsel %vm3062, %v3041, %v3043
    %v3076 = vsel %vm3062, %v3043, %v3045
    %v3077 = vsel %vm3062, %v3045, %v3047
    %v3078 = vsel %vm3062, %v3047, %v3049
    %v3079 = vsel %vm3062, %v3049, %v3051
    %v3080 = vsel %vm3062, %v3051, %v3053
    %v3081 = vsel %vm3062, %v3053, %v3055
    %v3082 = vsel %vm3062, %v3055, %v3057
    %v3083 = vsel %vm3062, %v3057, %v3059
    %v3084 = vsel %vm3062, %v3059, %v3061
    %3107 = vst [vmem:[#allocation2 + $0x370] sm:$0xe0] %v3063
    %3108 = vst [vmem:[#allocation2 + $0x378] sm:$0xe0] %v3064
    %3109 = vst [vmem:[#allocation2 + $0x380] sm:$0xe0] %v3065
    %3110 = vst [vmem:[#allocation2 + $0x388] sm:$0xe0] %v3066
    %3111 = vst [vmem:[#allocation2 + $0x390] sm:$0xe0] %v3067
    %3112 = vst [vmem:[#allocation2 + $0x398] sm:$0xe0] %v3068
    %3113 = vst [vmem:[#allocation2 + $0x3a0] sm:$0xe0] %v3069
    %3114 = vst [vmem:[#allocation2 + $0x3a8] sm:$0xe0] %v3070
    %3115 = vst [vmem:[#allocation2 + $0x3b0] sm:$0xe0] %v3071
    %3116 = vst [vmem:[#allocation2 + $0x3b8] sm:$0xe0] %v3072
    %3117 = vst [vmem:[#allocation2 + $0x3c0] sm:$0xe0] %v3073
    %3118 = vst [vmem:[#allocation2 + $0x3c8] sm:$0xe0] %v3074
    %3119 = vst [vmem:[#allocation2 + $0x3d0] sm:$0xe0] %v3075
    %3120 = vst [vmem:[#allocation2 + $0x3d8] sm:$0xe0] %v3076
    %3121 = vst [vmem:[#allocation2 + $0x3e0] sm:$0xe0] %v3077
    %3122 = vst [vmem:[#allocation2 + $0x3e8] sm:$0xe0] %v3078
    %3123 = vst [vmem:[#allocation2 + $0x3f0] sm:$0xe0] %v3079
    %3124 = vst [vmem:[#allocation2 + $0x3f8] sm:$0xe0] %v3080
    %3125 = vst [vmem:[#allocation2 + $0x400] sm:$0xe0] %v3081
    %3126 = vst [vmem:[#allocation2 + $0x408] sm:$0xe0] %v3082
    %3127 = vst [vmem:[#allocation2 + $0x410] sm:$0xe0] %v3083
    %3128 = vst [vmem:[#allocation2 + $0x418] sm:$0xe0] %v3084
    %v3129 = vld [vmem:[%s0] sm:$0x77]
    %v3130 = vld [vmem:[%s0 + $0x8] sm:$0x77]
    %v3131 = vld [vmem:[%s0 + $0x10] sm:$0x77]
    %v3132 = vld [vmem:[%s0 + $0x18] sm:$0x77]
    %v3133 = vld [vmem:[%s0 + $0x20] sm:$0x77]
    %v3134 = vld [vmem:[%s0 + $0x28] sm:$0x77]
    %v3135 = vld [vmem:[%s0 + $0x30] sm:$0x77]
    %v3136 = vld [vmem:[%s0 + $0x38] sm:$0x77]
    %v3137 = vld [vmem:[%s0 + $0x40] sm:$0x77]
    %v3138 = vld [vmem:[%s0 + $0x48] sm:$0x77]
    %v3139 = vld [vmem:[%s0 + $0x50] sm:$0x77]
    %v3140 = vld [vmem:[%s0 + $0x58] sm:$0x7]
    %3153 = vst [vmem:[#allocation1] ss:$2 sm:$0xff] %v3129
    %s3154 = scalar_lea.vmem [#allocation1], 16
    %3155 = vst [vmem:[%s3154] ss:$2 sm:$0xff] %v3130
    %s3156 = scalar_lea.vmem [#allocation1], 32
    %3157 = vst [vmem:[%s3156] ss:$2 sm:$0xff] %v3131
    %s3158 = scalar_lea.vmem [#allocation1], 48
    %3159 = vst [vmem:[%s3158] ss:$2 sm:$0xff] %v3132
    %v3160 = vld.sshfl [vmem:[#allocation1] sm:$0xff pattern:$0x75316420]
    %v3161 = vld.sshfl [vmem:[#allocation1 + $0x8] sm:$0xff pattern:$0x75316420]
    %v3162 = vld.sshfl [vmem:[#allocation1 + $0x10] sm:$0xff pattern:$0x75316420]
    %v3163 = vld.sshfl [vmem:[#allocation1 + $0x18] sm:$0xff pattern:$0x75316420]
    %v3164 = vld.sshfl [vmem:[#allocation1 + $0x20] sm:$0xff pattern:$0x75316420]
    %v3165 = vld.sshfl [vmem:[#allocation1 + $0x28] sm:$0xff pattern:$0x75316420]
    %v3166 = vld.sshfl [vmem:[#allocation1 + $0x30] sm:$0xff pattern:$0x75316420]
    %v3167 = vld.sshfl [vmem:[#allocation1 + $0x38] sm:$0xff pattern:$0x75316420]
    %3168 = vst [vmem:[#allocation1] ss:$2 sm:$0xff] %v3133
    %3169 = vst [vmem:[%s3154] ss:$2 sm:$0xff] %v3134
    %3170 = vst [vmem:[%s3156] ss:$2 sm:$0xff] %v3135
    %3171 = vst [vmem:[%s3158] ss:$2 sm:$0xff] %v3136
    %v3172 = vld.sshfl [vmem:[#allocation1] sm:$0xff pattern:$0x75316420]
    %v3173 = vld.sshfl [vmem:[#allocation1 + $0x8] sm:$0xff pattern:$0x75316420]
    %v3174 = vld.sshfl [vmem:[#allocation1 + $0x10] sm:$0xff pattern:$0x75316420]
    %v3175 = vld.sshfl [vmem:[#allocation1 + $0x18] sm:$0xff pattern:$0x75316420]
    %v3176 = vld.sshfl [vmem:[#allocation1 + $0x20] sm:$0xff pattern:$0x75316420]
    %v3177 = vld.sshfl [vmem:[#allocation1 + $0x28] sm:$0xff pattern:$0x75316420]
    %v3178 = vld.sshfl [vmem:[#allocation1 + $0x30] sm:$0xff pattern:$0x75316420]
    %v3179 = vld.sshfl [vmem:[#allocation1 + $0x38] sm:$0xff pattern:$0x75316420]
    %3180 = vst [vmem:[#allocation1] ss:$2 sm:$0xff] %v3137
    %3181 = vst [vmem:[%s3154] ss:$2 sm:$0xff] %v3138
    %3182 = vst [vmem:[%s3156] ss:$2 sm:$0xff] %v3139
    %3183 = vst [vmem:[%s3158] ss:$2 sm:$0xff] %v3140
    %v3184 = vld.sshfl [vmem:[#allocation1] sm:$0xff pattern:$0x75316420]
    %v3185 = vld.sshfl [vmem:[#allocation1 + $0x8] sm:$0xff pattern:$0x75316420]
    %v3186 = vld.sshfl [vmem:[#allocation1 + $0x10] sm:$0xff pattern:$0x75316420]
    %v3187 = vld.sshfl [vmem:[#allocation1 + $0x18] sm:$0xff pattern:$0x75316420]
    %v3188 = vld.sshfl [vmem:[#allocation1 + $0x20] sm:$0xff pattern:$0x75316420]
    %v3189 = vld.sshfl [vmem:[#allocation1 + $0x28] sm:$0xff pattern:$0x75316420]
    %v3190 = vld.sshfl [vmem:[#allocation1 + $0x30] sm:$0xff pattern:$0x75316420]
    %3191 = vrot.lane.b32.xlu0 %v3160, 31
    %v3192 = vpop.permute.xlu0 %3191
    %3193 = vrot.lane.b32.xlu0 %v3161, 31
    %v3194 = vpop.permute.xlu0 %3193
    %3195 = vrot.lane.b32.xlu0 %v3162, 31
    %v3196 = vpop.permute.xlu0 %3195
    %3197 = vrot.lane.b32.xlu0 %v3163, 31
    %v3198 = vpop.permute.xlu0 %3197
    %3199 = vrot.lane.b32.xlu0 %v3164, 31
    %v3200 = vpop.permute.xlu0 %3199
    %3201 = vrot.lane.b32.xlu0 %v3165, 31
    %v3202 = vpop.permute.xlu0 %3201
    %3203 = vrot.lane.b32.xlu0 %v3166, 31
    %v3204 = vpop.permute.xlu0 %3203
    %3205 = vrot.lane.b32.xlu0 %v3167, 31
    %v3206 = vpop.permute.xlu0 %3205
    %3207 = vrot.lane.b32.xlu0 %v3172, 31
    %v3208 = vpop.permute.xlu0 %3207
    %3209 = vrot.lane.b32.xlu0 %v3173, 31
    %v3210 = vpop.permute.xlu0 %3209
    %3211 = vrot.lane.b32.xlu0 %v3174, 31
    %v3212 = vpop.permute.xlu0 %3211
    %3213 = vrot.lane.b32.xlu0 %v3175, 31
    %v3214 = vpop.permute.xlu0 %3213
    %3215 = vrot.lane.b32.xlu0 %v3176, 31
    %v3216 = vpop.permute.xlu0 %3215
    %3217 = vrot.lane.b32.xlu0 %v3177, 31
    %v3218 = vpop.permute.xlu0 %3217
    %3219 = vrot.lane.b32.xlu0 %v3178, 31
    %v3220 = vpop.permute.xlu0 %3219
    %3221 = vrot.lane.b32.xlu0 %v3179, 31
    %v3222 = vpop.permute.xlu0 %3221
    %3223 = vrot.lane.b32.xlu0 %v3184, 31
    %v3224 = vpop.permute.xlu0 %3223
    %3225 = vrot.lane.b32.xlu0 %v3185, 31
    %v3226 = vpop.permute.xlu0 %3225
    %3227 = vrot.lane.b32.xlu0 %v3186, 31
    %v3228 = vpop.permute.xlu0 %3227
    %3229 = vrot.lane.b32.xlu0 %v3187, 31
    %v3230 = vpop.permute.xlu0 %3229
    %3231 = vrot.lane.b32.xlu0 %v3188, 31
    %v3232 = vpop.permute.xlu0 %3231
    %3233 = vrot.lane.b32.xlu0 %v3189, 31
    %v3234 = vpop.permute.xlu0 %3233
    %3235 = vrot.lane.b32.xlu0 %v3190, 31
    %v3236 = vpop.permute.xlu0 %3235
    %vm3237 = vcmask 252928
    %v3238 = vsel %vm3237, %v3192, %v3194
    %v3239 = vsel %vm3237, %v3194, %v3196
    %v3240 = vsel %vm3237, %v3196, %v3198
    %v3241 = vsel %vm3237, %v3198, %v3200
    %v3242 = vsel %vm3237, %v3200, %v3202
    %v3243 = vsel %vm3237, %v3202, %v3204
    %v3244 = vsel %vm3237, %v3204, %v3206
    %v3245 = vsel %vm3237, %v3206, %v3208
    %v3246 = vsel %vm3237, %v3208, %v3210
    %v3247 = vsel %vm3237, %v3210, %v3212
    %v3248 = vsel %vm3237, %v3212, %v3214
    %v3249 = vsel %vm3237, %v3214, %v3216
    %v3250 = vsel %vm3237, %v3216, %v3218
    %v3251 = vsel %vm3237, %v3218, %v3220
    %v3252 = vsel %vm3237, %v3220, %v3222
    %v3253 = vsel %vm3237, %v3222, %v3224
    %v3254 = vsel %vm3237, %v3224, %v3226
    %v3255 = vsel %vm3237, %v3226, %v3228
    %v3256 = vsel %vm3237, %v3228, %v3230
    %v3257 = vsel %vm3237, %v3230, %v3232
    %v3258 = vsel %vm3237, %v3232, %v3234
    %v3259 = vsel %vm3237, %v3234, %v3236
    %3282 = vst [vmem:[#allocation2 + $0x420] sm:$0x7] %v3238
    %3283 = vst [vmem:[#allocation2 + $0x428] sm:$0x7] %v3239
    %3284 = vst [vmem:[#allocation2 + $0x430] sm:$0x7] %v3240
    %3285 = vst [vmem:[#allocation2 + $0x438] sm:$0x7] %v3241
    %3286 = vst [vmem:[#allocation2 + $0x440] sm:$0x7] %v3242
    %3287 = vst [vmem:[#allocation2 + $0x448] sm:$0x7] %v3243
    %3288 = vst [vmem:[#allocation2 + $0x450] sm:$0x7] %v3244
    %3289 = vst [vmem:[#allocation2 + $0x458] sm:$0x7] %v3245
    %3290 = vst [vmem:[#allocation2 + $0x460] sm:$0x7] %v3246
    %3291 = vst [vmem:[#allocation2 + $0x468] sm:$0x7] %v3247
    %3292 = vst [vmem:[#allocation2 + $0x470] sm:$0x7] %v3248
    %3293 = vst [vmem:[#allocation2 + $0x478] sm:$0x7] %v3249
    %3294 = vst [vmem:[#allocation2 + $0x480] sm:$0x7] %v3250
    %3295 = vst [vmem:[#allocation2 + $0x488] sm:$0x7] %v3251
    %3296 = vst [vmem:[#allocation2 + $0x490] sm:$0x7] %v3252
    %3297 = vst [vmem:[#allocation2 + $0x498] sm:$0x7] %v3253
    %3298 = vst [vmem:[#allocation2 + $0x4a0] sm:$0x7] %v3254
    %3299 = vst [vmem:[#allocation2 + $0x4a8] sm:$0x7] %v3255
    %3300 = vst [vmem:[#allocation2 + $0x4b0] sm:$0x7] %v3256
    %3301 = vst [vmem:[#allocation2 + $0x4b8] sm:$0x7] %v3257
    %3302 = vst [vmem:[#allocation2 + $0x4c0] sm:$0x7] %v3258
    %3303 = vst [vmem:[#allocation2 + $0x4c8] sm:$0x7] %v3259
    %v3304 = vld [vmem:[%s0] sm:$0x77]
    %v3305 = vld [vmem:[%s0 + $0x8] sm:$0x77]
    %v3306 = vld [vmem:[%s0 + $0x10] sm:$0x77]
    %v3307 = vld [vmem:[%s0 + $0x18] sm:$0x77]
    %v3308 = vld [vmem:[%s0 + $0x20] sm:$0x77]
    %v3309 = vld [vmem:[%s0 + $0x28] sm:$0x77]
    %v3310 = vld [vmem:[%s0 + $0x30] sm:$0x77]
    %v3311 = vld [vmem:[%s0 + $0x38] sm:$0x77]
    %v3312 = vld [vmem:[%s0 + $0x40] sm:$0x77]
    %v3313 = vld [vmem:[%s0 + $0x48] sm:$0x77]
    %v3314 = vld [vmem:[%s0 + $0x50] sm:$0x77]
    %v3315 = vld [vmem:[%s0 + $0x58] sm:$0x7]
    %3328 = vst [vmem:[#allocation1] ss:$2 sm:$0xff] %v3304
    %s3329 = scalar_lea.vmem [#allocation1], 16
    %3330 = vst [vmem:[%s3329] ss:$2 sm:$0xff] %v3305
    %s3331 = scalar_lea.vmem [#allocation1], 32
    %3332 = vst [vmem:[%s3331] ss:$2 sm:$0xff] %v3306
    %s3333 = scalar_lea.vmem [#allocation1], 48
    %3334 = vst [vmem:[%s3333] ss:$2 sm:$0xff] %v3307
    %v3335 = vld.sshfl [vmem:[#allocation1] sm:$0xff pattern:$0x75316420]
    %v3336 = vld.sshfl [vmem:[#allocation1 + $0x8] sm:$0xff pattern:$0x75316420]
    %v3337 = vld.sshfl [vmem:[#allocation1 + $0x10] sm:$0xff pattern:$0x75316420]
    %v3338 = vld.sshfl [vmem:[#allocation1 + $0x18] sm:$0xff pattern:$0x75316420]
    %v3339 = vld.sshfl [vmem:[#allocation1 + $0x20] sm:$0xff pattern:$0x75316420]
    %v3340 = vld.sshfl [vmem:[#allocation1 + $0x28] sm:$0xff pattern:$0x75316420]
    %v3341 = vld.sshfl [vmem:[#allocation1 + $0x30] sm:$0xff pattern:$0x75316420]
    %v3342 = vld.sshfl [vmem:[#allocation1 + $0x38] sm:$0xff pattern:$0x75316420]
    %3343 = vst [vmem:[#allocation1] ss:$2 sm:$0xff] %v3308
    %3344 = vst [vmem:[%s3329] ss:$2 sm:$0xff] %v3309
    %3345 = vst [vmem:[%s3331] ss:$2 sm:$0xff] %v3310
    %3346 = vst [vmem:[%s3333] ss:$2 sm:$0xff] %v3311
    %v3347 = vld.sshfl [vmem:[#allocation1] sm:$0xff pattern:$0x75316420]
    %v3348 = vld.sshfl [vmem:[#allocation1 + $0x8] sm:$0xff pattern:$0x75316420]
    %v3349 = vld.sshfl [vmem:[#allocation1 + $0x10] sm:$0xff pattern:$0x75316420]
    %v3350 = vld.sshfl [vmem:[#allocation1 + $0x18] sm:$0xff pattern:$0x75316420]
    %v3351 = vld.sshfl [vmem:[#allocation1 + $0x20] sm:$0xff pattern:$0x75316420]
    %v3352 = vld.sshfl [vmem:[#allocation1 + $0x28] sm:$0xff pattern:$0x75316420]
    %v3353 = vld.sshfl [vmem:[#allocation1 + $0x30] sm:$0xff pattern:$0x75316420]
    %v3354 = vld.sshfl [vmem:[#allocation1 + $0x38] sm:$0xff pattern:$0x75316420]
    %3355 = vst [vmem:[#allocation1] ss:$2 sm:$0xff] %v3312
    %3356 = vst [vmem:[%s3329] ss:$2 sm:$0xff] %v3313
    %3357 = vst [vmem:[%s3331] ss:$2 sm:$0xff] %v3314
    %3358 = vst [vmem:[%s3333] ss:$2 sm:$0xff] %v3315
    %v3359 = vld.sshfl [vmem:[#allocation1] sm:$0xff pattern:$0x75316420]
    %v3360 = vld.sshfl [vmem:[#allocation1 + $0x8] sm:$0xff pattern:$0x75316420]
    %v3361 = vld.sshfl [vmem:[#allocation1 + $0x10] sm:$0xff pattern:$0x75316420]
    %v3362 = vld.sshfl [vmem:[#allocation1 + $0x18] sm:$0xff pattern:$0x75316420]
    %v3363 = vld.sshfl [vmem:[#allocation1 + $0x20] sm:$0xff pattern:$0x75316420]
    %v3364 = vld.sshfl [vmem:[#allocation1 + $0x28] sm:$0xff pattern:$0x75316420]
    %v3365 = vld.sshfl [vmem:[#allocation1 + $0x30] sm:$0xff pattern:$0x75316420]
    %v3366 = vrot.slane %v3335, 5
    %v3367 = vrot.slane %v3336, 5
    %v3368 = vrot.slane %v3337, 5
    %v3369 = vrot.slane %v3338, 5
    %v3370 = vrot.slane %v3339, 5
    %v3371 = vrot.slane %v3340, 5
    %v3372 = vrot.slane %v3341, 5
    %v3373 = vrot.slane %v3342, 5
    %v3374 = vrot.slane %v3347, 5
    %v3375 = vrot.slane %v3348, 5
    %v3376 = vrot.slane %v3349, 5
    %v3377 = vrot.slane %v3350, 5
    %v3378 = vrot.slane %v3351, 5
    %v3379 = vrot.slane %v3352, 5
    %v3380 = vrot.slane %v3353, 5
    %v3381 = vrot.slane %v3354, 5
    %v3382 = vrot.slane %v3359, 5
    %v3383 = vrot.slane %v3360, 5
    %v3384 = vrot.slane %v3361, 5
    %v3385 = vrot.slane %v3362, 5
    %v3386 = vrot.slane %v3363, 5
    %v3387 = vrot.slane %v3364, 5
    %v3388 = vrot.slane %v3365, 5
    %3389 = vrot.lane.b32.xlu0 %v3366, 30
    %v3390 = vpop.permute.xlu0 %3389
    %3391 = vrot.lane.b32.xlu0 %v3367, 30
    %v3392 = vpop.permute.xlu0 %3391
    %3393 = vrot.lane.b32.xlu0 %v3368, 30
    %v3394 = vpop.permute.xlu0 %3393
    %3395 = vrot.lane.b32.xlu0 %v3369, 30
    %v3396 = vpop.permute.xlu0 %3395
    %3397 = vrot.lane.b32.xlu0 %v3370, 30
    %v3398 = vpop.permute.xlu0 %3397
    %3399 = vrot.lane.b32.xlu0 %v3371, 30
    %v3400 = vpop.permute.xlu0 %3399
    %3401 = vrot.lane.b32.xlu0 %v3372, 30
    %v3402 = vpop.permute.xlu0 %3401
    %3403 = vrot.lane.b32.xlu0 %v3373, 30
    %v3404 = vpop.permute.xlu0 %3403
    %3405 = vrot.lane.b32.xlu0 %v3374, 30
    %v3406 = vpop.permute.xlu0 %3405
    %3407 = vrot.lane.b32.xlu0 %v3375, 30
    %v3408 = vpop.permute.xlu0 %3407
    %3409 = vrot.lane.b32.xlu0 %v3376, 30
    %v3410 = vpop.permute.xlu0 %3409
    %3411 = vrot.lane.b32.xlu0 %v3377, 30
    %v3412 = vpop.permute.xlu0 %3411
    %3413 = vrot.lane.b32.xlu0 %v3378, 30
    %v3414 = vpop.permute.xlu0 %3413
    %3415 = vrot.lane.b32.xlu0 %v3379, 30
    %v3416 = vpop.permute.xlu0 %3415
    %3417 = vrot.lane.b32.xlu0 %v3380, 30
    %v3418 = vpop.permute.xlu0 %3417
    %3419 = vrot.lane.b32.xlu0 %v3381, 30
    %v3420 = vpop.permute.xlu0 %3419
    %3421 = vrot.lane.b32.xlu0 %v3382, 30
    %v3422 = vpop.permute.xlu0 %3421
    %3423 = vrot.lane.b32.xlu0 %v3383, 30
    %v3424 = vpop.permute.xlu0 %3423
    %3425 = vrot.lane.b32.xlu0 %v3384, 30
    %v3426 = vpop.permute.xlu0 %3425
    %3427 = vrot.lane.b32.xlu0 %v3385, 30
    %v3428 = vpop.permute.xlu0 %3427
    %3429 = vrot.lane.b32.xlu0 %v3386, 30
    %v3430 = vpop.permute.xlu0 %3429
    %3431 = vrot.lane.b32.xlu0 %v3387, 30
    %v3432 = vpop.permute.xlu0 %3431
    %3433 = vrot.lane.b32.xlu0 %v3388, 30
    %v3434 = vpop.permute.xlu0 %3433
    %vm3435 = vcmask 244736
    %v3436 = vsel %vm3435, %v3390, %v3392
    %v3437 = vsel %vm3435, %v3392, %v3394
    %v3438 = vsel %vm3435, %v3394, %v3396
    %v3439 = vsel %vm3435, %v3396, %v3398
    %v3440 = vsel %vm3435, %v3398, %v3400
    %v3441 = vsel %vm3435, %v3400, %v3402
    %v3442 = vsel %vm3435, %v3402, %v3404
    %v3443 = vsel %vm3435, %v3404, %v3406
    %v3444 = vsel %vm3435, %v3406, %v3408
    %v3445 = vsel %vm3435, %v3408, %v3410
    %v3446 = vsel %vm3435, %v3410, %v3412
    %v3447 = vsel %vm3435, %v3412, %v3414
    %v3448 = vsel %vm3435, %v3414, %v3416
    %v3449 = vsel %vm3435, %v3416, %v3418
    %v3450 = vsel %vm3435, %v3418, %v3420
    %v3451 = vsel %vm3435, %v3420, %v3422
    %v3452 = vsel %vm3435, %v3422, %v3424
    %v3453 = vsel %vm3435, %v3424, %v3426
    %v3454 = vsel %vm3435, %v3426, %v3428
    %v3455 = vsel %vm3435, %v3428, %v3430
    %v3456 = vsel %vm3435, %v3430, %v3432
    %v3457 = vsel %vm3435, %v3432, %v3434
    %3480 = vst [vmem:[#allocation2 + $0x420] sm:$0x38] %v3436
    %3481 = vst [vmem:[#allocation2 + $0x428] sm:$0x38] %v3437
    %3482 = vst [vmem:[#allocation2 + $0x430] sm:$0x38] %v3438
    %3483 = vst [vmem:[#allocation2 + $0x438] sm:$0x38] %v3439
    %3484 = vst [vmem:[#allocation2 + $0x440] sm:$0x38] %v3440
    %3485 = vst [vmem:[#allocation2 + $0x448] sm:$0x38] %v3441
    %3486 = vst [vmem:[#allocation2 + $0x450] sm:$0x38] %v3442
    %3487 = vst [vmem:[#allocation2 + $0x458] sm:$0x38] %v3443
    %3488 = vst [vmem:[#allocation2 + $0x460] sm:$0x38] %v3444
    %3489 = vst [vmem:[#allocation2 + $0x468] sm:$0x38] %v3445
    %3490 = vst [vmem:[#allocation2 + $0x470] sm:$0x38] %v3446
    %3491 = vst [vmem:[#allocation2 + $0x478] sm:$0x38] %v3447
    %3492 = vst [vmem:[#allocation2 + $0x480] sm:$0x38] %v3448
    %3493 = vst [vmem:[#allocation2 + $0x488] sm:$0x38] %v3449
    %3494 = vst [vmem:[#allocation2 + $0x490] sm:$0x38] %v3450
    %3495 = vst [vmem:[#allocation2 + $0x498] sm:$0x38] %v3451
    %3496 = vst [vmem:[#allocation2 + $0x4a0] sm:$0x38] %v3452
    %3497 = vst [vmem:[#allocation2 + $0x4a8] sm:$0x38] %v3453
    %3498 = vst [vmem:[#allocation2 + $0x4b0] sm:$0x38] %v3454
    %3499 = vst [vmem:[#allocation2 + $0x4b8] sm:$0x38] %v3455
    %3500 = vst [vmem:[#allocation2 + $0x4c0] sm:$0x38] %v3456
    %3501 = vst [vmem:[#allocation2 + $0x4c8] sm:$0x38] %v3457
    %v3502 = vld [vmem:[%s0] sm:$0x77]
    %v3503 = vld [vmem:[%s0 + $0x8] sm:$0x77]
    %v3504 = vld [vmem:[%s0 + $0x10] sm:$0x77]
    %v3505 = vld [vmem:[%s0 + $0x18] sm:$0x77]
    %v3506 = vld [vmem:[%s0 + $0x20] sm:$0x77]
    %v3507 = vld [vmem:[%s0 + $0x28] sm:$0x77]
    %v3508 = vld [vmem:[%s0 + $0x30] sm:$0x77]
    %v3509 = vld [vmem:[%s0 + $0x38] sm:$0x77]
    %v3510 = vld [vmem:[%s0 + $0x40] sm:$0x77]
    %v3511 = vld [vmem:[%s0 + $0x48] sm:$0x77]
    %v3512 = vld [vmem:[%s0 + $0x50] sm:$0x77]
    %v3513 = vld [vmem:[%s0 + $0x58] sm:$0x7]
    %3526 = vst [vmem:[#allocation1] ss:$2 sm:$0xff] %v3502
    %s3527 = scalar_lea.vmem [#allocation1], 16
    %3528 = vst [vmem:[%s3527] ss:$2 sm:$0xff] %v3503
    %s3529 = scalar_lea.vmem [#allocation1], 32
    %3530 = vst [vmem:[%s3529] ss:$2 sm:$0xff] %v3504
    %s3531 = scalar_lea.vmem [#allocation1], 48
    %3532 = vst [vmem:[%s3531] ss:$2 sm:$0xff] %v3505
    %v3533 = vld.sshfl [vmem:[#allocation1] sm:$0xff pattern:$0x75316420]
    %v3534 = vld.sshfl [vmem:[#allocation1 + $0x8] sm:$0xff pattern:$0x75316420]
    %v3535 = vld.sshfl [vmem:[#allocation1 + $0x10] sm:$0xff pattern:$0x75316420]
    %v3536 = vld.sshfl [vmem:[#allocation1 + $0x18] sm:$0xff pattern:$0x75316420]
    %v3537 = vld.sshfl [vmem:[#allocation1 + $0x20] sm:$0xff pattern:$0x75316420]
    %v3538 = vld.sshfl [vmem:[#allocation1 + $0x28] sm:$0xff pattern:$0x75316420]
    %v3539 = vld.sshfl [vmem:[#allocation1 + $0x30] sm:$0xff pattern:$0x75316420]
    %v3540 = vld.sshfl [vmem:[#allocation1 + $0x38] sm:$0xff pattern:$0x75316420]
    %3541 = vst [vmem:[#allocation1] ss:$2 sm:$0xff] %v3506
    %3542 = vst [vmem:[%s3527] ss:$2 sm:$0xff] %v3507
    %3543 = vst [vmem:[%s3529] ss:$2 sm:$0xff] %v3508
    %3544 = vst [vmem:[%s3531] ss:$2 sm:$0xff] %v3509
    %v3545 = vld.sshfl [vmem:[#allocation1] sm:$0xff pattern:$0x75316420]
    %v3546 = vld.sshfl [vmem:[#allocation1 + $0x8] sm:$0xff pattern:$0x75316420]
    %v3547 = vld.sshfl [vmem:[#allocation1 + $0x10] sm:$0xff pattern:$0x75316420]
    %v3548 = vld.sshfl [vmem:[#allocation1 + $0x18] sm:$0xff pattern:$0x75316420]
    %v3549 = vld.sshfl [vmem:[#allocation1 + $0x20] sm:$0xff pattern:$0x75316420]
    %v3550 = vld.sshfl [vmem:[#allocation1 + $0x28] sm:$0xff pattern:$0x75316420]
    %v3551 = vld.sshfl [vmem:[#allocation1 + $0x30] sm:$0xff pattern:$0x75316420]
    %v3552 = vld.sshfl [vmem:[#allocation1 + $0x38] sm:$0xff pattern:$0x75316420]
    %3553 = vst [vmem:[#allocation1] ss:$2 sm:$0xff] %v3510
    %3554 = vst [vmem:[%s3527] ss:$2 sm:$0xff] %v3511
    %3555 = vst [vmem:[%s3529] ss:$2 sm:$0xff] %v3512
    %3556 = vst [vmem:[%s3531] ss:$2 sm:$0xff] %v3513
    %v3557 = vld.sshfl [vmem:[#allocation1] sm:$0xff pattern:$0x75316420]
    %v3558 = vld.sshfl [vmem:[#allocation1 + $0x8] sm:$0xff pattern:$0x75316420]
    %v3559 = vld.sshfl [vmem:[#allocation1 + $0x10] sm:$0xff pattern:$0x75316420]
    %v3560 = vld.sshfl [vmem:[#allocation1 + $0x18] sm:$0xff pattern:$0x75316420]
    %v3561 = vld.sshfl [vmem:[#allocation1 + $0x20] sm:$0xff pattern:$0x75316420]
    %v3562 = vld.sshfl [vmem:[#allocation1 + $0x28] sm:$0xff pattern:$0x75316420]
    %v3563 = vld.sshfl [vmem:[#allocation1 + $0x30] sm:$0xff pattern:$0x75316420]
    %v3564 = vrot.slane %v3533, 2
    %v3565 = vrot.slane %v3534, 2
    %v3566 = vrot.slane %v3535, 2
    %v3567 = vrot.slane %v3536, 2
    %v3568 = vrot.slane %v3537, 2
    %v3569 = vrot.slane %v3538, 2
    %v3570 = vrot.slane %v3539, 2
    %v3571 = vrot.slane %v3540, 2
    %v3572 = vrot.slane %v3545, 2
    %v3573 = vrot.slane %v3546, 2
    %v3574 = vrot.slane %v3547, 2
    %v3575 = vrot.slane %v3548, 2
    %v3576 = vrot.slane %v3549, 2
    %v3577 = vrot.slane %v3550, 2
    %v3578 = vrot.slane %v3551, 2
    %v3579 = vrot.slane %v3552, 2
    %v3580 = vrot.slane %v3557, 2
    %v3581 = vrot.slane %v3558, 2
    %v3582 = vrot.slane %v3559, 2
    %v3583 = vrot.slane %v3560, 2
    %v3584 = vrot.slane %v3561, 2
    %v3585 = vrot.slane %v3562, 2
    %v3586 = vrot.slane %v3563, 2
    %3587 = vrot.lane.b32.xlu0 %v3564, 29
    %v3588 = vpop.permute.xlu0 %3587
    %3589 = vrot.lane.b32.xlu0 %v3565, 29
    %v3590 = vpop.permute.xlu0 %3589
    %3591 = vrot.lane.b32.xlu0 %v3566, 29
    %v3592 = vpop.permute.xlu0 %3591
    %3593 = vrot.lane.b32.xlu0 %v3567, 29
    %v3594 = vpop.permute.xlu0 %3593
    %3595 = vrot.lane.b32.xlu0 %v3568, 29
    %v3596 = vpop.permute.xlu0 %3595
    %3597 = vrot.lane.b32.xlu0 %v3569, 29
    %v3598 = vpop.permute.xlu0 %3597
    %3599 = vrot.lane.b32.xlu0 %v3570, 29
    %v3600 = vpop.permute.xlu0 %3599
    %3601 = vrot.lane.b32.xlu0 %v3571, 29
    %v3602 = vpop.permute.xlu0 %3601
    %3603 = vrot.lane.b32.xlu0 %v3572, 29
    %v3604 = vpop.permute.xlu0 %3603
    %3605 = vrot.lane.b32.xlu0 %v3573, 29
    %v3606 = vpop.permute.xlu0 %3605
    %3607 = vrot.lane.b32.xlu0 %v3574, 29
    %v3608 = vpop.permute.xlu0 %3607
    %3609 = vrot.lane.b32.xlu0 %v3575, 29
    %v3610 = vpop.permute.xlu0 %3609
    %3611 = vrot.lane.b32.xlu0 %v3576, 29
    %v3612 = vpop.permute.xlu0 %3611
    %3613 = vrot.lane.b32.xlu0 %v3577, 29
    %v3614 = vpop.permute.xlu0 %3613
    %3615 = vrot.lane.b32.xlu0 %v3578, 29
    %v3616 = vpop.permute.xlu0 %3615
    %3617 = vrot.lane.b32.xlu0 %v3579, 29
    %v3618 = vpop.permute.xlu0 %3617
    %3619 = vrot.lane.b32.xlu0 %v3580, 29
    %v3620 = vpop.permute.xlu0 %3619
    %3621 = vrot.lane.b32.xlu0 %v3581, 29
    %v3622 = vpop.permute.xlu0 %3621
    %3623 = vrot.lane.b32.xlu0 %v3582, 29
    %v3624 = vpop.permute.xlu0 %3623
    %3625 = vrot.lane.b32.xlu0 %v3583, 29
    %v3626 = vpop.permute.xlu0 %3625
    %3627 = vrot.lane.b32.xlu0 %v3584, 29
    %v3628 = vpop.permute.xlu0 %3627
    %3629 = vrot.lane.b32.xlu0 %v3585, 29
    %v3630 = vpop.permute.xlu0 %3629
    %3631 = vrot.lane.b32.xlu0 %v3586, 29
    %v3632 = vpop.permute.xlu0 %3631
    %vm3633 = vcmask 236544
    %v3634 = vsel %vm3633, %v3588, %v3590
    %v3635 = vsel %vm3633, %v3590, %v3592
    %v3636 = vsel %vm3633, %v3592, %v3594
    %v3637 = vsel %vm3633, %v3594, %v3596
    %v3638 = vsel %vm3633, %v3596, %v3598
    %v3639 = vsel %vm3633, %v3598, %v3600
    %v3640 = vsel %vm3633, %v3600, %v3602
    %v3641 = vsel %vm3633, %v3602, %v3604
    %v3642 = vsel %vm3633, %v3604, %v3606
    %v3643 = vsel %vm3633, %v3606, %v3608
    %v3644 = vsel %vm3633, %v3608, %v3610
    %v3645 = vsel %vm3633, %v3610, %v3612
    %v3646 = vsel %vm3633, %v3612, %v3614
    %v3647 = vsel %vm3633, %v3614, %v3616
    %v3648 = vsel %vm3633, %v3616, %v3618
    %v3649 = vsel %vm3633, %v3618, %v3620
    %v3650 = vsel %vm3633, %v3620, %v3622
    %v3651 = vsel %vm3633, %v3622, %v3624
    %v3652 = vsel %vm3633, %v3624, %v3626
    %v3653 = vsel %vm3633, %v3626, %v3628
    %v3654 = vsel %vm3633, %v3628, %v3630
    %v3655 = vsel %vm3633, %v3630, %v3632
    %3678 = vst [vmem:[#allocation2 + $0x420] sm:$0xc0] %v3634
    %3679 = vst [vmem:[#allocation2 + $0x428] sm:$0xc0] %v3635
    %3680 = vst [vmem:[#allocation2 + $0x430] sm:$0xc0] %v3636
    %3681 = vst [vmem:[#allocation2 + $0x438] sm:$0xc0] %v3637
    %3682 = vst [vmem:[#allocation2 + $0x440] sm:$0xc0] %v3638
    %3683 = vst [vmem:[#allocation2 + $0x448] sm:$0xc0] %v3639
    %3684 = vst [vmem:[#allocation2 + $0x450] sm:$0xc0] %v3640
    %3685 = vst [vmem:[#allocation2 + $0x458] sm:$0xc0] %v3641
    %3686 = vst [vmem:[#allocation2 + $0x460] sm:$0xc0] %v3642
    %3687 = vst [vmem:[#allocation2 + $0x468] sm:$0xc0] %v3643
    %3688 = vst [vmem:[#allocation2 + $0x470] sm:$0xc0] %v3644
    %3689 = vst [vmem:[#allocation2 + $0x478] sm:$0xc0] %v3645
    %3690 = vst [vmem:[#allocation2 + $0x480] sm:$0xc0] %v3646
    %3691 = vst [vmem:[#allocation2 + $0x488] sm:$0xc0] %v3647
    %3692 = vst [vmem:[#allocation2 + $0x490] sm:$0xc0] %v3648
    %3693 = vst [vmem:[#allocation2 + $0x498] sm:$0xc0] %v3649
    %3694 = vst [vmem:[#allocation2 + $0x4a0] sm:$0xc0] %v3650
    %3695 = vst [vmem:[#allocation2 + $0x4a8] sm:$0xc0] %v3651
    %3696 = vst [vmem:[#allocation2 + $0x4b0] sm:$0xc0] %v3652
    %3697 = vst [vmem:[#allocation2 + $0x4b8] sm:$0xc0] %v3653
    %3698 = vst [vmem:[#allocation2 + $0x4c0] sm:$0xc0] %v3654
    %3699 = vst [vmem:[#allocation2 + $0x4c8] sm:$0xc0] %v3655
    %3700 = vst [vmem:[#allocation2 + $0x4d0] sm:$0x1] %v3634
    %3701 = vst [vmem:[#allocation2 + $0x4d8] sm:$0x1] %v3635
    %3702 = vst [vmem:[#allocation2 + $0x4e0] sm:$0x1] %v3636
    %3703 = vst [vmem:[#allocation2 + $0x4e8] sm:$0x1] %v3637
    %3704 = vst [vmem:[#allocation2 + $0x4f0] sm:$0x1] %v3638
    %3705 = vst [vmem:[#allocation2 + $0x4f8] sm:$0x1] %v3639
    %3706 = vst [vmem:[#allocation2 + $0x500] sm:$0x1] %v3640
    %3707 = vst [vmem:[#allocation2 + $0x508] sm:$0x1] %v3641
    %3708 = vst [vmem:[#allocation2 + $0x510] sm:$0x1] %v3642
    %3709 = vst [vmem:[#allocation2 + $0x518] sm:$0x1] %v3643
    %3710 = vst [vmem:[#allocation2 + $0x520] sm:$0x1] %v3644
    %3711 = vst [vmem:[#allocation2 + $0x528] sm:$0x1] %v3645
    %3712 = vst [vmem:[#allocation2 + $0x530] sm:$0x1] %v3646
    %3713 = vst [vmem:[#allocation2 + $0x538] sm:$0x1] %v3647
    %3714 = vst [vmem:[#allocation2 + $0x540] sm:$0x1] %v3648
    %3715 = vst [vmem:[#allocation2 + $0x548] sm:$0x1] %v3649
    %3716 = vst [vmem:[#allocation2 + $0x550] sm:$0x1] %v3650
    %3717 = vst [vmem:[#allocation2 + $0x558] sm:$0x1] %v3651
    %3718 = vst [vmem:[#allocation2 + $0x560] sm:$0x1] %v3652
    %3719 = vst [vmem:[#allocation2 + $0x568] sm:$0x1] %v3653
    %3720 = vst [vmem:[#allocation2 + $0x570] sm:$0x1] %v3654
    %3721 = vst [vmem:[#allocation2 + $0x578] sm:$0x1] %v3655
    %v3722 = vld [vmem:[%s0] sm:$0x77]
    %v3723 = vld [vmem:[%s0 + $0x8] sm:$0x77]
    %v3724 = vld [vmem:[%s0 + $0x10] sm:$0x77]
    %v3725 = vld [vmem:[%s0 + $0x18] sm:$0x77]
    %v3726 = vld [vmem:[%s0 + $0x20] sm:$0x77]
    %v3727 = vld [vmem:[%s0 + $0x28] sm:$0x77]
    %v3728 = vld [vmem:[%s0 + $0x30] sm:$0x77]
    %v3729 = vld [vmem:[%s0 + $0x38] sm:$0x77]
    %v3730 = vld [vmem:[%s0 + $0x40] sm:$0x77]
    %v3731 = vld [vmem:[%s0 + $0x48] sm:$0x77]
    %v3732 = vld [vmem:[%s0 + $0x50] sm:$0x77]
    %v3733 = vld [vmem:[%s0 + $0x58] sm:$0x7]
    %3746 = vst [vmem:[#allocation1] ss:$2 sm:$0xff] %v3722
    %s3747 = scalar_lea.vmem [#allocation1], 16
    %3748 = vst [vmem:[%s3747] ss:$2 sm:$0xff] %v3723
    %s3749 = scalar_lea.vmem [#allocation1], 32
    %3750 = vst [vmem:[%s3749] ss:$2 sm:$0xff] %v3724
    %s3751 = scalar_lea.vmem [#allocation1], 48
    %3752 = vst [vmem:[%s3751] ss:$2 sm:$0xff] %v3725
    %v3753 = vld.sshfl [vmem:[#allocation1] sm:$0xff pattern:$0x75316420]
    %v3754 = vld.sshfl [vmem:[#allocation1 + $0x8] sm:$0xff pattern:$0x75316420]
    %v3755 = vld.sshfl [vmem:[#allocation1 + $0x10] sm:$0xff pattern:$0x75316420]
    %v3756 = vld.sshfl [vmem:[#allocation1 + $0x18] sm:$0xff pattern:$0x75316420]
    %v3757 = vld.sshfl [vmem:[#allocation1 + $0x20] sm:$0xff pattern:$0x75316420]
    %v3758 = vld.sshfl [vmem:[#allocation1 + $0x28] sm:$0xff pattern:$0x75316420]
    %v3759 = vld.sshfl [vmem:[#allocation1 + $0x30] sm:$0xff pattern:$0x75316420]
    %v3760 = vld.sshfl [vmem:[#allocation1 + $0x38] sm:$0xff pattern:$0x75316420]
    %3761 = vst [vmem:[#allocation1] ss:$2 sm:$0xff] %v3726
    %3762 = vst [vmem:[%s3747] ss:$2 sm:$0xff] %v3727
    %3763 = vst [vmem:[%s3749] ss:$2 sm:$0xff] %v3728
    %3764 = vst [vmem:[%s3751] ss:$2 sm:$0xff] %v3729
    %v3765 = vld.sshfl [vmem:[#allocation1] sm:$0xff pattern:$0x75316420]
    %v3766 = vld.sshfl [vmem:[#allocation1 + $0x8] sm:$0xff pattern:$0x75316420]
    %v3767 = vld.sshfl [vmem:[#allocation1 + $0x10] sm:$0xff pattern:$0x75316420]
    %v3768 = vld.sshfl [vmem:[#allocation1 + $0x18] sm:$0xff pattern:$0x75316420]
    %v3769 = vld.sshfl [vmem:[#allocation1 + $0x20] sm:$0xff pattern:$0x75316420]
    %v3770 = vld.sshfl [vmem:[#allocation1 + $0x28] sm:$0xff pattern:$0x75316420]
    %v3771 = vld.sshfl [vmem:[#allocation1 + $0x30] sm:$0xff pattern:$0x75316420]
    %v3772 = vld.sshfl [vmem:[#allocation1 + $0x38] sm:$0xff pattern:$0x75316420]
    %3773 = vst [vmem:[#allocation1] ss:$2 sm:$0xff] %v3730
    %3774 = vst [vmem:[%s3747] ss:$2 sm:$0xff] %v3731
    %3775 = vst [vmem:[%s3749] ss:$2 sm:$0xff] %v3732
    %3776 = vst [vmem:[%s3751] ss:$2 sm:$0xff] %v3733
    %v3777 = vld.sshfl [vmem:[#allocation1] sm:$0xff pattern:$0x75316420]
    %v3778 = vld.sshfl [vmem:[#allocation1 + $0x8] sm:$0xff pattern:$0x75316420]
    %v3779 = vld.sshfl [vmem:[#allocation1 + $0x10] sm:$0xff pattern:$0x75316420]
    %v3780 = vld.sshfl [vmem:[#allocation1 + $0x18] sm:$0xff pattern:$0x75316420]
    %v3781 = vld.sshfl [vmem:[#allocation1 + $0x20] sm:$0xff pattern:$0x75316420]
    %v3782 = vld.sshfl [vmem:[#allocation1 + $0x28] sm:$0xff pattern:$0x75316420]
    %v3783 = vld.sshfl [vmem:[#allocation1 + $0x30] sm:$0xff pattern:$0x75316420]
    %v3784 = vrot.slane %v3753, 7
    %v3785 = vrot.slane %v3754, 7
    %v3786 = vrot.slane %v3755, 7
    %v3787 = vrot.slane %v3756, 7
    %v3788 = vrot.slane %v3757, 7
    %v3789 = vrot.slane %v3758, 7
    %v3790 = vrot.slane %v3759, 7
    %v3791 = vrot.slane %v3760, 7
    %v3792 = vrot.slane %v3765, 7
    %v3793 = vrot.slane %v3766, 7
    %v3794 = vrot.slane %v3767, 7
    %v3795 = vrot.slane %v3768, 7
    %v3796 = vrot.slane %v3769, 7
    %v3797 = vrot.slane %v3770, 7
    %v3798 = vrot.slane %v3771, 7
    %v3799 = vrot.slane %v3772, 7
    %v3800 = vrot.slane %v3777, 7
    %v3801 = vrot.slane %v3778, 7
    %v3802 = vrot.slane %v3779, 7
    %v3803 = vrot.slane %v3780, 7
    %v3804 = vrot.slane %v3781, 7
    %v3805 = vrot.slane %v3782, 7
    %v3806 = vrot.slane %v3783, 7
    %3807 = vrot.lane.b32.xlu0 %v3784, 28
    %v3808 = vpop.permute.xlu0 %3807
    %3809 = vrot.lane.b32.xlu0 %v3785, 28
    %v3810 = vpop.permute.xlu0 %3809
    %3811 = vrot.lane.b32.xlu0 %v3786, 28
    %v3812 = vpop.permute.xlu0 %3811
    %3813 = vrot.lane.b32.xlu0 %v3787, 28
    %v3814 = vpop.permute.xlu0 %3813
    %3815 = vrot.lane.b32.xlu0 %v3788, 28
    %v3816 = vpop.permute.xlu0 %3815
    %3817 = vrot.lane.b32.xlu0 %v3789, 28
    %v3818 = vpop.permute.xlu0 %3817
    %3819 = vrot.lane.b32.xlu0 %v3790, 28
    %v3820 = vpop.permute.xlu0 %3819
    %3821 = vrot.lane.b32.xlu0 %v3791, 28
    %v3822 = vpop.permute.xlu0 %3821
    %3823 = vrot.lane.b32.xlu0 %v3792, 28
    %v3824 = vpop.permute.xlu0 %3823
    %3825 = vrot.lane.b32.xlu0 %v3793, 28
    %v3826 = vpop.permute.xlu0 %3825
    %3827 = vrot.lane.b32.xlu0 %v3794, 28
    %v3828 = vpop.permute.xlu0 %3827
    %3829 = vrot.lane.b32.xlu0 %v3795, 28
    %v3830 = vpop.permute.xlu0 %3829
    %3831 = vrot.lane.b32.xlu0 %v3796, 28
    %v3832 = vpop.permute.xlu0 %3831
    %3833 = vrot.lane.b32.xlu0 %v3797, 28
    %v3834 = vpop.permute.xlu0 %3833
    %3835 = vrot.lane.b32.xlu0 %v3798, 28
    %v3836 = vpop.permute.xlu0 %3835
    %3837 = vrot.lane.b32.xlu0 %v3799, 28
    %v3838 = vpop.permute.xlu0 %3837
    %3839 = vrot.lane.b32.xlu0 %v3800, 28
    %v3840 = vpop.permute.xlu0 %3839
    %3841 = vrot.lane.b32.xlu0 %v3801, 28
    %v3842 = vpop.permute.xlu0 %3841
    %3843 = vrot.lane.b32.xlu0 %v3802, 28
    %v3844 = vpop.permute.xlu0 %3843
    %3845 = vrot.lane.b32.xlu0 %v3803, 28
    %v3846 = vpop.permute.xlu0 %3845
    %3847 = vrot.lane.b32.xlu0 %v3804, 28
    %v3848 = vpop.permute.xlu0 %3847
    %3849 = vrot.lane.b32.xlu0 %v3805, 28
    %v3850 = vpop.permute.xlu0 %3849
    %3851 = vrot.lane.b32.xlu0 %v3806, 28
    %v3852 = vpop.permute.xlu0 %3851
    %vm3853 = vcmask 228352
    %v3854 = vsel %vm3853, %v3808, %v3810
    %v3855 = vsel %vm3853, %v3810, %v3812
    %v3856 = vsel %vm3853, %v3812, %v3814
    %v3857 = vsel %vm3853, %v3814, %v3816
    %v3858 = vsel %vm3853, %v3816, %v3818
    %v3859 = vsel %vm3853, %v3818, %v3820
    %v3860 = vsel %vm3853, %v3820, %v3822
    %v3861 = vsel %vm3853, %v3822, %v3824
    %v3862 = vsel %vm3853, %v3824, %v3826
    %v3863 = vsel %vm3853, %v3826, %v3828
    %v3864 = vsel %vm3853, %v3828, %v3830
    %v3865 = vsel %vm3853, %v3830, %v3832
    %v3866 = vsel %vm3853, %v3832, %v3834
    %v3867 = vsel %vm3853, %v3834, %v3836
    %v3868 = vsel %vm3853, %v3836, %v3838
    %v3869 = vsel %vm3853, %v3838, %v3840
    %v3870 = vsel %vm3853, %v3840, %v3842
    %v3871 = vsel %vm3853, %v3842, %v3844
    %v3872 = vsel %vm3853, %v3844, %v3846
    %v3873 = vsel %vm3853, %v3846, %v3848
    %v3874 = vsel %vm3853, %v3848, %v3850
    %v3875 = vsel %vm3853, %v3850, %v3852
    %3898 = vst [vmem:[#allocation2 + $0x4d0] sm:$0xe] %v3854
    %3899 = vst [vmem:[#allocation2 + $0x4d8] sm:$0xe] %v3855
    %3900 = vst [vmem:[#allocation2 + $0x4e0] sm:$0xe] %v3856
    %3901 = vst [vmem:[#allocation2 + $0x4e8] sm:$0xe] %v3857
    %3902 = vst [vmem:[#allocation2 + $0x4f0] sm:$0xe] %v3858
    %3903 = vst [vmem:[#allocation2 + $0x4f8] sm:$0xe] %v3859
    %3904 = vst [vmem:[#allocation2 + $0x500] sm:$0xe] %v3860
    %3905 = vst [vmem:[#allocation2 + $0x508] sm:$0xe] %v3861
    %3906 = vst [vmem:[#allocation2 + $0x510] sm:$0xe] %v3862
    %3907 = vst [vmem:[#allocation2 + $0x518] sm:$0xe] %v3863
    %3908 = vst [vmem:[#allocation2 + $0x520] sm:$0xe] %v3864
    %3909 = vst [vmem:[#allocation2 + $0x528] sm:$0xe] %v3865
    %3910 = vst [vmem:[#allocation2 + $0x530] sm:$0xe] %v3866
    %3911 = vst [vmem:[#allocation2 + $0x538] sm:$0xe] %v3867
    %3912 = vst [vmem:[#allocation2 + $0x540] sm:$0xe] %v3868
    %3913 = vst [vmem:[#allocation2 + $0x548] sm:$0xe] %v3869
    %3914 = vst [vmem:[#allocation2 + $0x550] sm:$0xe] %v3870
    %3915 = vst [vmem:[#allocation2 + $0x558] sm:$0xe] %v3871
    %3916 = vst [vmem:[#allocation2 + $0x560] sm:$0xe] %v3872
    %3917 = vst [vmem:[#allocation2 + $0x568] sm:$0xe] %v3873
    %3918 = vst [vmem:[#allocation2 + $0x570] sm:$0xe] %v3874
    %3919 = vst [vmem:[#allocation2 + $0x578] sm:$0xe] %v3875
    %v3920 = vld [vmem:[%s0 + $0x4] sm:$0x77]
    %v3921 = vld [vmem:[%s0 + $0xc] sm:$0x77]
    %v3922 = vld [vmem:[%s0 + $0x14] sm:$0x77]
    %v3923 = vld [vmem:[%s0 + $0x1c] sm:$0x77]
    %v3924 = vld [vmem:[%s0 + $0x24] sm:$0x77]
    %v3925 = vld [vmem:[%s0 + $0x2c] sm:$0x77]
    %v3926 = vld [vmem:[%s0 + $0x34] sm:$0x77]
    %v3927 = vld [vmem:[%s0 + $0x3c] sm:$0x77]
    %v3928 = vld [vmem:[%s0 + $0x44] sm:$0x77]
    %v3929 = vld [vmem:[%s0 + $0x4c] sm:$0x77]
    %v3930 = vld [vmem:[%s0 + $0x54] sm:$0x77]
    %s3942 = scalar_lea.vmem [#allocation1], 1
    %3943 = vst [vmem:[%s3942] ss:$2 sm:$0xff] %v3920
    %s3944 = scalar_lea.vmem [#allocation1], 17
    %3945 = vst [vmem:[%s3944] ss:$2 sm:$0xff] %v3921
    %s3946 = scalar_lea.vmem [#allocation1], 33
    %3947 = vst [vmem:[%s3946] ss:$2 sm:$0xff] %v3922
    %s3948 = scalar_lea.vmem [#allocation1], 49
    %3949 = vst [vmem:[%s3948] ss:$2 sm:$0xff] %v3923
    %v3950 = vld.sshfl [vmem:[#allocation1] sm:$0xff pattern:$0x75316420]
    %v3951 = vld.sshfl [vmem:[#allocation1 + $0x8] sm:$0xff pattern:$0x75316420]
    %v3952 = vld.sshfl [vmem:[#allocation1 + $0x10] sm:$0xff pattern:$0x75316420]
    %v3953 = vld.sshfl [vmem:[#allocation1 + $0x18] sm:$0xff pattern:$0x75316420]
    %v3954 = vld.sshfl [vmem:[#allocation1 + $0x20] sm:$0xff pattern:$0x75316420]
    %v3955 = vld.sshfl [vmem:[#allocation1 + $0x28] sm:$0xff pattern:$0x75316420]
    %v3956 = vld.sshfl [vmem:[#allocation1 + $0x30] sm:$0xff pattern:$0x75316420]
    %v3957 = vld.sshfl [vmem:[#allocation1 + $0x38] sm:$0xff pattern:$0x75316420]
    %3958 = vst [vmem:[%s3942] ss:$2 sm:$0xff] %v3924
    %3959 = vst [vmem:[%s3944] ss:$2 sm:$0xff] %v3925
    %3960 = vst [vmem:[%s3946] ss:$2 sm:$0xff] %v3926
    %3961 = vst [vmem:[%s3948] ss:$2 sm:$0xff] %v3927
    %v3962 = vld.sshfl [vmem:[#allocation1] sm:$0xff pattern:$0x75316420]
    %v3963 = vld.sshfl [vmem:[#allocation1 + $0x8] sm:$0xff pattern:$0x75316420]
    %v3964 = vld.sshfl [vmem:[#allocation1 + $0x10] sm:$0xff pattern:$0x75316420]
    %v3965 = vld.sshfl [vmem:[#allocation1 + $0x18] sm:$0xff pattern:$0x75316420]
    %v3966 = vld.sshfl [vmem:[#allocation1 + $0x20] sm:$0xff pattern:$0x75316420]
    %v3967 = vld.sshfl [vmem:[#allocation1 + $0x28] sm:$0xff pattern:$0x75316420]
    %v3968 = vld.sshfl [vmem:[#allocation1 + $0x30] sm:$0xff pattern:$0x75316420]
    %v3969 = vld.sshfl [vmem:[#allocation1 + $0x38] sm:$0xff pattern:$0x75316420]
    %3970 = vst [vmem:[%s3942] ss:$2 sm:$0xff] %v3928
    %3971 = vst [vmem:[%s3944] ss:$2 sm:$0xff] %v3929
    %3972 = vst [vmem:[%s3946] ss:$2 sm:$0xff] %v3930
    %v3973 = vld.sshfl [vmem:[#allocation1] sm:$0xff pattern:$0x75316420]
    %v3974 = vld.sshfl [vmem:[#allocation1 + $0x8] sm:$0xff pattern:$0x75316420]
    %v3975 = vld.sshfl [vmem:[#allocation1 + $0x10] sm:$0xff pattern:$0x75316420]
    %v3976 = vld.sshfl [vmem:[#allocation1 + $0x18] sm:$0xff pattern:$0x75316420]
    %v3977 = vld.sshfl [vmem:[#allocation1 + $0x20] sm:$0xff pattern:$0x75316420]
    %v3978 = vld.sshfl [vmem:[#allocation1 + $0x28] sm:$0xff pattern:$0x75316420]
    %4001 = vst [vmem:[#allocation2 + $0x4d0] sm:$0x70] %v3950
    %4002 = vst [vmem:[#allocation2 + $0x4d8] sm:$0x70] %v3951
    %4003 = vst [vmem:[#allocation2 + $0x4e0] sm:$0x70] %v3952
    %4004 = vst [vmem:[#allocation2 + $0x4e8] sm:$0x70] %v3953
    %4005 = vst [vmem:[#allocation2 + $0x4f0] sm:$0x70] %v3954
    %4006 = vst [vmem:[#allocation2 + $0x4f8] sm:$0x70] %v3955
    %4007 = vst [vmem:[#allocation2 + $0x500] sm:$0x70] %v3956
    %4008 = vst [vmem:[#allocation2 + $0x508] sm:$0x70] %v3957
    %4009 = vst [vmem:[#allocation2 + $0x510] sm:$0x70] %v3962
    %4010 = vst [vmem:[#allocation2 + $0x518] sm:$0x70] %v3963
    %4011 = vst [vmem:[#allocation2 + $0x520] sm:$0x70] %v3964
    %4012 = vst [vmem:[#allocation2 + $0x528] sm:$0x70] %v3965
    %4013 = vst [vmem:[#allocation2 + $0x530] sm:$0x70] %v3966
    %4014 = vst [vmem:[#allocation2 + $0x538] sm:$0x70] %v3967
    %4015 = vst [vmem:[#allocation2 + $0x540] sm:$0x70] %v3968
    %4016 = vst [vmem:[#allocation2 + $0x548] sm:$0x70] %v3969
    %4017 = vst [vmem:[#allocation2 + $0x550] sm:$0x70] %v3973
    %4018 = vst [vmem:[#allocation2 + $0x558] sm:$0x70] %v3974
    %4019 = vst [vmem:[#allocation2 + $0x560] sm:$0x70] %v3975
    %4020 = vst [vmem:[#allocation2 + $0x568] sm:$0x70] %v3976
    %4021 = vst [vmem:[#allocation2 + $0x570] sm:$0x70] %v3977
    %4022 = vst [vmem:[#allocation2 + $0x578] sm:$0x70] %v3978
    %v4023 = vld [vmem:[%s0 + $0x4] sm:$0x77]
    %v4024 = vld [vmem:[%s0 + $0xc] sm:$0x77]
    %v4025 = vld [vmem:[%s0 + $0x14] sm:$0x77]
    %v4026 = vld [vmem:[%s0 + $0x1c] sm:$0x77]
    %v4027 = vld [vmem:[%s0 + $0x24] sm:$0x77]
    %v4028 = vld [vmem:[%s0 + $0x2c] sm:$0x77]
    %v4029 = vld [vmem:[%s0 + $0x34] sm:$0x77]
    %v4030 = vld [vmem:[%s0 + $0x3c] sm:$0x77]
    %v4031 = vld [vmem:[%s0 + $0x44] sm:$0x77]
    %v4032 = vld [vmem:[%s0 + $0x4c] sm:$0x77]
    %v4033 = vld [vmem:[%s0 + $0x54] sm:$0x77]
    %v4034 = vld [vmem:[%s0 + $0x5c] sm:$0x7]
    %4047 = vst [vmem:[#allocation1] ss:$2 sm:$0xff] %v4023
    %s4048 = scalar_lea.vmem [#allocation1], 16
    %4049 = vst [vmem:[%s4048] ss:$2 sm:$0xff] %v4024
    %s4050 = scalar_lea.vmem [#allocation1], 32
    %4051 = vst [vmem:[%s4050] ss:$2 sm:$0xff] %v4025
    %s4052 = scalar_lea.vmem [#allocation1], 48
    %4053 = vst [vmem:[%s4052] ss:$2 sm:$0xff] %v4026
    %v4054 = vld.sshfl [vmem:[#allocation1] sm:$0xff pattern:$0x75316420]
    %v4055 = vld.sshfl [vmem:[#allocation1 + $0x8] sm:$0xff pattern:$0x75316420]
    %v4056 = vld.sshfl [vmem:[#allocation1 + $0x10] sm:$0xff pattern:$0x75316420]
    %v4057 = vld.sshfl [vmem:[#allocation1 + $0x18] sm:$0xff pattern:$0x75316420]
    %v4058 = vld.sshfl [vmem:[#allocation1 + $0x20] sm:$0xff pattern:$0x75316420]
    %v4059 = vld.sshfl [vmem:[#allocation1 + $0x28] sm:$0xff pattern:$0x75316420]
    %v4060 = vld.sshfl [vmem:[#allocation1 + $0x30] sm:$0xff pattern:$0x75316420]
    %v4061 = vld.sshfl [vmem:[#allocation1 + $0x38] sm:$0xff pattern:$0x75316420]
    %4062 = vst [vmem:[#allocation1] ss:$2 sm:$0xff] %v4027
    %4063 = vst [vmem:[%s4048] ss:$2 sm:$0xff] %v4028
    %4064 = vst [vmem:[%s4050] ss:$2 sm:$0xff] %v4029
    %4065 = vst [vmem:[%s4052] ss:$2 sm:$0xff] %v4030
    %v4066 = vld.sshfl [vmem:[#allocation1] sm:$0xff pattern:$0x75316420]
    %v4067 = vld.sshfl [vmem:[#allocation1 + $0x8] sm:$0xff pattern:$0x75316420]
    %v4068 = vld.sshfl [vmem:[#allocation1 + $0x10] sm:$0xff pattern:$0x75316420]
    %v4069 = vld.sshfl [vmem:[#allocation1 + $0x18] sm:$0xff pattern:$0x75316420]
    %v4070 = vld.sshfl [vmem:[#allocation1 + $0x20] sm:$0xff pattern:$0x75316420]
    %v4071 = vld.sshfl [vmem:[#allocation1 + $0x28] sm:$0xff pattern:$0x75316420]
    %v4072 = vld.sshfl [vmem:[#allocation1 + $0x30] sm:$0xff pattern:$0x75316420]
    %v4073 = vld.sshfl [vmem:[#allocation1 + $0x38] sm:$0xff pattern:$0x75316420]
    %4074 = vst [vmem:[#allocation1] ss:$2 sm:$0xff] %v4031
    %4075 = vst [vmem:[%s4048] ss:$2 sm:$0xff] %v4032
    %4076 = vst [vmem:[%s4050] ss:$2 sm:$0xff] %v4033
    %4077 = vst [vmem:[%s4052] ss:$2 sm:$0xff] %v4034
    %v4078 = vld.sshfl [vmem:[#allocation1] sm:$0xff pattern:$0x75316420]
    %v4079 = vld.sshfl [vmem:[#allocation1 + $0x8] sm:$0xff pattern:$0x75316420]
    %v4080 = vld.sshfl [vmem:[#allocation1 + $0x10] sm:$0xff pattern:$0x75316420]
    %v4081 = vld.sshfl [vmem:[#allocation1 + $0x18] sm:$0xff pattern:$0x75316420]
    %v4082 = vld.sshfl [vmem:[#allocation1 + $0x20] sm:$0xff pattern:$0x75316420]
    %v4083 = vld.sshfl [vmem:[#allocation1 + $0x28] sm:$0xff pattern:$0x75316420]
    %v4084 = vld.sshfl [vmem:[#allocation1 + $0x30] sm:$0xff pattern:$0x75316420]
    %v4085 = vrot.slane %v4054, 1
    %v4086 = vrot.slane %v4055, 1
    %v4087 = vrot.slane %v4056, 1
    %v4088 = vrot.slane %v4057, 1
    %v4089 = vrot.slane %v4058, 1
    %v4090 = vrot.slane %v4059, 1
    %v4091 = vrot.slane %v4060, 1
    %v4092 = vrot.slane %v4061, 1
    %v4093 = vrot.slane %v4066, 1
    %v4094 = vrot.slane %v4067, 1
    %v4095 = vrot.slane %v4068, 1
    %v4096 = vrot.slane %v4069, 1
    %v4097 = vrot.slane %v4070, 1
    %v4098 = vrot.slane %v4071, 1
    %v4099 = vrot.slane %v4072, 1
    %v4100 = vrot.slane %v4073, 1
    %v4101 = vrot.slane %v4078, 1
    %v4102 = vrot.slane %v4079, 1
    %v4103 = vrot.slane %v4080, 1
    %v4104 = vrot.slane %v4081, 1
    %v4105 = vrot.slane %v4082, 1
    %v4106 = vrot.slane %v4083, 1
    %v4107 = vrot.slane %v4084, 1
    %4108 = vrot.lane.b32.xlu0 %v4085, 127
    %v4109 = vpop.permute.xlu0 %4108
    %4110 = vrot.lane.b32.xlu0 %v4086, 127
    %v4111 = vpop.permute.xlu0 %4110
    %4112 = vrot.lane.b32.xlu0 %v4087, 127
    %v4113 = vpop.permute.xlu0 %4112
    %4114 = vrot.lane.b32.xlu0 %v4088, 127
    %v4115 = vpop.permute.xlu0 %4114
    %4116 = vrot.lane.b32.xlu0 %v4089, 127
    %v4117 = vpop.permute.xlu0 %4116
    %4118 = vrot.lane.b32.xlu0 %v4090, 127
    %v4119 = vpop.permute.xlu0 %4118
    %4120 = vrot.lane.b32.xlu0 %v4091, 127
    %v4121 = vpop.permute.xlu0 %4120
    %4122 = vrot.lane.b32.xlu0 %v4092, 127
    %v4123 = vpop.permute.xlu0 %4122
    %4124 = vrot.lane.b32.xlu0 %v4093, 127
    %v4125 = vpop.permute.xlu0 %4124
    %4126 = vrot.lane.b32.xlu0 %v4094, 127
    %v4127 = vpop.permute.xlu0 %4126
    %4128 = vrot.lane.b32.xlu0 %v4095, 127
    %v4129 = vpop.permute.xlu0 %4128
    %4130 = vrot.lane.b32.xlu0 %v4096, 127
    %v4131 = vpop.permute.xlu0 %4130
    %4132 = vrot.lane.b32.xlu0 %v4097, 127
    %v4133 = vpop.permute.xlu0 %4132
    %4134 = vrot.lane.b32.xlu0 %v4098, 127
    %v4135 = vpop.permute.xlu0 %4134
    %4136 = vrot.lane.b32.xlu0 %v4099, 127
    %v4137 = vpop.permute.xlu0 %4136
    %4138 = vrot.lane.b32.xlu0 %v4100, 127
    %v4139 = vpop.permute.xlu0 %4138
    %4140 = vrot.lane.b32.xlu0 %v4101, 127
    %v4141 = vpop.permute.xlu0 %4140
    %4142 = vrot.lane.b32.xlu0 %v4102, 127
    %v4143 = vpop.permute.xlu0 %4142
    %4144 = vrot.lane.b32.xlu0 %v4103, 127
    %v4145 = vpop.permute.xlu0 %4144
    %4146 = vrot.lane.b32.xlu0 %v4104, 127
    %v4147 = vpop.permute.xlu0 %4146
    %4148 = vrot.lane.b32.xlu0 %v4105, 127
    %v4149 = vpop.permute.xlu0 %4148
    %4150 = vrot.lane.b32.xlu0 %v4106, 127
    %v4151 = vpop.permute.xlu0 %4150
    %4152 = vrot.lane.b32.xlu0 %v4107, 127
    %v4153 = vpop.permute.xlu0 %4152
    %v4154 = vsel %vm269, %v4109, %v4111
    %v4155 = vsel %vm269, %v4111, %v4113
    %v4156 = vsel %vm269, %v4113, %v4115
    %v4157 = vsel %vm269, %v4115, %v4117
    %v4158 = vsel %vm269, %v4117, %v4119
    %v4159 = vsel %vm269, %v4119, %v4121
    %v4160 = vsel %vm269, %v4121, %v4123
    %v4161 = vsel %vm269, %v4123, %v4125
    %v4162 = vsel %vm269, %v4125, %v4127
    %v4163 = vsel %vm269, %v4127, %v4129
    %v4164 = vsel %vm269, %v4129, %v4131
    %v4165 = vsel %vm269, %v4131, %v4133
    %v4166 = vsel %vm269, %v4133, %v4135
    %v4167 = vsel %vm269, %v4135, %v4137
    %v4168 = vsel %vm269, %v4137, %v4139
    %v4169 = vsel %vm269, %v4139, %v4141
    %v4170 = vsel %vm269, %v4141, %v4143
    %v4171 = vsel %vm269, %v4143, %v4145
    %v4172 = vsel %vm269, %v4145, %v4147
    %v4173 = vsel %vm269, %v4147, %v4149
    %v4174 = vsel %vm269, %v4149, %v4151
    %v4175 = vsel %vm269, %v4151, %v4153
    %4198 = vst [vmem:[#allocation2 + $0x4d0] sm:$0x80] %v4154
    %4199 = vst [vmem:[#allocation2 + $0x4d8] sm:$0x80] %v4155
    %4200 = vst [vmem:[#allocation2 + $0x4e0] sm:$0x80] %v4156
    %4201 = vst [vmem:[#allocation2 + $0x4e8] sm:$0x80] %v4157
    %4202 = vst [vmem:[#allocation2 + $0x4f0] sm:$0x80] %v4158
    %4203 = vst [vmem:[#allocation2 + $0x4f8] sm:$0x80] %v4159
    %4204 = vst [vmem:[#allocation2 + $0x500] sm:$0x80] %v4160
    %4205 = vst [vmem:[#allocation2 + $0x508] sm:$0x80] %v4161
    %4206 = vst [vmem:[#allocation2 + $0x510] sm:$0x80] %v4162
    %4207 = vst [vmem:[#allocation2 + $0x518] sm:$0x80] %v4163
    %4208 = vst [vmem:[#allocation2 + $0x520] sm:$0x80] %v4164
    %4209 = vst [vmem:[#allocation2 + $0x528] sm:$0x80] %v4165
    %4210 = vst [vmem:[#allocation2 + $0x530] sm:$0x80] %v4166
    %4211 = vst [vmem:[#allocation2 + $0x538] sm:$0x80] %v4167
    %4212 = vst [vmem:[#allocation2 + $0x540] sm:$0x80] %v4168
    %4213 = vst [vmem:[#allocation2 + $0x548] sm:$0x80] %v4169
    %4214 = vst [vmem:[#allocation2 + $0x550] sm:$0x80] %v4170
    %4215 = vst [vmem:[#allocation2 + $0x558] sm:$0x80] %v4171
    %4216 = vst [vmem:[#allocation2 + $0x560] sm:$0x80] %v4172
    %4217 = vst [vmem:[#allocation2 + $0x568] sm:$0x80] %v4173
    %4218 = vst [vmem:[#allocation2 + $0x570] sm:$0x80] %v4174
    %4219 = vst [vmem:[#allocation2 + $0x578] sm:$0x80] %v4175
    %4220 = vst [vmem:[#allocation2 + $0x580] sm:$0x3] %v4154
    %4221 = vst [vmem:[#allocation2 + $0x588] sm:$0x3] %v4155
    %4222 = vst [vmem:[#allocation2 + $0x590] sm:$0x3] %v4156
    %4223 = vst [vmem:[#allocation2 + $0x598] sm:$0x3] %v4157
    %4224 = vst [vmem:[#allocation2 + $0x5a0] sm:$0x3] %v4158
    %4225 = vst [vmem:[#allocation2 + $0x5a8] sm:$0x3] %v4159
    %4226 = vst [vmem:[#allocation2 + $0x5b0] sm:$0x3] %v4160
    %4227 = vst [vmem:[#allocation2 + $0x5b8] sm:$0x3] %v4161
    %4228 = vst [vmem:[#allocation2 + $0x5c0] sm:$0x3] %v4162
    %4229 = vst [vmem:[#allocation2 + $0x5c8] sm:$0x3] %v4163
    %4230 = vst [vmem:[#allocation2 + $0x5d0] sm:$0x3] %v4164
    %4231 = vst [vmem:[#allocation2 + $0x5d8] sm:$0x3] %v4165
    %4232 = vst [vmem:[#allocation2 + $0x5e0] sm:$0x3] %v4166
    %4233 = vst [vmem:[#allocation2 + $0x5e8] sm:$0x3] %v4167
    %4234 = vst [vmem:[#allocation2 + $0x5f0] sm:$0x3] %v4168
    %4235 = vst [vmem:[#allocation2 + $0x5f8] sm:$0x3] %v4169
    %4236 = vst [vmem:[#allocation2 + $0x600] sm:$0x3] %v4170
    %4237 = vst [vmem:[#allocation2 + $0x608] sm:$0x3] %v4171
    %4238 = vst [vmem:[#allocation2 + $0x610] sm:$0x3] %v4172
    %4239 = vst [vmem:[#allocation2 + $0x618] sm:$0x3] %v4173
    %4240 = vst [vmem:[#allocation2 + $0x620] sm:$0x3] %v4174
    %4241 = vst [vmem:[#allocation2 + $0x628] sm:$0x3] %v4175
    %v4242 = vld [vmem:[%s0 + $0x4] sm:$0x77]
    %v4243 = vld [vmem:[%s0 + $0xc] sm:$0x77]
    %v4244 = vld [vmem:[%s0 + $0x14] sm:$0x77]
    %v4245 = vld [vmem:[%s0 + $0x1c] sm:$0x77]
    %v4246 = vld [vmem:[%s0 + $0x24] sm:$0x77]
    %v4247 = vld [vmem:[%s0 + $0x2c] sm:$0x77]
    %v4248 = vld [vmem:[%s0 + $0x34] sm:$0x77]
    %v4249 = vld [vmem:[%s0 + $0x3c] sm:$0x77]
    %v4250 = vld [vmem:[%s0 + $0x44] sm:$0x77]
    %v4251 = vld [vmem:[%s0 + $0x4c] sm:$0x77]
    %v4252 = vld [vmem:[%s0 + $0x54] sm:$0x77]
    %v4253 = vld [vmem:[%s0 + $0x5c] sm:$0x7]
    %4266 = vst [vmem:[#allocation1] ss:$2 sm:$0xff] %v4242
    %s4267 = scalar_lea.vmem [#allocation1], 16
    %4268 = vst [vmem:[%s4267] ss:$2 sm:$0xff] %v4243
    %s4269 = scalar_lea.vmem [#allocation1], 32
    %4270 = vst [vmem:[%s4269] ss:$2 sm:$0xff] %v4244
    %s4271 = scalar_lea.vmem [#allocation1], 48
    %4272 = vst [vmem:[%s4271] ss:$2 sm:$0xff] %v4245
    %v4273 = vld.sshfl [vmem:[#allocation1] sm:$0xff pattern:$0x75316420]
    %v4274 = vld.sshfl [vmem:[#allocation1 + $0x8] sm:$0xff pattern:$0x75316420]
    %v4275 = vld.sshfl [vmem:[#allocation1 + $0x10] sm:$0xff pattern:$0x75316420]
    %v4276 = vld.sshfl [vmem:[#allocation1 + $0x18] sm:$0xff pattern:$0x75316420]
    %v4277 = vld.sshfl [vmem:[#allocation1 + $0x20] sm:$0xff pattern:$0x75316420]
    %v4278 = vld.sshfl [vmem:[#allocation1 + $0x28] sm:$0xff pattern:$0x75316420]
    %v4279 = vld.sshfl [vmem:[#allocation1 + $0x30] sm:$0xff pattern:$0x75316420]
    %v4280 = vld.sshfl [vmem:[#allocation1 + $0x38] sm:$0xff pattern:$0x75316420]
    %4281 = vst [vmem:[#allocation1] ss:$2 sm:$0xff] %v4246
    %4282 = vst [vmem:[%s4267] ss:$2 sm:$0xff] %v4247
    %4283 = vst [vmem:[%s4269] ss:$2 sm:$0xff] %v4248
    %4284 = vst [vmem:[%s4271] ss:$2 sm:$0xff] %v4249
    %v4285 = vld.sshfl [vmem:[#allocation1] sm:$0xff pattern:$0x75316420]
    %v4286 = vld.sshfl [vmem:[#allocation1 + $0x8] sm:$0xff pattern:$0x75316420]
    %v4287 = vld.sshfl [vmem:[#allocation1 + $0x10] sm:$0xff pattern:$0x75316420]
    %v4288 = vld.sshfl [vmem:[#allocation1 + $0x18] sm:$0xff pattern:$0x75316420]
    %v4289 = vld.sshfl [vmem:[#allocation1 + $0x20] sm:$0xff pattern:$0x75316420]
    %v4290 = vld.sshfl [vmem:[#allocation1 + $0x28] sm:$0xff pattern:$0x75316420]
    %v4291 = vld.sshfl [vmem:[#allocation1 + $0x30] sm:$0xff pattern:$0x75316420]
    %v4292 = vld.sshfl [vmem:[#allocation1 + $0x38] sm:$0xff pattern:$0x75316420]
    %4293 = vst [vmem:[#allocation1] ss:$2 sm:$0xff] %v4250
    %4294 = vst [vmem:[%s4267] ss:$2 sm:$0xff] %v4251
    %4295 = vst [vmem:[%s4269] ss:$2 sm:$0xff] %v4252
    %4296 = vst [vmem:[%s4271] ss:$2 sm:$0xff] %v4253
    %v4297 = vld.sshfl [vmem:[#allocation1] sm:$0xff pattern:$0x75316420]
    %v4298 = vld.sshfl [vmem:[#allocation1 + $0x8] sm:$0xff pattern:$0x75316420]
    %v4299 = vld.sshfl [vmem:[#allocation1 + $0x10] sm:$0xff pattern:$0x75316420]
    %v4300 = vld.sshfl [vmem:[#allocation1 + $0x18] sm:$0xff pattern:$0x75316420]
    %v4301 = vld.sshfl [vmem:[#allocation1 + $0x20] sm:$0xff pattern:$0x75316420]
    %v4302 = vld.sshfl [vmem:[#allocation1 + $0x28] sm:$0xff pattern:$0x75316420]
    %v4303 = vld.sshfl [vmem:[#allocation1 + $0x30] sm:$0xff pattern:$0x75316420]
    %v4304 = vrot.slane %v4273, 6
    %v4305 = vrot.slane %v4274, 6
    %v4306 = vrot.slane %v4275, 6
    %v4307 = vrot.slane %v4276, 6
    %v4308 = vrot.slane %v4277, 6
    %v4309 = vrot.slane %v4278, 6
    %v4310 = vrot.slane %v4279, 6
    %v4311 = vrot.slane %v4280, 6
    %v4312 = vrot.slane %v4285, 6
    %v4313 = vrot.slane %v4286, 6
    %v4314 = vrot.slane %v4287, 6
    %v4315 = vrot.slane %v4288, 6
    %v4316 = vrot.slane %v4289, 6
    %v4317 = vrot.slane %v4290, 6
    %v4318 = vrot.slane %v4291, 6
    %v4319 = vrot.slane %v4292, 6
    %v4320 = vrot.slane %v4297, 6
    %v4321 = vrot.slane %v4298, 6
    %v4322 = vrot.slane %v4299, 6
    %v4323 = vrot.slane %v4300, 6
    %v4324 = vrot.slane %v4301, 6
    %v4325 = vrot.slane %v4302, 6
    %v4326 = vrot.slane %v4303, 6
    %4327 = vrot.lane.b32.xlu0 %v4304, 126
    %v4328 = vpop.permute.xlu0 %4327
    %4329 = vrot.lane.b32.xlu0 %v4305, 126
    %v4330 = vpop.permute.xlu0 %4329
    %4331 = vrot.lane.b32.xlu0 %v4306, 126
    %v4332 = vpop.permute.xlu0 %4331
    %4333 = vrot.lane.b32.xlu0 %v4307, 126
    %v4334 = vpop.permute.xlu0 %4333
    %4335 = vrot.lane.b32.xlu0 %v4308, 126
    %v4336 = vpop.permute.xlu0 %4335
    %4337 = vrot.lane.b32.xlu0 %v4309, 126
    %v4338 = vpop.permute.xlu0 %4337
    %4339 = vrot.lane.b32.xlu0 %v4310, 126
    %v4340 = vpop.permute.xlu0 %4339
    %4341 = vrot.lane.b32.xlu0 %v4311, 126
    %v4342 = vpop.permute.xlu0 %4341
    %4343 = vrot.lane.b32.xlu0 %v4312, 126
    %v4344 = vpop.permute.xlu0 %4343
    %4345 = vrot.lane.b32.xlu0 %v4313, 126
    %v4346 = vpop.permute.xlu0 %4345
    %4347 = vrot.lane.b32.xlu0 %v4314, 126
    %v4348 = vpop.permute.xlu0 %4347
    %4349 = vrot.lane.b32.xlu0 %v4315, 126
    %v4350 = vpop.permute.xlu0 %4349
    %4351 = vrot.lane.b32.xlu0 %v4316, 126
    %v4352 = vpop.permute.xlu0 %4351
    %4353 = vrot.lane.b32.xlu0 %v4317, 126
    %v4354 = vpop.permute.xlu0 %4353
    %4355 = vrot.lane.b32.xlu0 %v4318, 126
    %v4356 = vpop.permute.xlu0 %4355
    %4357 = vrot.lane.b32.xlu0 %v4319, 126
    %v4358 = vpop.permute.xlu0 %4357
    %4359 = vrot.lane.b32.xlu0 %v4320, 126
    %v4360 = vpop.permute.xlu0 %4359
    %4361 = vrot.lane.b32.xlu0 %v4321, 126
    %v4362 = vpop.permute.xlu0 %4361
    %4363 = vrot.lane.b32.xlu0 %v4322, 126
    %v4364 = vpop.permute.xlu0 %4363
    %4365 = vrot.lane.b32.xlu0 %v4323, 126
    %v4366 = vpop.permute.xlu0 %4365
    %4367 = vrot.lane.b32.xlu0 %v4324, 126
    %v4368 = vpop.permute.xlu0 %4367
    %4369 = vrot.lane.b32.xlu0 %v4325, 126
    %v4370 = vpop.permute.xlu0 %4369
    %4371 = vrot.lane.b32.xlu0 %v4326, 126
    %v4372 = vpop.permute.xlu0 %4371
    %v4373 = vsel %vm467, %v4328, %v4330
    %v4374 = vsel %vm467, %v4330, %v4332
    %v4375 = vsel %vm467, %v4332, %v4334
    %v4376 = vsel %vm467, %v4334, %v4336
    %v4377 = vsel %vm467, %v4336, %v4338
    %v4378 = vsel %vm467, %v4338, %v4340
    %v4379 = vsel %vm467, %v4340, %v4342
    %v4380 = vsel %vm467, %v4342, %v4344
    %v4381 = vsel %vm467, %v4344, %v4346
    %v4382 = vsel %vm467, %v4346, %v4348
    %v4383 = vsel %vm467, %v4348, %v4350
    %v4384 = vsel %vm467, %v4350, %v4352
    %v4385 = vsel %vm467, %v4352, %v4354
    %v4386 = vsel %vm467, %v4354, %v4356
    %v4387 = vsel %vm467, %v4356, %v4358
    %v4388 = vsel %vm467, %v4358, %v4360
    %v4389 = vsel %vm467, %v4360, %v4362
    %v4390 = vsel %vm467, %v4362, %v4364
    %v4391 = vsel %vm467, %v4364, %v4366
    %v4392 = vsel %vm467, %v4366, %v4368
    %v4393 = vsel %vm467, %v4368, %v4370
    %v4394 = vsel %vm467, %v4370, %v4372
    %4417 = vst [vmem:[#allocation2 + $0x580] sm:$0x1c] %v4373
    %4418 = vst [vmem:[#allocation2 + $0x588] sm:$0x1c] %v4374
    %4419 = vst [vmem:[#allocation2 + $0x590] sm:$0x1c] %v4375
    %4420 = vst [vmem:[#allocation2 + $0x598] sm:$0x1c] %v4376
    %4421 = vst [vmem:[#allocation2 + $0x5a0] sm:$0x1c] %v4377
    %4422 = vst [vmem:[#allocation2 + $0x5a8] sm:$0x1c] %v4378
    %4423 = vst [vmem:[#allocation2 + $0x5b0] sm:$0x1c] %v4379
    %4424 = vst [vmem:[#allocation2 + $0x5b8] sm:$0x1c] %v4380
    %4425 = vst [vmem:[#allocation2 + $0x5c0] sm:$0x1c] %v4381
    %4426 = vst [vmem:[#allocation2 + $0x5c8] sm:$0x1c] %v4382
    %4427 = vst [vmem:[#allocation2 + $0x5d0] sm:$0x1c] %v4383
    %4428 = vst [vmem:[#allocation2 + $0x5d8] sm:$0x1c] %v4384
    %4429 = vst [vmem:[#allocation2 + $0x5e0] sm:$0x1c] %v4385
    %4430 = vst [vmem:[#allocation2 + $0x5e8] sm:$0x1c] %v4386
    %4431 = vst [vmem:[#allocation2 + $0x5f0] sm:$0x1c] %v4387
    %4432 = vst [vmem:[#allocation2 + $0x5f8] sm:$0x1c] %v4388
    %4433 = vst [vmem:[#allocation2 + $0x600] sm:$0x1c] %v4389
    %4434 = vst [vmem:[#allocation2 + $0x608] sm:$0x1c] %v4390
    %4435 = vst [vmem:[#allocation2 + $0x610] sm:$0x1c] %v4391
    %4436 = vst [vmem:[#allocation2 + $0x618] sm:$0x1c] %v4392
    %4437 = vst [vmem:[#allocation2 + $0x620] sm:$0x1c] %v4393
    %4438 = vst [vmem:[#allocation2 + $0x628] sm:$0x1c] %v4394
    %v4439 = vld [vmem:[%s0 + $0x4] sm:$0x77]
    %v4440 = vld [vmem:[%s0 + $0xc] sm:$0x77]
    %v4441 = vld [vmem:[%s0 + $0x14] sm:$0x77]
    %v4442 = vld [vmem:[%s0 + $0x1c] sm:$0x77]
    %v4443 = vld [vmem:[%s0 + $0x24] sm:$0x77]
    %v4444 = vld [vmem:[%s0 + $0x2c] sm:$0x77]
    %v4445 = vld [vmem:[%s0 + $0x34] sm:$0x77]
    %v4446 = vld [vmem:[%s0 + $0x3c] sm:$0x77]
    %v4447 = vld [vmem:[%s0 + $0x44] sm:$0x77]
    %v4448 = vld [vmem:[%s0 + $0x4c] sm:$0x77]
    %v4449 = vld [vmem:[%s0 + $0x54] sm:$0x77]
    %v4450 = vld [vmem:[%s0 + $0x5c] sm:$0x7]
    %4463 = vst [vmem:[#allocation1] ss:$2 sm:$0xff] %v4439
    %s4464 = scalar_lea.vmem [#allocation1], 16
    %4465 = vst [vmem:[%s4464] ss:$2 sm:$0xff] %v4440
    %s4466 = scalar_lea.vmem [#allocation1], 32
    %4467 = vst [vmem:[%s4466] ss:$2 sm:$0xff] %v4441
    %s4468 = scalar_lea.vmem [#allocation1], 48
    %4469 = vst [vmem:[%s4468] ss:$2 sm:$0xff] %v4442
    %v4470 = vld.sshfl [vmem:[#allocation1] sm:$0xff pattern:$0x75316420]
    %v4471 = vld.sshfl [vmem:[#allocation1 + $0x8] sm:$0xff pattern:$0x75316420]
    %v4472 = vld.sshfl [vmem:[#allocation1 + $0x10] sm:$0xff pattern:$0x75316420]
    %v4473 = vld.sshfl [vmem:[#allocation1 + $0x18] sm:$0xff pattern:$0x75316420]
    %v4474 = vld.sshfl [vmem:[#allocation1 + $0x20] sm:$0xff pattern:$0x75316420]
    %v4475 = vld.sshfl [vmem:[#allocation1 + $0x28] sm:$0xff pattern:$0x75316420]
    %v4476 = vld.sshfl [vmem:[#allocation1 + $0x30] sm:$0xff pattern:$0x75316420]
    %v4477 = vld.sshfl [vmem:[#allocation1 + $0x38] sm:$0xff pattern:$0x75316420]
    %4478 = vst [vmem:[#allocation1] ss:$2 sm:$0xff] %v4443
    %4479 = vst [vmem:[%s4464] ss:$2 sm:$0xff] %v4444
    %4480 = vst [vmem:[%s4466] ss:$2 sm:$0xff] %v4445
    %4481 = vst [vmem:[%s4468] ss:$2 sm:$0xff] %v4446
    %v4482 = vld.sshfl [vmem:[#allocation1] sm:$0xff pattern:$0x75316420]
    %v4483 = vld.sshfl [vmem:[#allocation1 + $0x8] sm:$0xff pattern:$0x75316420]
    %v4484 = vld.sshfl [vmem:[#allocation1 + $0x10] sm:$0xff pattern:$0x75316420]
    %v4485 = vld.sshfl [vmem:[#allocation1 + $0x18] sm:$0xff pattern:$0x75316420]
    %v4486 = vld.sshfl [vmem:[#allocation1 + $0x20] sm:$0xff pattern:$0x75316420]
    %v4487 = vld.sshfl [vmem:[#allocation1 + $0x28] sm:$0xff pattern:$0x75316420]
    %v4488 = vld.sshfl [vmem:[#allocation1 + $0x30] sm:$0xff pattern:$0x75316420]
    %v4489 = vld.sshfl [vmem:[#allocation1 + $0x38] sm:$0xff pattern:$0x75316420]
    %4490 = vst [vmem:[#allocation1] ss:$2 sm:$0xff] %v4447
    %4491 = vst [vmem:[%s4464] ss:$2 sm:$0xff] %v4448
    %4492 = vst [vmem:[%s4466] ss:$2 sm:$0xff] %v4449
    %4493 = vst [vmem:[%s4468] ss:$2 sm:$0xff] %v4450
    %v4494 = vld.sshfl [vmem:[#allocation1] sm:$0xff pattern:$0x75316420]
    %v4495 = vld.sshfl [vmem:[#allocation1 + $0x8] sm:$0xff pattern:$0x75316420]
    %v4496 = vld.sshfl [vmem:[#allocation1 + $0x10] sm:$0xff pattern:$0x75316420]
    %v4497 = vld.sshfl [vmem:[#allocation1 + $0x18] sm:$0xff pattern:$0x75316420]
    %v4498 = vld.sshfl [vmem:[#allocation1 + $0x20] sm:$0xff pattern:$0x75316420]
    %v4499 = vld.sshfl [vmem:[#allocation1 + $0x28] sm:$0xff pattern:$0x75316420]
    %v4500 = vld.sshfl [vmem:[#allocation1 + $0x30] sm:$0xff pattern:$0x75316420]
    %v4501 = vrot.slane %v4470, 3
    %v4502 = vrot.slane %v4471, 3
    %v4503 = vrot.slane %v4472, 3
    %v4504 = vrot.slane %v4473, 3
    %v4505 = vrot.slane %v4474, 3
    %v4506 = vrot.slane %v4475, 3
    %v4507 = vrot.slane %v4476, 3
    %v4508 = vrot.slane %v4477, 3
    %v4509 = vrot.slane %v4482, 3
    %v4510 = vrot.slane %v4483, 3
    %v4511 = vrot.slane %v4484, 3
    %v4512 = vrot.slane %v4485, 3
    %v4513 = vrot.slane %v4486, 3
    %v4514 = vrot.slane %v4487, 3
    %v4515 = vrot.slane %v4488, 3
    %v4516 = vrot.slane %v4489, 3
    %v4517 = vrot.slane %v4494, 3
    %v4518 = vrot.slane %v4495, 3
    %v4519 = vrot.slane %v4496, 3
    %v4520 = vrot.slane %v4497, 3
    %v4521 = vrot.slane %v4498, 3
    %v4522 = vrot.slane %v4499, 3
    %v4523 = vrot.slane %v4500, 3
    %4524 = vrot.lane.b32.xlu0 %v4501, 125
    %v4525 = vpop.permute.xlu0 %4524
    %4526 = vrot.lane.b32.xlu0 %v4502, 125
    %v4527 = vpop.permute.xlu0 %4526
    %4528 = vrot.lane.b32.xlu0 %v4503, 125
    %v4529 = vpop.permute.xlu0 %4528
    %4530 = vrot.lane.b32.xlu0 %v4504, 125
    %v4531 = vpop.permute.xlu0 %4530
    %4532 = vrot.lane.b32.xlu0 %v4505, 125
    %v4533 = vpop.permute.xlu0 %4532
    %4534 = vrot.lane.b32.xlu0 %v4506, 125
    %v4535 = vpop.permute.xlu0 %4534
    %4536 = vrot.lane.b32.xlu0 %v4507, 125
    %v4537 = vpop.permute.xlu0 %4536
    %4538 = vrot.lane.b32.xlu0 %v4508, 125
    %v4539 = vpop.permute.xlu0 %4538
    %4540 = vrot.lane.b32.xlu0 %v4509, 125
    %v4541 = vpop.permute.xlu0 %4540
    %4542 = vrot.lane.b32.xlu0 %v4510, 125
    %v4543 = vpop.permute.xlu0 %4542
    %4544 = vrot.lane.b32.xlu0 %v4511, 125
    %v4545 = vpop.permute.xlu0 %4544
    %4546 = vrot.lane.b32.xlu0 %v4512, 125
    %v4547 = vpop.permute.xlu0 %4546
    %4548 = vrot.lane.b32.xlu0 %v4513, 125
    %v4549 = vpop.permute.xlu0 %4548
    %4550 = vrot.lane.b32.xlu0 %v4514, 125
    %v4551 = vpop.permute.xlu0 %4550
    %4552 = vrot.lane.b32.xlu0 %v4515, 125
    %v4553 = vpop.permute.xlu0 %4552
    %4554 = vrot.lane.b32.xlu0 %v4516, 125
    %v4555 = vpop.permute.xlu0 %4554
    %4556 = vrot.lane.b32.xlu0 %v4517, 125
    %v4557 = vpop.permute.xlu0 %4556
    %4558 = vrot.lane.b32.xlu0 %v4518, 125
    %v4559 = vpop.permute.xlu0 %4558
    %4560 = vrot.lane.b32.xlu0 %v4519, 125
    %v4561 = vpop.permute.xlu0 %4560
    %4562 = vrot.lane.b32.xlu0 %v4520, 125
    %v4563 = vpop.permute.xlu0 %4562
    %4564 = vrot.lane.b32.xlu0 %v4521, 125
    %v4565 = vpop.permute.xlu0 %4564
    %4566 = vrot.lane.b32.xlu0 %v4522, 125
    %v4567 = vpop.permute.xlu0 %4566
    %4568 = vrot.lane.b32.xlu0 %v4523, 125
    %v4569 = vpop.permute.xlu0 %4568
    %v4570 = vsel %vm687, %v4525, %v4527
    %v4571 = vsel %vm687, %v4527, %v4529
    %v4572 = vsel %vm687, %v4529, %v4531
    %v4573 = vsel %vm687, %v4531, %v4533
    %v4574 = vsel %vm687, %v4533, %v4535
    %v4575 = vsel %vm687, %v4535, %v4537
    %v4576 = vsel %vm687, %v4537, %v4539
    %v4577 = vsel %vm687, %v4539, %v4541
    %v4578 = vsel %vm687, %v4541, %v4543
    %v4579 = vsel %vm687, %v4543, %v4545
    %v4580 = vsel %vm687, %v4545, %v4547
    %v4581 = vsel %vm687, %v4547, %v4549
    %v4582 = vsel %vm687, %v4549, %v4551
    %v4583 = vsel %vm687, %v4551, %v4553
    %v4584 = vsel %vm687, %v4553, %v4555
    %v4585 = vsel %vm687, %v4555, %v4557
    %v4586 = vsel %vm687, %v4557, %v4559
    %v4587 = vsel %vm687, %v4559, %v4561
    %v4588 = vsel %vm687, %v4561, %v4563
    %v4589 = vsel %vm687, %v4563, %v4565
    %v4590 = vsel %vm687, %v4565, %v4567
    %v4591 = vsel %vm687, %v4567, %v4569
    %4614 = vst [vmem:[#allocation2 + $0x580] sm:$0xe0] %v4570
    %4615 = vst [vmem:[#allocation2 + $0x588] sm:$0xe0] %v4571
    %4616 = vst [vmem:[#allocation2 + $0x590] sm:$0xe0] %v4572
    %4617 = vst [vmem:[#allocation2 + $0x598] sm:$0xe0] %v4573
    %4618 = vst [vmem:[#allocation2 + $0x5a0] sm:$0xe0] %v4574
    %4619 = vst [vmem:[#allocation2 + $0x5a8] sm:$0xe0] %v4575
    %4620 = vst [vmem:[#allocation2 + $0x5b0] sm:$0xe0] %v4576
    %4621 = vst [vmem:[#allocation2 + $0x5b8] sm:$0xe0] %v4577
    %4622 = vst [vmem:[#allocation2 + $0x5c0] sm:$0xe0] %v4578
    %4623 = vst [vmem:[#allocation2 + $0x5c8] sm:$0xe0] %v4579
    %4624 = vst [vmem:[#allocation2 + $0x5d0] sm:$0xe0] %v4580
    %4625 = vst [vmem:[#allocation2 + $0x5d8] sm:$0xe0] %v4581
    %4626 = vst [vmem:[#allocation2 + $0x5e0] sm:$0xe0] %v4582
    %4627 = vst [vmem:[#allocation2 + $0x5e8] sm:$0xe0] %v4583
    %4628 = vst [vmem:[#allocation2 + $0x5f0] sm:$0xe0] %v4584
    %4629 = vst [vmem:[#allocation2 + $0x5f8] sm:$0xe0] %v4585
    %4630 = vst [vmem:[#allocation2 + $0x600] sm:$0xe0] %v4586
    %4631 = vst [vmem:[#allocation2 + $0x608] sm:$0xe0] %v4587
    %4632 = vst [vmem:[#allocation2 + $0x610] sm:$0xe0] %v4588
    %4633 = vst [vmem:[#allocation2 + $0x618] sm:$0xe0] %v4589
    %4634 = vst [vmem:[#allocation2 + $0x620] sm:$0xe0] %v4590
    %4635 = vst [vmem:[#allocation2 + $0x628] sm:$0xe0] %v4591
    %v4636 = vld [vmem:[%s0 + $0x4] sm:$0x77]
    %v4637 = vld [vmem:[%s0 + $0xc] sm:$0x77]
    %v4638 = vld [vmem:[%s0 + $0x14] sm:$0x77]
    %v4639 = vld [vmem:[%s0 + $0x1c] sm:$0x77]
    %v4640 = vld [vmem:[%s0 + $0x24] sm:$0x77]
    %v4641 = vld [vmem:[%s0 + $0x2c] sm:$0x77]
    %v4642 = vld [vmem:[%s0 + $0x34] sm:$0x77]
    %v4643 = vld [vmem:[%s0 + $0x3c] sm:$0x77]
    %v4644 = vld [vmem:[%s0 + $0x44] sm:$0x77]
    %v4645 = vld [vmem:[%s0 + $0x4c] sm:$0x77]
    %v4646 = vld [vmem:[%s0 + $0x54] sm:$0x77]
    %v4647 = vld [vmem:[%s0 + $0x5c] sm:$0x7]
    %4660 = vst [vmem:[#allocation1] ss:$2 sm:$0xff] %v4636
    %s4661 = scalar_lea.vmem [#allocation1], 16
    %4662 = vst [vmem:[%s4661] ss:$2 sm:$0xff] %v4637
    %s4663 = scalar_lea.vmem [#allocation1], 32
    %4664 = vst [vmem:[%s4663] ss:$2 sm:$0xff] %v4638
    %s4665 = scalar_lea.vmem [#allocation1], 48
    %4666 = vst [vmem:[%s4665] ss:$2 sm:$0xff] %v4639
    %v4667 = vld.sshfl [vmem:[#allocation1] sm:$0xff pattern:$0x75316420]
    %v4668 = vld.sshfl [vmem:[#allocation1 + $0x8] sm:$0xff pattern:$0x75316420]
    %v4669 = vld.sshfl [vmem:[#allocation1 + $0x10] sm:$0xff pattern:$0x75316420]
    %v4670 = vld.sshfl [vmem:[#allocation1 + $0x18] sm:$0xff pattern:$0x75316420]
    %v4671 = vld.sshfl [vmem:[#allocation1 + $0x20] sm:$0xff pattern:$0x75316420]
    %v4672 = vld.sshfl [vmem:[#allocation1 + $0x28] sm:$0xff pattern:$0x75316420]
    %v4673 = vld.sshfl [vmem:[#allocation1 + $0x30] sm:$0xff pattern:$0x75316420]
    %v4674 = vld.sshfl [vmem:[#allocation1 + $0x38] sm:$0xff pattern:$0x75316420]
    %4675 = vst [vmem:[#allocation1] ss:$2 sm:$0xff] %v4640
    %4676 = vst [vmem:[%s4661] ss:$2 sm:$0xff] %v4641
    %4677 = vst [vmem:[%s4663] ss:$2 sm:$0xff] %v4642
    %4678 = vst [vmem:[%s4665] ss:$2 sm:$0xff] %v4643
    %v4679 = vld.sshfl [vmem:[#allocation1] sm:$0xff pattern:$0x75316420]
    %v4680 = vld.sshfl [vmem:[#allocation1 + $0x8] sm:$0xff pattern:$0x75316420]
    %v4681 = vld.sshfl [vmem:[#allocation1 + $0x10] sm:$0xff pattern:$0x75316420]
    %v4682 = vld.sshfl [vmem:[#allocation1 + $0x18] sm:$0xff pattern:$0x75316420]
    %v4683 = vld.sshfl [vmem:[#allocation1 + $0x20] sm:$0xff pattern:$0x75316420]
    %v4684 = vld.sshfl [vmem:[#allocation1 + $0x28] sm:$0xff pattern:$0x75316420]
    %v4685 = vld.sshfl [vmem:[#allocation1 + $0x30] sm:$0xff pattern:$0x75316420]
    %v4686 = vld.sshfl [vmem:[#allocation1 + $0x38] sm:$0xff pattern:$0x75316420]
    %4687 = vst [vmem:[#allocation1] ss:$2 sm:$0xff] %v4644
    %4688 = vst [vmem:[%s4661] ss:$2 sm:$0xff] %v4645
    %4689 = vst [vmem:[%s4663] ss:$2 sm:$0xff] %v4646
    %4690 = vst [vmem:[%s4665] ss:$2 sm:$0xff] %v4647
    %v4691 = vld.sshfl [vmem:[#allocation1] sm:$0xff pattern:$0x75316420]
    %v4692 = vld.sshfl [vmem:[#allocation1 + $0x8] sm:$0xff pattern:$0x75316420]
    %v4693 = vld.sshfl [vmem:[#allocation1 + $0x10] sm:$0xff pattern:$0x75316420]
    %v4694 = vld.sshfl [vmem:[#allocation1 + $0x18] sm:$0xff pattern:$0x75316420]
    %v4695 = vld.sshfl [vmem:[#allocation1 + $0x20] sm:$0xff pattern:$0x75316420]
    %v4696 = vld.sshfl [vmem:[#allocation1 + $0x28] sm:$0xff pattern:$0x75316420]
    %v4697 = vld.sshfl [vmem:[#allocation1 + $0x30] sm:$0xff pattern:$0x75316420]
    %4698 = vrot.lane.b32.xlu0 %v4667, 124
    %v4699 = vpop.permute.xlu0 %4698
    %4700 = vrot.lane.b32.xlu0 %v4668, 124
    %v4701 = vpop.permute.xlu0 %4700
    %4702 = vrot.lane.b32.xlu0 %v4669, 124
    %v4703 = vpop.permute.xlu0 %4702
    %4704 = vrot.lane.b32.xlu0 %v4670, 124
    %v4705 = vpop.permute.xlu0 %4704
    %4706 = vrot.lane.b32.xlu0 %v4671, 124
    %v4707 = vpop.permute.xlu0 %4706
    %4708 = vrot.lane.b32.xlu0 %v4672, 124
    %v4709 = vpop.permute.xlu0 %4708
    %4710 = vrot.lane.b32.xlu0 %v4673, 124
    %v4711 = vpop.permute.xlu0 %4710
    %4712 = vrot.lane.b32.xlu0 %v4674, 124
    %v4713 = vpop.permute.xlu0 %4712
    %4714 = vrot.lane.b32.xlu0 %v4679, 124
    %v4715 = vpop.permute.xlu0 %4714
    %4716 = vrot.lane.b32.xlu0 %v4680, 124
    %v4717 = vpop.permute.xlu0 %4716
    %4718 = vrot.lane.b32.xlu0 %v4681, 124
    %v4719 = vpop.permute.xlu0 %4718
    %4720 = vrot.lane.b32.xlu0 %v4682, 124
    %v4721 = vpop.permute.xlu0 %4720
    %4722 = vrot.lane.b32.xlu0 %v4683, 124
    %v4723 = vpop.permute.xlu0 %4722
    %4724 = vrot.lane.b32.xlu0 %v4684, 124
    %v4725 = vpop.permute.xlu0 %4724
    %4726 = vrot.lane.b32.xlu0 %v4685, 124
    %v4727 = vpop.permute.xlu0 %4726
    %4728 = vrot.lane.b32.xlu0 %v4686, 124
    %v4729 = vpop.permute.xlu0 %4728
    %4730 = vrot.lane.b32.xlu0 %v4691, 124
    %v4731 = vpop.permute.xlu0 %4730
    %4732 = vrot.lane.b32.xlu0 %v4692, 124
    %v4733 = vpop.permute.xlu0 %4732
    %4734 = vrot.lane.b32.xlu0 %v4693, 124
    %v4735 = vpop.permute.xlu0 %4734
    %4736 = vrot.lane.b32.xlu0 %v4694, 124
    %v4737 = vpop.permute.xlu0 %4736
    %4738 = vrot.lane.b32.xlu0 %v4695, 124
    %v4739 = vpop.permute.xlu0 %4738
    %4740 = vrot.lane.b32.xlu0 %v4696, 124
    %v4741 = vpop.permute.xlu0 %4740
    %4742 = vrot.lane.b32.xlu0 %v4697, 124
    %v4743 = vpop.permute.xlu0 %4742
    %v4744 = vsel %vm863, %v4699, %v4701
    %v4745 = vsel %vm863, %v4701, %v4703
    %v4746 = vsel %vm863, %v4703, %v4705
    %v4747 = vsel %vm863, %v4705, %v4707
    %v4748 = vsel %vm863, %v4707, %v4709
    %v4749 = vsel %vm863, %v4709, %v4711
    %v4750 = vsel %vm863, %v4711, %v4713
    %v4751 = vsel %vm863, %v4713, %v4715
    %v4752 = vsel %vm863, %v4715, %v4717
    %v4753 = vsel %vm863, %v4717, %v4719
    %v4754 = vsel %vm863, %v4719, %v4721
    %v4755 = vsel %vm863, %v4721, %v4723
    %v4756 = vsel %vm863, %v4723, %v4725
    %v4757 = vsel %vm863, %v4725, %v4727
    %v4758 = vsel %vm863, %v4727, %v4729
    %v4759 = vsel %vm863, %v4729, %v4731
    %v4760 = vsel %vm863, %v4731, %v4733
    %v4761 = vsel %vm863, %v4733, %v4735
    %v4762 = vsel %vm863, %v4735, %v4737
    %v4763 = vsel %vm863, %v4737, %v4739
    %v4764 = vsel %vm863, %v4739, %v4741
    %v4765 = vsel %vm863, %v4741, %v4743
    %4788 = vst [vmem:[#allocation2 + $0x630] sm:$0x7] %v4744
    %4789 = vst [vmem:[#allocation2 + $0x638] sm:$0x7] %v4745
    %4790 = vst [vmem:[#allocation2 + $0x640] sm:$0x7] %v4746
    %4791 = vst [vmem:[#allocation2 + $0x648] sm:$0x7] %v4747
    %4792 = vst [vmem:[#allocation2 + $0x650] sm:$0x7] %v4748
    %4793 = vst [vmem:[#allocation2 + $0x658] sm:$0x7] %v4749
    %4794 = vst [vmem:[#allocation2 + $0x660] sm:$0x7] %v4750
    %4795 = vst [vmem:[#allocation2 + $0x668] sm:$0x7] %v4751
    %4796 = vst [vmem:[#allocation2 + $0x670] sm:$0x7] %v4752
    %4797 = vst [vmem:[#allocation2 + $0x678] sm:$0x7] %v4753
    %4798 = vst [vmem:[#allocation2 + $0x680] sm:$0x7] %v4754
    %4799 = vst [vmem:[#allocation2 + $0x688] sm:$0x7] %v4755
    %4800 = vst [vmem:[#allocation2 + $0x690] sm:$0x7] %v4756
    %4801 = vst [vmem:[#allocation2 + $0x698] sm:$0x7] %v4757
    %4802 = vst [vmem:[#allocation2 + $0x6a0] sm:$0x7] %v4758
    %4803 = vst [vmem:[#allocation2 + $0x6a8] sm:$0x7] %v4759
    %4804 = vst [vmem:[#allocation2 + $0x6b0] sm:$0x7] %v4760
    %4805 = vst [vmem:[#allocation2 + $0x6b8] sm:$0x7] %v4761
    %4806 = vst [vmem:[#allocation2 + $0x6c0] sm:$0x7] %v4762
    %4807 = vst [vmem:[#allocation2 + $0x6c8] sm:$0x7] %v4763
    %4808 = vst [vmem:[#allocation2 + $0x6d0] sm:$0x7] %v4764
    %4809 = vst [vmem:[#allocation2 + $0x6d8] sm:$0x7] %v4765
    %v4810 = vld [vmem:[%s1] sm:$0xf]
    %v4811 = vld [vmem:[#allocation2] sm:$0xff]
    %v4812 = vld [vmem:[#allocation2 + $0x8] sm:$0xff]
    %v4813 = vld [vmem:[#allocation2 + $0x10] sm:$0xff]
    %v4814 = vld [vmem:[#allocation2 + $0x18] sm:$0xff]
    %v4815 = vld [vmem:[#allocation2 + $0x20] sm:$0xff]
    %v4816 = vld [vmem:[#allocation2 + $0x28] sm:$0xff]
    %v4817 = vld [vmem:[#allocation2 + $0x30] sm:$0xff]
    %v4818 = vld [vmem:[#allocation2 + $0x38] sm:$0xff]
    %v4819 = vld [vmem:[#allocation2 + $0x40] sm:$0xff]
    %v4820 = vld [vmem:[#allocation2 + $0x48] sm:$0xff]
    %v4821 = vld [vmem:[#allocation2 + $0x50] sm:$0xff]
    %v4822 = vld [vmem:[#allocation2 + $0x58] sm:$0xff]
    %v4823 = vld [vmem:[#allocation2 + $0x60] sm:$0xff]
    %v4824 = vld [vmem:[#allocation2 + $0x68] sm:$0xff]
    %v4825 = vld [vmem:[#allocation2 + $0x70] sm:$0xff]
    %v4826 = vld [vmem:[#allocation2 + $0x78] sm:$0xff]
    %v4827 = vld [vmem:[#allocation2 + $0x80] sm:$0xff]
    %v4828 = vld [vmem:[#allocation2 + $0x88] sm:$0xff]
    %v4829 = vld [vmem:[#allocation2 + $0x90] sm:$0xff]
    %v4830 = vld [vmem:[#allocation2 + $0x98] sm:$0xff]
    %v4831 = vld [vmem:[#allocation2 + $0xa0] sm:$0xff]
    %v4832 = vld [vmem:[#allocation2 + $0xa8] sm:$0xff]
    %v4833 = vld [vmem:[#allocation2 + $0xb0] sm:$0xff]
    %v4834 = vld [vmem:[#allocation2 + $0xb8] sm:$0xff]
    %v4835 = vld [vmem:[#allocation2 + $0xc0] sm:$0xff]
    %v4836 = vld [vmem:[#allocation2 + $0xc8] sm:$0xff]
    %v4837 = vld [vmem:[#allocation2 + $0xd0] sm:$0xff]
    %v4838 = vld [vmem:[#allocation2 + $0xd8] sm:$0xff]
    %v4839 = vld [vmem:[#allocation2 + $0xe0] sm:$0xff]
    %v4840 = vld [vmem:[#allocation2 + $0xe8] sm:$0xff]
    %v4841 = vld [vmem:[#allocation2 + $0xf0] sm:$0xff]
    %v4842 = vld [vmem:[#allocation2 + $0xf8] sm:$0xff]
    %v4843 = vld [vmem:[#allocation2 + $0x100] sm:$0xff]
    %v4844 = vld [vmem:[#allocation2 + $0x108] sm:$0xff]
    %v4845 = vld [vmem:[#allocation2 + $0x110] sm:$0xff]
    %v4846 = vld [vmem:[#allocation2 + $0x118] sm:$0xff]
    %v4847 = vld [vmem:[#allocation2 + $0x120] sm:$0xff]
    %v4848 = vld [vmem:[#allocation2 + $0x128] sm:$0xff]
    %v4849 = vld [vmem:[#allocation2 + $0x130] sm:$0xff]
    %v4850 = vld [vmem:[#allocation2 + $0x138] sm:$0xff]
    %v4851 = vld [vmem:[#allocation2 + $0x140] sm:$0xff]
    %v4852 = vld [vmem:[#allocation2 + $0x148] sm:$0xff]
    %v4853 = vld [vmem:[#allocation2 + $0x150] sm:$0xff]
    %v4854 = vld [vmem:[#allocation2 + $0x158] sm:$0xff]
    %v4855 = vld [vmem:[#allocation2 + $0x160] sm:$0xff]
    %v4856 = vld [vmem:[#allocation2 + $0x168] sm:$0xff]
    %v4857 = vld [vmem:[#allocation2 + $0x170] sm:$0xff]
    %v4858 = vld [vmem:[#allocation2 + $0x178] sm:$0xff]
    %v4859 = vld [vmem:[#allocation2 + $0x180] sm:$0xff]
    %v4860 = vld [vmem:[#allocation2 + $0x188] sm:$0xff]
    %v4861 = vld [vmem:[#allocation2 + $0x190] sm:$0xff]
    %v4862 = vld [vmem:[#allocation2 + $0x198] sm:$0xff]
    %v4863 = vld [vmem:[#allocation2 + $0x1a0] sm:$0xff]
    %v4864 = vld [vmem:[#allocation2 + $0x1a8] sm:$0xff]
    %v4865 = vld [vmem:[#allocation2 + $0x1b0] sm:$0xff]
    %v4866 = vld [vmem:[#allocation2 + $0x1b8] sm:$0xff]
    %v4867 = vld [vmem:[#allocation2 + $0x1c0] sm:$0xff]
    %v4868 = vld [vmem:[#allocation2 + $0x1c8] sm:$0xff]
    %v4869 = vld [vmem:[#allocation2 + $0x1d0] sm:$0xff]
    %v4870 = vld [vmem:[#allocation2 + $0x1d8] sm:$0xff]
    %v4871 = vld [vmem:[#allocation2 + $0x1e0] sm:$0xff]
    %v4872 = vld [vmem:[#allocation2 + $0x1e8] sm:$0xff]
    %v4873 = vld [vmem:[#allocation2 + $0x1f0] sm:$0xff]
    %v4874 = vld [vmem:[#allocation2 + $0x1f8] sm:$0xff]
    %v4875 = vld [vmem:[#allocation2 + $0x200] sm:$0xff]
    %v4876 = vld [vmem:[#allocation2 + $0x208] sm:$0xff]
    %v4877 = vld [vmem:[#allocation2 + $0x210] sm:$0xff]
    %v4878 = vld [vmem:[#allocation2 + $0x218] sm:$0xff]
    %v4879 = vld [vmem:[#allocation2 + $0x220] sm:$0xff]
    %v4880 = vld [vmem:[#allocation2 + $0x228] sm:$0xff]
    %v4881 = vld [vmem:[#allocation2 + $0x230] sm:$0xff]
    %v4882 = vld [vmem:[#allocation2 + $0x238] sm:$0xff]
    %v4883 = vld [vmem:[#allocation2 + $0x240] sm:$0xff]
    %v4884 = vld [vmem:[#allocation2 + $0x248] sm:$0xff]
    %v4885 = vld [vmem:[#allocation2 + $0x250] sm:$0xff]
    %v4886 = vld [vmem:[#allocation2 + $0x258] sm:$0xff]
    %v4887 = vld [vmem:[#allocation2 + $0x260] sm:$0xff]
    %v4888 = vld [vmem:[#allocation2 + $0x268] sm:$0xff]
    %v4889 = vld [vmem:[#allocation2 + $0x270] sm:$0xff]
    %v4890 = vld [vmem:[#allocation2 + $0x278] sm:$0xff]
    %v4891 = vld [vmem:[#allocation2 + $0x280] sm:$0xff]
    %v4892 = vld [vmem:[#allocation2 + $0x288] sm:$0xff]
    %v4893 = vld [vmem:[#allocation2 + $0x290] sm:$0xff]
    %v4894 = vld [vmem:[#allocation2 + $0x298] sm:$0xff]
    %v4895 = vld [vmem:[#allocation2 + $0x2a0] sm:$0xff]
    %v4896 = vld [vmem:[#allocation2 + $0x2a8] sm:$0xff]
    %v4897 = vld [vmem:[#allocation2 + $0x2b0] sm:$0xff]
    %v4898 = vld [vmem:[#allocation2 + $0x2b8] sm:$0xff]
    %v4899 = vld [vmem:[#allocation2 + $0x2c0] sm:$0xff]
    %v4900 = vld [vmem:[#allocation2 + $0x2c8] sm:$0xff]
    %v4901 = vld [vmem:[#allocation2 + $0x2d0] sm:$0xff]
    %v4902 = vld [vmem:[#allocation2 + $0x2d8] sm:$0xff]
    %v4903 = vld [vmem:[#allocation2 + $0x2e0] sm:$0xff]
    %v4904 = vld [vmem:[#allocation2 + $0x2e8] sm:$0xff]
    %v4905 = vld [vmem:[#allocation2 + $0x2f0] sm:$0xff]
    %v4906 = vld [vmem:[#allocation2 + $0x2f8] sm:$0xff]
    %v4907 = vld [vmem:[#allocation2 + $0x300] sm:$0xff]
    %v4908 = vld [vmem:[#allocation2 + $0x308] sm:$0xff]
    %v4909 = vld [vmem:[#allocation2 + $0x310] sm:$0xff]
    %v4910 = vld [vmem:[#allocation2 + $0x318] sm:$0xff]
    %v4911 = vld [vmem:[#allocation2 + $0x320] sm:$0xff]
    %v4912 = vld [vmem:[#allocation2 + $0x328] sm:$0xff]
    %v4913 = vld [vmem:[#allocation2 + $0x330] sm:$0xff]
    %v4914 = vld [vmem:[#allocation2 + $0x338] sm:$0xff]
    %v4915 = vld [vmem:[#allocation2 + $0x340] sm:$0xff]
    %v4916 = vld [vmem:[#allocation2 + $0x348] sm:$0xff]
    %v4917 = vld [vmem:[#allocation2 + $0x350] sm:$0xff]
    %v4918 = vld [vmem:[#allocation2 + $0x358] sm:$0xff]
    %v4919 = vld [vmem:[#allocation2 + $0x360] sm:$0xff]
    %v4920 = vld [vmem:[#allocation2 + $0x368] sm:$0xff]
    %v4921 = vld [vmem:[#allocation2 + $0x370] sm:$0xff]
    %v4922 = vld [vmem:[#allocation2 + $0x378] sm:$0xff]
    %v4923 = vld [vmem:[#allocation2 + $0x380] sm:$0xff]
    %v4924 = vld [vmem:[#allocation2 + $0x388] sm:$0xff]
    %v4925 = vld [vmem:[#allocation2 + $0x390] sm:$0xff]
    %v4926 = vld [vmem:[#allocation2 + $0x398] sm:$0xff]
    %v4927 = vld [vmem:[#allocation2 + $0x3a0] sm:$0xff]
    %v4928 = vld [vmem:[#allocation2 + $0x3a8] sm:$0xff]
    %v4929 = vld [vmem:[#allocation2 + $0x3b0] sm:$0xff]
    %v4930 = vld [vmem:[#allocation2 + $0x3b8] sm:$0xff]
    %v4931 = vld [vmem:[#allocation2 + $0x3c0] sm:$0xff]
    %v4932 = vld [vmem:[#allocation2 + $0x3c8] sm:$0xff]
    %v4933 = vld [vmem:[#allocation2 + $0x3d0] sm:$0xff]
    %v4934 = vld [vmem:[#allocation2 + $0x3d8] sm:$0xff]
    %v4935 = vld [vmem:[#allocation2 + $0x3e0] sm:$0xff]
    %v4936 = vld [vmem:[#allocation2 + $0x3e8] sm:$0xff]
    %v4937 = vld [vmem:[#allocation2 + $0x3f0] sm:$0xff]
    %v4938 = vld [vmem:[#allocation2 + $0x3f8] sm:$0xff]
    %v4939 = vld [vmem:[#allocation2 + $0x400] sm:$0xff]
    %v4940 = vld [vmem:[#allocation2 + $0x408] sm:$0xff]
    %v4941 = vld [vmem:[#allocation2 + $0x410] sm:$0xff]
    %v4942 = vld [vmem:[#allocation2 + $0x418] sm:$0xff]
    %v4943 = vld [vmem:[#allocation2 + $0x420] sm:$0xff]
    %v4944 = vld [vmem:[#allocation2 + $0x428] sm:$0xff]
    %v4945 = vld [vmem:[#allocation2 + $0x430] sm:$0xff]
    %v4946 = vld [vmem:[#allocation2 + $0x438] sm:$0xff]
    %v4947 = vld [vmem:[#allocation2 + $0x440] sm:$0xff]
    %v4948 = vld [vmem:[#allocation2 + $0x448] sm:$0xff]
    %v4949 = vld [vmem:[#allocation2 + $0x450] sm:$0xff]
    %v4950 = vld [vmem:[#allocation2 + $0x458] sm:$0xff]
    %v4951 = vld [vmem:[#allocation2 + $0x460] sm:$0xff]
    %v4952 = vld [vmem:[#allocation2 + $0x468] sm:$0xff]
    %v4953 = vld [vmem:[#allocation2 + $0x470] sm:$0xff]
    %v4954 = vld [vmem:[#allocation2 + $0x478] sm:$0xff]
    %v4955 = vld [vmem:[#allocation2 + $0x480] sm:$0xff]
    %v4956 = vld [vmem:[#allocation2 + $0x488] sm:$0xff]
    %v4957 = vld [vmem:[#allocation2 + $0x490] sm:$0xff]
    %v4958 = vld [vmem:[#allocation2 + $0x498] sm:$0xff]
    %v4959 = vld [vmem:[#allocation2 + $0x4a0] sm:$0xff]
    %v4960 = vld [vmem:[#allocation2 + $0x4a8] sm:$0xff]
    %v4961 = vld [vmem:[#allocation2 + $0x4b0] sm:$0xff]
    %v4962 = vld [vmem:[#allocation2 + $0x4b8] sm:$0xff]
    %v4963 = vld [vmem:[#allocation2 + $0x4c0] sm:$0xff]
    %v4964 = vld [vmem:[#allocation2 + $0x4c8] sm:$0xff]
    %v4965 = vld [vmem:[#allocation2 + $0x4d0] sm:$0xff]
    %v4966 = vld [vmem:[#allocation2 + $0x4d8] sm:$0xff]
    %v4967 = vld [vmem:[#allocation2 + $0x4e0] sm:$0xff]
    %v4968 = vld [vmem:[#allocation2 + $0x4e8] sm:$0xff]
    %v4969 = vld [vmem:[#allocation2 + $0x4f0] sm:$0xff]
    %v4970 = vld [vmem:[#allocation2 + $0x4f8] sm:$0xff]
    %v4971 = vld [vmem:[#allocation2 + $0x500] sm:$0xff]
    %v4972 = vld [vmem:[#allocation2 + $0x508] sm:$0xff]
    %v4973 = vld [vmem:[#allocation2 + $0x510] sm:$0xff]
    %v4974 = vld [vmem:[#allocation2 + $0x518] sm:$0xff]
    %v4975 = vld [vmem:[#allocation2 + $0x520] sm:$0xff]
    %v4976 = vld [vmem:[#allocation2 + $0x528] sm:$0xff]
    %v4977 = vld [vmem:[#allocation2 + $0x530] sm:$0xff]
    %v4978 = vld [vmem:[#allocation2 + $0x538] sm:$0xff]
    %v4979 = vld [vmem:[#allocation2 + $0x540] sm:$0xff]
    %v4980 = vld [vmem:[#allocation2 + $0x548] sm:$0xff]
    %v4981 = vld [vmem:[#allocation2 + $0x550] sm:$0xff]
    %v4982 = vld [vmem:[#allocation2 + $0x558] sm:$0xff]
    %v4983 = vld [vmem:[#allocation2 + $0x560] sm:$0xff]
    %v4984 = vld [vmem:[#allocation2 + $0x568] sm:$0xff]
    %v4985 = vld [vmem:[#allocation2 + $0x570] sm:$0xff]
    %v4986 = vld [vmem:[#allocation2 + $0x578] sm:$0xff]
    %v4987 = vld [vmem:[#allocation2 + $0x580] sm:$0xff]
    %v4988 = vld [vmem:[#allocation2 + $0x588] sm:$0xff]
    %v4989 = vld [vmem:[#allocation2 + $0x590] sm:$0xff]
    %v4990 = vld [vmem:[#allocation2 + $0x598] sm:$0xff]
    %v4991 = vld [vmem:[#allocation2 + $0x5a0] sm:$0xff]
    %v4992 = vld [vmem:[#allocation2 + $0x5a8] sm:$0xff]
    %v4993 = vld [vmem:[#allocation2 + $0x5b0] sm:$0xff]
    %v4994 = vld [vmem:[#allocation2 + $0x5b8] sm:$0xff]
    %v4995 = vld [vmem:[#allocation2 + $0x5c0] sm:$0xff]
    %v4996 = vld [vmem:[#allocation2 + $0x5c8] sm:$0xff]
    %v4997 = vld [vmem:[#allocation2 + $0x5d0] sm:$0xff]
    %v4998 = vld [vmem:[#allocation2 + $0x5d8] sm:$0xff]
    %v4999 = vld [vmem:[#allocation2 + $0x5e0] sm:$0xff]
    %v5000 = vld [vmem:[#allocation2 + $0x5e8] sm:$0xff]
    %v5001 = vld [vmem:[#allocation2 + $0x5f0] sm:$0xff]
    %v5002 = vld [vmem:[#allocation2 + $0x5f8] sm:$0xff]
    %v5003 = vld [vmem:[#allocation2 + $0x600] sm:$0xff]
    %v5004 = vld [vmem:[#allocation2 + $0x608] sm:$0xff]
    %v5005 = vld [vmem:[#allocation2 + $0x610] sm:$0xff]
    %v5006 = vld [vmem:[#allocation2 + $0x618] sm:$0xff]
    %v5007 = vld [vmem:[#allocation2 + $0x620] sm:$0xff]
    %v5008 = vld [vmem:[#allocation2 + $0x628] sm:$0xff]
    %v5009 = vld [vmem:[#allocation2 + $0x630] sm:$0x7]
    %v5010 = vld [vmem:[#allocation2 + $0x638] sm:$0x7]
    %v5011 = vld [vmem:[#allocation2 + $0x640] sm:$0x7]
    %v5012 = vld [vmem:[#allocation2 + $0x648] sm:$0x7]
    %v5013 = vld [vmem:[#allocation2 + $0x650] sm:$0x7]
    %v5014 = vld [vmem:[#allocation2 + $0x658] sm:$0x7]
    %v5015 = vld [vmem:[#allocation2 + $0x660] sm:$0x7]
    %v5016 = vld [vmem:[#allocation2 + $0x668] sm:$0x7]
    %v5017 = vld [vmem:[#allocation2 + $0x670] sm:$0x7]
    %v5018 = vld [vmem:[#allocation2 + $0x678] sm:$0x7]
    %v5019 = vld [vmem:[#allocation2 + $0x680] sm:$0x7]
    %v5020 = vld [vmem:[#allocation2 + $0x688] sm:$0x7]
    %v5021 = vld [vmem:[#allocation2 + $0x690] sm:$0x7]
    %v5022 = vld [vmem:[#allocation2 + $0x698] sm:$0x7]
    %v5023 = vld [vmem:[#allocation2 + $0x6a0] sm:$0x7]
    %v5024 = vld [vmem:[#allocation2 + $0x6a8] sm:$0x7]
    %v5025 = vld [vmem:[#allocation2 + $0x6b0] sm:$0x7]
    %v5026 = vld [vmem:[#allocation2 + $0x6b8] sm:$0x7]
    %v5027 = vld [vmem:[#allocation2 + $0x6c0] sm:$0x7]
    %v5028 = vld [vmem:[#allocation2 + $0x6c8] sm:$0x7]
    %v5029 = vld [vmem:[#allocation2 + $0x6d0] sm:$0x7]
    %v5030 = vld [vmem:[#allocation2 + $0x6d8] sm:$0x7]
    %v5031 = vld [vmem:[%s2] sm:$0xf]
    %5033 = vset.pattern.permute.xlu0 0
    %5034 = vperm.xlu0 %5033, %v5031
    %v5035 = vpop.permute.xlu0 %5034
    %vm5037 = vcmask 613376
    %v5039 = vsel %vm5037, %v4810, 0
    %vm5041 = vcmask 1042432
    %v5043 = vsel %vm5041, %v5009, 0
    %v5046 = vsel %vm5041, %v5010, 0
    %v5049 = vsel %vm5041, %v5011, 0
    %v5052 = vsel %vm5041, %v5012, 0
    %v5055 = vsel %vm5041, %v5013, 0
    %v5058 = vsel %vm5041, %v5014, 0
    %v5061 = vsel %vm5041, %v5015, 0
    %v5064 = vsel %vm5041, %v5016, 0
    %v5067 = vsel %vm5041, %v5017, 0
    %v5070 = vsel %vm5041, %v5018, 0
    %v5073 = vsel %vm5041, %v5019, 0
    %v5076 = vsel %vm5041, %v5020, 0
    %v5079 = vsel %vm5041, %v5021, 0
    %v5082 = vsel %vm5041, %v5022, 0
    %v5085 = vsel %vm5041, %v5023, 0
    %v5088 = vsel %vm5041, %v5024, 0
    %v5091 = vsel %vm5041, %v5025, 0
    %v5094 = vsel %vm5041, %v5026, 0
    %v5097 = vsel %vm5041, %v5027, 0
    %v5100 = vsel %vm5041, %v5028, 0
    %v5103 = vsel %vm5041, %v5029, 0
    %v5106 = vsel %vm5041, %v5030, 0
    %5108 = vmatpush.msra.mxu0 0.0
    %5109 = vmatpush.msra.mxu0 0.0
    %5110 = vmatpush.msra.mxu0 0.0
    %5111 = vmatpush.msra.mxu0 0.0
    %5112 = vmatpush.msra.mxu0 0.0
    %5113 = vmatpush.msra.mxu0 0.0
    %5114 = vmatpush.msra.mxu0 %v5043
    %5115 = vmatpush.msra.mxu0 %v4987
    %5116 = vmatpush.msra.mxu0 %v4965
    %5117 = vmatpush.msra.mxu0 %v4943
    %5118 = vmatpush.msra.mxu0 %v4921
    %5119 = vmatpush.msra.mxu0 %v4899
    %5120 = vmatpush.msra.mxu0 %v4877
    %5121 = vmatpush.msra.mxu0 %v4855
    %5122 = vmatpush.msra.mxu0 %v4833
    %5123 = vmatpush.msra.mxu0 %v4811
    %5124 = vmatmul.f32.gmra.mxu0 %v5039
    %v5125 = vpop.f32.mrf.mxu0
    %v5126 = vadd.f32 %v5035, %v5125
    %5127 = vdwg.mxu0
    %5128 = vmatpush.msra.mxu0 0.0
    %5129 = vmatpush.msra.mxu0 0.0
    %5130 = vmatpush.msra.mxu0 0.0
    %5131 = vmatpush.msra.mxu0 0.0
    %5132 = vmatpush.msra.mxu0 0.0
    %5133 = vmatpush.msra.mxu0 0.0
    %5134 = vmatpush.msra.mxu0 %v5046
    %5135 = vmatpush.msra.mxu0 %v4988
    %5136 = vmatpush.msra.mxu0 %v4966
    %5137 = vmatpush.msra.mxu0 %v4944
    %5138 = vmatpush.msra.mxu0 %v4922
    %5139 = vmatpush.msra.mxu0 %v4900
    %5140 = vmatpush.msra.mxu0 %v4878
    %5141 = vmatpush.msra.mxu0 %v4856
    %5142 = vmatpush.msra.mxu0 %v4834
    %5143 = vmatpush.msra.mxu0 %v4812
    %5144 = vmatmul.f32.gmra.mxu0 %v5039
    %v5145 = vpop.f32.mrf.mxu0
    %v5146 = vadd.f32 %v5035, %v5145
    %5147 = vdwg.mxu0
    %5148 = vmatpush.msra.mxu0 0.0
    %5149 = vmatpush.msra.mxu0 0.0
    %5150 = vmatpush.msra.mxu0 0.0
    %5151 = vmatpush.msra.mxu0 0.0
    %5152 = vmatpush.msra.mxu0 0.0
    %5153 = vmatpush.msra.mxu0 0.0
    %5154 = vmatpush.msra.mxu0 %v5049
    %5155 = vmatpush.msra.mxu0 %v4989
    %5156 = vmatpush.msra.mxu0 %v4967
    %5157 = vmatpush.msra.mxu0 %v4945
    %5158 = vmatpush.msra.mxu0 %v4923
    %5159 = vmatpush.msra.mxu0 %v4901
    %5160 = vmatpush.msra.mxu0 %v4879
    %5161 = vmatpush.msra.mxu0 %v4857
    %5162 = vmatpush.msra.mxu0 %v4835
    %5163 = vmatpush.msra.mxu0 %v4813
    %5164 = vmatmul.f32.gmra.mxu0 %v5039
    %v5165 = vpop.f32.mrf.mxu0
    %v5166 = vadd.f32 %v5035, %v5165
    %5167 = vdwg.mxu0
    %5168 = vmatpush.msra.mxu0 0.0
    %5169 = vmatpush.msra.mxu0 0.0
    %5170 = vmatpush.msra.mxu0 0.0
    %5171 = vmatpush.msra.mxu0 0.0
    %5172 = vmatpush.msra.mxu0 0.0
    %5173 = vmatpush.msra.mxu0 0.0
    %5174 = vmatpush.msra.mxu0 %v5052
    %5175 = vmatpush.msra.mxu0 %v4990
    %5176 = vmatpush.msra.mxu0 %v4968
    %5177 = vmatpush.msra.mxu0 %v4946
    %5178 = vmatpush.msra.mxu0 %v4924
    %5179 = vmatpush.msra.mxu0 %v4902
    %5180 = vmatpush.msra.mxu0 %v4880
    %5181 = vmatpush.msra.mxu0 %v4858
    %5182 = vmatpush.msra.mxu0 %v4836
    %5183 = vmatpush.msra.mxu0 %v4814
    %5184 = vmatmul.f32.gmra.mxu0 %v5039
    %v5185 = vpop.f32.mrf.mxu0
    %v5186 = vadd.f32 %v5035, %v5185
    %5187 = vdwg.mxu0
    %5188 = vmatpush.msra.mxu0 0.0
    %5189 = vmatpush.msra.mxu0 0.0
    %5190 = vmatpush.msra.mxu0 0.0
    %5191 = vmatpush.msra.mxu0 0.0
    %5192 = vmatpush.msra.mxu0 0.0
    %5193 = vmatpush.msra.mxu0 0.0
    %5194 = vmatpush.msra.mxu0 %v5055
    %5195 = vmatpush.msra.mxu0 %v4991
    %5196 = vmatpush.msra.mxu0 %v4969
    %5197 = vmatpush.msra.mxu0 %v4947
    %5198 = vmatpush.msra.mxu0 %v4925
    %5199 = vmatpush.msra.mxu0 %v4903
    %5200 = vmatpush.msra.mxu0 %v4881
    %5201 = vmatpush.msra.mxu0 %v4859
    %5202 = vmatpush.msra.mxu0 %v4837
    %5203 = vmatpush.msra.mxu0 %v4815
    %5204 = vmatmul.f32.gmra.mxu0 %v5039
    %v5205 = vpop.f32.mrf.mxu0
    %v5206 = vadd.f32 %v5035, %v5205
    %5207 = vdwg.mxu0
    %5208 = vmatpush.msra.mxu0 0.0
    %5209 = vmatpush.msra.mxu0 0.0
    %5210 = vmatpush.msra.mxu0 0.0
    %5211 = vmatpush.msra.mxu0 0.0
    %5212 = vmatpush.msra.mxu0 0.0
    %5213 = vmatpush.msra.mxu0 0.0
    %5214 = vmatpush.msra.mxu0 %v5058
    %5215 = vmatpush.msra.mxu0 %v4992
    %5216 = vmatpush.msra.mxu0 %v4970
    %5217 = vmatpush.msra.mxu0 %v4948
    %5218 = vmatpush.msra.mxu0 %v4926
    %5219 = vmatpush.msra.mxu0 %v4904
    %5220 = vmatpush.msra.mxu0 %v4882
    %5221 = vmatpush.msra.mxu0 %v4860
    %5222 = vmatpush.msra.mxu0 %v4838
    %5223 = vmatpush.msra.mxu0 %v4816
    %5224 = vmatmul.f32.gmra.mxu0 %v5039
    %v5225 = vpop.f32.mrf.mxu0
    %v5226 = vadd.f32 %v5035, %v5225
    %5227 = vdwg.mxu0
    %5228 = vmatpush.msra.mxu0 0.0
    %5229 = vmatpush.msra.mxu0 0.0
    %5230 = vmatpush.msra.mxu0 0.0
    %5231 = vmatpush.msra.mxu0 0.0
    %5232 = vmatpush.msra.mxu0 0.0
    %5233 = vmatpush.msra.mxu0 0.0
    %5234 = vmatpush.msra.mxu0 %v5061
    %5235 = vmatpush.msra.mxu0 %v4993
    %5236 = vmatpush.msra.mxu0 %v4971
    %5237 = vmatpush.msra.mxu0 %v4949
    %5238 = vmatpush.msra.mxu0 %v4927
    %5239 = vmatpush.msra.mxu0 %v4905
    %5240 = vmatpush.msra.mxu0 %v4883
    %5241 = vmatpush.msra.mxu0 %v4861
    %5242 = vmatpush.msra.mxu0 %v4839
    %5243 = vmatpush.msra.mxu0 %v4817
    %5244 = vmatmul.f32.gmra.mxu0 %v5039
    %v5245 = vpop.f32.mrf.mxu0
    %v5246 = vadd.f32 %v5035, %v5245
    %5247 = vdwg.mxu0
    %5248 = vmatpush.msra.mxu0 0.0
    %5249 = vmatpush.msra.mxu0 0.0
    %5250 = vmatpush.msra.mxu0 0.0
    %5251 = vmatpush.msra.mxu0 0.0
    %5252 = vmatpush.msra.mxu0 0.0
    %5253 = vmatpush.msra.mxu0 0.0
    %5254 = vmatpush.msra.mxu0 %v5064
    %5255 = vmatpush.msra.mxu0 %v4994
    %5256 = vmatpush.msra.mxu0 %v4972
    %5257 = vmatpush.msra.mxu0 %v4950
    %5258 = vmatpush.msra.mxu0 %v4928
    %5259 = vmatpush.msra.mxu0 %v4906
    %5260 = vmatpush.msra.mxu0 %v4884
    %5261 = vmatpush.msra.mxu0 %v4862
    %5262 = vmatpush.msra.mxu0 %v4840
    %5263 = vmatpush.msra.mxu0 %v4818
    %5264 = vmatmul.f32.gmra.mxu0 %v5039
    %v5265 = vpop.f32.mrf.mxu0
    %v5266 = vadd.f32 %v5035, %v5265
    %5267 = vdwg.mxu0
    %5268 = vmatpush.msra.mxu0 0.0
    %5269 = vmatpush.msra.mxu0 0.0
    %5270 = vmatpush.msra.mxu0 0.0
    %5271 = vmatpush.msra.mxu0 0.0
    %5272 = vmatpush.msra.mxu0 0.0
    %5273 = vmatpush.msra.mxu0 0.0
    %5274 = vmatpush.msra.mxu0 %v5067
    %5275 = vmatpush.msra.mxu0 %v4995
    %5276 = vmatpush.msra.mxu0 %v4973
    %5277 = vmatpush.msra.mxu0 %v4951
    %5278 = vmatpush.msra.mxu0 %v4929
    %5279 = vmatpush.msra.mxu0 %v4907
    %5280 = vmatpush.msra.mxu0 %v4885
    %5281 = vmatpush.msra.mxu0 %v4863
    %5282 = vmatpush.msra.mxu0 %v4841
    %5283 = vmatpush.msra.mxu0 %v4819
    %5284 = vmatmul.f32.gmra.mxu0 %v5039
    %v5285 = vpop.f32.mrf.mxu0
    %v5286 = vadd.f32 %v5035, %v5285
    %5287 = vdwg.mxu0
    %5288 = vmatpush.msra.mxu0 0.0
    %5289 = vmatpush.msra.mxu0 0.0
    %5290 = vmatpush.msra.mxu0 0.0
    %5291 = vmatpush.msra.mxu0 0.0
    %5292 = vmatpush.msra.mxu0 0.0
    %5293 = vmatpush.msra.mxu0 0.0
    %5294 = vmatpush.msra.mxu0 %v5070
    %5295 = vmatpush.msra.mxu0 %v4996
    %5296 = vmatpush.msra.mxu0 %v4974
    %5297 = vmatpush.msra.mxu0 %v4952
    %5298 = vmatpush.msra.mxu0 %v4930
    %5299 = vmatpush.msra.mxu0 %v4908
    %5300 = vmatpush.msra.mxu0 %v4886
    %5301 = vmatpush.msra.mxu0 %v4864
    %5302 = vmatpush.msra.mxu0 %v4842
    %5303 = vmatpush.msra.mxu0 %v4820
    %5304 = vmatmul.f32.gmra.mxu0 %v5039
    %v5305 = vpop.f32.mrf.mxu0
    %v5306 = vadd.f32 %v5035, %v5305
    %5307 = vdwg.mxu0
    %5308 = vmatpush.msra.mxu0 0.0
    %5309 = vmatpush.msra.mxu0 0.0
    %5310 = vmatpush.msra.mxu0 0.0
    %5311 = vmatpush.msra.mxu0 0.0
    %5312 = vmatpush.msra.mxu0 0.0
    %5313 = vmatpush.msra.mxu0 0.0
    %5314 = vmatpush.msra.mxu0 %v5073
    %5315 = vmatpush.msra.mxu0 %v4997
    %5316 = vmatpush.msra.mxu0 %v4975
    %5317 = vmatpush.msra.mxu0 %v4953
    %5318 = vmatpush.msra.mxu0 %v4931
    %5319 = vmatpush.msra.mxu0 %v4909
    %5320 = vmatpush.msra.mxu0 %v4887
    %5321 = vmatpush.msra.mxu0 %v4865
    %5322 = vmatpush.msra.mxu0 %v4843
    %5323 = vmatpush.msra.mxu0 %v4821
    %5324 = vmatmul.f32.gmra.mxu0 %v5039
    %v5325 = vpop.f32.mrf.mxu0
    %v5326 = vadd.f32 %v5035, %v5325
    %5327 = vdwg.mxu0
    %5328 = vmatpush.msra.mxu0 0.0
    %5329 = vmatpush.msra.mxu0 0.0
    %5330 = vmatpush.msra.mxu0 0.0
    %5331 = vmatpush.msra.mxu0 0.0
    %5332 = vmatpush.msra.mxu0 0.0
    %5333 = vmatpush.msra.mxu0 0.0
    %5334 = vmatpush.msra.mxu0 %v5076
    %5335 = vmatpush.msra.mxu0 %v4998
    %5336 = vmatpush.msra.mxu0 %v4976
    %5337 = vmatpush.msra.mxu0 %v4954
    %5338 = vmatpush.msra.mxu0 %v4932
    %5339 = vmatpush.msra.mxu0 %v4910
    %5340 = vmatpush.msra.mxu0 %v4888
    %5341 = vmatpush.msra.mxu0 %v4866
    %5342 = vmatpush.msra.mxu0 %v4844
    %5343 = vmatpush.msra.mxu0 %v4822
    %5344 = vmatmul.f32.gmra.mxu0 %v5039
    %v5345 = vpop.f32.mrf.mxu0
    %v5346 = vadd.f32 %v5035, %v5345
    %5347 = vdwg.mxu0
    %5348 = vmatpush.msra.mxu0 0.0
    %5349 = vmatpush.msra.mxu0 0.0
    %5350 = vmatpush.msra.mxu0 0.0
    %5351 = vmatpush.msra.mxu0 0.0
    %5352 = vmatpush.msra.mxu0 0.0
    %5353 = vmatpush.msra.mxu0 0.0
    %5354 = vmatpush.msra.mxu0 %v5079
    %5355 = vmatpush.msra.mxu0 %v4999
    %5356 = vmatpush.msra.mxu0 %v4977
    %5357 = vmatpush.msra.mxu0 %v4955
    %5358 = vmatpush.msra.mxu0 %v4933
    %5359 = vmatpush.msra.mxu0 %v4911
    %5360 = vmatpush.msra.mxu0 %v4889
    %5361 = vmatpush.msra.mxu0 %v4867
    %5362 = vmatpush.msra.mxu0 %v4845
    %5363 = vmatpush.msra.mxu0 %v4823
    %5364 = vmatmul.f32.gmra.mxu0 %v5039
    %v5365 = vpop.f32.mrf.mxu0
    %v5366 = vadd.f32 %v5035, %v5365
    %5367 = vdwg.mxu0
    %5368 = vmatpush.msra.mxu0 0.0
    %5369 = vmatpush.msra.mxu0 0.0
    %5370 = vmatpush.msra.mxu0 0.0
    %5371 = vmatpush.msra.mxu0 0.0
    %5372 = vmatpush.msra.mxu0 0.0
    %5373 = vmatpush.msra.mxu0 0.0
    %5374 = vmatpush.msra.mxu0 %v5082
    %5375 = vmatpush.msra.mxu0 %v5000
    %5376 = vmatpush.msra.mxu0 %v4978
    %5377 = vmatpush.msra.mxu0 %v4956
    %5378 = vmatpush.msra.mxu0 %v4934
    %5379 = vmatpush.msra.mxu0 %v4912
    %5380 = vmatpush.msra.mxu0 %v4890
    %5381 = vmatpush.msra.mxu0 %v4868
    %5382 = vmatpush.msra.mxu0 %v4846
    %5383 = vmatpush.msra.mxu0 %v4824
    %5384 = vmatmul.f32.gmra.mxu0 %v5039
    %v5385 = vpop.f32.mrf.mxu0
    %v5386 = vadd.f32 %v5035, %v5385
    %5387 = vdwg.mxu0
    %5388 = vmatpush.msra.mxu0 0.0
    %5389 = vmatpush.msra.mxu0 0.0
    %5390 = vmatpush.msra.mxu0 0.0
    %5391 = vmatpush.msra.mxu0 0.0
    %5392 = vmatpush.msra.mxu0 0.0
    %5393 = vmatpush.msra.mxu0 0.0
    %5394 = vmatpush.msra.mxu0 %v5085
    %5395 = vmatpush.msra.mxu0 %v5001
    %5396 = vmatpush.msra.mxu0 %v4979
    %5397 = vmatpush.msra.mxu0 %v4957
    %5398 = vmatpush.msra.mxu0 %v4935
    %5399 = vmatpush.msra.mxu0 %v4913
    %5400 = vmatpush.msra.mxu0 %v4891
    %5401 = vmatpush.msra.mxu0 %v4869
    %5402 = vmatpush.msra.mxu0 %v4847
    %5403 = vmatpush.msra.mxu0 %v4825
    %5404 = vmatmul.f32.gmra.mxu0 %v5039
    %v5405 = vpop.f32.mrf.mxu0
    %v5406 = vadd.f32 %v5035, %v5405
    %5407 = vdwg.mxu0
    %5408 = vmatpush.msra.mxu0 0.0
    %5409 = vmatpush.msra.mxu0 0.0
    %5410 = vmatpush.msra.mxu0 0.0
    %5411 = vmatpush.msra.mxu0 0.0
    %5412 = vmatpush.msra.mxu0 0.0
    %5413 = vmatpush.msra.mxu0 0.0
    %5414 = vmatpush.msra.mxu0 %v5088
    %5415 = vmatpush.msra.mxu0 %v5002
    %5416 = vmatpush.msra.mxu0 %v4980
    %5417 = vmatpush.msra.mxu0 %v4958
    %5418 = vmatpush.msra.mxu0 %v4936
    %5419 = vmatpush.msra.mxu0 %v4914
    %5420 = vmatpush.msra.mxu0 %v4892
    %5421 = vmatpush.msra.mxu0 %v4870
    %5422 = vmatpush.msra.mxu0 %v4848
    %5423 = vmatpush.msra.mxu0 %v4826
    %5424 = vmatmul.f32.gmra.mxu0 %v5039
    %v5425 = vpop.f32.mrf.mxu0
    %v5426 = vadd.f32 %v5035, %v5425
    %5427 = vdwg.mxu0
    %5428 = vmatpush.msra.mxu0 0.0
    %5429 = vmatpush.msra.mxu0 0.0
    %5430 = vmatpush.msra.mxu0 0.0
    %5431 = vmatpush.msra.mxu0 0.0
    %5432 = vmatpush.msra.mxu0 0.0
    %5433 = vmatpush.msra.mxu0 0.0
    %5434 = vmatpush.msra.mxu0 %v5091
    %5435 = vmatpush.msra.mxu0 %v5003
    %5436 = vmatpush.msra.mxu0 %v4981
    %5437 = vmatpush.msra.mxu0 %v4959
    %5438 = vmatpush.msra.mxu0 %v4937
    %5439 = vmatpush.msra.mxu0 %v4915
    %5440 = vmatpush.msra.mxu0 %v4893
    %5441 = vmatpush.msra.mxu0 %v4871
    %5442 = vmatpush.msra.mxu0 %v4849
    %5443 = vmatpush.msra.mxu0 %v4827
    %5444 = vmatmul.f32.gmra.mxu0 %v5039
    %v5445 = vpop.f32.mrf.mxu0
    %v5446 = vadd.f32 %v5035, %v5445
    %5447 = vdwg.mxu0
    %5448 = vmatpush.msra.mxu0 0.0
    %5449 = vmatpush.msra.mxu0 0.0
    %5450 = vmatpush.msra.mxu0 0.0
    %5451 = vmatpush.msra.mxu0 0.0
    %5452 = vmatpush.msra.mxu0 0.0
    %5453 = vmatpush.msra.mxu0 0.0
    %5454 = vmatpush.msra.mxu0 %v5094
    %5455 = vmatpush.msra.mxu0 %v5004
    %5456 = vmatpush.msra.mxu0 %v4982
    %5457 = vmatpush.msra.mxu0 %v4960
    %5458 = vmatpush.msra.mxu0 %v4938
    %5459 = vmatpush.msra.mxu0 %v4916
    %5460 = vmatpush.msra.mxu0 %v4894
    %5461 = vmatpush.msra.mxu0 %v4872
    %5462 = vmatpush.msra.mxu0 %v4850
    %5463 = vmatpush.msra.mxu0 %v4828
    %5464 = vmatmul.f32.gmra.mxu0 %v5039
    %v5465 = vpop.f32.mrf.mxu0
    %v5466 = vadd.f32 %v5035, %v5465
    %5467 = vdwg.mxu0
    %5468 = vmatpush.msra.mxu0 0.0
    %5469 = vmatpush.msra.mxu0 0.0
    %5470 = vmatpush.msra.mxu0 0.0
    %5471 = vmatpush.msra.mxu0 0.0
    %5472 = vmatpush.msra.mxu0 0.0
    %5473 = vmatpush.msra.mxu0 0.0
    %5474 = vmatpush.msra.mxu0 %v5097
    %5475 = vmatpush.msra.mxu0 %v5005
    %5476 = vmatpush.msra.mxu0 %v4983
    %5477 = vmatpush.msra.mxu0 %v4961
    %5478 = vmatpush.msra.mxu0 %v4939
    %5479 = vmatpush.msra.mxu0 %v4917
    %5480 = vmatpush.msra.mxu0 %v4895
    %5481 = vmatpush.msra.mxu0 %v4873
    %5482 = vmatpush.msra.mxu0 %v4851
    %5483 = vmatpush.msra.mxu0 %v4829
    %5484 = vmatmul.f32.gmra.mxu0 %v5039
    %v5485 = vpop.f32.mrf.mxu0
    %v5486 = vadd.f32 %v5035, %v5485
    %5487 = vdwg.mxu0
    %5488 = vmatpush.msra.mxu0 0.0
    %5489 = vmatpush.msra.mxu0 0.0
    %5490 = vmatpush.msra.mxu0 0.0
    %5491 = vmatpush.msra.mxu0 0.0
    %5492 = vmatpush.msra.mxu0 0.0
    %5493 = vmatpush.msra.mxu0 0.0
    %5494 = vmatpush.msra.mxu0 %v5100
    %5495 = vmatpush.msra.mxu0 %v5006
    %5496 = vmatpush.msra.mxu0 %v4984
    %5497 = vmatpush.msra.mxu0 %v4962
    %5498 = vmatpush.msra.mxu0 %v4940
    %5499 = vmatpush.msra.mxu0 %v4918
    %5500 = vmatpush.msra.mxu0 %v4896
    %5501 = vmatpush.msra.mxu0 %v4874
    %5502 = vmatpush.msra.mxu0 %v4852
    %5503 = vmatpush.msra.mxu0 %v4830
    %5504 = vmatmul.f32.gmra.mxu0 %v5039
    %v5505 = vpop.f32.mrf.mxu0
    %v5506 = vadd.f32 %v5035, %v5505
    %5507 = vdwg.mxu0
    %5508 = vmatpush.msra.mxu0 0.0
    %5509 = vmatpush.msra.mxu0 0.0
    %5510 = vmatpush.msra.mxu0 0.0
    %5511 = vmatpush.msra.mxu0 0.0
    %5512 = vmatpush.msra.mxu0 0.0
    %5513 = vmatpush.msra.mxu0 0.0
    %5514 = vmatpush.msra.mxu0 %v5103
    %5515 = vmatpush.msra.mxu0 %v5007
    %5516 = vmatpush.msra.mxu0 %v4985
    %5517 = vmatpush.msra.mxu0 %v4963
    %5518 = vmatpush.msra.mxu0 %v4941
    %5519 = vmatpush.msra.mxu0 %v4919
    %5520 = vmatpush.msra.mxu0 %v4897
    %5521 = vmatpush.msra.mxu0 %v4875
    %5522 = vmatpush.msra.mxu0 %v4853
    %5523 = vmatpush.msra.mxu0 %v4831
    %5524 = vmatmul.f32.gmra.mxu0 %v5039
    %v5525 = vpop.f32.mrf.mxu0
    %v5526 = vadd.f32 %v5035, %v5525
    %5527 = vdwg.mxu0
    %5528 = vmatpush.msra.mxu0 0.0
    %5529 = vmatpush.msra.mxu0 0.0
    %5530 = vmatpush.msra.mxu0 0.0
    %5531 = vmatpush.msra.mxu0 0.0
    %5532 = vmatpush.msra.mxu0 0.0
    %5533 = vmatpush.msra.mxu0 0.0
    %5534 = vmatpush.msra.mxu0 %v5106
    %5535 = vmatpush.msra.mxu0 %v5008
    %5536 = vmatpush.msra.mxu0 %v4986
    %5537 = vmatpush.msra.mxu0 %v4964
    %5538 = vmatpush.msra.mxu0 %v4942
    %5539 = vmatpush.msra.mxu0 %v4920
    %5540 = vmatpush.msra.mxu0 %v4898
    %5541 = vmatpush.msra.mxu0 %v4876
    %5542 = vmatpush.msra.mxu0 %v4854
    %5543 = vmatpush.msra.mxu0 %v4832
    %5544 = vmatmul.f32.gmra.mxu0 %v5039
    %v5545 = vpop.f32.mrf.mxu0
    %v5546 = vadd.f32 %v5035, %v5545
    %5547 = vdwg.mxu0
    %v5548 = vmax.f32 %v5126, 0.0
    %v5549 = vmax.f32 %v5146, 0.0
    %v5550 = vmax.f32 %v5166, 0.0
    %v5551 = vmax.f32 %v5186, 0.0
    %v5552 = vmax.f32 %v5206, 0.0
    %v5553 = vmax.f32 %v5226, 0.0
    %v5554 = vmax.f32 %v5246, 0.0
    %v5555 = vmax.f32 %v5266, 0.0
    %v5556 = vmax.f32 %v5286, 0.0
    %v5557 = vmax.f32 %v5306, 0.0
    %v5558 = vmax.f32 %v5326, 0.0
    %v5559 = vmax.f32 %v5346, 0.0
    %v5560 = vmax.f32 %v5366, 0.0
    %v5561 = vmax.f32 %v5386, 0.0
    %v5562 = vmax.f32 %v5406, 0.0
    %v5563 = vmax.f32 %v5426, 0.0
    %v5564 = vmax.f32 %v5446, 0.0
    %v5565 = vmax.f32 %v5466, 0.0
    %v5566 = vmax.f32 %v5486, 0.0
    %v5567 = vmax.f32 %v5506, 0.0
    %v5568 = vmax.f32 %v5526, 0.0
    %v5569 = vmax.f32 %v5546, 0.0
    %5592 = vrot.lane.b32.xlu0 %v5548, 127
    %v5593 = vpop.permute.xlu0 %5592
    %5594 = vrot.lane.b32.xlu0 %v5549, 127
    %v5595 = vpop.permute.xlu0 %5594
    %5596 = vrot.lane.b32.xlu0 %v5550, 127
    %v5597 = vpop.permute.xlu0 %5596
    %5598 = vrot.lane.b32.xlu0 %v5551, 127
    %v5599 = vpop.permute.xlu0 %5598
    %5600 = vrot.lane.b32.xlu0 %v5552, 127
    %v5601 = vpop.permute.xlu0 %5600
    %5602 = vrot.lane.b32.xlu0 %v5553, 127
    %v5603 = vpop.permute.xlu0 %5602
    %5604 = vrot.lane.b32.xlu0 %v5554, 127
    %v5605 = vpop.permute.xlu0 %5604
    %5606 = vrot.lane.b32.xlu0 %v5555, 127
    %v5607 = vpop.permute.xlu0 %5606
    %5608 = vrot.lane.b32.xlu0 %v5556, 127
    %v5609 = vpop.permute.xlu0 %5608
    %5610 = vrot.lane.b32.xlu0 %v5557, 127
    %v5611 = vpop.permute.xlu0 %5610
    %5612 = vrot.lane.b32.xlu0 %v5558, 127
    %v5613 = vpop.permute.xlu0 %5612
    %5614 = vrot.lane.b32.xlu0 %v5559, 127
    %v5615 = vpop.permute.xlu0 %5614
    %5616 = vrot.lane.b32.xlu0 %v5560, 127
    %v5617 = vpop.permute.xlu0 %5616
    %5618 = vrot.lane.b32.xlu0 %v5561, 127
    %v5619 = vpop.permute.xlu0 %5618
    %5620 = vrot.lane.b32.xlu0 %v5562, 127
    %v5621 = vpop.permute.xlu0 %5620
    %5622 = vrot.lane.b32.xlu0 %v5563, 127
    %v5623 = vpop.permute.xlu0 %5622
    %5624 = vrot.lane.b32.xlu0 %v5564, 127
    %v5625 = vpop.permute.xlu0 %5624
    %5626 = vrot.lane.b32.xlu0 %v5565, 127
    %v5627 = vpop.permute.xlu0 %5626
    %5628 = vrot.lane.b32.xlu0 %v5566, 127
    %v5629 = vpop.permute.xlu0 %5628
    %5630 = vrot.lane.b32.xlu0 %v5567, 127
    %v5631 = vpop.permute.xlu0 %5630
    %5632 = vrot.lane.b32.xlu0 %v5568, 127
    %v5633 = vpop.permute.xlu0 %5632
    %5634 = vrot.lane.b32.xlu0 %v5569, 127
    %v5635 = vpop.permute.xlu0 %5634
    %v5636 = vsel %vm269, %v5593, %v5595
    %v5637 = vsel %vm269, %v5595, %v5597
    %v5638 = vsel %vm269, %v5597, %v5599
    %v5639 = vsel %vm269, %v5599, %v5601
    %v5640 = vsel %vm269, %v5601, %v5603
    %v5641 = vsel %vm269, %v5603, %v5605
    %v5642 = vsel %vm269, %v5605, %v5607
    %v5643 = vsel %vm269, %v5607, %v5609
    %v5644 = vsel %vm269, %v5609, %v5611
    %v5645 = vsel %vm269, %v5611, %v5613
    %v5646 = vsel %vm269, %v5613, %v5615
    %v5647 = vsel %vm269, %v5615, %v5617
    %v5648 = vsel %vm269, %v5617, %v5619
    %v5649 = vsel %vm269, %v5619, %v5621
    %v5650 = vsel %vm269, %v5621, %v5623
    %v5651 = vsel %vm269, %v5623, %v5625
    %v5652 = vsel %vm269, %v5625, %v5627
    %v5653 = vsel %vm269, %v5627, %v5629
    %v5654 = vsel %vm269, %v5629, %v5631
    %v5655 = vsel %vm269, %v5631, %v5633
    %v5656 = vsel %vm269, %v5633, %v5635
    %v5678 = vmax.f32 %v5548, %v5636
    %v5679 = vmax.f32 %v5549, %v5637
    %v5680 = vmax.f32 %v5550, %v5638
    %v5681 = vmax.f32 %v5551, %v5639
    %v5682 = vmax.f32 %v5552, %v5640
    %v5683 = vmax.f32 %v5553, %v5641
    %v5684 = vmax.f32 %v5554, %v5642
    %v5685 = vmax.f32 %v5555, %v5643
    %v5686 = vmax.f32 %v5556, %v5644
    %v5687 = vmax.f32 %v5557, %v5645
    %v5688 = vmax.f32 %v5558, %v5646
    %v5689 = vmax.f32 %v5559, %v5647
    %v5690 = vmax.f32 %v5560, %v5648
    %v5691 = vmax.f32 %v5561, %v5649
    %v5692 = vmax.f32 %v5562, %v5650
    %v5693 = vmax.f32 %v5563, %v5651
    %v5694 = vmax.f32 %v5564, %v5652
    %v5695 = vmax.f32 %v5565, %v5653
    %v5696 = vmax.f32 %v5566, %v5654
    %v5697 = vmax.f32 %v5567, %v5655
    %v5698 = vmax.f32 %v5568, %v5656
    %v5700 = vmax.f32 %v5569, %v5635
    %5723 = vrot.lane.b32.xlu0 %v5678, 96
    %v5724 = vpop.permute.xlu0 %5723
    %5725 = vrot.lane.b32.xlu0 %v5679, 96
    %v5726 = vpop.permute.xlu0 %5725
    %5727 = vrot.lane.b32.xlu0 %v5680, 96
    %v5728 = vpop.permute.xlu0 %5727
    %5729 = vrot.lane.b32.xlu0 %v5681, 96
    %v5730 = vpop.permute.xlu0 %5729
    %5731 = vrot.lane.b32.xlu0 %v5682, 96
    %v5732 = vpop.permute.xlu0 %5731
    %5733 = vrot.lane.b32.xlu0 %v5683, 96
    %v5734 = vpop.permute.xlu0 %5733
    %5735 = vrot.lane.b32.xlu0 %v5684, 96
    %v5736 = vpop.permute.xlu0 %5735
    %5737 = vrot.lane.b32.xlu0 %v5685, 96
    %v5738 = vpop.permute.xlu0 %5737
    %5739 = vrot.lane.b32.xlu0 %v5686, 96
    %v5740 = vpop.permute.xlu0 %5739
    %5741 = vrot.lane.b32.xlu0 %v5687, 96
    %v5742 = vpop.permute.xlu0 %5741
    %5743 = vrot.lane.b32.xlu0 %v5688, 96
    %v5744 = vpop.permute.xlu0 %5743
    %5745 = vrot.lane.b32.xlu0 %v5689, 96
    %v5746 = vpop.permute.xlu0 %5745
    %5747 = vrot.lane.b32.xlu0 %v5690, 96
    %v5748 = vpop.permute.xlu0 %5747
    %5749 = vrot.lane.b32.xlu0 %v5691, 96
    %v5750 = vpop.permute.xlu0 %5749
    %5751 = vrot.lane.b32.xlu0 %v5692, 96
    %v5752 = vpop.permute.xlu0 %5751
    %5753 = vrot.lane.b32.xlu0 %v5693, 96
    %v5754 = vpop.permute.xlu0 %5753
    %5755 = vrot.lane.b32.xlu0 %v5694, 96
    %v5756 = vpop.permute.xlu0 %5755
    %5757 = vrot.lane.b32.xlu0 %v5695, 96
    %v5758 = vpop.permute.xlu0 %5757
    %5759 = vrot.lane.b32.xlu0 %v5696, 96
    %v5760 = vpop.permute.xlu0 %5759
    %5761 = vrot.lane.b32.xlu0 %v5697, 96
    %v5762 = vpop.permute.xlu0 %5761
    %5763 = vrot.lane.b32.xlu0 %v5698, 96
    %v5764 = vpop.permute.xlu0 %5763
    %5765 = vrot.lane.b32.xlu0 %v5700, 96
    %v5766 = vpop.permute.xlu0 %5765
    %v5767 = vsel %vm1061, %v5724, %v5726
    %v5768 = vsel %vm1061, %v5726, %v5728
    %v5769 = vsel %vm1061, %v5728, %v5730
    %v5770 = vsel %vm1061, %v5730, %v5732
    %v5771 = vsel %vm1061, %v5732, %v5734
    %v5772 = vsel %vm1061, %v5734, %v5736
    %v5773 = vsel %vm1061, %v5736, %v5738
    %v5774 = vsel %vm1061, %v5738, %v5740
    %v5775 = vsel %vm1061, %v5740, %v5742
    %v5776 = vsel %vm1061, %v5742, %v5744
    %v5777 = vsel %vm1061, %v5744, %v5746
    %v5778 = vsel %vm1061, %v5746, %v5748
    %v5779 = vsel %vm1061, %v5748, %v5750
    %v5780 = vsel %vm1061, %v5750, %v5752
    %v5781 = vsel %vm1061, %v5752, %v5754
    %v5782 = vsel %vm1061, %v5754, %v5756
    %v5783 = vsel %vm1061, %v5756, %v5758
    %v5784 = vsel %vm1061, %v5758, %v5760
    %v5785 = vsel %vm1061, %v5760, %v5762
    %v5786 = vsel %vm1061, %v5762, %v5764
    %v5787 = vsel %vm1061, %v5764, %v5766
    %v5809 = vmax.f32 %v5678, %v5767
    %v5810 = vmax.f32 %v5679, %v5768
    %v5811 = vmax.f32 %v5680, %v5769
    %v5812 = vmax.f32 %v5681, %v5770
    %v5813 = vmax.f32 %v5682, %v5771
    %v5814 = vmax.f32 %v5683, %v5772
    %v5815 = vmax.f32 %v5684, %v5773
    %v5816 = vmax.f32 %v5685, %v5774
    %v5817 = vmax.f32 %v5686, %v5775
    %v5818 = vmax.f32 %v5687, %v5776
    %v5819 = vmax.f32 %v5688, %v5777
    %v5820 = vmax.f32 %v5689, %v5778
    %v5821 = vmax.f32 %v5690, %v5779
    %v5822 = vmax.f32 %v5691, %v5780
    %v5823 = vmax.f32 %v5692, %v5781
    %v5824 = vmax.f32 %v5693, %v5782
    %v5825 = vmax.f32 %v5694, %v5783
    %v5826 = vmax.f32 %v5695, %v5784
    %v5827 = vmax.f32 %v5696, %v5785
    %v5828 = vmax.f32 %v5697, %v5786
    %v5829 = vmax.f32 %v5698, %v5787
    %5830 = vst [vmem:[#allocation3] sm:$0xf] %v5809
    %5831 = vst [vmem:[#allocation3 + $0x8] sm:$0xf] %v5810
    %5832 = vst [vmem:[#allocation3 + $0x10] sm:$0xf] %v5811
    %5833 = vst [vmem:[#allocation3 + $0x18] sm:$0xf] %v5812
    %5834 = vst [vmem:[#allocation3 + $0x20] sm:$0xf] %v5813
    %5835 = vst [vmem:[#allocation3 + $0x28] sm:$0xf] %v5814
    %5836 = vst [vmem:[#allocation3 + $0x30] sm:$0xf] %v5815
    %5837 = vst [vmem:[#allocation3 + $0x38] sm:$0xf] %v5816
    %5838 = vst [vmem:[#allocation3 + $0x40] sm:$0xf] %v5817
    %5839 = vst [vmem:[#allocation3 + $0x48] sm:$0xf] %v5818
    %5840 = vst [vmem:[#allocation3 + $0x50] sm:$0xf] %v5819
    %5841 = vst [vmem:[#allocation3 + $0x58] sm:$0xf] %v5820
    %5842 = vst [vmem:[#allocation3 + $0x60] sm:$0xf] %v5821
    %5843 = vst [vmem:[#allocation3 + $0x68] sm:$0xf] %v5822
    %5844 = vst [vmem:[#allocation3 + $0x70] sm:$0xf] %v5823
    %5845 = vst [vmem:[#allocation3 + $0x78] sm:$0xf] %v5824
    %5846 = vst [vmem:[#allocation3 + $0x80] sm:$0xf] %v5825
    %5847 = vst [vmem:[#allocation3 + $0x88] sm:$0xf] %v5826
    %v5867 = vrot.slane %v5809, 4
    %v5868 = vrot.slane %v5810, 4
    %v5869 = vrot.slane %v5811, 4
    %v5870 = vrot.slane %v5812, 4
    %v5871 = vrot.slane %v5813, 4
    %v5872 = vrot.slane %v5814, 4
    %v5873 = vrot.slane %v5815, 4
    %v5874 = vrot.slane %v5816, 4
    %v5875 = vrot.slane %v5817, 4
    %v5876 = vrot.slane %v5818, 4
    %v5877 = vrot.slane %v5819, 4
    %v5878 = vrot.slane %v5820, 4
    %v5879 = vrot.slane %v5821, 4
    %v5880 = vrot.slane %v5822, 4
    %v5881 = vrot.slane %v5823, 4
    %v5882 = vrot.slane %v5824, 4
    %v5883 = vrot.slane %v5825, 4
    %v5884 = vrot.slane %v5826, 4
    %v5885 = vrot.slane %v5827, 4
    %5886 = vrot.lane.b32.xlu0 %v5867, 126
    %v5887 = vpop.permute.xlu0 %5886
    %5888 = vrot.lane.b32.xlu0 %v5868, 126
    %v5889 = vpop.permute.xlu0 %5888
    %5890 = vrot.lane.b32.xlu0 %v5869, 126
    %v5891 = vpop.permute.xlu0 %5890
    %5892 = vrot.lane.b32.xlu0 %v5870, 126
    %v5893 = vpop.permute.xlu0 %5892
    %5894 = vrot.lane.b32.xlu0 %v5871, 126
    %v5895 = vpop.permute.xlu0 %5894
    %5896 = vrot.lane.b32.xlu0 %v5872, 126
    %v5897 = vpop.permute.xlu0 %5896
    %5898 = vrot.lane.b32.xlu0 %v5873, 126
    %v5899 = vpop.permute.xlu0 %5898
    %5900 = vrot.lane.b32.xlu0 %v5874, 126
    %v5901 = vpop.permute.xlu0 %5900
    %5902 = vrot.lane.b32.xlu0 %v5875, 126
    %v5903 = vpop.permute.xlu0 %5902
    %5904 = vrot.lane.b32.xlu0 %v5876, 126
    %v5905 = vpop.permute.xlu0 %5904
    %5906 = vrot.lane.b32.xlu0 %v5877, 126
    %v5907 = vpop.permute.xlu0 %5906
    %5908 = vrot.lane.b32.xlu0 %v5878, 126
    %v5909 = vpop.permute.xlu0 %5908
    %5910 = vrot.lane.b32.xlu0 %v5879, 126
    %v5911 = vpop.permute.xlu0 %5910
    %5912 = vrot.lane.b32.xlu0 %v5880, 126
    %v5913 = vpop.permute.xlu0 %5912
    %5914 = vrot.lane.b32.xlu0 %v5881, 126
    %v5915 = vpop.permute.xlu0 %5914
    %5916 = vrot.lane.b32.xlu0 %v5882, 126
    %v5917 = vpop.permute.xlu0 %5916
    %5918 = vrot.lane.b32.xlu0 %v5883, 126
    %v5919 = vpop.permute.xlu0 %5918
    %5920 = vrot.lane.b32.xlu0 %v5884, 126
    %v5921 = vpop.permute.xlu0 %5920
    %5922 = vrot.lane.b32.xlu0 %v5885, 126
    %v5923 = vpop.permute.xlu0 %5922
    %v5924 = vsel %vm467, %v5887, %v5889
    %v5925 = vsel %vm467, %v5889, %v5891
    %v5926 = vsel %vm467, %v5891, %v5893
    %v5927 = vsel %vm467, %v5893, %v5895
    %v5928 = vsel %vm467, %v5895, %v5897
    %v5929 = vsel %vm467, %v5897, %v5899
    %v5930 = vsel %vm467, %v5899, %v5901
    %v5931 = vsel %vm467, %v5901, %v5903
    %v5932 = vsel %vm467, %v5903, %v5905
    %v5933 = vsel %vm467, %v5905, %v5907
    %v5934 = vsel %vm467, %v5907, %v5909
    %v5935 = vsel %vm467, %v5909, %v5911
    %v5936 = vsel %vm467, %v5911, %v5913
    %v5937 = vsel %vm467, %v5913, %v5915
    %v5938 = vsel %vm467, %v5915, %v5917
    %v5939 = vsel %vm467, %v5917, %v5919
    %v5940 = vsel %vm467, %v5919, %v5921
    %v5941 = vsel %vm467, %v5921, %v5923
    %5960 = vst [vmem:[#allocation3] sm:$0xf0] %v5924
    %5961 = vst [vmem:[#allocation3 + $0x8] sm:$0xf0] %v5925
    %5962 = vst [vmem:[#allocation3 + $0x10] sm:$0xf0] %v5926
    %5963 = vst [vmem:[#allocation3 + $0x18] sm:$0xf0] %v5927
    %5964 = vst [vmem:[#allocation3 + $0x20] sm:$0xf0] %v5928
    %5965 = vst [vmem:[#allocation3 + $0x28] sm:$0xf0] %v5929
    %5966 = vst [vmem:[#allocation3 + $0x30] sm:$0xf0] %v5930
    %5967 = vst [vmem:[#allocation3 + $0x38] sm:$0xf0] %v5931
    %5968 = vst [vmem:[#allocation3 + $0x40] sm:$0xf0] %v5932
    %5969 = vst [vmem:[#allocation3 + $0x48] sm:$0xf0] %v5933
    %5970 = vst [vmem:[#allocation3 + $0x50] sm:$0xf0] %v5934
    %5971 = vst [vmem:[#allocation3 + $0x58] sm:$0xf0] %v5935
    %5972 = vst [vmem:[#allocation3 + $0x60] sm:$0xf0] %v5936
    %5973 = vst [vmem:[#allocation3 + $0x68] sm:$0xf0] %v5937
    %5974 = vst [vmem:[#allocation3 + $0x70] sm:$0xf0] %v5938
    %5975 = vst [vmem:[#allocation3 + $0x78] sm:$0xf0] %v5939
    %5976 = vst [vmem:[#allocation3 + $0x80] sm:$0xf0] %v5940
    %5977 = vst [vmem:[#allocation3 + $0x88] sm:$0xf0] %v5941
    %5978 = vrot.lane.b32.xlu0 %v5809, 124
    %v5979 = vpop.permute.xlu0 %5978
    %5980 = vrot.lane.b32.xlu0 %v5810, 124
    %v5981 = vpop.permute.xlu0 %5980
    %5982 = vrot.lane.b32.xlu0 %v5811, 124
    %v5983 = vpop.permute.xlu0 %5982
    %5984 = vrot.lane.b32.xlu0 %v5812, 124
    %v5985 = vpop.permute.xlu0 %5984
    %5986 = vrot.lane.b32.xlu0 %v5813, 124
    %v5987 = vpop.permute.xlu0 %5986
    %5988 = vrot.lane.b32.xlu0 %v5814, 124
    %v5989 = vpop.permute.xlu0 %5988
    %5990 = vrot.lane.b32.xlu0 %v5815, 124
    %v5991 = vpop.permute.xlu0 %5990
    %5992 = vrot.lane.b32.xlu0 %v5816, 124
    %v5993 = vpop.permute.xlu0 %5992
    %5994 = vrot.lane.b32.xlu0 %v5817, 124
    %v5995 = vpop.permute.xlu0 %5994
    %5996 = vrot.lane.b32.xlu0 %v5818, 124
    %v5997 = vpop.permute.xlu0 %5996
    %5998 = vrot.lane.b32.xlu0 %v5819, 124
    %v5999 = vpop.permute.xlu0 %5998
    %6000 = vrot.lane.b32.xlu0 %v5820, 124
    %v6001 = vpop.permute.xlu0 %6000
    %6002 = vrot.lane.b32.xlu0 %v5821, 124
    %v6003 = vpop.permute.xlu0 %6002
    %6004 = vrot.lane.b32.xlu0 %v5822, 124
    %v6005 = vpop.permute.xlu0 %6004
    %6006 = vrot.lane.b32.xlu0 %v5823, 124
    %v6007 = vpop.permute.xlu0 %6006
    %6008 = vrot.lane.b32.xlu0 %v5824, 124
    %v6009 = vpop.permute.xlu0 %6008
    %6010 = vrot.lane.b32.xlu0 %v5825, 124
    %v6011 = vpop.permute.xlu0 %6010
    %6012 = vrot.lane.b32.xlu0 %v5826, 124
    %v6013 = vpop.permute.xlu0 %6012
    %6014 = vrot.lane.b32.xlu0 %v5827, 124
    %v6015 = vpop.permute.xlu0 %6014
    %v6016 = vsel %vm863, %v5979, %v5981
    %v6017 = vsel %vm863, %v5981, %v5983
    %v6018 = vsel %vm863, %v5983, %v5985
    %v6019 = vsel %vm863, %v5985, %v5987
    %v6020 = vsel %vm863, %v5987, %v5989
    %v6021 = vsel %vm863, %v5989, %v5991
    %v6022 = vsel %vm863, %v5991, %v5993
    %v6023 = vsel %vm863, %v5993, %v5995
    %v6024 = vsel %vm863, %v5995, %v5997
    %v6025 = vsel %vm863, %v5997, %v5999
    %v6026 = vsel %vm863, %v5999, %v6001
    %v6027 = vsel %vm863, %v6001, %v6003
    %v6028 = vsel %vm863, %v6003, %v6005
    %v6029 = vsel %vm863, %v6005, %v6007
    %v6030 = vsel %vm863, %v6007, %v6009
    %v6031 = vsel %vm863, %v6009, %v6011
    %v6032 = vsel %vm863, %v6011, %v6013
    %v6033 = vsel %vm863, %v6013, %v6015
    %6052 = vst [vmem:[#allocation3 + $0x90] sm:$0xf] %v6016
    %6053 = vst [vmem:[#allocation3 + $0x98] sm:$0xf] %v6017
    %6054 = vst [vmem:[#allocation3 + $0xa0] sm:$0xf] %v6018
    %6055 = vst [vmem:[#allocation3 + $0xa8] sm:$0xf] %v6019
    %6056 = vst [vmem:[#allocation3 + $0xb0] sm:$0xf] %v6020
    %6057 = vst [vmem:[#allocation3 + $0xb8] sm:$0xf] %v6021
    %6058 = vst [vmem:[#allocation3 + $0xc0] sm:$0xf] %v6022
    %6059 = vst [vmem:[#allocation3 + $0xc8] sm:$0xf] %v6023
    %6060 = vst [vmem:[#allocation3 + $0xd0] sm:$0xf] %v6024
    %6061 = vst [vmem:[#allocation3 + $0xd8] sm:$0xf] %v6025
    %6062 = vst [vmem:[#allocation3 + $0xe0] sm:$0xf] %v6026
    %6063 = vst [vmem:[#allocation3 + $0xe8] sm:$0xf] %v6027
    %6064 = vst [vmem:[#allocation3 + $0xf0] sm:$0xf] %v6028
    %6065 = vst [vmem:[#allocation3 + $0xf8] sm:$0xf] %v6029
    %6066 = vst [vmem:[#allocation3 + $0x100] sm:$0xf] %v6030
    %6067 = vst [vmem:[#allocation3 + $0x108] sm:$0xf] %v6031
    %6068 = vst [vmem:[#allocation3 + $0x110] sm:$0xf] %v6032
    %6069 = vst [vmem:[#allocation3 + $0x118] sm:$0xf] %v6033
    %6070 = vrot.lane.b32.xlu0 %v5867, 122
    %v6071 = vpop.permute.xlu0 %6070
    %6072 = vrot.lane.b32.xlu0 %v5868, 122
    %v6073 = vpop.permute.xlu0 %6072
    %6074 = vrot.lane.b32.xlu0 %v5869, 122
    %v6075 = vpop.permute.xlu0 %6074
    %6076 = vrot.lane.b32.xlu0 %v5870, 122
    %v6077 = vpop.permute.xlu0 %6076
    %6078 = vrot.lane.b32.xlu0 %v5871, 122
    %v6079 = vpop.permute.xlu0 %6078
    %6080 = vrot.lane.b32.xlu0 %v5872, 122
    %v6081 = vpop.permute.xlu0 %6080
    %6082 = vrot.lane.b32.xlu0 %v5873, 122
    %v6083 = vpop.permute.xlu0 %6082
    %6084 = vrot.lane.b32.xlu0 %v5874, 122
    %v6085 = vpop.permute.xlu0 %6084
    %6086 = vrot.lane.b32.xlu0 %v5875, 122
    %v6087 = vpop.permute.xlu0 %6086
    %6088 = vrot.lane.b32.xlu0 %v5876, 122
    %v6089 = vpop.permute.xlu0 %6088
    %6090 = vrot.lane.b32.xlu0 %v5877, 122
    %v6091 = vpop.permute.xlu0 %6090
    %6092 = vrot.lane.b32.xlu0 %v5878, 122
    %v6093 = vpop.permute.xlu0 %6092
    %6094 = vrot.lane.b32.xlu0 %v5879, 122
    %v6095 = vpop.permute.xlu0 %6094
    %6096 = vrot.lane.b32.xlu0 %v5880, 122
    %v6097 = vpop.permute.xlu0 %6096
    %6098 = vrot.lane.b32.xlu0 %v5881, 122
    %v6099 = vpop.permute.xlu0 %6098
    %6100 = vrot.lane.b32.xlu0 %v5882, 122
    %v6101 = vpop.permute.xlu0 %6100
    %6102 = vrot.lane.b32.xlu0 %v5883, 122
    %v6103 = vpop.permute.xlu0 %6102
    %6104 = vrot.lane.b32.xlu0 %v5884, 122
    %v6105 = vpop.permute.xlu0 %6104
    %6106 = vrot.lane.b32.xlu0 %v5885, 122
    %v6107 = vpop.permute.xlu0 %6106
    %vm6108 = vcmask 998400
    %v6109 = vsel %vm6108, %v6071, %v6073
    %v6110 = vsel %vm6108, %v6073, %v6075
    %v6111 = vsel %vm6108, %v6075, %v6077
    %v6112 = vsel %vm6108, %v6077, %v6079
    %v6113 = vsel %vm6108, %v6079, %v6081
    %v6114 = vsel %vm6108, %v6081, %v6083
    %v6115 = vsel %vm6108, %v6083, %v6085
    %v6116 = vsel %vm6108, %v6085, %v6087
    %v6117 = vsel %vm6108, %v6087, %v6089
    %v6118 = vsel %vm6108, %v6089, %v6091
    %v6119 = vsel %vm6108, %v6091, %v6093
    %v6120 = vsel %vm6108, %v6093, %v6095
    %v6121 = vsel %vm6108, %v6095, %v6097
    %v6122 = vsel %vm6108, %v6097, %v6099
    %v6123 = vsel %vm6108, %v6099, %v6101
    %v6124 = vsel %vm6108, %v6101, %v6103
    %v6125 = vsel %vm6108, %v6103, %v6105
    %v6126 = vsel %vm6108, %v6105, %v6107
    %6145 = vst [vmem:[#allocation3 + $0x90] sm:$0xf0] %v6109
    %6146 = vst [vmem:[#allocation3 + $0x98] sm:$0xf0] %v6110
    %6147 = vst [vmem:[#allocation3 + $0xa0] sm:$0xf0] %v6111
    %6148 = vst [vmem:[#allocation3 + $0xa8] sm:$0xf0] %v6112
    %6149 = vst [vmem:[#allocation3 + $0xb0] sm:$0xf0] %v6113
    %6150 = vst [vmem:[#allocation3 + $0xb8] sm:$0xf0] %v6114
    %6151 = vst [vmem:[#allocation3 + $0xc0] sm:$0xf0] %v6115
    %6152 = vst [vmem:[#allocation3 + $0xc8] sm:$0xf0] %v6116
    %6153 = vst [vmem:[#allocation3 + $0xd0] sm:$0xf0] %v6117
    %6154 = vst [vmem:[#allocation3 + $0xd8] sm:$0xf0] %v6118
    %6155 = vst [vmem:[#allocation3 + $0xe0] sm:$0xf0] %v6119
    %6156 = vst [vmem:[#allocation3 + $0xe8] sm:$0xf0] %v6120
    %6157 = vst [vmem:[#allocation3 + $0xf0] sm:$0xf0] %v6121
    %6158 = vst [vmem:[#allocation3 + $0xf8] sm:$0xf0] %v6122
    %6159 = vst [vmem:[#allocation3 + $0x100] sm:$0xf0] %v6123
    %6160 = vst [vmem:[#allocation3 + $0x108] sm:$0xf0] %v6124
    %6161 = vst [vmem:[#allocation3 + $0x110] sm:$0xf0] %v6125
    %6162 = vst [vmem:[#allocation3 + $0x118] sm:$0xf0] %v6126
    %6163 = vrot.lane.b32.xlu0 %v5809, 120
    %v6164 = vpop.permute.xlu0 %6163
    %6165 = vrot.lane.b32.xlu0 %v5810, 120
    %v6166 = vpop.permute.xlu0 %6165
    %6167 = vrot.lane.b32.xlu0 %v5811, 120
    %v6168 = vpop.permute.xlu0 %6167
    %6169 = vrot.lane.b32.xlu0 %v5812, 120
    %v6170 = vpop.permute.xlu0 %6169
    %6171 = vrot.lane.b32.xlu0 %v5813, 120
    %v6172 = vpop.permute.xlu0 %6171
    %6173 = vrot.lane.b32.xlu0 %v5814, 120
    %v6174 = vpop.permute.xlu0 %6173
    %6175 = vrot.lane.b32.xlu0 %v5815, 120
    %v6176 = vpop.permute.xlu0 %6175
    %6177 = vrot.lane.b32.xlu0 %v5816, 120
    %v6178 = vpop.permute.xlu0 %6177
    %6179 = vrot.lane.b32.xlu0 %v5817, 120
    %v6180 = vpop.permute.xlu0 %6179
    %6181 = vrot.lane.b32.xlu0 %v5818, 120
    %v6182 = vpop.permute.xlu0 %6181
    %6183 = vrot.lane.b32.xlu0 %v5819, 120
    %v6184 = vpop.permute.xlu0 %6183
    %6185 = vrot.lane.b32.xlu0 %v5820, 120
    %v6186 = vpop.permute.xlu0 %6185
    %6187 = vrot.lane.b32.xlu0 %v5821, 120
    %v6188 = vpop.permute.xlu0 %6187
    %6189 = vrot.lane.b32.xlu0 %v5822, 120
    %v6190 = vpop.permute.xlu0 %6189
    %6191 = vrot.lane.b32.xlu0 %v5823, 120
    %v6192 = vpop.permute.xlu0 %6191
    %6193 = vrot.lane.b32.xlu0 %v5824, 120
    %v6194 = vpop.permute.xlu0 %6193
    %6195 = vrot.lane.b32.xlu0 %v5825, 120
    %v6196 = vpop.permute.xlu0 %6195
    %6197 = vrot.lane.b32.xlu0 %v5826, 120
    %v6198 = vpop.permute.xlu0 %6197
    %6199 = vrot.lane.b32.xlu0 %v5827, 120
    %v6200 = vpop.permute.xlu0 %6199
    %vm6201 = vcmask 982016
    %v6202 = vsel %vm6201, %v6164, %v6166
    %v6203 = vsel %vm6201, %v6166, %v6168
    %v6204 = vsel %vm6201, %v6168, %v6170
    %v6205 = vsel %vm6201, %v6170, %v6172
    %v6206 = vsel %vm6201, %v6172, %v6174
    %v6207 = vsel %vm6201, %v6174, %v6176
    %v6208 = vsel %vm6201, %v6176, %v6178
    %v6209 = vsel %vm6201, %v6178, %v6180
    %v6210 = vsel %vm6201, %v6180, %v6182
    %v6211 = vsel %vm6201, %v6182, %v6184
    %v6212 = vsel %vm6201, %v6184, %v6186
    %v6213 = vsel %vm6201, %v6186, %v6188
    %v6214 = vsel %vm6201, %v6188, %v6190
    %v6215 = vsel %vm6201, %v6190, %v6192
    %v6216 = vsel %vm6201, %v6192, %v6194
    %v6217 = vsel %vm6201, %v6194, %v6196
    %v6218 = vsel %vm6201, %v6196, %v6198
    %v6219 = vsel %vm6201, %v6198, %v6200
    %6238 = vst [vmem:[#allocation3 + $0x120] sm:$0xf] %v6202
    %6239 = vst [vmem:[#allocation3 + $0x128] sm:$0xf] %v6203
    %6240 = vst [vmem:[#allocation3 + $0x130] sm:$0xf] %v6204
    %6241 = vst [vmem:[#allocation3 + $0x138] sm:$0xf] %v6205
    %6242 = vst [vmem:[#allocation3 + $0x140] sm:$0xf] %v6206
    %6243 = vst [vmem:[#allocation3 + $0x148] sm:$0xf] %v6207
    %6244 = vst [vmem:[#allocation3 + $0x150] sm:$0xf] %v6208
    %6245 = vst [vmem:[#allocation3 + $0x158] sm:$0xf] %v6209
    %6246 = vst [vmem:[#allocation3 + $0x160] sm:$0xf] %v6210
    %6247 = vst [vmem:[#allocation3 + $0x168] sm:$0xf] %v6211
    %6248 = vst [vmem:[#allocation3 + $0x170] sm:$0xf] %v6212
    %6249 = vst [vmem:[#allocation3 + $0x178] sm:$0xf] %v6213
    %6250 = vst [vmem:[#allocation3 + $0x180] sm:$0xf] %v6214
    %6251 = vst [vmem:[#allocation3 + $0x188] sm:$0xf] %v6215
    %6252 = vst [vmem:[#allocation3 + $0x190] sm:$0xf] %v6216
    %6253 = vst [vmem:[#allocation3 + $0x198] sm:$0xf] %v6217
    %6254 = vst [vmem:[#allocation3 + $0x1a0] sm:$0xf] %v6218
    %6255 = vst [vmem:[#allocation3 + $0x1a8] sm:$0xf] %v6219
    %6256 = vrot.lane.b32.xlu0 %v5867, 64
    %v6257 = vpop.permute.xlu0 %6256
    %6258 = vrot.lane.b32.xlu0 %v5868, 64
    %v6259 = vpop.permute.xlu0 %6258
    %6260 = vrot.lane.b32.xlu0 %v5869, 64
    %v6261 = vpop.permute.xlu0 %6260
    %6262 = vrot.lane.b32.xlu0 %v5870, 64
    %v6263 = vpop.permute.xlu0 %6262
    %6264 = vrot.lane.b32.xlu0 %v5871, 64
    %v6265 = vpop.permute.xlu0 %6264
    %6266 = vrot.lane.b32.xlu0 %v5872, 64
    %v6267 = vpop.permute.xlu0 %6266
    %6268 = vrot.lane.b32.xlu0 %v5873, 64
    %v6269 = vpop.permute.xlu0 %6268
    %6270 = vrot.lane.b32.xlu0 %v5874, 64
    %v6271 = vpop.permute.xlu0 %6270
    %6272 = vrot.lane.b32.xlu0 %v5875, 64
    %v6273 = vpop.permute.xlu0 %6272
    %6274 = vrot.lane.b32.xlu0 %v5876, 64
    %v6275 = vpop.permute.xlu0 %6274
    %6276 = vrot.lane.b32.xlu0 %v5877, 64
    %v6277 = vpop.permute.xlu0 %6276
    %6278 = vrot.lane.b32.xlu0 %v5878, 64
    %v6279 = vpop.permute.xlu0 %6278
    %6280 = vrot.lane.b32.xlu0 %v5879, 64
    %v6281 = vpop.permute.xlu0 %6280
    %6282 = vrot.lane.b32.xlu0 %v5880, 64
    %v6283 = vpop.permute.xlu0 %6282
    %6284 = vrot.lane.b32.xlu0 %v5881, 64
    %v6285 = vpop.permute.xlu0 %6284
    %6286 = vrot.lane.b32.xlu0 %v5882, 64
    %v6287 = vpop.permute.xlu0 %6286
    %6288 = vrot.lane.b32.xlu0 %v5883, 64
    %v6289 = vpop.permute.xlu0 %6288
    %6290 = vrot.lane.b32.xlu0 %v5884, 64
    %v6291 = vpop.permute.xlu0 %6290
    %6292 = vrot.lane.b32.xlu0 %v5885, 64
    %v6293 = vpop.permute.xlu0 %6292
    %v6294 = vsel %vm2050, %v6257, %v6259
    %v6295 = vsel %vm2050, %v6259, %v6261
    %v6296 = vsel %vm2050, %v6261, %v6263
    %v6297 = vsel %vm2050, %v6263, %v6265
    %v6298 = vsel %vm2050, %v6265, %v6267
    %v6299 = vsel %vm2050, %v6267, %v6269
    %v6300 = vsel %vm2050, %v6269, %v6271
    %v6301 = vsel %vm2050, %v6271, %v6273
    %v6302 = vsel %vm2050, %v6273, %v6275
    %v6303 = vsel %vm2050, %v6275, %v6277
    %v6304 = vsel %vm2050, %v6277, %v6279
    %v6305 = vsel %vm2050, %v6279, %v6281
    %v6306 = vsel %vm2050, %v6281, %v6283
    %v6307 = vsel %vm2050, %v6283, %v6285
    %v6308 = vsel %vm2050, %v6285, %v6287
    %v6309 = vsel %vm2050, %v6287, %v6289
    %v6310 = vsel %vm2050, %v6289, %v6291
    %v6311 = vsel %vm2050, %v6291, %v6293
    %6330 = vst [vmem:[#allocation3 + $0x120] sm:$0xf0] %v6294
    %6331 = vst [vmem:[#allocation3 + $0x128] sm:$0xf0] %v6295
    %6332 = vst [vmem:[#allocation3 + $0x130] sm:$0xf0] %v6296
    %6333 = vst [vmem:[#allocation3 + $0x138] sm:$0xf0] %v6297
    %6334 = vst [vmem:[#allocation3 + $0x140] sm:$0xf0] %v6298
    %6335 = vst [vmem:[#allocation3 + $0x148] sm:$0xf0] %v6299
    %6336 = vst [vmem:[#allocation3 + $0x150] sm:$0xf0] %v6300
    %6337 = vst [vmem:[#allocation3 + $0x158] sm:$0xf0] %v6301
    %6338 = vst [vmem:[#allocation3 + $0x160] sm:$0xf0] %v6302
    %6339 = vst [vmem:[#allocation3 + $0x168] sm:$0xf0] %v6303
    %6340 = vst [vmem:[#allocation3 + $0x170] sm:$0xf0] %v6304
    %6341 = vst [vmem:[#allocation3 + $0x178] sm:$0xf0] %v6305
    %6342 = vst [vmem:[#allocation3 + $0x180] sm:$0xf0] %v6306
    %6343 = vst [vmem:[#allocation3 + $0x188] sm:$0xf0] %v6307
    %6344 = vst [vmem:[#allocation3 + $0x190] sm:$0xf0] %v6308
    %6345 = vst [vmem:[#allocation3 + $0x198] sm:$0xf0] %v6309
    %6346 = vst [vmem:[#allocation3 + $0x1a0] sm:$0xf0] %v6310
    %6347 = vst [vmem:[#allocation3 + $0x1a8] sm:$0xf0] %v6311
    %6348 = vrot.lane.b32.xlu0 %v5809, 62
    %v6349 = vpop.permute.xlu0 %6348
    %6350 = vrot.lane.b32.xlu0 %v5810, 62
    %v6351 = vpop.permute.xlu0 %6350
    %6352 = vrot.lane.b32.xlu0 %v5811, 62
    %v6353 = vpop.permute.xlu0 %6352
    %6354 = vrot.lane.b32.xlu0 %v5812, 62
    %v6355 = vpop.permute.xlu0 %6354
    %6356 = vrot.lane.b32.xlu0 %v5813, 62
    %v6357 = vpop.permute.xlu0 %6356
    %6358 = vrot.lane.b32.xlu0 %v5814, 62
    %v6359 = vpop.permute.xlu0 %6358
    %6360 = vrot.lane.b32.xlu0 %v5815, 62
    %v6361 = vpop.permute.xlu0 %6360
    %6362 = vrot.lane.b32.xlu0 %v5816, 62
    %v6363 = vpop.permute.xlu0 %6362
    %6364 = vrot.lane.b32.xlu0 %v5817, 62
    %v6365 = vpop.permute.xlu0 %6364
    %6366 = vrot.lane.b32.xlu0 %v5818, 62
    %v6367 = vpop.permute.xlu0 %6366
    %6368 = vrot.lane.b32.xlu0 %v5819, 62
    %v6369 = vpop.permute.xlu0 %6368
    %6370 = vrot.lane.b32.xlu0 %v5820, 62
    %v6371 = vpop.permute.xlu0 %6370
    %6372 = vrot.lane.b32.xlu0 %v5821, 62
    %v6373 = vpop.permute.xlu0 %6372
    %6374 = vrot.lane.b32.xlu0 %v5822, 62
    %v6375 = vpop.permute.xlu0 %6374
    %6376 = vrot.lane.b32.xlu0 %v5823, 62
    %v6377 = vpop.permute.xlu0 %6376
    %6378 = vrot.lane.b32.xlu0 %v5824, 62
    %v6379 = vpop.permute.xlu0 %6378
    %6380 = vrot.lane.b32.xlu0 %v5825, 62
    %v6381 = vpop.permute.xlu0 %6380
    %6382 = vrot.lane.b32.xlu0 %v5826, 62
    %v6383 = vpop.permute.xlu0 %6382
    %6384 = vrot.lane.b32.xlu0 %v5827, 62
    %v6385 = vpop.permute.xlu0 %6384
    %v6386 = vsel %vm2446, %v6349, %v6351
    %v6387 = vsel %vm2446, %v6351, %v6353
    %v6388 = vsel %vm2446, %v6353, %v6355
    %v6389 = vsel %vm2446, %v6355, %v6357
    %v6390 = vsel %vm2446, %v6357, %v6359
    %v6391 = vsel %vm2446, %v6359, %v6361
    %v6392 = vsel %vm2446, %v6361, %v6363
    %v6393 = vsel %vm2446, %v6363, %v6365
    %v6394 = vsel %vm2446, %v6365, %v6367
    %v6395 = vsel %vm2446, %v6367, %v6369
    %v6396 = vsel %vm2446, %v6369, %v6371
    %v6397 = vsel %vm2446, %v6371, %v6373
    %v6398 = vsel %vm2446, %v6373, %v6375
    %v6399 = vsel %vm2446, %v6375, %v6377
    %v6400 = vsel %vm2446, %v6377, %v6379
    %v6401 = vsel %vm2446, %v6379, %v6381
    %v6402 = vsel %vm2446, %v6381, %v6383
    %v6403 = vsel %vm2446, %v6383, %v6385
    %6422 = vst [vmem:[#allocation3 + $0x1b0] sm:$0xf] %v6386
    %6423 = vst [vmem:[#allocation3 + $0x1b8] sm:$0xf] %v6387
    %6424 = vst [vmem:[#allocation3 + $0x1c0] sm:$0xf] %v6388
    %6425 = vst [vmem:[#allocation3 + $0x1c8] sm:$0xf] %v6389
    %6426 = vst [vmem:[#allocation3 + $0x1d0] sm:$0xf] %v6390
    %6427 = vst [vmem:[#allocation3 + $0x1d8] sm:$0xf] %v6391
    %6428 = vst [vmem:[#allocation3 + $0x1e0] sm:$0xf] %v6392
    %6429 = vst [vmem:[#allocation3 + $0x1e8] sm:$0xf] %v6393
    %6430 = vst [vmem:[#allocation3 + $0x1f0] sm:$0xf] %v6394
    %6431 = vst [vmem:[#allocation3 + $0x1f8] sm:$0xf] %v6395
    %6432 = vst [vmem:[#allocation3 + $0x200] sm:$0xf] %v6396
    %6433 = vst [vmem:[#allocation3 + $0x208] sm:$0xf] %v6397
    %6434 = vst [vmem:[#allocation3 + $0x210] sm:$0xf] %v6398
    %6435 = vst [vmem:[#allocation3 + $0x218] sm:$0xf] %v6399
    %6436 = vst [vmem:[#allocation3 + $0x220] sm:$0xf] %v6400
    %6437 = vst [vmem:[#allocation3 + $0x228] sm:$0xf] %v6401
    %6438 = vst [vmem:[#allocation3 + $0x230] sm:$0xf] %v6402
    %6439 = vst [vmem:[#allocation3 + $0x238] sm:$0xf] %v6403
    %6440 = vrot.lane.b32.xlu0 %v5867, 60
    %v6441 = vpop.permute.xlu0 %6440
    %6442 = vrot.lane.b32.xlu0 %v5868, 60
    %v6443 = vpop.permute.xlu0 %6442
    %6444 = vrot.lane.b32.xlu0 %v5869, 60
    %v6445 = vpop.permute.xlu0 %6444
    %6446 = vrot.lane.b32.xlu0 %v5870, 60
    %v6447 = vpop.permute.xlu0 %6446
    %6448 = vrot.lane.b32.xlu0 %v5871, 60
    %v6449 = vpop.permute.xlu0 %6448
    %6450 = vrot.lane.b32.xlu0 %v5872, 60
    %v6451 = vpop.permute.xlu0 %6450
    %6452 = vrot.lane.b32.xlu0 %v5873, 60
    %v6453 = vpop.permute.xlu0 %6452
    %6454 = vrot.lane.b32.xlu0 %v5874, 60
    %v6455 = vpop.permute.xlu0 %6454
    %6456 = vrot.lane.b32.xlu0 %v5875, 60
    %v6457 = vpop.permute.xlu0 %6456
    %6458 = vrot.lane.b32.xlu0 %v5876, 60
    %v6459 = vpop.permute.xlu0 %6458
    %6460 = vrot.lane.b32.xlu0 %v5877, 60
    %v6461 = vpop.permute.xlu0 %6460
    %6462 = vrot.lane.b32.xlu0 %v5878, 60
    %v6463 = vpop.permute.xlu0 %6462
    %6464 = vrot.lane.b32.xlu0 %v5879, 60
    %v6465 = vpop.permute.xlu0 %6464
    %6466 = vrot.lane.b32.xlu0 %v5880, 60
    %v6467 = vpop.permute.xlu0 %6466
    %6468 = vrot.lane.b32.xlu0 %v5881, 60
    %v6469 = vpop.permute.xlu0 %6468
    %6470 = vrot.lane.b32.xlu0 %v5882, 60
    %v6471 = vpop.permute.xlu0 %6470
    %6472 = vrot.lane.b32.xlu0 %v5883, 60
    %v6473 = vpop.permute.xlu0 %6472
    %6474 = vrot.lane.b32.xlu0 %v5884, 60
    %v6475 = vpop.permute.xlu0 %6474
    %6476 = vrot.lane.b32.xlu0 %v5885, 60
    %v6477 = vpop.permute.xlu0 %6476
    %v6478 = vsel %vm2864, %v6441, %v6443
    %v6479 = vsel %vm2864, %v6443, %v6445
    %v6480 = vsel %vm2864, %v6445, %v6447
    %v6481 = vsel %vm2864, %v6447, %v6449
    %v6482 = vsel %vm2864, %v6449, %v6451
    %v6483 = vsel %vm2864, %v6451, %v6453
    %v6484 = vsel %vm2864, %v6453, %v6455
    %v6485 = vsel %vm2864, %v6455, %v6457
    %v6486 = vsel %vm2864, %v6457, %v6459
    %v6487 = vsel %vm2864, %v6459, %v6461
    %v6488 = vsel %vm2864, %v6461, %v6463
    %v6489 = vsel %vm2864, %v6463, %v6465
    %v6490 = vsel %vm2864, %v6465, %v6467
    %v6491 = vsel %vm2864, %v6467, %v6469
    %v6492 = vsel %vm2864, %v6469, %v6471
    %v6493 = vsel %vm2864, %v6471, %v6473
    %v6494 = vsel %vm2864, %v6473, %v6475
    %v6495 = vsel %vm2864, %v6475, %v6477
    %6514 = vst [vmem:[#allocation3 + $0x1b0] sm:$0xf0] %v6478
    %6515 = vst [vmem:[#allocation3 + $0x1b8] sm:$0xf0] %v6479
    %6516 = vst [vmem:[#allocation3 + $0x1c0] sm:$0xf0] %v6480
    %6517 = vst [vmem:[#allocation3 + $0x1c8] sm:$0xf0] %v6481
    %6518 = vst [vmem:[#allocation3 + $0x1d0] sm:$0xf0] %v6482
    %6519 = vst [vmem:[#allocation3 + $0x1d8] sm:$0xf0] %v6483
    %6520 = vst [vmem:[#allocation3 + $0x1e0] sm:$0xf0] %v6484
    %6521 = vst [vmem:[#allocation3 + $0x1e8] sm:$0xf0] %v6485
    %6522 = vst [vmem:[#allocation3 + $0x1f0] sm:$0xf0] %v6486
    %6523 = vst [vmem:[#allocation3 + $0x1f8] sm:$0xf0] %v6487
    %6524 = vst [vmem:[#allocation3 + $0x200] sm:$0xf0] %v6488
    %6525 = vst [vmem:[#allocation3 + $0x208] sm:$0xf0] %v6489
    %6526 = vst [vmem:[#allocation3 + $0x210] sm:$0xf0] %v6490
    %6527 = vst [vmem:[#allocation3 + $0x218] sm:$0xf0] %v6491
    %6528 = vst [vmem:[#allocation3 + $0x220] sm:$0xf0] %v6492
    %6529 = vst [vmem:[#allocation3 + $0x228] sm:$0xf0] %v6493
    %6530 = vst [vmem:[#allocation3 + $0x230] sm:$0xf0] %v6494
    %6531 = vst [vmem:[#allocation3 + $0x238] sm:$0xf0] %v6495
    %6532 = vrot.lane.b32.xlu0 %v5809, 58
    %v6533 = vpop.permute.xlu0 %6532
    %6534 = vrot.lane.b32.xlu0 %v5810, 58
    %v6535 = vpop.permute.xlu0 %6534
    %6536 = vrot.lane.b32.xlu0 %v5811, 58
    %v6537 = vpop.permute.xlu0 %6536
    %6538 = vrot.lane.b32.xlu0 %v5812, 58
    %v6539 = vpop.permute.xlu0 %6538
    %6540 = vrot.lane.b32.xlu0 %v5813, 58
    %v6541 = vpop.permute.xlu0 %6540
    %6542 = vrot.lane.b32.xlu0 %v5814, 58
    %v6543 = vpop.permute.xlu0 %6542
    %6544 = vrot.lane.b32.xlu0 %v5815, 58
    %v6545 = vpop.permute.xlu0 %6544
    %6546 = vrot.lane.b32.xlu0 %v5816, 58
    %v6547 = vpop.permute.xlu0 %6546
    %6548 = vrot.lane.b32.xlu0 %v5817, 58
    %v6549 = vpop.permute.xlu0 %6548
    %6550 = vrot.lane.b32.xlu0 %v5818, 58
    %v6551 = vpop.permute.xlu0 %6550
    %6552 = vrot.lane.b32.xlu0 %v5819, 58
    %v6553 = vpop.permute.xlu0 %6552
    %6554 = vrot.lane.b32.xlu0 %v5820, 58
    %v6555 = vpop.permute.xlu0 %6554
    %6556 = vrot.lane.b32.xlu0 %v5821, 58
    %v6557 = vpop.permute.xlu0 %6556
    %6558 = vrot.lane.b32.xlu0 %v5822, 58
    %v6559 = vpop.permute.xlu0 %6558
    %6560 = vrot.lane.b32.xlu0 %v5823, 58
    %v6561 = vpop.permute.xlu0 %6560
    %6562 = vrot.lane.b32.xlu0 %v5824, 58
    %v6563 = vpop.permute.xlu0 %6562
    %6564 = vrot.lane.b32.xlu0 %v5825, 58
    %v6565 = vpop.permute.xlu0 %6564
    %6566 = vrot.lane.b32.xlu0 %v5826, 58
    %v6567 = vpop.permute.xlu0 %6566
    %6568 = vrot.lane.b32.xlu0 %v5827, 58
    %v6569 = vpop.permute.xlu0 %6568
    %vm6570 = vcmask 474112
    %v6571 = vsel %vm6570, %v6533, %v6535
    %v6572 = vsel %vm6570, %v6535, %v6537
    %v6573 = vsel %vm6570, %v6537, %v6539
    %v6574 = vsel %vm6570, %v6539, %v6541
    %v6575 = vsel %vm6570, %v6541, %v6543
    %v6576 = vsel %vm6570, %v6543, %v6545
    %v6577 = vsel %vm6570, %v6545, %v6547
    %v6578 = vsel %vm6570, %v6547, %v6549
    %v6579 = vsel %vm6570, %v6549, %v6551
    %v6580 = vsel %vm6570, %v6551, %v6553
    %v6581 = vsel %vm6570, %v6553, %v6555
    %v6582 = vsel %vm6570, %v6555, %v6557
    %v6583 = vsel %vm6570, %v6557, %v6559
    %v6584 = vsel %vm6570, %v6559, %v6561
    %v6585 = vsel %vm6570, %v6561, %v6563
    %v6586 = vsel %vm6570, %v6563, %v6565
    %v6587 = vsel %vm6570, %v6565, %v6567
    %v6588 = vsel %vm6570, %v6567, %v6569
    %6607 = vst [vmem:[#allocation3 + $0x240] sm:$0xf] %v6571
    %6608 = vst [vmem:[#allocation3 + $0x248] sm:$0xf] %v6572
    %6609 = vst [vmem:[#allocation3 + $0x250] sm:$0xf] %v6573
    %6610 = vst [vmem:[#allocation3 + $0x258] sm:$0xf] %v6574
    %6611 = vst [vmem:[#allocation3 + $0x260] sm:$0xf] %v6575
    %6612 = vst [vmem:[#allocation3 + $0x268] sm:$0xf] %v6576
    %6613 = vst [vmem:[#allocation3 + $0x270] sm:$0xf] %v6577
    %6614 = vst [vmem:[#allocation3 + $0x278] sm:$0xf] %v6578
    %6615 = vst [vmem:[#allocation3 + $0x280] sm:$0xf] %v6579
    %6616 = vst [vmem:[#allocation3 + $0x288] sm:$0xf] %v6580
    %6617 = vst [vmem:[#allocation3 + $0x290] sm:$0xf] %v6581
    %6618 = vst [vmem:[#allocation3 + $0x298] sm:$0xf] %v6582
    %6619 = vst [vmem:[#allocation3 + $0x2a0] sm:$0xf] %v6583
    %6620 = vst [vmem:[#allocation3 + $0x2a8] sm:$0xf] %v6584
    %6621 = vst [vmem:[#allocation3 + $0x2b0] sm:$0xf] %v6585
    %6622 = vst [vmem:[#allocation3 + $0x2b8] sm:$0xf] %v6586
    %6623 = vst [vmem:[#allocation3 + $0x2c0] sm:$0xf] %v6587
    %6624 = vst [vmem:[#allocation3 + $0x2c8] sm:$0xf] %v6588
    %6625 = vrot.lane.b32.xlu0 %v5867, 56
    %v6626 = vpop.permute.xlu0 %6625
    %6627 = vrot.lane.b32.xlu0 %v5868, 56
    %v6628 = vpop.permute.xlu0 %6627
    %6629 = vrot.lane.b32.xlu0 %v5869, 56
    %v6630 = vpop.permute.xlu0 %6629
    %6631 = vrot.lane.b32.xlu0 %v5870, 56
    %v6632 = vpop.permute.xlu0 %6631
    %6633 = vrot.lane.b32.xlu0 %v5871, 56
    %v6634 = vpop.permute.xlu0 %6633
    %6635 = vrot.lane.b32.xlu0 %v5872, 56
    %v6636 = vpop.permute.xlu0 %6635
    %6637 = vrot.lane.b32.xlu0 %v5873, 56
    %v6638 = vpop.permute.xlu0 %6637
    %6639 = vrot.lane.b32.xlu0 %v5874, 56
    %v6640 = vpop.permute.xlu0 %6639
    %6641 = vrot.lane.b32.xlu0 %v5875, 56
    %v6642 = vpop.permute.xlu0 %6641
    %6643 = vrot.lane.b32.xlu0 %v5876, 56
    %v6644 = vpop.permute.xlu0 %6643
    %6645 = vrot.lane.b32.xlu0 %v5877, 56
    %v6646 = vpop.permute.xlu0 %6645
    %6647 = vrot.lane.b32.xlu0 %v5878, 56
    %v6648 = vpop.permute.xlu0 %6647
    %6649 = vrot.lane.b32.xlu0 %v5879, 56
    %v6650 = vpop.permute.xlu0 %6649
    %6651 = vrot.lane.b32.xlu0 %v5880, 56
    %v6652 = vpop.permute.xlu0 %6651
    %6653 = vrot.lane.b32.xlu0 %v5881, 56
    %v6654 = vpop.permute.xlu0 %6653
    %6655 = vrot.lane.b32.xlu0 %v5882, 56
    %v6656 = vpop.permute.xlu0 %6655
    %6657 = vrot.lane.b32.xlu0 %v5883, 56
    %v6658 = vpop.permute.xlu0 %6657
    %6659 = vrot.lane.b32.xlu0 %v5884, 56
    %v6660 = vpop.permute.xlu0 %6659
    %6661 = vrot.lane.b32.xlu0 %v5885, 56
    %v6662 = vpop.permute.xlu0 %6661
    %vm6663 = vcmask 457728
    %v6664 = vsel %vm6663, %v6626, %v6628
    %v6665 = vsel %vm6663, %v6628, %v6630
    %v6666 = vsel %vm6663, %v6630, %v6632
    %v6667 = vsel %vm6663, %v6632, %v6634
    %v6668 = vsel %vm6663, %v6634, %v6636
    %v6669 = vsel %vm6663, %v6636, %v6638
    %v6670 = vsel %vm6663, %v6638, %v6640
    %v6671 = vsel %vm6663, %v6640, %v6642
    %v6672 = vsel %vm6663, %v6642, %v6644
    %v6673 = vsel %vm6663, %v6644, %v6646
    %v6674 = vsel %vm6663, %v6646, %v6648
    %v6675 = vsel %vm6663, %v6648, %v6650
    %v6676 = vsel %vm6663, %v6650, %v6652
    %v6677 = vsel %vm6663, %v6652, %v6654
    %v6678 = vsel %vm6663, %v6654, %v6656
    %v6679 = vsel %vm6663, %v6656, %v6658
    %v6680 = vsel %vm6663, %v6658, %v6660
    %v6681 = vsel %vm6663, %v6660, %v6662
    %6700 = vst [vmem:[#allocation3 + $0x240] sm:$0xf0] %v6664
    %6701 = vst [vmem:[#allocation3 + $0x248] sm:$0xf0] %v6665
    %6702 = vst [vmem:[#allocation3 + $0x250] sm:$0xf0] %v6666
    %6703 = vst [vmem:[#allocation3 + $0x258] sm:$0xf0] %v6667
    %6704 = vst [vmem:[#allocation3 + $0x260] sm:$0xf0] %v6668
    %6705 = vst [vmem:[#allocation3 + $0x268] sm:$0xf0] %v6669
    %6706 = vst [vmem:[#allocation3 + $0x270] sm:$0xf0] %v6670
    %6707 = vst [vmem:[#allocation3 + $0x278] sm:$0xf0] %v6671
    %6708 = vst [vmem:[#allocation3 + $0x280] sm:$0xf0] %v6672
    %6709 = vst [vmem:[#allocation3 + $0x288] sm:$0xf0] %v6673
    %6710 = vst [vmem:[#allocation3 + $0x290] sm:$0xf0] %v6674
    %6711 = vst [vmem:[#allocation3 + $0x298] sm:$0xf0] %v6675
    %6712 = vst [vmem:[#allocation3 + $0x2a0] sm:$0xf0] %v6676
    %6713 = vst [vmem:[#allocation3 + $0x2a8] sm:$0xf0] %v6677
    %6714 = vst [vmem:[#allocation3 + $0x2b0] sm:$0xf0] %v6678
    %6715 = vst [vmem:[#allocation3 + $0x2b8] sm:$0xf0] %v6679
    %6716 = vst [vmem:[#allocation3 + $0x2c0] sm:$0xf0] %v6680
    %6717 = vst [vmem:[#allocation3 + $0x2c8] sm:$0xf0] %v6681
    %6718 = vst [vmem:[#allocation3 + $0x2d0] sm:$0xf] %v5810
    %6719 = vst [vmem:[#allocation3 + $0x2d8] sm:$0xf] %v5811
    %6720 = vst [vmem:[#allocation3 + $0x2e0] sm:$0xf] %v5812
    %6721 = vst [vmem:[#allocation3 + $0x2e8] sm:$0xf] %v5813
    %6722 = vst [vmem:[#allocation3 + $0x2f0] sm:$0xf] %v5814
    %6723 = vst [vmem:[#allocation3 + $0x2f8] sm:$0xf] %v5815
    %6724 = vst [vmem:[#allocation3 + $0x300] sm:$0xf] %v5816
    %6725 = vst [vmem:[#allocation3 + $0x308] sm:$0xf] %v5817
    %6726 = vst [vmem:[#allocation3 + $0x310] sm:$0xf] %v5818
    %6727 = vst [vmem:[#allocation3 + $0x318] sm:$0xf] %v5819
    %6728 = vst [vmem:[#allocation3 + $0x320] sm:$0xf] %v5820
    %6729 = vst [vmem:[#allocation3 + $0x328] sm:$0xf] %v5821
    %6730 = vst [vmem:[#allocation3 + $0x330] sm:$0xf] %v5822
    %6731 = vst [vmem:[#allocation3 + $0x338] sm:$0xf] %v5823
    %6732 = vst [vmem:[#allocation3 + $0x340] sm:$0xf] %v5824
    %6733 = vst [vmem:[#allocation3 + $0x348] sm:$0xf] %v5825
    %6734 = vst [vmem:[#allocation3 + $0x350] sm:$0xf] %v5826
    %6735 = vst [vmem:[#allocation3 + $0x358] sm:$0xf] %v5827
    %v6737 = vrot.slane %v5828, 4
    %6738 = vrot.lane.b32.xlu0 %v6737, 126
    %v6739 = vpop.permute.xlu0 %6738
    %v6740 = vsel %vm467, %v5923, %v6739
    %6742 = vst [vmem:[#allocation3 + $0x2d0] sm:$0xf0] %v5925
    %6743 = vst [vmem:[#allocation3 + $0x2d8] sm:$0xf0] %v5926
    %6744 = vst [vmem:[#allocation3 + $0x2e0] sm:$0xf0] %v5927
    %6745 = vst [vmem:[#allocation3 + $0x2e8] sm:$0xf0] %v5928
    %6746 = vst [vmem:[#allocation3 + $0x2f0] sm:$0xf0] %v5929
    %6747 = vst [vmem:[#allocation3 + $0x2f8] sm:$0xf0] %v5930
    %6748 = vst [vmem:[#allocation3 + $0x300] sm:$0xf0] %v5931
    %6749 = vst [vmem:[#allocation3 + $0x308] sm:$0xf0] %v5932
    %6750 = vst [vmem:[#allocation3 + $0x310] sm:$0xf0] %v5933
    %6751 = vst [vmem:[#allocation3 + $0x318] sm:$0xf0] %v5934
    %6752 = vst [vmem:[#allocation3 + $0x320] sm:$0xf0] %v5935
    %6753 = vst [vmem:[#allocation3 + $0x328] sm:$0xf0] %v5936
    %6754 = vst [vmem:[#allocation3 + $0x330] sm:$0xf0] %v5937
    %6755 = vst [vmem:[#allocation3 + $0x338] sm:$0xf0] %v5938
    %6756 = vst [vmem:[#allocation3 + $0x340] sm:$0xf0] %v5939
    %6757 = vst [vmem:[#allocation3 + $0x348] sm:$0xf0] %v5940
    %6758 = vst [vmem:[#allocation3 + $0x350] sm:$0xf0] %v5941
    %6759 = vst [vmem:[#allocation3 + $0x358] sm:$0xf0] %v6740
    %6760 = vrot.lane.b32.xlu0 %v5828, 124
    %v6761 = vpop.permute.xlu0 %6760
    %v6762 = vsel %vm863, %v6015, %v6761
    %6764 = vst [vmem:[#allocation3 + $0x360] sm:$0xf] %v6017
    %6765 = vst [vmem:[#allocation3 + $0x368] sm:$0xf] %v6018
    %6766 = vst [vmem:[#allocation3 + $0x370] sm:$0xf] %v6019
    %6767 = vst [vmem:[#allocation3 + $0x378] sm:$0xf] %v6020
    %6768 = vst [vmem:[#allocation3 + $0x380] sm:$0xf] %v6021
    %6769 = vst [vmem:[#allocation3 + $0x388] sm:$0xf] %v6022
    %6770 = vst [vmem:[#allocation3 + $0x390] sm:$0xf] %v6023
    %6771 = vst [vmem:[#allocation3 + $0x398] sm:$0xf] %v6024
    %6772 = vst [vmem:[#allocation3 + $0x3a0] sm:$0xf] %v6025
    %6773 = vst [vmem:[#allocation3 + $0x3a8] sm:$0xf] %v6026
    %6774 = vst [vmem:[#allocation3 + $0x3b0] sm:$0xf] %v6027
    %6775 = vst [vmem:[#allocation3 + $0x3b8] sm:$0xf] %v6028
    %6776 = vst [vmem:[#allocation3 + $0x3c0] sm:$0xf] %v6029
    %6777 = vst [vmem:[#allocation3 + $0x3c8] sm:$0xf] %v6030
    %6778 = vst [vmem:[#allocation3 + $0x3d0] sm:$0xf] %v6031
    %6779 = vst [vmem:[#allocation3 + $0x3d8] sm:$0xf] %v6032
    %6780 = vst [vmem:[#allocation3 + $0x3e0] sm:$0xf] %v6033
    %6781 = vst [vmem:[#allocation3 + $0x3e8] sm:$0xf] %v6762
    %6782 = vrot.lane.b32.xlu0 %v6737, 122
    %v6783 = vpop.permute.xlu0 %6782
    %v6784 = vsel %vm6108, %v6107, %v6783
    %6786 = vst [vmem:[#allocation3 + $0x360] sm:$0xf0] %v6110
    %6787 = vst [vmem:[#allocation3 + $0x368] sm:$0xf0] %v6111
    %6788 = vst [vmem:[#allocation3 + $0x370] sm:$0xf0] %v6112
    %6789 = vst [vmem:[#allocation3 + $0x378] sm:$0xf0] %v6113
    %6790 = vst [vmem:[#allocation3 + $0x380] sm:$0xf0] %v6114
    %6791 = vst [vmem:[#allocation3 + $0x388] sm:$0xf0] %v6115
    %6792 = vst [vmem:[#allocation3 + $0x390] sm:$0xf0] %v6116
    %6793 = vst [vmem:[#allocation3 + $0x398] sm:$0xf0] %v6117
    %6794 = vst [vmem:[#allocation3 + $0x3a0] sm:$0xf0] %v6118
    %6795 = vst [vmem:[#allocation3 + $0x3a8] sm:$0xf0] %v6119
    %6796 = vst [vmem:[#allocation3 + $0x3b0] sm:$0xf0] %v6120
    %6797 = vst [vmem:[#allocation3 + $0x3b8] sm:$0xf0] %v6121
    %6798 = vst [vmem:[#allocation3 + $0x3c0] sm:$0xf0] %v6122
    %6799 = vst [vmem:[#allocation3 + $0x3c8] sm:$0xf0] %v6123
    %6800 = vst [vmem:[#allocation3 + $0x3d0] sm:$0xf0] %v6124
    %6801 = vst [vmem:[#allocation3 + $0x3d8] sm:$0xf0] %v6125
    %6802 = vst [vmem:[#allocation3 + $0x3e0] sm:$0xf0] %v6126
    %6803 = vst [vmem:[#allocation3 + $0x3e8] sm:$0xf0] %v6784
    %6804 = vrot.lane.b32.xlu0 %v5828, 120
    %v6805 = vpop.permute.xlu0 %6804
    %v6806 = vsel %vm6201, %v6200, %v6805
    %6808 = vst [vmem:[#allocation3 + $0x3f0] sm:$0xf] %v6203
    %6809 = vst [vmem:[#allocation3 + $0x3f8] sm:$0xf] %v6204
    %6810 = vst [vmem:[#allocation3 + $0x400] sm:$0xf] %v6205
    %6811 = vst [vmem:[#allocation3 + $0x408] sm:$0xf] %v6206
    %6812 = vst [vmem:[#allocation3 + $0x410] sm:$0xf] %v6207
    %6813 = vst [vmem:[#allocation3 + $0x418] sm:$0xf] %v6208
    %6814 = vst [vmem:[#allocation3 + $0x420] sm:$0xf] %v6209
    %6815 = vst [vmem:[#allocation3 + $0x428] sm:$0xf] %v6210
    %6816 = vst [vmem:[#allocation3 + $0x430] sm:$0xf] %v6211
    %6817 = vst [vmem:[#allocation3 + $0x438] sm:$0xf] %v6212
    %6818 = vst [vmem:[#allocation3 + $0x440] sm:$0xf] %v6213
    %6819 = vst [vmem:[#allocation3 + $0x448] sm:$0xf] %v6214
    %6820 = vst [vmem:[#allocation3 + $0x450] sm:$0xf] %v6215
    %6821 = vst [vmem:[#allocation3 + $0x458] sm:$0xf] %v6216
    %6822 = vst [vmem:[#allocation3 + $0x460] sm:$0xf] %v6217
    %6823 = vst [vmem:[#allocation3 + $0x468] sm:$0xf] %v6218
    %6824 = vst [vmem:[#allocation3 + $0x470] sm:$0xf] %v6219
    %6825 = vst [vmem:[#allocation3 + $0x478] sm:$0xf] %v6806
    %6826 = vrot.lane.b32.xlu0 %v6737, 64
    %v6827 = vpop.permute.xlu0 %6826
    %v6828 = vsel %vm2050, %v6293, %v6827
    %6830 = vst [vmem:[#allocation3 + $0x3f0] sm:$0xf0] %v6295
    %6831 = vst [vmem:[#allocation3 + $0x3f8] sm:$0xf0] %v6296
    %6832 = vst [vmem:[#allocation3 + $0x400] sm:$0xf0] %v6297
    %6833 = vst [vmem:[#allocation3 + $0x408] sm:$0xf0] %v6298
    %6834 = vst [vmem:[#allocation3 + $0x410] sm:$0xf0] %v6299
    %6835 = vst [vmem:[#allocation3 + $0x418] sm:$0xf0] %v6300
    %6836 = vst [vmem:[#allocation3 + $0x420] sm:$0xf0] %v6301
    %6837 = vst [vmem:[#allocation3 + $0x428] sm:$0xf0] %v6302
    %6838 = vst [vmem:[#allocation3 + $0x430] sm:$0xf0] %v6303
    %6839 = vst [vmem:[#allocation3 + $0x438] sm:$0xf0] %v6304
    %6840 = vst [vmem:[#allocation3 + $0x440] sm:$0xf0] %v6305
    %6841 = vst [vmem:[#allocation3 + $0x448] sm:$0xf0] %v6306
    %6842 = vst [vmem:[#allocation3 + $0x450] sm:$0xf0] %v6307
    %6843 = vst [vmem:[#allocation3 + $0x458] sm:$0xf0] %v6308
    %6844 = vst [vmem:[#allocation3 + $0x460] sm:$0xf0] %v6309
    %6845 = vst [vmem:[#allocation3 + $0x468] sm:$0xf0] %v6310
    %6846 = vst [vmem:[#allocation3 + $0x470] sm:$0xf0] %v6311
    %6847 = vst [vmem:[#allocation3 + $0x478] sm:$0xf0] %v6828
    %6848 = vrot.lane.b32.xlu0 %v5828, 62
    %v6849 = vpop.permute.xlu0 %6848
    %v6850 = vsel %vm2446, %v6385, %v6849
    %6852 = vst [vmem:[#allocation3 + $0x480] sm:$0xf] %v6387
    %6853 = vst [vmem:[#allocation3 + $0x488] sm:$0xf] %v6388
    %6854 = vst [vmem:[#allocation3 + $0x490] sm:$0xf] %v6389
    %6855 = vst [vmem:[#allocation3 + $0x498] sm:$0xf] %v6390
    %6856 = vst [vmem:[#allocation3 + $0x4a0] sm:$0xf] %v6391
    %6857 = vst [vmem:[#allocation3 + $0x4a8] sm:$0xf] %v6392
    %6858 = vst [vmem:[#allocation3 + $0x4b0] sm:$0xf] %v6393
    %6859 = vst [vmem:[#allocation3 + $0x4b8] sm:$0xf] %v6394
    %6860 = vst [vmem:[#allocation3 + $0x4c0] sm:$0xf] %v6395
    %6861 = vst [vmem:[#allocation3 + $0x4c8] sm:$0xf] %v6396
    %6862 = vst [vmem:[#allocation3 + $0x4d0] sm:$0xf] %v6397
    %6863 = vst [vmem:[#allocation3 + $0x4d8] sm:$0xf] %v6398
    %6864 = vst [vmem:[#allocation3 + $0x4e0] sm:$0xf] %v6399
    %6865 = vst [vmem:[#allocation3 + $0x4e8] sm:$0xf] %v6400
    %6866 = vst [vmem:[#allocation3 + $0x4f0] sm:$0xf] %v6401
    %6867 = vst [vmem:[#allocation3 + $0x4f8] sm:$0xf] %v6402
    %6868 = vst [vmem:[#allocation3 + $0x500] sm:$0xf] %v6403
    %6869 = vst [vmem:[#allocation3 + $0x508] sm:$0xf] %v6850
    %6870 = vrot.lane.b32.xlu0 %v6737, 60
    %v6871 = vpop.permute.xlu0 %6870
    %v6872 = vsel %vm2864, %v6477, %v6871
    %6874 = vst [vmem:[#allocation3 + $0x480] sm:$0xf0] %v6479
    %6875 = vst [vmem:[#allocation3 + $0x488] sm:$0xf0] %v6480
    %6876 = vst [vmem:[#allocation3 + $0x490] sm:$0xf0] %v6481
    %6877 = vst [vmem:[#allocation3 + $0x498] sm:$0xf0] %v6482
    %6878 = vst [vmem:[#allocation3 + $0x4a0] sm:$0xf0] %v6483
    %6879 = vst [vmem:[#allocation3 + $0x4a8] sm:$0xf0] %v6484
    %6880 = vst [vmem:[#allocation3 + $0x4b0] sm:$0xf0] %v6485
    %6881 = vst [vmem:[#allocation3 + $0x4b8] sm:$0xf0] %v6486
    %6882 = vst [vmem:[#allocation3 + $0x4c0] sm:$0xf0] %v6487
    %6883 = vst [vmem:[#allocation3 + $0x4c8] sm:$0xf0] %v6488
    %6884 = vst [vmem:[#allocation3 + $0x4d0] sm:$0xf0] %v6489
    %6885 = vst [vmem:[#allocation3 + $0x4d8] sm:$0xf0] %v6490
    %6886 = vst [vmem:[#allocation3 + $0x4e0] sm:$0xf0] %v6491
    %6887 = vst [vmem:[#allocation3 + $0x4e8] sm:$0xf0] %v6492
    %6888 = vst [vmem:[#allocation3 + $0x4f0] sm:$0xf0] %v6493
    %6889 = vst [vmem:[#allocation3 + $0x4f8] sm:$0xf0] %v6494
    %6890 = vst [vmem:[#allocation3 + $0x500] sm:$0xf0] %v6495
    %6891 = vst [vmem:[#allocation3 + $0x508] sm:$0xf0] %v6872
    %6892 = vrot.lane.b32.xlu0 %v5828, 58
    %v6893 = vpop.permute.xlu0 %6892
    %v6894 = vsel %vm6570, %v6569, %v6893
    %6896 = vst [vmem:[#allocation3 + $0x510] sm:$0xf] %v6572
    %6897 = vst [vmem:[#allocation3 + $0x518] sm:$0xf] %v6573
    %6898 = vst [vmem:[#allocation3 + $0x520] sm:$0xf] %v6574
    %6899 = vst [vmem:[#allocation3 + $0x528] sm:$0xf] %v6575
    %6900 = vst [vmem:[#allocation3 + $0x530] sm:$0xf] %v6576
    %6901 = vst [vmem:[#allocation3 + $0x538] sm:$0xf] %v6577
    %6902 = vst [vmem:[#allocation3 + $0x540] sm:$0xf] %v6578
    %6903 = vst [vmem:[#allocation3 + $0x548] sm:$0xf] %v6579
    %6904 = vst [vmem:[#allocation3 + $0x550] sm:$0xf] %v6580
    %6905 = vst [vmem:[#allocation3 + $0x558] sm:$0xf] %v6581
    %6906 = vst [vmem:[#allocation3 + $0x560] sm:$0xf] %v6582
    %6907 = vst [vmem:[#allocation3 + $0x568] sm:$0xf] %v6583
    %6908 = vst [vmem:[#allocation3 + $0x570] sm:$0xf] %v6584
    %6909 = vst [vmem:[#allocation3 + $0x578] sm:$0xf] %v6585
    %6910 = vst [vmem:[#allocation3 + $0x580] sm:$0xf] %v6586
    %6911 = vst [vmem:[#allocation3 + $0x588] sm:$0xf] %v6587
    %6912 = vst [vmem:[#allocation3 + $0x590] sm:$0xf] %v6588
    %6913 = vst [vmem:[#allocation3 + $0x598] sm:$0xf] %v6894
    %6914 = vrot.lane.b32.xlu0 %v6737, 56
    %v6915 = vpop.permute.xlu0 %6914
    %v6916 = vsel %vm6663, %v6662, %v6915
    %6918 = vst [vmem:[#allocation3 + $0x510] sm:$0xf0] %v6665
    %6919 = vst [vmem:[#allocation3 + $0x518] sm:$0xf0] %v6666
    %6920 = vst [vmem:[#allocation3 + $0x520] sm:$0xf0] %v6667
    %6921 = vst [vmem:[#allocation3 + $0x528] sm:$0xf0] %v6668
    %6922 = vst [vmem:[#allocation3 + $0x530] sm:$0xf0] %v6669
    %6923 = vst [vmem:[#allocation3 + $0x538] sm:$0xf0] %v6670
    %6924 = vst [vmem:[#allocation3 + $0x540] sm:$0xf0] %v6671
    %6925 = vst [vmem:[#allocation3 + $0x548] sm:$0xf0] %v6672
    %6926 = vst [vmem:[#allocation3 + $0x550] sm:$0xf0] %v6673
    %6927 = vst [vmem:[#allocation3 + $0x558] sm:$0xf0] %v6674
    %6928 = vst [vmem:[#allocation3 + $0x560] sm:$0xf0] %v6675
    %6929 = vst [vmem:[#allocation3 + $0x568] sm:$0xf0] %v6676
    %6930 = vst [vmem:[#allocation3 + $0x570] sm:$0xf0] %v6677
    %6931 = vst [vmem:[#allocation3 + $0x578] sm:$0xf0] %v6678
    %6932 = vst [vmem:[#allocation3 + $0x580] sm:$0xf0] %v6679
    %6933 = vst [vmem:[#allocation3 + $0x588] sm:$0xf0] %v6680
    %6934 = vst [vmem:[#allocation3 + $0x590] sm:$0xf0] %v6681
    %6935 = vst [vmem:[#allocation3 + $0x598] sm:$0xf0] %v6916
    %6936 = vst [vmem:[#allocation3 + $0x5a0] sm:$0xf] %v5811
    %6937 = vst [vmem:[#allocation3 + $0x5a8] sm:$0xf] %v5812
    %6938 = vst [vmem:[#allocation3 + $0x5b0] sm:$0xf] %v5813
    %6939 = vst [vmem:[#allocation3 + $0x5b8] sm:$0xf] %v5814
    %6940 = vst [vmem:[#allocation3 + $0x5c0] sm:$0xf] %v5815
    %6941 = vst [vmem:[#allocation3 + $0x5c8] sm:$0xf] %v5816
    %6942 = vst [vmem:[#allocation3 + $0x5d0] sm:$0xf] %v5817
    %6943 = vst [vmem:[#allocation3 + $0x5d8] sm:$0xf] %v5818
    %6944 = vst [vmem:[#allocation3 + $0x5e0] sm:$0xf] %v5819
    %6945 = vst [vmem:[#allocation3 + $0x5e8] sm:$0xf] %v5820
    %6946 = vst [vmem:[#allocation3 + $0x5f0] sm:$0xf] %v5821
    %6947 = vst [vmem:[#allocation3 + $0x5f8] sm:$0xf] %v5822
    %6948 = vst [vmem:[#allocation3 + $0x600] sm:$0xf] %v5823
    %6949 = vst [vmem:[#allocation3 + $0x608] sm:$0xf] %v5824
    %6950 = vst [vmem:[#allocation3 + $0x610] sm:$0xf] %v5825
    %6951 = vst [vmem:[#allocation3 + $0x618] sm:$0xf] %v5826
    %6952 = vst [vmem:[#allocation3 + $0x620] sm:$0xf] %v5827
    %6953 = vst [vmem:[#allocation3 + $0x628] sm:$0xf] %v5828
    %v6955 = vrot.slane %v5829, 4
    %6956 = vrot.lane.b32.xlu0 %v6955, 126
    %v6957 = vpop.permute.xlu0 %6956
    %v6958 = vsel %vm467, %v6739, %v6957
    %6960 = vst [vmem:[#allocation3 + $0x5a0] sm:$0xf0] %v5926
    %6961 = vst [vmem:[#allocation3 + $0x5a8] sm:$0xf0] %v5927
    %6962 = vst [vmem:[#allocation3 + $0x5b0] sm:$0xf0] %v5928
    %6963 = vst [vmem:[#allocation3 + $0x5b8] sm:$0xf0] %v5929
    %6964 = vst [vmem:[#allocation3 + $0x5c0] sm:$0xf0] %v5930
    %6965 = vst [vmem:[#allocation3 + $0x5c8] sm:$0xf0] %v5931
    %6966 = vst [vmem:[#allocation3 + $0x5d0] sm:$0xf0] %v5932
    %6967 = vst [vmem:[#allocation3 + $0x5d8] sm:$0xf0] %v5933
    %6968 = vst [vmem:[#allocation3 + $0x5e0] sm:$0xf0] %v5934
    %6969 = vst [vmem:[#allocation3 + $0x5e8] sm:$0xf0] %v5935
    %6970 = vst [vmem:[#allocation3 + $0x5f0] sm:$0xf0] %v5936
    %6971 = vst [vmem:[#allocation3 + $0x5f8] sm:$0xf0] %v5937
    %6972 = vst [vmem:[#allocation3 + $0x600] sm:$0xf0] %v5938
    %6973 = vst [vmem:[#allocation3 + $0x608] sm:$0xf0] %v5939
    %6974 = vst [vmem:[#allocation3 + $0x610] sm:$0xf0] %v5940
    %6975 = vst [vmem:[#allocation3 + $0x618] sm:$0xf0] %v5941
    %6976 = vst [vmem:[#allocation3 + $0x620] sm:$0xf0] %v6740
    %6977 = vst [vmem:[#allocation3 + $0x628] sm:$0xf0] %v6958
    %6978 = vrot.lane.b32.xlu0 %v5829, 124
    %v6979 = vpop.permute.xlu0 %6978
    %v6980 = vsel %vm863, %v6761, %v6979
    %6982 = vst [vmem:[#allocation3 + $0x630] sm:$0xf] %v6018
    %6983 = vst [vmem:[#allocation3 + $0x638] sm:$0xf] %v6019
    %6984 = vst [vmem:[#allocation3 + $0x640] sm:$0xf] %v6020
    %6985 = vst [vmem:[#allocation3 + $0x648] sm:$0xf] %v6021
    %6986 = vst [vmem:[#allocation3 + $0x650] sm:$0xf] %v6022
    %6987 = vst [vmem:[#allocation3 + $0x658] sm:$0xf] %v6023
    %6988 = vst [vmem:[#allocation3 + $0x660] sm:$0xf] %v6024
    %6989 = vst [vmem:[#allocation3 + $0x668] sm:$0xf] %v6025
    %6990 = vst [vmem:[#allocation3 + $0x670] sm:$0xf] %v6026
    %6991 = vst [vmem:[#allocation3 + $0x678] sm:$0xf] %v6027
    %6992 = vst [vmem:[#allocation3 + $0x680] sm:$0xf] %v6028
    %6993 = vst [vmem:[#allocation3 + $0x688] sm:$0xf] %v6029
    %6994 = vst [vmem:[#allocation3 + $0x690] sm:$0xf] %v6030
    %6995 = vst [vmem:[#allocation3 + $0x698] sm:$0xf] %v6031
    %6996 = vst [vmem:[#allocation3 + $0x6a0] sm:$0xf] %v6032
    %6997 = vst [vmem:[#allocation3 + $0x6a8] sm:$0xf] %v6033
    %6998 = vst [vmem:[#allocation3 + $0x6b0] sm:$0xf] %v6762
    %6999 = vst [vmem:[#allocation3 + $0x6b8] sm:$0xf] %v6980
    %7000 = vrot.lane.b32.xlu0 %v6955, 122
    %v7001 = vpop.permute.xlu0 %7000
    %v7002 = vsel %vm6108, %v6783, %v7001
    %7004 = vst [vmem:[#allocation3 + $0x630] sm:$0xf0] %v6111
    %7005 = vst [vmem:[#allocation3 + $0x638] sm:$0xf0] %v6112
    %7006 = vst [vmem:[#allocation3 + $0x640] sm:$0xf0] %v6113
    %7007 = vst [vmem:[#allocation3 + $0x648] sm:$0xf0] %v6114
    %7008 = vst [vmem:[#allocation3 + $0x650] sm:$0xf0] %v6115
    %7009 = vst [vmem:[#allocation3 + $0x658] sm:$0xf0] %v6116
    %7010 = vst [vmem:[#allocation3 + $0x660] sm:$0xf0] %v6117
    %7011 = vst [vmem:[#allocation3 + $0x668] sm:$0xf0] %v6118
    %7012 = vst [vmem:[#allocation3 + $0x670] sm:$0xf0] %v6119
    %7013 = vst [vmem:[#allocation3 + $0x678] sm:$0xf0] %v6120
    %7014 = vst [vmem:[#allocation3 + $0x680] sm:$0xf0] %v6121
    %7015 = vst [vmem:[#allocation3 + $0x688] sm:$0xf0] %v6122
    %7016 = vst [vmem:[#allocation3 + $0x690] sm:$0xf0] %v6123
    %7017 = vst [vmem:[#allocation3 + $0x698] sm:$0xf0] %v6124
    %7018 = vst [vmem:[#allocation3 + $0x6a0] sm:$0xf0] %v6125
    %7019 = vst [vmem:[#allocation3 + $0x6a8] sm:$0xf0] %v6126
    %7020 = vst [vmem:[#allocation3 + $0x6b0] sm:$0xf0] %v6784
    %7021 = vst [vmem:[#allocation3 + $0x6b8] sm:$0xf0] %v7002
    %7022 = vrot.lane.b32.xlu0 %v5829, 120
    %v7023 = vpop.permute.xlu0 %7022
    %v7024 = vsel %vm6201, %v6805, %v7023
    %7026 = vst [vmem:[#allocation3 + $0x6c0] sm:$0xf] %v6204
    %7027 = vst [vmem:[#allocation3 + $0x6c8] sm:$0xf] %v6205
    %7028 = vst [vmem:[#allocation3 + $0x6d0] sm:$0xf] %v6206
    %7029 = vst [vmem:[#allocation3 + $0x6d8] sm:$0xf] %v6207
    %7030 = vst [vmem:[#allocation3 + $0x6e0] sm:$0xf] %v6208
    %7031 = vst [vmem:[#allocation3 + $0x6e8] sm:$0xf] %v6209
    %7032 = vst [vmem:[#allocation3 + $0x6f0] sm:$0xf] %v6210
    %7033 = vst [vmem:[#allocation3 + $0x6f8] sm:$0xf] %v6211
    %7034 = vst [vmem:[#allocation3 + $0x700] sm:$0xf] %v6212
    %7035 = vst [vmem:[#allocation3 + $0x708] sm:$0xf] %v6213
    %7036 = vst [vmem:[#allocation3 + $0x710] sm:$0xf] %v6214
    %7037 = vst [vmem:[#allocation3 + $0x718] sm:$0xf] %v6215
    %7038 = vst [vmem:[#allocation3 + $0x720] sm:$0xf] %v6216
    %7039 = vst [vmem:[#allocation3 + $0x728] sm:$0xf] %v6217
    %7040 = vst [vmem:[#allocation3 + $0x730] sm:$0xf] %v6218
    %7041 = vst [vmem:[#allocation3 + $0x738] sm:$0xf] %v6219
    %7042 = vst [vmem:[#allocation3 + $0x740] sm:$0xf] %v6806
    %7043 = vst [vmem:[#allocation3 + $0x748] sm:$0xf] %v7024
    %v7044 = vld [vmem:[%s3] sm:$0xff]
    %v7045 = vld [vmem:[%s3 + $0x8] sm:$0x3]
    %v7046 = vld [vmem:[#allocation3] sm:$0xff]
    %v7047 = vld [vmem:[#allocation3 + $0x8] sm:$0xff]
    %v7048 = vld [vmem:[#allocation3 + $0x10] sm:$0xff]
    %v7049 = vld [vmem:[#allocation3 + $0x18] sm:$0xff]
    %v7050 = vld [vmem:[#allocation3 + $0x20] sm:$0xff]
    %v7051 = vld [vmem:[#allocation3 + $0x28] sm:$0xff]
    %v7052 = vld [vmem:[#allocation3 + $0x30] sm:$0xff]
    %v7053 = vld [vmem:[#allocation3 + $0x48] sm:$0xff]
    %v7054 = vld [vmem:[#allocation3 + $0x50] sm:$0xff]
    %v7055 = vld [vmem:[#allocation3 + $0x58] sm:$0xff]
    %v7056 = vld [vmem:[#allocation3 + $0x60] sm:$0xff]
    %v7057 = vld [vmem:[#allocation3 + $0x68] sm:$0xff]
    %v7058 = vld [vmem:[#allocation3 + $0x70] sm:$0xff]
    %v7059 = vld [vmem:[#allocation3 + $0x78] sm:$0xff]
    %v7060 = vld [vmem:[#allocation3 + $0x90] sm:$0xff]
    %v7061 = vld [vmem:[#allocation3 + $0x98] sm:$0xff]
    %v7062 = vld [vmem:[#allocation3 + $0xa0] sm:$0xff]
    %v7063 = vld [vmem:[#allocation3 + $0xa8] sm:$0xff]
    %v7064 = vld [vmem:[#allocation3 + $0xb0] sm:$0xff]
    %v7065 = vld [vmem:[#allocation3 + $0xb8] sm:$0xff]
    %v7066 = vld [vmem:[#allocation3 + $0xc0] sm:$0xff]
    %v7067 = vld [vmem:[#allocation3 + $0xd8] sm:$0xff]
    %v7068 = vld [vmem:[#allocation3 + $0xe0] sm:$0xff]
    %v7069 = vld [vmem:[#allocation3 + $0xe8] sm:$0xff]
    %v7070 = vld [vmem:[#allocation3 + $0xf0] sm:$0xff]
    %v7071 = vld [vmem:[#allocation3 + $0xf8] sm:$0xff]
    %v7072 = vld [vmem:[#allocation3 + $0x100] sm:$0xff]
    %v7073 = vld [vmem:[#allocation3 + $0x108] sm:$0xff]
    %v7074 = vld [vmem:[#allocation3 + $0x120] sm:$0xff]
    %v7075 = vld [vmem:[#allocation3 + $0x128] sm:$0xff]
    %v7076 = vld [vmem:[#allocation3 + $0x130] sm:$0xff]
    %v7077 = vld [vmem:[#allocation3 + $0x138] sm:$0xff]
    %v7078 = vld [vmem:[#allocation3 + $0x140] sm:$0xff]
    %v7079 = vld [vmem:[#allocation3 + $0x148] sm:$0xff]
    %v7080 = vld [vmem:[#allocation3 + $0x150] sm:$0xff]
    %v7081 = vld [vmem:[#allocation3 + $0x168] sm:$0xff]
    %v7082 = vld [vmem:[#allocation3 + $0x170] sm:$0xff]
    %v7083 = vld [vmem:[#allocation3 + $0x178] sm:$0xff]
    %v7084 = vld [vmem:[#allocation3 + $0x180] sm:$0xff]
    %v7085 = vld [vmem:[#allocation3 + $0x188] sm:$0xff]
    %v7086 = vld [vmem:[#allocation3 + $0x190] sm:$0xff]
    %v7087 = vld [vmem:[#allocation3 + $0x198] sm:$0xff]
    %v7088 = vld [vmem:[#allocation3 + $0x1b0] sm:$0xff]
    %v7089 = vld [vmem:[#allocation3 + $0x1b8] sm:$0xff]
    %v7090 = vld [vmem:[#allocation3 + $0x1c0] sm:$0xff]
    %v7091 = vld [vmem:[#allocation3 + $0x1c8] sm:$0xff]
    %v7092 = vld [vmem:[#allocation3 + $0x1d0] sm:$0xff]
    %v7093 = vld [vmem:[#allocation3 + $0x1d8] sm:$0xff]
    %v7094 = vld [vmem:[#allocation3 + $0x1e0] sm:$0xff]
    %v7095 = vld [vmem:[#allocation3 + $0x1f8] sm:$0xff]
    %v7096 = vld [vmem:[#allocation3 + $0x200] sm:$0xff]
    %v7097 = vld [vmem:[#allocation3 + $0x208] sm:$0xff]
    %v7098 = vld [vmem:[#allocation3 + $0x210] sm:$0xff]
    %v7099 = vld [vmem:[#allocation3 + $0x218] sm:$0xff]
    %v7100 = vld [vmem:[#allocation3 + $0x220] sm:$0xff]
    %v7101 = vld [vmem:[#allocation3 + $0x228] sm:$0xff]
    %v7102 = vld [vmem:[#allocation3 + $0x240] sm:$0xff]
    %v7103 = vld [vmem:[#allocation3 + $0x248] sm:$0xff]
    %v7104 = vld [vmem:[#allocation3 + $0x250] sm:$0xff]
    %v7105 = vld [vmem:[#allocation3 + $0x258] sm:$0xff]
    %v7106 = vld [vmem:[#allocation3 + $0x260] sm:$0xff]
    %v7107 = vld [vmem:[#allocation3 + $0x268] sm:$0xff]
    %v7108 = vld [vmem:[#allocation3 + $0x270] sm:$0xff]
    %v7109 = vld [vmem:[#allocation3 + $0x288] sm:$0xff]
    %v7110 = vld [vmem:[#allocation3 + $0x290] sm:$0xff]
    %v7111 = vld [vmem:[#allocation3 + $0x298] sm:$0xff]
    %v7112 = vld [vmem:[#allocation3 + $0x2a0] sm:$0xff]
    %v7113 = vld [vmem:[#allocation3 + $0x2a8] sm:$0xff]
    %v7114 = vld [vmem:[#allocation3 + $0x2b0] sm:$0xff]
    %v7115 = vld [vmem:[#allocation3 + $0x2b8] sm:$0xff]
    %v7116 = vld [vmem:[#allocation3 + $0x2d0] sm:$0xff]
    %v7117 = vld [vmem:[#allocation3 + $0x2d8] sm:$0xff]
    %v7118 = vld [vmem:[#allocation3 + $0x2e0] sm:$0xff]
    %v7119 = vld [vmem:[#allocation3 + $0x2e8] sm:$0xff]
    %v7120 = vld [vmem:[#allocation3 + $0x2f0] sm:$0xff]
    %v7121 = vld [vmem:[#allocation3 + $0x2f8] sm:$0xff]
    %v7122 = vld [vmem:[#allocation3 + $0x300] sm:$0xff]
    %v7123 = vld [vmem:[#allocation3 + $0x318] sm:$0xff]
    %v7124 = vld [vmem:[#allocation3 + $0x320] sm:$0xff]
    %v7125 = vld [vmem:[#allocation3 + $0x328] sm:$0xff]
    %v7126 = vld [vmem:[#allocation3 + $0x330] sm:$0xff]
    %v7127 = vld [vmem:[#allocation3 + $0x338] sm:$0xff]
    %v7128 = vld [vmem:[#allocation3 + $0x340] sm:$0xff]
    %v7129 = vld [vmem:[#allocation3 + $0x348] sm:$0xff]
    %v7130 = vld [vmem:[#allocation3 + $0x360] sm:$0xff]
    %v7131 = vld [vmem:[#allocation3 + $0x368] sm:$0xff]
    %v7132 = vld [vmem:[#allocation3 + $0x370] sm:$0xff]
    %v7133 = vld [vmem:[#allocation3 + $0x378] sm:$0xff]
    %v7134 = vld [vmem:[#allocation3 + $0x380] sm:$0xff]
    %v7135 = vld [vmem:[#allocation3 + $0x388] sm:$0xff]
    %v7136 = vld [vmem:[#allocation3 + $0x390] sm:$0xff]
    %v7137 = vld [vmem:[#allocation3 + $0x3a8] sm:$0xff]
    %v7138 = vld [vmem:[#allocation3 + $0x3b0] sm:$0xff]
    %v7139 = vld [vmem:[#allocation3 + $0x3b8] sm:$0xff]
    %v7140 = vld [vmem:[#allocation3 + $0x3c0] sm:$0xff]
    %v7141 = vld [vmem:[#allocation3 + $0x3c8] sm:$0xff]
    %v7142 = vld [vmem:[#allocation3 + $0x3d0] sm:$0xff]
    %v7143 = vld [vmem:[#allocation3 + $0x3d8] sm:$0xff]
    %v7144 = vld [vmem:[#allocation3 + $0x3f0] sm:$0xff]
    %v7145 = vld [vmem:[#allocation3 + $0x3f8] sm:$0xff]
    %v7146 = vld [vmem:[#allocation3 + $0x400] sm:$0xff]
    %v7147 = vld [vmem:[#allocation3 + $0x408] sm:$0xff]
    %v7148 = vld [vmem:[#allocation3 + $0x410] sm:$0xff]
    %v7149 = vld [vmem:[#allocation3 + $0x418] sm:$0xff]
    %v7150 = vld [vmem:[#allocation3 + $0x420] sm:$0xff]
    %v7151 = vld [vmem:[#allocation3 + $0x438] sm:$0xff]
    %v7152 = vld [vmem:[#allocation3 + $0x440] sm:$0xff]
    %v7153 = vld [vmem:[#allocation3 + $0x448] sm:$0xff]
    %v7154 = vld [vmem:[#allocation3 + $0x450] sm:$0xff]
    %v7155 = vld [vmem:[#allocation3 + $0x458] sm:$0xff]
    %v7156 = vld [vmem:[#allocation3 + $0x460] sm:$0xff]
    %v7157 = vld [vmem:[#allocation3 + $0x468] sm:$0xff]
    %v7158 = vld [vmem:[#allocation3 + $0x480] sm:$0xff]
    %v7159 = vld [vmem:[#allocation3 + $0x488] sm:$0xff]
    %v7160 = vld [vmem:[#allocation3 + $0x490] sm:$0xff]
    %v7161 = vld [vmem:[#allocation3 + $0x498] sm:$0xff]
    %v7162 = vld [vmem:[#allocation3 + $0x4a0] sm:$0xff]
    %v7163 = vld [vmem:[#allocation3 + $0x4a8] sm:$0xff]
    %v7164 = vld [vmem:[#allocation3 + $0x4b0] sm:$0xff]
    %v7165 = vld [vmem:[#allocation3 + $0x4c8] sm:$0xff]
    %v7166 = vld [vmem:[#allocation3 + $0x4d0] sm:$0xff]
    %v7167 = vld [vmem:[#allocation3 + $0x4d8] sm:$0xff]
    %v7168 = vld [vmem:[#allocation3 + $0x4e0] sm:$0xff]
    %v7169 = vld [vmem:[#allocation3 + $0x4e8] sm:$0xff]
    %v7170 = vld [vmem:[#allocation3 + $0x4f0] sm:$0xff]
    %v7171 = vld [vmem:[#allocation3 + $0x4f8] sm:$0xff]
    %v7172 = vld [vmem:[#allocation3 + $0x510] sm:$0xff]
    %v7173 = vld [vmem:[#allocation3 + $0x518] sm:$0xff]
    %v7174 = vld [vmem:[#allocation3 + $0x520] sm:$0xff]
    %v7175 = vld [vmem:[#allocation3 + $0x528] sm:$0xff]
    %v7176 = vld [vmem:[#allocation3 + $0x530] sm:$0xff]
    %v7177 = vld [vmem:[#allocation3 + $0x538] sm:$0xff]
    %v7178 = vld [vmem:[#allocation3 + $0x540] sm:$0xff]
    %v7179 = vld [vmem:[#allocation3 + $0x558] sm:$0xff]
    %v7180 = vld [vmem:[#allocation3 + $0x560] sm:$0xff]
    %v7181 = vld [vmem:[#allocation3 + $0x568] sm:$0xff]
    %v7182 = vld [vmem:[#allocation3 + $0x570] sm:$0xff]
    %v7183 = vld [vmem:[#allocation3 + $0x578] sm:$0xff]
    %v7184 = vld [vmem:[#allocation3 + $0x580] sm:$0xff]
    %v7185 = vld [vmem:[#allocation3 + $0x588] sm:$0xff]
    %v7186 = vld [vmem:[#allocation3 + $0x5a0] sm:$0xff]
    %v7187 = vld [vmem:[#allocation3 + $0x5a8] sm:$0xff]
    %v7188 = vld [vmem:[#allocation3 + $0x5b0] sm:$0xff]
    %v7189 = vld [vmem:[#allocation3 + $0x5b8] sm:$0xff]
    %v7190 = vld [vmem:[#allocation3 + $0x5c0] sm:$0xff]
    %v7191 = vld [vmem:[#allocation3 + $0x5c8] sm:$0xff]
    %v7192 = vld [vmem:[#allocation3 + $0x5d0] sm:$0xff]
    %v7193 = vld [vmem:[#allocation3 + $0x5e8] sm:$0xff]
    %v7194 = vld [vmem:[#allocation3 + $0x5f0] sm:$0xff]
    %v7195 = vld [vmem:[#allocation3 + $0x5f8] sm:$0xff]
    %v7196 = vld [vmem:[#allocation3 + $0x600] sm:$0xff]
    %v7197 = vld [vmem:[#allocation3 + $0x608] sm:$0xff]
    %v7198 = vld [vmem:[#allocation3 + $0x610] sm:$0xff]
    %v7199 = vld [vmem:[#allocation3 + $0x618] sm:$0xff]
    %v7200 = vld [vmem:[#allocation3 + $0x630] sm:$0xff]
    %v7201 = vld [vmem:[#allocation3 + $0x638] sm:$0xff]
    %v7202 = vld [vmem:[#allocation3 + $0x640] sm:$0xff]
    %v7203 = vld [vmem:[#allocation3 + $0x648] sm:$0xff]
    %v7204 = vld [vmem:[#allocation3 + $0x650] sm:$0xff]
    %v7205 = vld [vmem:[#allocation3 + $0x658] sm:$0xff]
    %v7206 = vld [vmem:[#allocation3 + $0x660] sm:$0xff]
    %v7207 = vld [vmem:[#allocation3 + $0x678] sm:$0xff]
    %v7208 = vld [vmem:[#allocation3 + $0x680] sm:$0xff]
    %v7209 = vld [vmem:[#allocation3 + $0x688] sm:$0xff]
    %v7210 = vld [vmem:[#allocation3 + $0x690] sm:$0xff]
    %v7211 = vld [vmem:[#allocation3 + $0x698] sm:$0xff]
    %v7212 = vld [vmem:[#allocation3 + $0x6a0] sm:$0xff]
    %v7213 = vld [vmem:[#allocation3 + $0x6a8] sm:$0xff]
    %v7214 = vld [vmem:[#allocation3 + $0x6c0] sm:$0xf]
    %v7215 = vld [vmem:[#allocation3 + $0x6c8] sm:$0xf]
    %v7216 = vld [vmem:[#allocation3 + $0x6d0] sm:$0xf]
    %v7217 = vld [vmem:[#allocation3 + $0x6d8] sm:$0xf]
    %v7218 = vld [vmem:[#allocation3 + $0x6e0] sm:$0xf]
    %v7219 = vld [vmem:[#allocation3 + $0x6e8] sm:$0xf]
    %v7220 = vld [vmem:[#allocation3 + $0x6f0] sm:$0xf]
    %v7221 = vld [vmem:[#allocation3 + $0x708] sm:$0xf]
    %v7222 = vld [vmem:[#allocation3 + $0x710] sm:$0xf]
    %v7223 = vld [vmem:[#allocation3 + $0x718] sm:$0xf]
    %v7224 = vld [vmem:[#allocation3 + $0x720] sm:$0xf]
    %v7225 = vld [vmem:[#allocation3 + $0x728] sm:$0xf]
    %v7226 = vld [vmem:[#allocation3 + $0x730] sm:$0xf]
    %v7227 = vld [vmem:[#allocation3 + $0x738] sm:$0xf]
    %v7228 = vld [vmem:[%s4] sm:$0xff]
    %v7229 = vld [vmem:[%s4 + $0x8] sm:$0x3]
    %7231 = vset.pattern.permute.xlu0 0
    %7232 = vperm.xlu0 %7231, %v7228
    %v7233 = vpop.permute.xlu0 %7232
    %7236 = vset.pattern.permute.xlu0 0
    %7237 = vperm.xlu0 %7236, %v7229
    %v7238 = vpop.permute.xlu0 %7237
    %vm7240 = vcmask 818176
    %v7242 = vsel %vm7240, %v7044, 0
    %v7245 = vsel %vm7240, %v7045, 0
    %vm7247 = vcmask 1043456
    %v7249 = vsel %vm7247, %v7214, 0
    %v7252 = vsel %vm7247, %v7215, 0
    %v7255 = vsel %vm7247, %v7216, 0
    %v7258 = vsel %vm7247, %v7217, 0
    %v7261 = vsel %vm7247, %v7218, 0
    %v7264 = vsel %vm7247, %v7219, 0
    %v7267 = vsel %vm7247, %v7220, 0
    %v7270 = vsel %vm7247, %v7221, 0
    %v7273 = vsel %vm7247, %v7222, 0
    %v7276 = vsel %vm7247, %v7223, 0
    %v7279 = vsel %vm7247, %v7224, 0
    %v7282 = vsel %vm7247, %v7225, 0
    %v7285 = vsel %vm7247, %v7226, 0
    %v7288 = vsel %vm7247, %v7227, 0
    %7290 = vmatpush.msra.mxu0 0.0
    %7291 = vmatpush.msra.mxu0 0.0
    %7292 = vmatpush.msra.mxu0 0.0
    %7293 = vmatpush.msra.mxu0 %v7249
    %7294 = vmatpush.msra.mxu0 %v7200
    %7295 = vmatpush.msra.mxu0 %v7186
    %7296 = vmatpush.msra.mxu0 %v7172
    %7297 = vmatpush.msra.mxu0 %v7158
    %7298 = vmatpush.msra.mxu0 %v7144
    %7299 = vmatpush.msra.mxu0 %v7130
    %7300 = vmatpush.msra.mxu0 %v7116
    %7301 = vmatpush.msra.mxu0 %v7102
    %7302 = vmatpush.msra.mxu0 %v7088
    %7303 = vmatpush.msra.mxu0 %v7074
    %7304 = vmatpush.msra.mxu0 %v7060
    %7305 = vmatpush.msra.mxu0 %v7046
    %7306 = vmatmul.f32.gmra.mxu0 %v7242
    %v7307 = vpop.f32.mrf.mxu0
    %v7308 = vadd.f32 %v7233, %v7307
    %7309 = vmatmul.f32.gmra.mxu0 %v7245
    %v7310 = vpop.f32.mrf.mxu0
    %v7311 = vadd.f32 %v7238, %v7310
    %7312 = vdwg.mxu0
    %7313 = vmatpush.msra.mxu0 0.0
    %7314 = vmatpush.msra.mxu0 0.0
    %7315 = vmatpush.msra.mxu0 0.0
    %7316 = vmatpush.msra.mxu0 %v7252
    %7317 = vmatpush.msra.mxu0 %v7201
    %7318 = vmatpush.msra.mxu0 %v7187
    %7319 = vmatpush.msra.mxu0 %v7173
    %7320 = vmatpush.msra.mxu0 %v7159
    %7321 = vmatpush.msra.mxu0 %v7145
    %7322 = vmatpush.msra.mxu0 %v7131
    %7323 = vmatpush.msra.mxu0 %v7117
    %7324 = vmatpush.msra.mxu0 %v7103
    %7325 = vmatpush.msra.mxu0 %v7089
    %7326 = vmatpush.msra.mxu0 %v7075
    %7327 = vmatpush.msra.mxu0 %v7061
    %7328 = vmatpush.msra.mxu0 %v7047
    %7329 = vmatmul.f32.gmra.mxu0 %v7242
    %v7330 = vpop.f32.mrf.mxu0
    %v7331 = vadd.f32 %v7233, %v7330
    %7332 = vmatmul.f32.gmra.mxu0 %v7245
    %v7333 = vpop.f32.mrf.mxu0
    %v7334 = vadd.f32 %v7238, %v7333
    %7335 = vdwg.mxu0
    %7336 = vmatpush.msra.mxu0 0.0
    %7337 = vmatpush.msra.mxu0 0.0
    %7338 = vmatpush.msra.mxu0 0.0
    %7339 = vmatpush.msra.mxu0 %v7255
    %7340 = vmatpush.msra.mxu0 %v7202
    %7341 = vmatpush.msra.mxu0 %v7188
    %7342 = vmatpush.msra.mxu0 %v7174
    %7343 = vmatpush.msra.mxu0 %v7160
    %7344 = vmatpush.msra.mxu0 %v7146
    %7345 = vmatpush.msra.mxu0 %v7132
    %7346 = vmatpush.msra.mxu0 %v7118
    %7347 = vmatpush.msra.mxu0 %v7104
    %7348 = vmatpush.msra.mxu0 %v7090
    %7349 = vmatpush.msra.mxu0 %v7076
    %7350 = vmatpush.msra.mxu0 %v7062
    %7351 = vmatpush.msra.mxu0 %v7048
    %7352 = vmatmul.f32.gmra.mxu0 %v7242
    %v7353 = vpop.f32.mrf.mxu0
    %v7354 = vadd.f32 %v7233, %v7353
    %7355 = vmatmul.f32.gmra.mxu0 %v7245
    %v7356 = vpop.f32.mrf.mxu0
    %v7357 = vadd.f32 %v7238, %v7356
    %7358 = vdwg.mxu0
    %7359 = vmatpush.msra.mxu0 0.0
    %7360 = vmatpush.msra.mxu0 0.0
    %7361 = vmatpush.msra.mxu0 0.0
    %7362 = vmatpush.msra.mxu0 %v7258
    %7363 = vmatpush.msra.mxu0 %v7203
    %7364 = vmatpush.msra.mxu0 %v7189
    %7365 = vmatpush.msra.mxu0 %v7175
    %7366 = vmatpush.msra.mxu0 %v7161
    %7367 = vmatpush.msra.mxu0 %v7147
    %7368 = vmatpush.msra.mxu0 %v7133
    %7369 = vmatpush.msra.mxu0 %v7119
    %7370 = vmatpush.msra.mxu0 %v7105
    %7371 = vmatpush.msra.mxu0 %v7091
    %7372 = vmatpush.msra.mxu0 %v7077
    %7373 = vmatpush.msra.mxu0 %v7063
    %7374 = vmatpush.msra.mxu0 %v7049
    %7375 = vmatmul.f32.gmra.mxu0 %v7242
    %v7376 = vpop.f32.mrf.mxu0
    %v7377 = vadd.f32 %v7233, %v7376
    %7378 = vmatmul.f32.gmra.mxu0 %v7245
    %v7379 = vpop.f32.mrf.mxu0
    %v7380 = vadd.f32 %v7238, %v7379
    %7381 = vdwg.mxu0
    %7382 = vmatpush.msra.mxu0 0.0
    %7383 = vmatpush.msra.mxu0 0.0
    %7384 = vmatpush.msra.mxu0 0.0
    %7385 = vmatpush.msra.mxu0 %v7261
    %7386 = vmatpush.msra.mxu0 %v7204
    %7387 = vmatpush.msra.mxu0 %v7190
    %7388 = vmatpush.msra.mxu0 %v7176
    %7389 = vmatpush.msra.mxu0 %v7162
    %7390 = vmatpush.msra.mxu0 %v7148
    %7391 = vmatpush.msra.mxu0 %v7134
    %7392 = vmatpush.msra.mxu0 %v7120
    %7393 = vmatpush.msra.mxu0 %v7106
    %7394 = vmatpush.msra.mxu0 %v7092
    %7395 = vmatpush.msra.mxu0 %v7078
    %7396 = vmatpush.msra.mxu0 %v7064
    %7397 = vmatpush.msra.mxu0 %v7050
    %7398 = vmatmul.f32.gmra.mxu0 %v7242
    %v7399 = vpop.f32.mrf.mxu0
    %v7400 = vadd.f32 %v7233, %v7399
    %7401 = vmatmul.f32.gmra.mxu0 %v7245
    %v7402 = vpop.f32.mrf.mxu0
    %v7403 = vadd.f32 %v7238, %v7402
    %7404 = vdwg.mxu0
    %7405 = vmatpush.msra.mxu0 0.0
    %7406 = vmatpush.msra.mxu0 0.0
    %7407 = vmatpush.msra.mxu0 0.0
    %7408 = vmatpush.msra.mxu0 %v7264
    %7409 = vmatpush.msra.mxu0 %v7205
    %7410 = vmatpush.msra.mxu0 %v7191
    %7411 = vmatpush.msra.mxu0 %v7177
    %7412 = vmatpush.msra.mxu0 %v7163
    %7413 = vmatpush.msra.mxu0 %v7149
    %7414 = vmatpush.msra.mxu0 %v7135
    %7415 = vmatpush.msra.mxu0 %v7121
    %7416 = vmatpush.msra.mxu0 %v7107
    %7417 = vmatpush.msra.mxu0 %v7093
    %7418 = vmatpush.msra.mxu0 %v7079
    %7419 = vmatpush.msra.mxu0 %v7065
    %7420 = vmatpush.msra.mxu0 %v7051
    %7421 = vmatmul.f32.gmra.mxu0 %v7242
    %v7422 = vpop.f32.mrf.mxu0
    %v7423 = vadd.f32 %v7233, %v7422
    %7424 = vmatmul.f32.gmra.mxu0 %v7245
    %v7425 = vpop.f32.mrf.mxu0
    %v7426 = vadd.f32 %v7238, %v7425
    %7427 = vdwg.mxu0
    %7428 = vmatpush.msra.mxu0 0.0
    %7429 = vmatpush.msra.mxu0 0.0
    %7430 = vmatpush.msra.mxu0 0.0
    %7431 = vmatpush.msra.mxu0 %v7267
    %7432 = vmatpush.msra.mxu0 %v7206
    %7433 = vmatpush.msra.mxu0 %v7192
    %7434 = vmatpush.msra.mxu0 %v7178
    %7435 = vmatpush.msra.mxu0 %v7164
    %7436 = vmatpush.msra.mxu0 %v7150
    %7437 = vmatpush.msra.mxu0 %v7136
    %7438 = vmatpush.msra.mxu0 %v7122
    %7439 = vmatpush.msra.mxu0 %v7108
    %7440 = vmatpush.msra.mxu0 %v7094
    %7441 = vmatpush.msra.mxu0 %v7080
    %7442 = vmatpush.msra.mxu0 %v7066
    %7443 = vmatpush.msra.mxu0 %v7052
    %7444 = vmatmul.f32.gmra.mxu0 %v7242
    %v7445 = vpop.f32.mrf.mxu0
    %v7446 = vadd.f32 %v7233, %v7445
    %7447 = vmatmul.f32.gmra.mxu0 %v7245
    %v7448 = vpop.f32.mrf.mxu0
    %v7449 = vadd.f32 %v7238, %v7448
    %7450 = vdwg.mxu0
    %7451 = vmatpush.msra.mxu0 0.0
    %7452 = vmatpush.msra.mxu0 0.0
    %7453 = vmatpush.msra.mxu0 0.0
    %7454 = vmatpush.msra.mxu0 %v7270
    %7455 = vmatpush.msra.mxu0 %v7207
    %7456 = vmatpush.msra.mxu0 %v7193
    %7457 = vmatpush.msra.mxu0 %v7179
    %7458 = vmatpush.msra.mxu0 %v7165
    %7459 = vmatpush.msra.mxu0 %v7151
    %7460 = vmatpush.msra.mxu0 %v7137
    %7461 = vmatpush.msra.mxu0 %v7123
    %7462 = vmatpush.msra.mxu0 %v7109
    %7463 = vmatpush.msra.mxu0 %v7095
    %7464 = vmatpush.msra.mxu0 %v7081
    %7465 = vmatpush.msra.mxu0 %v7067
    %7466 = vmatpush.msra.mxu0 %v7053
    %7467 = vmatmul.f32.gmra.mxu0 %v7242
    %v7468 = vpop.f32.mrf.mxu0
    %v7469 = vadd.f32 %v7233, %v7468
    %7470 = vmatmul.f32.gmra.mxu0 %v7245
    %v7471 = vpop.f32.mrf.mxu0
    %v7472 = vadd.f32 %v7238, %v7471
    %7473 = vdwg.mxu0
    %7474 = vmatpush.msra.mxu0 0.0
    %7475 = vmatpush.msra.mxu0 0.0
    %7476 = vmatpush.msra.mxu0 0.0
    %7477 = vmatpush.msra.mxu0 %v7273
    %7478 = vmatpush.msra.mxu0 %v7208
    %7479 = vmatpush.msra.mxu0 %v7194
    %7480 = vmatpush.msra.mxu0 %v7180
    %7481 = vmatpush.msra.mxu0 %v7166
    %7482 = vmatpush.msra.mxu0 %v7152
    %7483 = vmatpush.msra.mxu0 %v7138
    %7484 = vmatpush.msra.mxu0 %v7124
    %7485 = vmatpush.msra.mxu0 %v7110
    %7486 = vmatpush.msra.mxu0 %v7096
    %7487 = vmatpush.msra.mxu0 %v7082
    %7488 = vmatpush.msra.mxu0 %v7068
    %7489 = vmatpush.msra.mxu0 %v7054
    %7490 = vmatmul.f32.gmra.mxu0 %v7242
    %v7491 = vpop.f32.mrf.mxu0
    %v7492 = vadd.f32 %v7233, %v7491
    %7493 = vmatmul.f32.gmra.mxu0 %v7245
    %v7494 = vpop.f32.mrf.mxu0
    %v7495 = vadd.f32 %v7238, %v7494
    %7496 = vdwg.mxu0
    %7497 = vmatpush.msra.mxu0 0.0
    %7498 = vmatpush.msra.mxu0 0.0
    %7499 = vmatpush.msra.mxu0 0.0
    %7500 = vmatpush.msra.mxu0 %v7276
    %7501 = vmatpush.msra.mxu0 %v7209
    %7502 = vmatpush.msra.mxu0 %v7195
    %7503 = vmatpush.msra.mxu0 %v7181
    %7504 = vmatpush.msra.mxu0 %v7167
    %7505 = vmatpush.msra.mxu0 %v7153
    %7506 = vmatpush.msra.mxu0 %v7139
    %7507 = vmatpush.msra.mxu0 %v7125
    %7508 = vmatpush.msra.mxu0 %v7111
    %7509 = vmatpush.msra.mxu0 %v7097
    %7510 = vmatpush.msra.mxu0 %v7083
    %7511 = vmatpush.msra.mxu0 %v7069
    %7512 = vmatpush.msra.mxu0 %v7055
    %7513 = vmatmul.f32.gmra.mxu0 %v7242
    %v7514 = vpop.f32.mrf.mxu0
    %v7515 = vadd.f32 %v7233, %v7514
    %7516 = vmatmul.f32.gmra.mxu0 %v7245
    %v7517 = vpop.f32.mrf.mxu0
    %v7518 = vadd.f32 %v7238, %v7517
    %7519 = vdwg.mxu0
    %7520 = vmatpush.msra.mxu0 0.0
    %7521 = vmatpush.msra.mxu0 0.0
    %7522 = vmatpush.msra.mxu0 0.0
    %7523 = vmatpush.msra.mxu0 %v7279
    %7524 = vmatpush.msra.mxu0 %v7210
    %7525 = vmatpush.msra.mxu0 %v7196
    %7526 = vmatpush.msra.mxu0 %v7182
    %7527 = vmatpush.msra.mxu0 %v7168
    %7528 = vmatpush.msra.mxu0 %v7154
    %7529 = vmatpush.msra.mxu0 %v7140
    %7530 = vmatpush.msra.mxu0 %v7126
    %7531 = vmatpush.msra.mxu0 %v7112
    %7532 = vmatpush.msra.mxu0 %v7098
    %7533 = vmatpush.msra.mxu0 %v7084
    %7534 = vmatpush.msra.mxu0 %v7070
    %7535 = vmatpush.msra.mxu0 %v7056
    %7536 = vmatmul.f32.gmra.mxu0 %v7242
    %v7537 = vpop.f32.mrf.mxu0
    %v7538 = vadd.f32 %v7233, %v7537
    %7539 = vmatmul.f32.gmra.mxu0 %v7245
    %v7540 = vpop.f32.mrf.mxu0
    %v7541 = vadd.f32 %v7238, %v7540
    %7542 = vdwg.mxu0
    %7543 = vmatpush.msra.mxu0 0.0
    %7544 = vmatpush.msra.mxu0 0.0
    %7545 = vmatpush.msra.mxu0 0.0
    %7546 = vmatpush.msra.mxu0 %v7282
    %7547 = vmatpush.msra.mxu0 %v7211
    %7548 = vmatpush.msra.mxu0 %v7197
    %7549 = vmatpush.msra.mxu0 %v7183
    %7550 = vmatpush.msra.mxu0 %v7169
    %7551 = vmatpush.msra.mxu0 %v7155
    %7552 = vmatpush.msra.mxu0 %v7141
    %7553 = vmatpush.msra.mxu0 %v7127
    %7554 = vmatpush.msra.mxu0 %v7113
    %7555 = vmatpush.msra.mxu0 %v7099
    %7556 = vmatpush.msra.mxu0 %v7085
    %7557 = vmatpush.msra.mxu0 %v7071
    %7558 = vmatpush.msra.mxu0 %v7057
    %7559 = vmatmul.f32.gmra.mxu0 %v7242
    %v7560 = vpop.f32.mrf.mxu0
    %v7561 = vadd.f32 %v7233, %v7560
    %7562 = vmatmul.f32.gmra.mxu0 %v7245
    %v7563 = vpop.f32.mrf.mxu0
    %v7564 = vadd.f32 %v7238, %v7563
    %7565 = vdwg.mxu0
    %7566 = vmatpush.msra.mxu0 0.0
    %7567 = vmatpush.msra.mxu0 0.0
    %7568 = vmatpush.msra.mxu0 0.0
    %7569 = vmatpush.msra.mxu0 %v7285
    %7570 = vmatpush.msra.mxu0 %v7212
    %7571 = vmatpush.msra.mxu0 %v7198
    %7572 = vmatpush.msra.mxu0 %v7184
    %7573 = vmatpush.msra.mxu0 %v7170
    %7574 = vmatpush.msra.mxu0 %v7156
    %7575 = vmatpush.msra.mxu0 %v7142
    %7576 = vmatpush.msra.mxu0 %v7128
    %7577 = vmatpush.msra.mxu0 %v7114
    %7578 = vmatpush.msra.mxu0 %v7100
    %7579 = vmatpush.msra.mxu0 %v7086
    %7580 = vmatpush.msra.mxu0 %v7072
    %7581 = vmatpush.msra.mxu0 %v7058
    %7582 = vmatmul.f32.gmra.mxu0 %v7242
    %v7583 = vpop.f32.mrf.mxu0
    %v7584 = vadd.f32 %v7233, %v7583
    %7585 = vmatmul.f32.gmra.mxu0 %v7245
    %v7586 = vpop.f32.mrf.mxu0
    %v7587 = vadd.f32 %v7238, %v7586
    %7588 = vdwg.mxu0
    %7589 = vmatpush.msra.mxu0 0.0
    %7590 = vmatpush.msra.mxu0 0.0
    %7591 = vmatpush.msra.mxu0 0.0
    %7592 = vmatpush.msra.mxu0 %v7288
    %7593 = vmatpush.msra.mxu0 %v7213
    %7594 = vmatpush.msra.mxu0 %v7199
    %7595 = vmatpush.msra.mxu0 %v7185
    %7596 = vmatpush.msra.mxu0 %v7171
    %7597 = vmatpush.msra.mxu0 %v7157
    %7598 = vmatpush.msra.mxu0 %v7143
    %7599 = vmatpush.msra.mxu0 %v7129
    %7600 = vmatpush.msra.mxu0 %v7115
    %7601 = vmatpush.msra.mxu0 %v7101
    %7602 = vmatpush.msra.mxu0 %v7087
    %7603 = vmatpush.msra.mxu0 %v7073
    %7604 = vmatpush.msra.mxu0 %v7059
    %7605 = vmatmul.f32.gmra.mxu0 %v7242
    %v7606 = vpop.f32.mrf.mxu0
    %v7607 = vadd.f32 %v7233, %v7606
    %7608 = vmatmul.f32.gmra.mxu0 %v7245
    %v7609 = vpop.f32.mrf.mxu0
    %v7610 = vadd.f32 %v7238, %v7609
    %7611 = vdwg.mxu0
    %v7612 = vmax.f32 %v7308, 0.0
    %v7613 = vmax.f32 %v7331, 0.0
    %v7614 = vmax.f32 %v7354, 0.0
    %v7615 = vmax.f32 %v7377, 0.0
    %v7616 = vmax.f32 %v7400, 0.0
    %v7617 = vmax.f32 %v7423, 0.0
    %v7618 = vmax.f32 %v7446, 0.0
    %v7619 = vmax.f32 %v7469, 0.0
    %v7620 = vmax.f32 %v7492, 0.0
    %v7621 = vmax.f32 %v7515, 0.0
    %v7622 = vmax.f32 %v7538, 0.0
    %v7623 = vmax.f32 %v7561, 0.0
    %v7624 = vmax.f32 %v7584, 0.0
    %v7625 = vmax.f32 %v7607, 0.0
    %v7626 = vmax.f32 %v7311, 0.0
    %v7627 = vmax.f32 %v7334, 0.0
    %v7628 = vmax.f32 %v7357, 0.0
    %v7629 = vmax.f32 %v7380, 0.0
    %v7630 = vmax.f32 %v7403, 0.0
    %v7631 = vmax.f32 %v7426, 0.0
    %v7632 = vmax.f32 %v7449, 0.0
    %v7633 = vmax.f32 %v7472, 0.0
    %v7634 = vmax.f32 %v7495, 0.0
    %v7635 = vmax.f32 %v7518, 0.0
    %v7636 = vmax.f32 %v7541, 0.0
    %v7637 = vmax.f32 %v7564, 0.0
    %v7638 = vmax.f32 %v7587, 0.0
    %v7639 = vmax.f32 %v7610, 0.0
    %7664 = vrot.lane.b32.xlu0 %v7612, 126
    %v7665 = vpop.permute.xlu0 %7664
    %7666 = vrot.lane.b32.xlu0 %v7613, 126
    %v7667 = vpop.permute.xlu0 %7666
    %7668 = vrot.lane.b32.xlu0 %v7614, 126
    %v7669 = vpop.permute.xlu0 %7668
    %7670 = vrot.lane.b32.xlu0 %v7615, 126
    %v7671 = vpop.permute.xlu0 %7670
    %7672 = vrot.lane.b32.xlu0 %v7616, 126
    %v7673 = vpop.permute.xlu0 %7672
    %7674 = vrot.lane.b32.xlu0 %v7617, 126
    %v7675 = vpop.permute.xlu0 %7674
    %7676 = vrot.lane.b32.xlu0 %v7619, 126
    %v7677 = vpop.permute.xlu0 %7676
    %7678 = vrot.lane.b32.xlu0 %v7620, 126
    %v7679 = vpop.permute.xlu0 %7678
    %7680 = vrot.lane.b32.xlu0 %v7621, 126
    %v7681 = vpop.permute.xlu0 %7680
    %7682 = vrot.lane.b32.xlu0 %v7622, 126
    %v7683 = vpop.permute.xlu0 %7682
    %7684 = vrot.lane.b32.xlu0 %v7623, 126
    %v7685 = vpop.permute.xlu0 %7684
    %7686 = vrot.lane.b32.xlu0 %v7624, 126
    %v7687 = vpop.permute.xlu0 %7686
    %7688 = vrot.lane.b32.xlu0 %v7626, 126
    %v7689 = vpop.permute.xlu0 %7688
    %7690 = vrot.lane.b32.xlu0 %v7627, 126
    %v7691 = vpop.permute.xlu0 %7690
    %7692 = vrot.lane.b32.xlu0 %v7628, 126
    %v7693 = vpop.permute.xlu0 %7692
    %7694 = vrot.lane.b32.xlu0 %v7629, 126
    %v7695 = vpop.permute.xlu0 %7694
    %7696 = vrot.lane.b32.xlu0 %v7630, 126
    %v7697 = vpop.permute.xlu0 %7696
    %7698 = vrot.lane.b32.xlu0 %v7631, 126
    %v7699 = vpop.permute.xlu0 %7698
    %7700 = vrot.lane.b32.xlu0 %v7633, 126
    %v7701 = vpop.permute.xlu0 %7700
    %7702 = vrot.lane.b32.xlu0 %v7634, 126
    %v7703 = vpop.permute.xlu0 %7702
    %7704 = vrot.lane.b32.xlu0 %v7635, 126
    %v7705 = vpop.permute.xlu0 %7704
    %7706 = vrot.lane.b32.xlu0 %v7636, 126
    %v7707 = vpop.permute.xlu0 %7706
    %7708 = vrot.lane.b32.xlu0 %v7637, 126
    %v7709 = vpop.permute.xlu0 %7708
    %7710 = vrot.lane.b32.xlu0 %v7638, 126
    %v7711 = vpop.permute.xlu0 %7710
    %v7712 = vsel %vm467, %v7665, %v7667
    %v7713 = vsel %vm467, %v7667, %v7669
    %v7714 = vsel %vm467, %v7669, %v7671
    %v7715 = vsel %vm467, %v7671, %v7673
    %v7716 = vsel %vm467, %v7673, %v7675
    %v7717 = vsel %vm467, %v7677, %v7679
    %v7718 = vsel %vm467, %v7679, %v7681
    %v7719 = vsel %vm467, %v7681, %v7683
    %v7720 = vsel %vm467, %v7683, %v7685
    %v7721 = vsel %vm467, %v7685, %v7687
    %v7722 = vsel %vm467, %v7689, %v7691
    %v7723 = vsel %vm467, %v7691, %v7693
    %v7724 = vsel %vm467, %v7693, %v7695
    %v7725 = vsel %vm467, %v7695, %v7697
    %v7726 = vsel %vm467, %v7697, %v7699
    %v7727 = vsel %vm467, %v7701, %v7703
    %v7728 = vsel %vm467, %v7703, %v7705
    %v7729 = vsel %vm467, %v7705, %v7707
    %v7730 = vsel %vm467, %v7707, %v7709
    %v7731 = vsel %vm467, %v7709, %v7711
    %v7752 = vmax.f32 %v7612, %v7712
    %v7753 = vmax.f32 %v7613, %v7713
    %v7754 = vmax.f32 %v7614, %v7714
    %v7755 = vmax.f32 %v7615, %v7715
    %v7756 = vmax.f32 %v7616, %v7716
    %v7757 = vmax.f32 %v7619, %v7717
    %v7758 = vmax.f32 %v7620, %v7718
    %v7759 = vmax.f32 %v7621, %v7719
    %v7760 = vmax.f32 %v7622, %v7720
    %v7761 = vmax.f32 %v7623, %v7721
    %v7762 = vmax.f32 %v7626, %v7722
    %v7763 = vmax.f32 %v7627, %v7723
    %v7764 = vmax.f32 %v7628, %v7724
    %v7765 = vmax.f32 %v7629, %v7725
    %v7766 = vmax.f32 %v7630, %v7726
    %v7767 = vmax.f32 %v7633, %v7727
    %v7768 = vmax.f32 %v7634, %v7728
    %v7769 = vmax.f32 %v7635, %v7729
    %v7770 = vmax.f32 %v7636, %v7730
    %v7771 = vmax.f32 %v7637, %v7731
    %7776 = vrot.lane.b32.xlu0 %v7618, 126
    %v7777 = vpop.permute.xlu0 %7776
    %7778 = vrot.lane.b32.xlu0 %v7625, 126
    %v7779 = vpop.permute.xlu0 %7778
    %7780 = vrot.lane.b32.xlu0 %v7632, 126
    %v7781 = vpop.permute.xlu0 %7780
    %7782 = vrot.lane.b32.xlu0 %v7639, 126
    %v7783 = vpop.permute.xlu0 %7782
    %v7784 = vsel %vm467, %v7675, %v7777
    %v7785 = vsel %vm467, %v7687, %v7779
    %v7786 = vsel %vm467, %v7699, %v7781
    %v7787 = vsel %vm467, %v7711, %v7783
    %v7792 = vmax.f32 %v7617, %v7784
    %v7793 = vmax.f32 %v7624, %v7785
    %v7794 = vmax.f32 %v7631, %v7786
    %v7795 = vmax.f32 %v7638, %v7787
    %7820 = vrot.lane.b32.xlu0 %v7752, 64
    %v7821 = vpop.permute.xlu0 %7820
    %7822 = vrot.lane.b32.xlu0 %v7753, 64
    %v7823 = vpop.permute.xlu0 %7822
    %7824 = vrot.lane.b32.xlu0 %v7754, 64
    %v7825 = vpop.permute.xlu0 %7824
    %7826 = vrot.lane.b32.xlu0 %v7755, 64
    %v7827 = vpop.permute.xlu0 %7826
    %7828 = vrot.lane.b32.xlu0 %v7756, 64
    %v7829 = vpop.permute.xlu0 %7828
    %7830 = vrot.lane.b32.xlu0 %v7792, 64
    %v7831 = vpop.permute.xlu0 %7830
    %7832 = vrot.lane.b32.xlu0 %v7757, 64
    %v7833 = vpop.permute.xlu0 %7832
    %7834 = vrot.lane.b32.xlu0 %v7758, 64
    %v7835 = vpop.permute.xlu0 %7834
    %7836 = vrot.lane.b32.xlu0 %v7759, 64
    %v7837 = vpop.permute.xlu0 %7836
    %7838 = vrot.lane.b32.xlu0 %v7760, 64
    %v7839 = vpop.permute.xlu0 %7838
    %7840 = vrot.lane.b32.xlu0 %v7761, 64
    %v7841 = vpop.permute.xlu0 %7840
    %7842 = vrot.lane.b32.xlu0 %v7793, 64
    %v7843 = vpop.permute.xlu0 %7842
    %7844 = vrot.lane.b32.xlu0 %v7762, 64
    %v7845 = vpop.permute.xlu0 %7844
    %7846 = vrot.lane.b32.xlu0 %v7763, 64
    %v7847 = vpop.permute.xlu0 %7846
    %7848 = vrot.lane.b32.xlu0 %v7764, 64
    %v7849 = vpop.permute.xlu0 %7848
    %7850 = vrot.lane.b32.xlu0 %v7765, 64
    %v7851 = vpop.permute.xlu0 %7850
    %7852 = vrot.lane.b32.xlu0 %v7766, 64
    %v7853 = vpop.permute.xlu0 %7852
    %7854 = vrot.lane.b32.xlu0 %v7794, 64
    %v7855 = vpop.permute.xlu0 %7854
    %7856 = vrot.lane.b32.xlu0 %v7767, 64
    %v7857 = vpop.permute.xlu0 %7856
    %7858 = vrot.lane.b32.xlu0 %v7768, 64
    %v7859 = vpop.permute.xlu0 %7858
    %7860 = vrot.lane.b32.xlu0 %v7769, 64
    %v7861 = vpop.permute.xlu0 %7860
    %7862 = vrot.lane.b32.xlu0 %v7770, 64
    %v7863 = vpop.permute.xlu0 %7862
    %7864 = vrot.lane.b32.xlu0 %v7771, 64
    %v7865 = vpop.permute.xlu0 %7864
    %7866 = vrot.lane.b32.xlu0 %v7795, 64
    %v7867 = vpop.permute.xlu0 %7866
    %v7868 = vsel %vm2050, %v7821, %v7823
    %v7869 = vsel %vm2050, %v7823, %v7825
    %v7870 = vsel %vm2050, %v7825, %v7827
    %v7871 = vsel %vm2050, %v7827, %v7829
    %v7872 = vsel %vm2050, %v7829, %v7831
    %v7873 = vsel %vm2050, %v7833, %v7835
    %v7874 = vsel %vm2050, %v7835, %v7837
    %v7875 = vsel %vm2050, %v7837, %v7839
    %v7876 = vsel %vm2050, %v7839, %v7841
    %v7877 = vsel %vm2050, %v7841, %v7843
    %v7878 = vsel %vm2050, %v7845, %v7847
    %v7879 = vsel %vm2050, %v7847, %v7849
    %v7880 = vsel %vm2050, %v7849, %v7851
    %v7881 = vsel %vm2050, %v7851, %v7853
    %v7882 = vsel %vm2050, %v7853, %v7855
    %v7883 = vsel %vm2050, %v7857, %v7859
    %v7884 = vsel %vm2050, %v7859, %v7861
    %v7885 = vsel %vm2050, %v7861, %v7863
    %v7886 = vsel %vm2050, %v7863, %v7865
    %v7887 = vsel %vm2050, %v7865, %v7867
    %v7908 = vmax.f32 %v7752, %v7868
    %v7909 = vmax.f32 %v7753, %v7869
    %v7910 = vmax.f32 %v7754, %v7870
    %v7911 = vmax.f32 %v7755, %v7871
    %v7912 = vmax.f32 %v7756, %v7872
    %v7913 = vmax.f32 %v7757, %v7873
    %v7914 = vmax.f32 %v7758, %v7874
    %v7915 = vmax.f32 %v7759, %v7875
    %v7916 = vmax.f32 %v7760, %v7876
    %v7917 = vmax.f32 %v7761, %v7877
    %v7918 = vmax.f32 %v7762, %v7878
    %v7919 = vmax.f32 %v7763, %v7879
    %v7920 = vmax.f32 %v7764, %v7880
    %v7921 = vmax.f32 %v7765, %v7881
    %v7922 = vmax.f32 %v7766, %v7882
    %v7923 = vmax.f32 %v7767, %v7883
    %v7924 = vmax.f32 %v7768, %v7884
    %v7925 = vmax.f32 %v7769, %v7885
    %v7926 = vmax.f32 %v7770, %v7886
    %v7927 = vmax.f32 %v7771, %v7887
    %v7928 = vld [vmem:[%s5] sm:$0xff]
    %v7929 = vld [vmem:[%s5 + $0x8] sm:$0xff]
    %v7930 = vld [vmem:[%s5 + $0x10] sm:$0xff]
    %v7931 = vld [vmem:[%s5 + $0x18] sm:$0xff]
    %v7932 = vld [vmem:[%s5 + $0x20] sm:$0xff]
    %v7933 = vld [vmem:[%s5 + $0x28] sm:$0xff]
    %v7934 = vld [vmem:[%s5 + $0x30] sm:$0xff]
    %v7935 = vld [vmem:[%s5 + $0x38] sm:$0xff]
    %v7936 = vld [vmem:[%s5 + $0x40] sm:$0xff]
    %v7937 = vld [vmem:[%s5 + $0x48] sm:$0xff]
    %v7938 = vld [vmem:[%s5 + $0x50] sm:$0xff]
    %v7939 = vld [vmem:[%s5 + $0x58] sm:$0xff]
    %v7940 = vld [vmem:[%s5 + $0x60] sm:$0xff]
    %v7941 = vld [vmem:[%s5 + $0x68] sm:$0xff]
    %v7942 = vld [vmem:[%s5 + $0x70] sm:$0xff]
    %v7943 = vld [vmem:[%s5 + $0x78] sm:$0xff]
    %v7944 = vld [vmem:[%s5 + $0x80] sm:$0xff]
    %v7945 = vld [vmem:[%s5 + $0x88] sm:$0xff]
    %v7946 = vld [vmem:[%s5 + $0x90] sm:$0xff]
    %v7947 = vld [vmem:[%s5 + $0x98] sm:$0xff]
    %v7948 = vld [vmem:[%s5 + $0xa0] sm:$0xff]
    %v7949 = vld [vmem:[%s5 + $0xa8] sm:$0xff]
    %v7950 = vld [vmem:[%s5 + $0xb0] sm:$0xff]
    %v7951 = vld [vmem:[%s5 + $0xb8] sm:$0xff]
    %v7952 = vld [vmem:[%s5 + $0xc0] sm:$0xff]
    %v7953 = vld [vmem:[%s5 + $0xc8] sm:$0xff]
    %v7954 = vld [vmem:[%s5 + $0xd0] sm:$0xff]
    %v7955 = vld [vmem:[%s5 + $0xd8] sm:$0xff]
    %v7956 = vld [vmem:[%s5 + $0xe0] sm:$0xff]
    %v7957 = vld [vmem:[%s5 + $0xe8] sm:$0xff]
    %v7958 = vld [vmem:[%s5 + $0xf0] sm:$0xff]
    %v7959 = vld [vmem:[%s5 + $0xf8] sm:$0xff]
    %v7960 = vld [vmem:[%s5 + $0x100] sm:$0xff]
    %v7961 = vld [vmem:[%s5 + $0x108] sm:$0xff]
    %v7962 = vld [vmem:[%s5 + $0x110] sm:$0xff]
    %v7963 = vld [vmem:[%s5 + $0x118] sm:$0xff]
    %v7964 = vld [vmem:[%s5 + $0x120] sm:$0xff]
    %v7965 = vld [vmem:[%s5 + $0x128] sm:$0xff]
    %v7966 = vld [vmem:[%s5 + $0x130] sm:$0xff]
    %v7967 = vld [vmem:[%s5 + $0x138] sm:$0xff]
    %v7968 = vld [vmem:[%s5 + $0x140] sm:$0xff]
    %v7969 = vld [vmem:[%s5 + $0x148] sm:$0xff]
    %v7970 = vld [vmem:[%s5 + $0x150] sm:$0xff]
    %v7971 = vld [vmem:[%s5 + $0x158] sm:$0xff]
    %v7972 = vld [vmem:[%s5 + $0x160] sm:$0xff]
    %v7973 = vld [vmem:[%s5 + $0x168] sm:$0xff]
    %v7974 = vld [vmem:[%s5 + $0x170] sm:$0xff]
    %v7975 = vld [vmem:[%s5 + $0x178] sm:$0xff]
    %v7976 = vld [vmem:[%s5 + $0x180] sm:$0xff]
    %v7977 = vld [vmem:[%s5 + $0x188] sm:$0xff]
    %v7978 = vld [vmem:[%s5 + $0x190] sm:$0xff]
    %v7979 = vld [vmem:[%s5 + $0x198] sm:$0xff]
    %v7980 = vld [vmem:[%s5 + $0x1a0] sm:$0xff]
    %v7981 = vld [vmem:[%s5 + $0x1a8] sm:$0xff]
    %v7982 = vld [vmem:[%s5 + $0x1b0] sm:$0xff]
    %v7983 = vld [vmem:[%s5 + $0x1b8] sm:$0xff]
    %v7984 = vld [vmem:[%s5 + $0x1c0] sm:$0xff]
    %v7985 = vld [vmem:[%s5 + $0x1c8] sm:$0xff]
    %v7986 = vld [vmem:[%s5 + $0x1d0] sm:$0xff]
    %v7987 = vld [vmem:[%s5 + $0x1d8] sm:$0xff]
    %v7988 = vld [vmem:[%s5 + $0x1e0] sm:$0xff]
    %v7989 = vld [vmem:[%s5 + $0x1e8] sm:$0xff]
    %v7990 = vld [vmem:[%s5 + $0x1f0] sm:$0xff]
    %v7991 = vld [vmem:[%s5 + $0x1f8] sm:$0xff]
    %v7992 = vld [vmem:[%s5 + $0x200] sm:$0xff]
    %v7993 = vld [vmem:[%s5 + $0x208] sm:$0xff]
    %v7994 = vld [vmem:[%s5 + $0x210] sm:$0xff]
    %v7995 = vld [vmem:[%s5 + $0x218] sm:$0xff]
    %v7996 = vld [vmem:[%s5 + $0x220] sm:$0xff]
    %v7997 = vld [vmem:[%s5 + $0x228] sm:$0xff]
    %v7998 = vld [vmem:[%s5 + $0x230] sm:$0xff]
    %v7999 = vld [vmem:[%s5 + $0x238] sm:$0xff]
    %v8000 = vld [vmem:[%s5 + $0x240] sm:$0xff]
    %v8001 = vld [vmem:[%s5 + $0x248] sm:$0xff]
    %v8002 = vld [vmem:[%s5 + $0x250] sm:$0xff]
    %v8003 = vld [vmem:[%s5 + $0x258] sm:$0xff]
    %v8004 = vld [vmem:[%s5 + $0x260] sm:$0xff]
    %v8005 = vld [vmem:[%s5 + $0x268] sm:$0xff]
    %v8006 = vld [vmem:[%s5 + $0x270] sm:$0xff]
    %v8007 = vld [vmem:[%s5 + $0x278] sm:$0xff]
    %8008 = vmatpush.msra.mxu0 %v7943
    %8009 = vmatpush.msra.mxu0 %v7942
    %8010 = vmatpush.msra.mxu0 %v7941
    %8011 = vmatpush.msra.mxu0 %v7940
    %8012 = vmatpush.msra.mxu0 %v7939
    %8013 = vmatpush.msra.mxu0 %v7938
    %8014 = vmatpush.msra.mxu0 %v7937
    %8015 = vmatpush.msra.mxu0 %v7936
    %8016 = vmatpush.msra.mxu0 %v7935
    %8017 = vmatpush.msra.mxu0 %v7934
    %8018 = vmatpush.msra.mxu0 %v7933
    %8019 = vmatpush.msra.mxu0 %v7932
    %8020 = vmatpush.msra.mxu0 %v7931
    %8021 = vmatpush.msra.mxu0 %v7930
    %8022 = vmatpush.msra.mxu0 %v7929
    %8023 = vmatpush.msra.mxu0 %v7928
    %8024 = vmatmul.f32.gmra.mxu0 %v7908
    %v8025 = vpop.f32.mrf.mxu0
    %v8026 = vadd.f32 0.0, %v8025
    %8027 = vmatmul.f32.gmra.mxu0 %v7918
    %v8028 = vpop.f32.mrf.mxu0
    %v8029 = vadd.f32 0.0, %v8028
    %8030 = vdwg.mxu0
    %8031 = vmatpush.msra.mxu0 %v7959
    %8032 = vmatpush.msra.mxu0 %v7958
    %8033 = vmatpush.msra.mxu0 %v7957
    %8034 = vmatpush.msra.mxu0 %v7956
    %8035 = vmatpush.msra.mxu0 %v7955
    %8036 = vmatpush.msra.mxu0 %v7954
    %8037 = vmatpush.msra.mxu0 %v7953
    %8038 = vmatpush.msra.mxu0 %v7952
    %8039 = vmatpush.msra.mxu0 %v7951
    %8040 = vmatpush.msra.mxu0 %v7950
    %8041 = vmatpush.msra.mxu0 %v7949
    %8042 = vmatpush.msra.mxu0 %v7948
    %8043 = vmatpush.msra.mxu0 %v7947
    %8044 = vmatpush.msra.mxu0 %v7946
    %8045 = vmatpush.msra.mxu0 %v7945
    %8046 = vmatpush.msra.mxu0 %v7944
    %8047 = vmatmul.f32.gmra.mxu0 %v7909
    %v8048 = vpop.f32.mrf.mxu0
    %v8049 = vadd.f32 %v8026, %v8048
    %8050 = vmatmul.f32.gmra.mxu0 %v7919
    %v8051 = vpop.f32.mrf.mxu0
    %v8052 = vadd.f32 %v8029, %v8051
    %8053 = vdwg.mxu0
    %8054 = vmatpush.msra.mxu0 %v7975
    %8055 = vmatpush.msra.mxu0 %v7974
    %8056 = vmatpush.msra.mxu0 %v7973
    %8057 = vmatpush.msra.mxu0 %v7972
    %8058 = vmatpush.msra.mxu0 %v7971
    %8059 = vmatpush.msra.mxu0 %v7970
    %8060 = vmatpush.msra.mxu0 %v7969
    %8061 = vmatpush.msra.mxu0 %v7968
    %8062 = vmatpush.msra.mxu0 %v7967
    %8063 = vmatpush.msra.mxu0 %v7966
    %8064 = vmatpush.msra.mxu0 %v7965
    %8065 = vmatpush.msra.mxu0 %v7964
    %8066 = vmatpush.msra.mxu0 %v7963
    %8067 = vmatpush.msra.mxu0 %v7962
    %8068 = vmatpush.msra.mxu0 %v7961
    %8069 = vmatpush.msra.mxu0 %v7960
    %8070 = vmatmul.f32.gmra.mxu0 %v7910
    %v8071 = vpop.f32.mrf.mxu0
    %v8072 = vadd.f32 %v8049, %v8071
    %8073 = vmatmul.f32.gmra.mxu0 %v7920
    %v8074 = vpop.f32.mrf.mxu0
    %v8075 = vadd.f32 %v8052, %v8074
    %8076 = vdwg.mxu0
    %8077 = vmatpush.msra.mxu0 %v7991
    %8078 = vmatpush.msra.mxu0 %v7990
    %8079 = vmatpush.msra.mxu0 %v7989
    %8080 = vmatpush.msra.mxu0 %v7988
    %8081 = vmatpush.msra.mxu0 %v7987
    %8082 = vmatpush.msra.mxu0 %v7986
    %8083 = vmatpush.msra.mxu0 %v7985
    %8084 = vmatpush.msra.mxu0 %v7984
    %8085 = vmatpush.msra.mxu0 %v7983
    %8086 = vmatpush.msra.mxu0 %v7982
    %8087 = vmatpush.msra.mxu0 %v7981
    %8088 = vmatpush.msra.mxu0 %v7980
    %8089 = vmatpush.msra.mxu0 %v7979
    %8090 = vmatpush.msra.mxu0 %v7978
    %8091 = vmatpush.msra.mxu0 %v7977
    %8092 = vmatpush.msra.mxu0 %v7976
    %8093 = vmatmul.f32.gmra.mxu0 %v7911
    %v8094 = vpop.f32.mrf.mxu0
    %v8095 = vadd.f32 %v8072, %v8094
    %8096 = vmatmul.f32.gmra.mxu0 %v7921
    %v8097 = vpop.f32.mrf.mxu0
    %v8098 = vadd.f32 %v8075, %v8097
    %8099 = vdwg.mxu0
    %8100 = vmatpush.msra.mxu0 %v8007
    %8101 = vmatpush.msra.mxu0 %v8006
    %8102 = vmatpush.msra.mxu0 %v8005
    %8103 = vmatpush.msra.mxu0 %v8004
    %8104 = vmatpush.msra.mxu0 %v8003
    %8105 = vmatpush.msra.mxu0 %v8002
    %8106 = vmatpush.msra.mxu0 %v8001
    %8107 = vmatpush.msra.mxu0 %v8000
    %8108 = vmatpush.msra.mxu0 %v7999
    %8109 = vmatpush.msra.mxu0 %v7998
    %8110 = vmatpush.msra.mxu0 %v7997
    %8111 = vmatpush.msra.mxu0 %v7996
    %8112 = vmatpush.msra.mxu0 %v7995
    %8113 = vmatpush.msra.mxu0 %v7994
    %8114 = vmatpush.msra.mxu0 %v7993
    %8115 = vmatpush.msra.mxu0 %v7992
    %8116 = vmatmul.f32.gmra.mxu0 %v7912
    %v8117 = vpop.f32.mrf.mxu0
    %v8118 = vadd.f32 %v8095, %v8117
    %8119 = vmatmul.f32.gmra.mxu0 %v7922
    %v8120 = vpop.f32.mrf.mxu0
    %v8121 = vadd.f32 %v8098, %v8120
    %8122 = vdwg.mxu0
    %vm8123 = vcmask 196608
    %8124 = vst.msk [vmem:[#allocation4] sm:$0x1] %vm8123, %v8118
    %v8126 = vrot.slane %v8118, 7
    %v8127 = vrot.slane %v8126, 2
    %8128 = vrot.lane.b32.xlu0 %v8127, 25
    %v8129 = vpop.permute.xlu0 %8128
    %vm8131 = vcmask 401608
    %8132 = vst.msk [vmem:[#allocation4] sm:$0x1] %vm8131, %v8129
    %8133 = vst.sshfl [vmem:[#allocation1] sm:$0xff pattern:$0x73625140] %v8118
    %s8134 = scalar_lea.vmem [#allocation1], 1
    %v8135 = vld [vmem:[%s8134] ss:$4 sm:$0xff]
    %8136 = vrot.lane.b32.xlu0 %v8135, 50
    %v8137 = vpop.permute.xlu0 %8136
    %vm8139 = vcmask 606608
    %8140 = vst.msk [vmem:[#allocation4] sm:$0x1] %vm8139, %v8137
    %8141 = vst.sshfl [vmem:[#allocation1] sm:$0xff pattern:$0x73625140] %v8118
    %s8142 = scalar_lea.vmem [#allocation1], 1
    %v8143 = vld [vmem:[%s8142] ss:$4 sm:$0xff]
    %v8144 = vrot.slane %v8143, 7
    %v8145 = vrot.slane %v8144, 2
    %8146 = vrot.lane.b32.xlu0 %v8145, 75
    %v8147 = vpop.permute.xlu0 %8146
    %vm8149 = vcmask 811608
    %8150 = vst.msk [vmem:[#allocation4] sm:$0x1] %vm8149, %v8147
    %8151 = vst.sshfl [vmem:[#allocation1] sm:$0xff pattern:$0x73625140] %v8118
    %s8152 = scalar_lea.vmem [#allocation1], 2
    %v8153 = vld [vmem:[%s8152] ss:$4 sm:$0xff]
    %8154 = vrot.lane.b32.xlu0 %v8153, 100
    %v8155 = vpop.permute.xlu0 %8154
    %vm8157 = vcmask 1016608
    %8158 = vst.msk [vmem:[#allocation4] sm:$0x1] %vm8157, %v8155
    %8159 = vst.sshfl [vmem:[#allocation1] sm:$0xff pattern:$0x73625140] %v8118
    %s8160 = scalar_lea.vmem [#allocation1], 2
    %v8161 = vld [vmem:[%s8160] ss:$4 sm:$0xff]
    %v8162 = vrot.slane %v8161, 7
    %v8163 = vrot.slane %v8162, 2
    %8164 = vrot.lane.b32.xlu0 %v8163, 125
    %v8165 = vpop.permute.xlu0 %8164
    %v8166 = vrot.slane %v8165, 6
    %v8167 = vsel %vm687, %v8166, %v8165
    %vm8169 = vcmask 1041384
    %vm8170 = vcmask 174082
    %vm8171 = vmor %vm8170, %vm8169
    %8172 = vst.msk [vmem:[#allocation4] sm:$0x5] %vm8171, %v8167
    %8173 = vst.sshfl [vmem:[#allocation1] sm:$0xff pattern:$0x73625140] %v8118
    %s8174 = scalar_lea.vmem [#allocation1], 3
    %v8175 = vld [vmem:[%s8174] ss:$4 sm:$0xff]
    %8176 = vrot.lane.b32.xlu0 %v8175, 22
    %v8177 = vpop.permute.xlu0 %8176
    %vm8179 = vcmask 377008
    %8180 = vst.msk [vmem:[#allocation4 + $0x2] sm:$0x1] %vm8179, %v8177
    %8181 = vst.sshfl [vmem:[#allocation1] sm:$0xff pattern:$0x73625140] %v8118
    %s8182 = scalar_lea.vmem [#allocation1], 3
    %v8183 = vld [vmem:[%s8182] ss:$4 sm:$0xff]
    %v8184 = vrot.slane %v8183, 7
    %v8185 = vrot.slane %v8184, 2
    %8186 = vrot.lane.b32.xlu0 %v8185, 47
    %v8187 = vpop.permute.xlu0 %8186
    %vm8189 = vcmask 582008
    %8190 = vst.msk [vmem:[#allocation4 + $0x2] sm:$0x1] %vm8189, %v8187
    %8192 = vrot.lane.b32.xlu0 %v8121, 72
    %v8193 = vpop.permute.xlu0 %8192
    %vm8195 = vcmask 787008
    %8196 = vst.msk [vmem:[#allocation4 + $0x2] sm:$0x1] %vm8195, %v8193
    %v8197 = vrot.slane %v8121, 7
    %v8198 = vrot.slane %v8197, 2
    %8199 = vrot.lane.b32.xlu0 %v8198, 97
    %v8200 = vpop.permute.xlu0 %8199
    %vm8202 = vcmask 992008
    %8203 = vst.msk [vmem:[#allocation4 + $0x2] sm:$0x1] %vm8202, %v8200
    %v8204 = vld [vmem:[%s5] sm:$0xff]
    %v8205 = vld [vmem:[%s5 + $0x8] sm:$0xff]
    %v8206 = vld [vmem:[%s5 + $0x10] sm:$0xff]
    %v8207 = vld [vmem:[%s5 + $0x18] sm:$0xff]
    %v8208 = vld [vmem:[%s5 + $0x20] sm:$0xff]
    %v8209 = vld [vmem:[%s5 + $0x28] sm:$0xff]
    %v8210 = vld [vmem:[%s5 + $0x30] sm:$0xff]
    %v8211 = vld [vmem:[%s5 + $0x38] sm:$0xff]
    %v8212 = vld [vmem:[%s5 + $0x40] sm:$0xff]
    %v8213 = vld [vmem:[%s5 + $0x48] sm:$0xff]
    %v8214 = vld [vmem:[%s5 + $0x50] sm:$0xff]
    %v8215 = vld [vmem:[%s5 + $0x58] sm:$0xff]
    %v8216 = vld [vmem:[%s5 + $0x60] sm:$0xff]
    %v8217 = vld [vmem:[%s5 + $0x68] sm:$0xff]
    %v8218 = vld [vmem:[%s5 + $0x70] sm:$0xff]
    %v8219 = vld [vmem:[%s5 + $0x78] sm:$0xff]
    %v8220 = vld [vmem:[%s5 + $0x80] sm:$0xff]
    %v8221 = vld [vmem:[%s5 + $0x88] sm:$0xff]
    %v8222 = vld [vmem:[%s5 + $0x90] sm:$0xff]
    %v8223 = vld [vmem:[%s5 + $0x98] sm:$0xff]
    %v8224 = vld [vmem:[%s5 + $0xa0] sm:$0xff]
    %v8225 = vld [vmem:[%s5 + $0xa8] sm:$0xff]
    %v8226 = vld [vmem:[%s5 + $0xb0] sm:$0xff]
    %v8227 = vld [vmem:[%s5 + $0xb8] sm:$0xff]
    %v8228 = vld [vmem:[%s5 + $0xc0] sm:$0xff]
    %v8229 = vld [vmem:[%s5 + $0xc8] sm:$0xff]
    %v8230 = vld [vmem:[%s5 + $0xd0] sm:$0xff]
    %v8231 = vld [vmem:[%s5 + $0xd8] sm:$0xff]
    %v8232 = vld [vmem:[%s5 + $0xe0] sm:$0xff]
    %v8233 = vld [vmem:[%s5 + $0xe8] sm:$0xff]
    %v8234 = vld [vmem:[%s5 + $0xf0] sm:$0xff]
    %v8235 = vld [vmem:[%s5 + $0xf8] sm:$0xff]
    %v8236 = vld [vmem:[%s5 + $0x100] sm:$0xff]
    %v8237 = vld [vmem:[%s5 + $0x108] sm:$0xff]
    %v8238 = vld [vmem:[%s5 + $0x110] sm:$0xff]
    %v8239 = vld [vmem:[%s5 + $0x118] sm:$0xff]
    %v8240 = vld [vmem:[%s5 + $0x120] sm:$0xff]
    %v8241 = vld [vmem:[%s5 + $0x128] sm:$0xff]
    %v8242 = vld [vmem:[%s5 + $0x130] sm:$0xff]
    %v8243 = vld [vmem:[%s5 + $0x138] sm:$0xff]
    %v8244 = vld [vmem:[%s5 + $0x140] sm:$0xff]
    %v8245 = vld [vmem:[%s5 + $0x148] sm:$0xff]
    %v8246 = vld [vmem:[%s5 + $0x150] sm:$0xff]
    %v8247 = vld [vmem:[%s5 + $0x158] sm:$0xff]
    %v8248 = vld [vmem:[%s5 + $0x160] sm:$0xff]
    %v8249 = vld [vmem:[%s5 + $0x168] sm:$0xff]
    %v8250 = vld [vmem:[%s5 + $0x170] sm:$0xff]
    %v8251 = vld [vmem:[%s5 + $0x178] sm:$0xff]
    %v8252 = vld [vmem:[%s5 + $0x180] sm:$0xff]
    %v8253 = vld [vmem:[%s5 + $0x188] sm:$0xff]
    %v8254 = vld [vmem:[%s5 + $0x190] sm:$0xff]
    %v8255 = vld [vmem:[%s5 + $0x198] sm:$0xff]
    %v8256 = vld [vmem:[%s5 + $0x1a0] sm:$0xff]
    %v8257 = vld [vmem:[%s5 + $0x1a8] sm:$0xff]
    %v8258 = vld [vmem:[%s5 + $0x1b0] sm:$0xff]
    %v8259 = vld [vmem:[%s5 + $0x1b8] sm:$0xff]
    %v8260 = vld [vmem:[%s5 + $0x1c0] sm:$0xff]
    %v8261 = vld [vmem:[%s5 + $0x1c8] sm:$0xff]
    %v8262 = vld [vmem:[%s5 + $0x1d0] sm:$0xff]
    %v8263 = vld [vmem:[%s5 + $0x1d8] sm:$0xff]
    %v8264 = vld [vmem:[%s5 + $0x1e0] sm:$0xff]
    %v8265 = vld [vmem:[%s5 + $0x1e8] sm:$0xff]
    %v8266 = vld [vmem:[%s5 + $0x1f0] sm:$0xff]
    %v8267 = vld [vmem:[%s5 + $0x1f8] sm:$0xff]
    %v8268 = vld [vmem:[%s5 + $0x200] sm:$0xff]
    %v8269 = vld [vmem:[%s5 + $0x208] sm:$0xff]
    %v8270 = vld [vmem:[%s5 + $0x210] sm:$0xff]
    %v8271 = vld [vmem:[%s5 + $0x218] sm:$0xff]
    %v8272 = vld [vmem:[%s5 + $0x220] sm:$0xff]
    %v8273 = vld [vmem:[%s5 + $0x228] sm:$0xff]
    %v8274 = vld [vmem:[%s5 + $0x230] sm:$0xff]
    %v8275 = vld [vmem:[%s5 + $0x238] sm:$0xff]
    %v8276 = vld [vmem:[%s5 + $0x240] sm:$0xff]
    %v8277 = vld [vmem:[%s5 + $0x248] sm:$0xff]
    %v8278 = vld [vmem:[%s5 + $0x250] sm:$0xff]
    %v8279 = vld [vmem:[%s5 + $0x258] sm:$0xff]
    %v8280 = vld [vmem:[%s5 + $0x260] sm:$0xff]
    %v8281 = vld [vmem:[%s5 + $0x268] sm:$0xff]
    %v8282 = vld [vmem:[%s5 + $0x270] sm:$0xff]
    %v8283 = vld [vmem:[%s5 + $0x278] sm:$0xff]
    %8284 = vmatpush.msra.mxu0 %v8219
    %8285 = vmatpush.msra.mxu0 %v8218
    %8286 = vmatpush.msra.mxu0 %v8217
    %8287 = vmatpush.msra.mxu0 %v8216
    %8288 = vmatpush.msra.mxu0 %v8215
    %8289 = vmatpush.msra.mxu0 %v8214
    %8290 = vmatpush.msra.mxu0 %v8213
    %8291 = vmatpush.msra.mxu0 %v8212
    %8292 = vmatpush.msra.mxu0 %v8211
    %8293 = vmatpush.msra.mxu0 %v8210
    %8294 = vmatpush.msra.mxu0 %v8209
    %8295 = vmatpush.msra.mxu0 %v8208
    %8296 = vmatpush.msra.mxu0 %v8207
    %8297 = vmatpush.msra.mxu0 %v8206
    %8298 = vmatpush.msra.mxu0 %v8205
    %8299 = vmatpush.msra.mxu0 %v8204
    %8300 = vmatmul.f32.gmra.mxu0 %v7913
    %v8301 = vpop.f32.mrf.mxu0
    %v8302 = vadd.f32 0.0, %v8301
    %8303 = vmatmul.f32.gmra.mxu0 %v7923
    %v8304 = vpop.f32.mrf.mxu0
    %v8305 = vadd.f32 0.0, %v8304
    %8306 = vdwg.mxu0
    %8307 = vmatpush.msra.mxu0 %v8235
    %8308 = vmatpush.msra.mxu0 %v8234
    %8309 = vmatpush.msra.mxu0 %v8233
    %8310 = vmatpush.msra.mxu0 %v8232
    %8311 = vmatpush.msra.mxu0 %v8231
    %8312 = vmatpush.msra.mxu0 %v8230
    %8313 = vmatpush.msra.mxu0 %v8229
    %8314 = vmatpush.msra.mxu0 %v8228
    %8315 = vmatpush.msra.mxu0 %v8227
    %8316 = vmatpush.msra.mxu0 %v8226
    %8317 = vmatpush.msra.mxu0 %v8225
    %8318 = vmatpush.msra.mxu0 %v8224
    %8319 = vmatpush.msra.mxu0 %v8223
    %8320 = vmatpush.msra.mxu0 %v8222
    %8321 = vmatpush.msra.mxu0 %v8221
    %8322 = vmatpush.msra.mxu0 %v8220
    %8323 = vmatmul.f32.gmra.mxu0 %v7914
    %v8324 = vpop.f32.mrf.mxu0
    %v8325 = vadd.f32 %v8302, %v8324
    %8326 = vmatmul.f32.gmra.mxu0 %v7924
    %v8327 = vpop.f32.mrf.mxu0
    %v8328 = vadd.f32 %v8305, %v8327
    %8329 = vdwg.mxu0
    %8330 = vmatpush.msra.mxu0 %v8251
    %8331 = vmatpush.msra.mxu0 %v8250
    %8332 = vmatpush.msra.mxu0 %v8249
    %8333 = vmatpush.msra.mxu0 %v8248
    %8334 = vmatpush.msra.mxu0 %v8247
    %8335 = vmatpush.msra.mxu0 %v8246
    %8336 = vmatpush.msra.mxu0 %v8245
    %8337 = vmatpush.msra.mxu0 %v8244
    %8338 = vmatpush.msra.mxu0 %v8243
    %8339 = vmatpush.msra.mxu0 %v8242
    %8340 = vmatpush.msra.mxu0 %v8241
    %8341 = vmatpush.msra.mxu0 %v8240
    %8342 = vmatpush.msra.mxu0 %v8239
    %8343 = vmatpush.msra.mxu0 %v8238
    %8344 = vmatpush.msra.mxu0 %v8237
    %8345 = vmatpush.msra.mxu0 %v8236
    %8346 = vmatmul.f32.gmra.mxu0 %v7915
    %v8347 = vpop.f32.mrf.mxu0
    %v8348 = vadd.f32 %v8325, %v8347
    %8349 = vmatmul.f32.gmra.mxu0 %v7925
    %v8350 = vpop.f32.mrf.mxu0
    %v8351 = vadd.f32 %v8328, %v8350
    %8352 = vdwg.mxu0
    %8353 = vmatpush.msra.mxu0 %v8267
    %8354 = vmatpush.msra.mxu0 %v8266
    %8355 = vmatpush.msra.mxu0 %v8265
    %8356 = vmatpush.msra.mxu0 %v8264
    %8357 = vmatpush.msra.mxu0 %v8263
    %8358 = vmatpush.msra.mxu0 %v8262
    %8359 = vmatpush.msra.mxu0 %v8261
    %8360 = vmatpush.msra.mxu0 %v8260
    %8361 = vmatpush.msra.mxu0 %v8259
    %8362 = vmatpush.msra.mxu0 %v8258
    %8363 = vmatpush.msra.mxu0 %v8257
    %8364 = vmatpush.msra.mxu0 %v8256
    %8365 = vmatpush.msra.mxu0 %v8255
    %8366 = vmatpush.msra.mxu0 %v8254
    %8367 = vmatpush.msra.mxu0 %v8253
    %8368 = vmatpush.msra.mxu0 %v8252
    %8369 = vmatmul.f32.gmra.mxu0 %v7916
    %v8370 = vpop.f32.mrf.mxu0
    %v8371 = vadd.f32 %v8348, %v8370
    %8372 = vmatmul.f32.gmra.mxu0 %v7926
    %v8373 = vpop.f32.mrf.mxu0
    %v8374 = vadd.f32 %v8351, %v8373
    %8375 = vdwg.mxu0
    %8376 = vmatpush.msra.mxu0 %v8283
    %8377 = vmatpush.msra.mxu0 %v8282
    %8378 = vmatpush.msra.mxu0 %v8281
    %8379 = vmatpush.msra.mxu0 %v8280
    %8380 = vmatpush.msra.mxu0 %v8279
    %8381 = vmatpush.msra.mxu0 %v8278
    %8382 = vmatpush.msra.mxu0 %v8277
    %8383 = vmatpush.msra.mxu0 %v8276
    %8384 = vmatpush.msra.mxu0 %v8275
    %8385 = vmatpush.msra.mxu0 %v8274
    %8386 = vmatpush.msra.mxu0 %v8273
    %8387 = vmatpush.msra.mxu0 %v8272
    %8388 = vmatpush.msra.mxu0 %v8271
    %8389 = vmatpush.msra.mxu0 %v8270
    %8390 = vmatpush.msra.mxu0 %v8269
    %8391 = vmatpush.msra.mxu0 %v8268
    %8392 = vmatmul.f32.gmra.mxu0 %v7917
    %v8393 = vpop.f32.mrf.mxu0
    %v8394 = vadd.f32 %v8371, %v8393
    %8395 = vmatmul.f32.gmra.mxu0 %v7927
    %v8396 = vpop.f32.mrf.mxu0
    %v8397 = vadd.f32 %v8374, %v8396
    %8398 = vdwg.mxu0
    %8399 = vst.msk [vmem:[#allocation4 + $0x1] sm:$0x1] %vm8123, %v8394
    %v8401 = vrot.slane %v8394, 7
    %v8402 = vrot.slane %v8401, 2
    %8403 = vrot.lane.b32.xlu0 %v8402, 25
    %v8404 = vpop.permute.xlu0 %8403
    %8406 = vst.msk [vmem:[#allocation4 + $0x1] sm:$0x1] %vm8131, %v8404
    %8407 = vst.sshfl [vmem:[#allocation1] sm:$0xff pattern:$0x73625140] %v8394
    %s8408 = scalar_lea.vmem [#allocation1], 1
    %v8409 = vld [vmem:[%s8408] ss:$4 sm:$0xff]
    %8410 = vrot.lane.b32.xlu0 %v8409, 50
    %v8411 = vpop.permute.xlu0 %8410
    %8413 = vst.msk [vmem:[#allocation4 + $0x1] sm:$0x1] %vm8139, %v8411
    %8414 = vst.sshfl [vmem:[#allocation1] sm:$0xff pattern:$0x73625140] %v8394
    %s8415 = scalar_lea.vmem [#allocation1], 1
    %v8416 = vld [vmem:[%s8415] ss:$4 sm:$0xff]
    %v8417 = vrot.slane %v8416, 7
    %v8418 = vrot.slane %v8417, 2
    %8419 = vrot.lane.b32.xlu0 %v8418, 75
    %v8420 = vpop.permute.xlu0 %8419
    %8422 = vst.msk [vmem:[#allocation4 + $0x1] sm:$0x1] %vm8149, %v8420
    %8423 = vst.sshfl [vmem:[#allocation1] sm:$0xff pattern:$0x73625140] %v8394
    %s8424 = scalar_lea.vmem [#allocation1], 2
    %v8425 = vld [vmem:[%s8424] ss:$4 sm:$0xff]
    %8426 = vrot.lane.b32.xlu0 %v8425, 100
    %v8427 = vpop.permute.xlu0 %8426
    %8429 = vst.msk [vmem:[#allocation4 + $0x1] sm:$0x1] %vm8157, %v8427
    %8430 = vst.sshfl [vmem:[#allocation1] sm:$0xff pattern:$0x73625140] %v8394
    %s8431 = scalar_lea.vmem [#allocation1], 2
    %v8432 = vld [vmem:[%s8431] ss:$4 sm:$0xff]
    %v8433 = vrot.slane %v8432, 7
    %v8434 = vrot.slane %v8433, 2
    %8435 = vrot.lane.b32.xlu0 %v8434, 125
    %v8436 = vpop.permute.xlu0 %8435
    %v8437 = vrot.slane %v8436, 6
    %v8438 = vsel %vm687, %v8437, %v8436
    %8440 = vst.msk [vmem:[#allocation4 + $0x1] sm:$0x5] %vm8171, %v8438
    %8441 = vst.sshfl [vmem:[#allocation1] sm:$0xff pattern:$0x73625140] %v8394
    %s8442 = scalar_lea.vmem [#allocation1], 3
    %v8443 = vld [vmem:[%s8442] ss:$4 sm:$0xff]
    %8444 = vrot.lane.b32.xlu0 %v8443, 22
    %v8445 = vpop.permute.xlu0 %8444
    %8447 = vst.msk [vmem:[#allocation4 + $0x3] sm:$0x1] %vm8179, %v8445
    %8448 = vst.sshfl [vmem:[#allocation1] sm:$0xff pattern:$0x73625140] %v8394
    %s8449 = scalar_lea.vmem [#allocation1], 3
    %v8450 = vld [vmem:[%s8449] ss:$4 sm:$0xff]
    %v8451 = vrot.slane %v8450, 7
    %v8452 = vrot.slane %v8451, 2
    %8453 = vrot.lane.b32.xlu0 %v8452, 47
    %v8454 = vpop.permute.xlu0 %8453
    %8456 = vst.msk [vmem:[#allocation4 + $0x3] sm:$0x1] %vm8189, %v8454
    %8458 = vrot.lane.b32.xlu0 %v8397, 72
    %v8459 = vpop.permute.xlu0 %8458
    %8461 = vst.msk [vmem:[#allocation4 + $0x3] sm:$0x1] %vm8195, %v8459
    %v8462 = vrot.slane %v8397, 7
    %v8463 = vrot.slane %v8462, 2
    %8464 = vrot.lane.b32.xlu0 %v8463, 97
    %v8465 = vpop.permute.xlu0 %8464
    %8467 = vst.msk [vmem:[#allocation4 + $0x3] sm:$0x1] %vm8202, %v8465
    %v8468 = vld [vmem:[#allocation4] sm:$0xf]
    %v8469 = vld [vmem:[%s6] sm:$0xff]
    %v8470 = vld [vmem:[%s6 + $0x8] sm:$0xff]
    %v8471 = vld [vmem:[%s6 + $0x10] sm:$0xff]
    %v8472 = vld [vmem:[%s6 + $0x18] sm:$0xff]
    %v8473 = vld [vmem:[%s6 + $0x20] sm:$0xff]
    %v8474 = vld [vmem:[%s6 + $0x28] sm:$0xff]
    %v8475 = vld [vmem:[%s6 + $0x30] sm:$0xff]
    %v8476 = vld [vmem:[%s6 + $0x38] sm:$0xff]
    %v8477 = vld [vmem:[%s6 + $0x40] sm:$0xff]
    %v8478 = vld [vmem:[%s6 + $0x48] sm:$0xff]
    %v8479 = vld [vmem:[%s6 + $0x50] sm:$0xff]
    %v8480 = vld [vmem:[%s6 + $0x58] sm:$0xff]
    %v8481 = vld [vmem:[%s6 + $0x60] sm:$0xff]
    %v8482 = vld [vmem:[%s6 + $0x68] sm:$0xff]
    %v8483 = vld [vmem:[%s6 + $0x70] sm:$0xff]
    %v8484 = vld [vmem:[%s6 + $0x78] sm:$0xff]
    %v8485 = vld [vmem:[%s6 + $0x80] sm:$0xff]
    %v8486 = vld [vmem:[%s6 + $0x88] sm:$0xff]
    %v8487 = vld [vmem:[%s6 + $0x90] sm:$0xff]
    %v8488 = vld [vmem:[%s6 + $0x98] sm:$0xff]
    %v8489 = vld [vmem:[%s6 + $0xa0] sm:$0xff]
    %v8490 = vld [vmem:[%s6 + $0xa8] sm:$0xff]
    %v8491 = vld [vmem:[%s6 + $0xb0] sm:$0xff]
    %v8492 = vld [vmem:[%s6 + $0xb8] sm:$0xff]
    %v8493 = vld [vmem:[%s6 + $0xc0] sm:$0xff]
    %v8494 = vld [vmem:[%s6 + $0xc8] sm:$0xff]
    %v8495 = vld [vmem:[%s6 + $0xd0] sm:$0xff]
    %v8496 = vld [vmem:[%s6 + $0xd8] sm:$0xff]
    %v8497 = vld [vmem:[%s6 + $0xe0] sm:$0xff]
    %v8498 = vld [vmem:[%s6 + $0xe8] sm:$0xff]
    %v8499 = vld [vmem:[%s6 + $0xf0] sm:$0xff]
    %v8500 = vld [vmem:[%s6 + $0xf8] sm:$0x3]
    %v8501 = vld [vmem:[%s7] sm:$0x1]
    %v8503 = vperm.slane %v8501, 0
    %8506 = vst [vmem:[#allocation1] ss:$4 sm:$0xff] %v8468
    %v8507 = vld.sshfl [vmem:[#allocation1] sm:$0xff pattern:$0x73625140]
    %v8508 = vld.sshfl [vmem:[#allocation1 + $0x8] sm:$0xff pattern:$0x73625140]
    %v8510 = vsel %vm6108, %v8508, 0
    %vm8512 = vcmask 1041408
    %v8514 = vsel %vm8512, %v8500, 0
    %8516 = vmatpush.msra.mxu0 %v8484
    %8517 = vmatpush.msra.mxu0 %v8483
    %8518 = vmatpush.msra.mxu0 %v8482
    %8519 = vmatpush.msra.mxu0 %v8481
    %8520 = vmatpush.msra.mxu0 %v8480
    %8521 = vmatpush.msra.mxu0 %v8479
    %8522 = vmatpush.msra.mxu0 %v8478
    %8523 = vmatpush.msra.mxu0 %v8477
    %8524 = vmatpush.msra.mxu0 %v8476
    %8525 = vmatpush.msra.mxu0 %v8475
    %8526 = vmatpush.msra.mxu0 %v8474
    %8527 = vmatpush.msra.mxu0 %v8473
    %8528 = vmatpush.msra.mxu0 %v8472
    %8529 = vmatpush.msra.mxu0 %v8471
    %8530 = vmatpush.msra.mxu0 %v8470
    %8531 = vmatpush.msra.mxu0 %v8469
    %8532 = vmatmul.f32.gmra.mxu0 %v8507
    %v8533 = vpop.f32.mrf.mxu0
    %v8534 = vadd.f32 %v8503, %v8533
    %8535 = vdwg.mxu0
    %8536 = vmatpush.msra.mxu0 %v8514
    %8537 = vmatpush.msra.mxu0 %v8499
    %8538 = vmatpush.msra.mxu0 %v8498
    %8539 = vmatpush.msra.mxu0 %v8497
    %8540 = vmatpush.msra.mxu0 %v8496
    %8541 = vmatpush.msra.mxu0 %v8495
    %8542 = vmatpush.msra.mxu0 %v8494
    %8543 = vmatpush.msra.mxu0 %v8493
    %8544 = vmatpush.msra.mxu0 %v8492
    %8545 = vmatpush.msra.mxu0 %v8491
    %8546 = vmatpush.msra.mxu0 %v8490
    %8547 = vmatpush.msra.mxu0 %v8489
    %8548 = vmatpush.msra.mxu0 %v8488
    %8549 = vmatpush.msra.mxu0 %v8487
    %8550 = vmatpush.msra.mxu0 %v8486
    %8551 = vmatpush.msra.mxu0 %v8485
    %8552 = vmatmul.f32.gmra.mxu0 %v8510
    %v8553 = vpop.f32.mrf.mxu0
    %v8554 = vadd.f32 %v8534, %v8553
    %8555 = vdwg.mxu0
    %v8556 = vmax.f32 %v8554, 0.0
    %v8557 = vld [vmem:[%s8] sm:$0xff]
    %v8558 = vld [vmem:[%s8 + $0x8] sm:$0xff]
    %v8559 = vld [vmem:[%s8 + $0x10] sm:$0xff]
    %v8560 = vld [vmem:[%s8 + $0x18] sm:$0xff]
    %v8561 = vld [vmem:[%s8 + $0x20] sm:$0xff]
    %v8562 = vld [vmem:[%s8 + $0x28] sm:$0xff]
    %v8563 = vld [vmem:[%s8 + $0x30] sm:$0xff]
    %v8564 = vld [vmem:[%s8 + $0x38] sm:$0xff]
    %v8565 = vld [vmem:[%s8 + $0x40] sm:$0xff]
    %v8566 = vld [vmem:[%s8 + $0x48] sm:$0xff]
    %v8567 = vld [vmem:[%s8 + $0x50] sm:$0xff]
    %v8568 = vld [vmem:[%s8 + $0x58] sm:$0xff]
    %v8569 = vld [vmem:[%s8 + $0x60] sm:$0xf]
    %v8570 = vld [vmem:[%s9] sm:$0x1]
    %v8572 = vperm.slane %v8570, 0
    %v8575 = vsel %vm7240, %v8556, 0
    %v8578 = vsel %vm7247, %v8569, 0
    %8580 = vmatpush.msra.mxu0 0.0
    %8581 = vmatpush.msra.mxu0 0.0
    %8582 = vmatpush.msra.mxu0 0.0
    %8583 = vmatpush.msra.mxu0 %v8578
    %8584 = vmatpush.msra.mxu0 %v8568
    %8585 = vmatpush.msra.mxu0 %v8567
    %8586 = vmatpush.msra.mxu0 %v8566
    %8587 = vmatpush.msra.mxu0 %v8565
    %8588 = vmatpush.msra.mxu0 %v8564
    %8589 = vmatpush.msra.mxu0 %v8563
    %8590 = vmatpush.msra.mxu0 %v8562
    %8591 = vmatpush.msra.mxu0 %v8561
    %8592 = vmatpush.msra.mxu0 %v8560
    %8593 = vmatpush.msra.mxu0 %v8559
    %8594 = vmatpush.msra.mxu0 %v8558
    %8595 = vmatpush.msra.mxu0 %v8557
    %8596 = vmatmul.f32.gmra.mxu0 %v8575
    %v8597 = vpop.f32.mrf.mxu0
    %v8598 = vadd.f32 %v8572, %v8597
    %8599 = vdwg.mxu0
    %vm8600 = vcmask 74752
    %v8601 = vsel %vm8600, %v8598, -inf
    %8602 = vmax.xlane.f32.xlu0 %v8601
    %v8603 = vpop.xlane.xlu0 %8602
    %v8604 = vsub.f32 %v8598, %v8603
    %v8605 = vmul.f32 %v8604, 1.442695
    %v8606 = vpow.pop %v8605
    %v8607 = vsel %vm8600, %v8606, 0.0
    %8608 = vadd.xlane.f32.xlu0 %v8607
    %v8609 = vpop.xlane.xlu0 %8608
    %v8610 = vlog2.pop %v8609
    %v8611 = vmul.f32 %v8610, 0.6931472
    %v8612 = vsub.f32 %v8604, %v8611
    %8613 = vst.msk [vmem:[#allocation5] sm:$0x3] %vm8600, %v8612
    // Predicated region
    $region42: #{tpu_custom_call.1} parent=1 // pred_check
      _
    $region43: #{tpu_custom_call.1} parent=1 // pred_check_branch
      %8615 = sbr.rel (0) target = $region45
    $region44: #{tpu_custom_call.1} parent=1 // pred_region
      %8617 = vsyncadd [#allocation6], 0
      %s8619 = sshll.u32 [#allocation5], 4
      %s8620 = int_to_ptr.vmem [resolvable:$true] %s8619
      %s8621 = sshll.u32 %s10, 4
      %s8622 = int_to_ptr.hbm [resolvable:$true] %s8621
      %8624 = dma.vmem_to_hbm [thread:$0]  %s8620, 32, %s8622, [#allocation6]
    $region45: #{tpu_custom_call.1} parent=1 // pred_fallthru
      _
    // Predicated region
    $region46: #{tpu_custom_call.1} parent=1 // pred_check
      _
    $region47: #{tpu_custom_call.1} parent=1 // pred_check_branch
      %8626 = sbr.rel (0) target = $region49
    $region48: #{tpu_custom_call.1} parent=1 // pred_region
      %8628 = dma.done [#allocation6], 32
    $region49: #{tpu_custom_call.1} parent=1 // pred_fallthru
      _
    %8629 = vsyncpa [#allocation6], 1

</llo_original>
